<compile_context>
chip_gen: v7x
topology: tpu7x:2x2x1
jax: 0.10.0
libtpu: 0.0.40
codegen_flags: <defaults>
</compile_context>

<pallas_src>
import functools

import jax
import jax.numpy as jnp
from jax.experimental import pallas as pl
from jax.experimental.pallas import tpu as pltpu

KERNEL_SIZE = 5
NUM_GROUPS = 32
EPS = 1e-5


def _ela_kernel(x_ref, p_ref, pool_ref, eh_ref, ew_ref, grp_ref, o_ref, *,
                H, W, gsize, highest):
    """One (batch, channel-tile) step over the padded flat (lane-dense) spatial axis."""
    K = KERNEL_SIZE
    pad = K // 2
    G = K - 1                                        # zero guard band between the two strips
    L = H + G + W
    prec = jax.lax.Precision.HIGHEST if highest else None

    x2 = x_ref[0]                                    # (ct, HWp), input dtype (no f32 copy of x)
    ct = x2.shape[0]

    params = p_ref[...]                              # (ct, K+2) f32: [conv taps | gamma | beta]
    wt = params[:, :K]
    gamma = params[:, K:K + 1]
    beta = params[:, K + 1:K + 2]

    # --- strip pooling: one lane-dense MXU matmul yields both strips -------------
    pool = pool_ref[...]                             # (HWp, H+W), exact 0/1 entries
    xd = x2.astype(pool.dtype)
    xp = jnp.dot(xd, pool, preferred_element_type=jnp.float32, precision=prec)
    x_h = xp[:, :H] * (1.0 / W)                      # mean over W  -> (ct, H)
    x_w = xp[:, H:] * (1.0 / H)                      # mean over H  -> (ct, W)

    # --- fused strips: [pad 0s | x_h | guard 0s | x_w | pad 0s] ------------------
    zp = jnp.zeros((ct, pad), jnp.float32)
    zg = jnp.zeros((ct, G), jnp.float32)
    xf = jnp.concatenate(
        [zp, x_h.astype(jnp.float32), zg, x_w.astype(jnp.float32), zp], axis=1)

    # --- depthwise 5-tap conv1d ('same', zero pad) on both strips at once --------
    acc = wt[:, 0:1] * xf[:, 0:L]
    for k in range(1, K):                            # static unroll, K = 5
        acc = acc + wt[:, k:k + 1] * xf[:, k:k + L]
    y = acc                                          # (ct, L) f32

    # --- GroupNorm (two-pass variance) + sigmoid, fused over both strips ---------
    grp = grp_ref[...]                               # (ct, ct) f32 block-diagonal "same group"
    n_h = float(gsize * H)
    n_w = float(gsize * W)
    s = jnp.concatenate([jnp.sum(y[:, :H], axis=1, keepdims=True),
                         jnp.sum(y[:, H + G:], axis=1, keepdims=True)], axis=1)
    gs = jnp.dot(grp, s, preferred_element_type=jnp.float32,
                 precision=jax.lax.Precision.HIGHEST)                # (ct, 2) group sums
    mean_h = gs[:, 0:1] * (1.0 / n_h)
    mean_w = gs[:, 1:2] * (1.0 / n_w)
    col = jax.lax.broadcasted_iota(jnp.int32, (ct, L), 1)
    is_h = col < H
    d = y - jnp.where(is_h, mean_h, mean_w)                          # (ct, L)
    ss = jnp.concatenate([jnp.sum(d[:, :H] * d[:, :H], axis=1, keepdims=True),
                          jnp.sum(d[:, H + G:] * d[:, H + G:], axis=1, keepdims=True)],
                         axis=1)
    gss = jnp.dot(grp, ss, preferred_element_type=jnp.float32,
                  precision=jax.lax.Precision.HIGHEST)               # (ct, 2)
    inv_h = jax.lax.rsqrt(gss[:, 0:1] * (1.0 / n_h) + EPS)
    inv_w = jax.lax.rsqrt(gss[:, 1:2] * (1.0 / n_w) + EPS)
    a = jax.nn.sigmoid(gamma * (d * jnp.where(is_h, inv_h, inv_w)) + beta)  # (ct, L)

    # --- expand both strips back to the flat lane-dense axis (MXU), apply --------
    a = a.astype(eh_ref.dtype)
    ah_full = jnp.dot(a[:, :H], eh_ref[...], preferred_element_type=jnp.float32,
                      precision=prec).astype(x2.dtype)               # (ct, HWp)
    aw_full = jnp.dot(a[:, H + G:], ew_ref[...], preferred_element_type=jnp.float32,
                      precision=prec).astype(x2.dtype)               # (ct, HWp)
    o_ref[0] = (ah_full * aw_full * x2).astype(o_ref.dtype)


def _vmem_limit_bytes():
    """Per-generation scoped-VMEM limit: ~75% of physical VMEM, clamped."""
    try:
        cap = int(pltpu.get_tpu_info().vmem_capacity_bytes)
    except Exception:
        cap = 64 * 1024 * 1024            # conservative (v7x-sized) fallback
    return max(32 * 1024 * 1024, min(int(cap * 0.75), 112 * 1024 * 1024))


@functools.partial(jax.jit, static_argnames=("num_groups", "single_buffer"))
def _ela_impl(x, conv_w, gamma, beta, *, num_groups, single_buffer):
    b, c, h, w = x.shape
    assert c % num_groups == 0, "GroupNorm requires C % num_groups == 0"
    gsize = c // num_groups
    hw = h * w
    hw_pad = -(-hw // 128) * 128                      # lane-dense loads / stores
    k = KERNEL_SIZE
    itemsize = jnp.dtype(x.dtype).itemsize
    dot_dtype = jnp.bfloat16 if x.dtype == jnp.bfloat16 else jnp.float32
    dot_isize = jnp.dtype(dot_dtype).itemsize
    highest = x.dtype == jnp.float32                  # exact pool/expand dots for f32

    vmem_limit = _vmem_limit_bytes()

    # ---- channel-tile selection: whole GroupNorm groups, sublane-aligned, sized
    # ---- against total per-step VMEM (x in/out double-buffered, the (ct, HWp)
    # ---- intermediates, f32 strip temporaries) with single-buffered constants
    # ---- charged once, and >= ~8 grid steps so the pipeline can overlap.
    const_bytes = 2 * hw_pad * (h + w) * dot_isize                    # pool + e_h + e_w
    row_bytes = (hw_pad * itemsize * 4                                # x in + out, 2 buffers each
                 + hw_pad * itemsize * 3                              # ah_full, aw_full, att
                 + hw_pad * dot_isize                                 # cast of x for pooling dot
                 + 16 * (h + w + 2 * k) * 4)                          # small f32 strip temporaries
    avail = int(0.8 * vmem_limit) - const_bytes

    sub_align = max(8, 32 // itemsize)                # 8 (f32) / 16 (bf16) / 32 (int8, fp8)
    candidates = []
    for gpt in range(1, num_groups + 1):
        if num_groups % gpt:
            continue
        cand = gpt * gsize
        if cand == c or cand % sub_align == 0:
            candidates.append(cand)
    fits = [cand for cand in candidates if cand * row_bytes + 8 * cand * cand <= avail]
    if fits:
        deep = [cand for cand in fits if b * (c // cand) >= 8]
        ct = max(deep) if deep else min(fits)
    else:
        # TODO(synk): constants alone exceed the budget (huge H*W); would need the
        # reshape/reduction variant instead of the pool/expand-matrix trick.
        ct = min(candidates)

    # ---- per-channel parameters folded into one (C, K+2) f32 array --------------
    params = jnp.concatenate(
        [conv_w.reshape(c, k), gamma.reshape(c, 1), beta.reshape(c, 1)],
        axis=1).astype(jnp.float32)

    # ---- exact 0/1 pooling / expansion matrices over the padded flat axis -------
    pos = jnp.arange(hw_pad)
    pos_h = jnp.where(pos < hw, pos // w, h)          # padded positions -> all-zero rows
    pos_w = jnp.where(pos < hw, pos % w, w)
    pool_h = (pos_h[:, None] == jnp.arange(h)[None, :]).astype(dot_dtype)   # (HWp, H)
    pool_w = (pos_w[:, None] == jnp.arange(w)[None, :]).astype(dot_dtype)   # (HWp, W)
    pool = jnp.concatenate([pool_h, pool_w], axis=1)                        # (HWp, H+W)
    e_h = pool_h.T                                                          # (H, HWp)
    e_w = pool_w.T                                                          # (W, HWp)

    # ---- block-diagonal "same group" matrix for one channel tile ----------------
    rows = jnp.arange(ct) // gsize
    grp = (rows[:, None] == rows[None, :]).astype(jnp.float32)              # (ct, ct)

    x_flat = x.reshape(b, c, hw)
    if hw_pad != hw:
        x_flat = jnp.pad(x_flat, ((0, 0), (0, 0), (0, hw_pad - hw)))

    # Grid-invariant operands (constant index maps) can live in a single buffer.
    if single_buffer:
        def const_spec(shape):
            return pl.BlockSpec(shape, lambda bi, ci: (0, 0), pipeline_mode=pl.Buffered(1))
    else:
        def const_spec(shape):
            return pl.BlockSpec(shape, lambda bi, ci: (0, 0))

    cost = pl.CostEstimate(
        flops=int(4 * b * c * hw_pad * (h + w) + 6 * b * c * hw_pad),
        transcendentals=int(2 * b * c * (h + w)),
        bytes_accessed=int(2 * b * c * hw_pad * itemsize + const_bytes
                           + c * (k + 2) * 4 + ct * ct * 4),
    )

    out_flat = pl.pallas_call(
        functools.partial(_ela_kernel, H=h, W=w, gsize=gsize, highest=highest),
        out_shape=jax.ShapeDtypeStruct((b, c, hw_pad), x.dtype),
        grid_spec=pltpu.PrefetchScalarGridSpec(
            num_scalar_prefetch=0,
            grid=(b, c // ct),
            in_specs=[
                pl.BlockSpec((1, ct, hw_pad), lambda bi, ci: (bi, ci, 0)),   # x, lane-dense
                pl.BlockSpec((ct, k + 2), lambda bi, ci: (ci, 0)),           # fused params (tiny)
                const_spec((hw_pad, h + w)),                                 # pooling matrix
                const_spec((h, hw_pad)),                                     # expand a_h
                const_spec((w, hw_pad)),                                     # expand a_w
                const_spec((ct, ct)),                                        # group matrix
            ],
            out_specs=pl.BlockSpec((1, ct, hw_pad), lambda bi, ci: (bi, ci, 0)),
        ),
        compiler_params=pltpu.CompilerParams(
            dimension_semantics=("parallel", "parallel"),
            vmem_limit_bytes=vmem_limit,
        ),
        cost_estimate=cost,
    )(x_flat, params, pool, e_h, e_w, grp)

    if hw_pad != hw:
        out_flat = out_flat[:, :, :hw]
    return out_flat.reshape(b, c, h, w)


_SINGLE_BUFFER_OK = None


def ela_pallas(x, conv_w, gamma, beta, *, num_groups=NUM_GROUPS):
    """ELA forward. Tries single-buffered invariant constants first (halves their
    VMEM footprint); falls back to default double-buffering once if this JAX
    build rejects pl.Buffered on a top-level pallas_call BlockSpec."""
    global _SINGLE_BUFFER_OK
    if _SINGLE_BUFFER_OK is None:
        try:
            out = jax.block_until_ready(
                _ela_impl(x, conv_w, gamma, beta, num_groups=num_groups,
                          single_buffer=True))
            _SINGLE_BUFFER_OK = True
            return out
        except Exception:
            _SINGLE_BUFFER_OK = False
    return _ela_impl(x, conv_w, gamma, beta, num_groups=num_groups,
                     single_buffer=_SINGLE_BUFFER_OK)


def ela_reference(x, conv_w, gamma, beta, num_groups=NUM_GROUPS):
    """Pure-JAX reference mirroring the PyTorch ELA forward."""
    b, c, h, w = x.shape
    x = x.astype(jnp.float32)
    x_h = jnp.mean(x, axis=3)                  # (B, C, H)
    x_w = jnp.mean(x, axis=2)                  # (B, C, W)

    def conv1d_dw(y):
        return jax.lax.conv_general_dilated(
            y, conv_w.reshape(c, 1, KERNEL_SIZE),
            window_strides=(1,), padding=((KERNEL_SIZE // 2,) * 2,),
            dimension_numbers=("NCH", "OIH", "NCH"),
            feature_group_count=c)

    def gn_sig(y):
        bb, cc, L = y.shape
        yg = y.reshape(bb, num_groups, (cc // num_groups) * L)
        mean = yg.mean(axis=2, keepdims=True)
        var = yg.var(axis=2, keepdims=True)
        yn = ((yg - mean) / jnp.sqrt(var + EPS)).reshape(bb, cc, L)
        return jax.nn.sigmoid(gamma[None, :, None] * yn + beta[None, :, None])

    a_h = gn_sig(conv1d_dw(x_h))               # (B, C, H)
    a_w = gn_sig(conv1d_dw(x_w))               # (B, C, W)
    return a_h[:, :, :, None] * a_w[:, :, None, :] * x


if __name__ == "__main__":
    key = jax.random.PRNGKey(0)
    k_x, k_w, k_g, k_b = jax.random.split(key, 4)

    B, C, H, W = 2, 32, 16, 16                 # C must be a multiple of 32 (GroupNorm)
    x = jax.random.normal(k_x, (B, C, H, W), dtype=jnp.float32)
    conv_w = 0.2 * jax.random.normal(k_w, (C, 1, KERNEL_SIZE), dtype=jnp.float32)
    gamma = 1.0 + 0.1 * jax.random.normal(k_g, (C,), dtype=jnp.float32)
    beta = 0.1 * jax.random.normal(k_b, (C,), dtype=jnp.float32)

    # float32 path (Precision.HIGHEST pool/expand dots): tight tolerance.
    out = jax.block_until_ready(ela_pallas(x, conv_w, gamma, beta))
    ref = ela_reference(x, conv_w, gamma, beta)
    assert out.shape == (B, C, H, W)
    max_err = float(jnp.max(jnp.abs(out - ref)))
    assert jnp.allclose(out, ref, atol=2e-4, rtol=2e-4), max_err

    # bfloat16 path (bf16 constants / intermediates, single-pass MXU): loose tolerance.
    x16 = x.astype(jnp.bfloat16)
    out16 = jax.block_until_ready(ela_pallas(x16, conv_w, gamma, beta))
    ref16 = ela_reference(x16, conv_w, gamma, beta)
    err16 = float(jnp.max(jnp.abs(out16.astype(jnp.float32) - ref16)))
    assert err16 < 0.1, err16

    print("KERNEL_OK")
</pallas_src>

<mosaic_0001>
module attributes {stable_mosaic.version = 11 : i64} {
  func.func @_ela_kernel(%arg0: i32, %arg1: i32, %arg2: memref<1x8x256xf32, #tpu.memory_space<vmem>>, %arg3: memref<8x7xf32, #tpu.memory_space<vmem>>, %arg4: memref<256x32xf32, #tpu.memory_space<vmem>>, %arg5: memref<16x256xf32, #tpu.memory_space<vmem>>, %arg6: memref<16x256xf32, #tpu.memory_space<vmem>>, %arg7: memref<8x8xf32, #tpu.memory_space<vmem>>, %arg8: memref<1x8x256xf32, #tpu.memory_space<vmem>>) attributes {dimension_semantics = [#tpu.dimension_semantics<parallel>, #tpu.dimension_semantics<parallel>], iteration_bounds = array<i64: 2, 4>, scalar_prefetch = 0 : i64, scratch_operands = 0 : i64, tpu.core_type = #tpu.core_type<tc>, window_params = [{transform_indices = @transform_0, window_bounds = array<i64: 1, 8, 256>}, {transform_indices = @transform_1, window_bounds = array<i64: 8, 7>}, {pipeline_mode = #tpu.pipeline_mode<synchronous>, transform_indices = @transform_2, window_bounds = array<i64: 256, 32>}, {pipeline_mode = #tpu.pipeline_mode<synchronous>, transform_indices = @transform_3, window_bounds = array<i64: 16, 256>}, {pipeline_mode = #tpu.pipeline_mode<synchronous>, transform_indices = @transform_4, window_bounds = array<i64: 16, 256>}, {pipeline_mode = #tpu.pipeline_mode<synchronous>, transform_indices = @transform_5, window_bounds = array<i64: 8, 8>}, {transform_indices = @transform_6, window_bounds = array<i64: 1, 8, 256>}]} {
    %c0 = arith.constant 0 : index
    %c0_0 = arith.constant 0 : index
    %c0_1 = arith.constant 0 : index
    %0 = vector.load %arg2[%c0, %c0_0, %c0_1] : memref<1x8x256xf32, #tpu.memory_space<vmem>>, vector<1x8x256xf32>
    %1 = vector.shape_cast %0 : vector<1x8x256xf32> to vector<8x256xf32>
    %c0_2 = arith.constant 0 : index
    %c0_3 = arith.constant 0 : index
    %2 = vector.load %arg3[%c0_2, %c0_3] : memref<8x7xf32, #tpu.memory_space<vmem>>, vector<8x7xf32>
    %3 = vector.extract_strided_slice %2 {offsets = [0, 0], sizes = [8, 5], strides = [1, 1]} : vector<8x7xf32> to vector<8x5xf32>
    %4 = vector.extract_strided_slice %2 {offsets = [0, 5], sizes = [8, 1], strides = [1, 1]} : vector<8x7xf32> to vector<8x1xf32>
    %5 = vector.extract_strided_slice %2 {offsets = [0, 6], sizes = [8, 1], strides = [1, 1]} : vector<8x7xf32> to vector<8x1xf32>
    %c0_4 = arith.constant 0 : index
    %c0_5 = arith.constant 0 : index
    %6 = vector.load %arg4[%c0_4, %c0_5] : memref<256x32xf32, #tpu.memory_space<vmem>>, vector<256x32xf32>
    %cst = arith.constant dense<0.000000e+00> : vector<8x32xf32>
    %7 = tpu.matmul %1, %6, %cst {dimension_numbers = #tpu.dot_dimension_numbers<[1], [0], [0], [1], [0, 0, 1, 1], [], []>, precision = #tpu.contract_precision<fp32>} : vector<8x256xf32>, vector<256x32xf32>, vector<8x32xf32> -> vector<8x32xf32>
    %8 = vector.extract_strided_slice %7 {offsets = [0, 0], sizes = [8, 16], strides = [1, 1]} : vector<8x32xf32> to vector<8x16xf32>
    %cst_6 = arith.constant 6.250000e-02 : f32
    %9 = vector.broadcast %cst_6 : f32 to vector<8x16xf32>
    %10 = arith.mulf %8, %9 : vector<8x16xf32>
    %11 = vector.extract_strided_slice %7 {offsets = [0, 16], sizes = [8, 16], strides = [1, 1]} : vector<8x32xf32> to vector<8x16xf32>
    %cst_7 = arith.constant 6.250000e-02 : f32
    %12 = vector.broadcast %cst_7 : f32 to vector<8x16xf32>
    %13 = arith.mulf %11, %12 : vector<8x16xf32>
    %cst_8 = arith.constant 0.000000e+00 : f32
    %14 = vector.broadcast %cst_8 : f32 to vector<8x2xf32>
    %cst_9 = arith.constant 0.000000e+00 : f32
    %15 = vector.broadcast %cst_9 : f32 to vector<8x4xf32>
    %16 = tpu.concatenate %14, %10, %15, %13, %14 in 1 : vector<8x2xf32>, vector<8x16xf32>, vector<8x4xf32>, vector<8x16xf32>, vector<8x2xf32> -> vector<8x40xf32>
    %17 = vector.extract_strided_slice %3 {offsets = [0, 0], sizes = [8, 1], strides = [1, 1]} : vector<8x5xf32> to vector<8x1xf32>
    %18 = vector.extract_strided_slice %16 {offsets = [0, 0], sizes = [8, 36], strides = [1, 1]} : vector<8x40xf32> to vector<8x36xf32>
    %19 = vector.broadcast %17 : vector<8x1xf32> to vector<8x36xf32>
    %20 = arith.mulf %19, %18 : vector<8x36xf32>
    %21 = vector.extract_strided_slice %3 {offsets = [0, 1], sizes = [8, 1], strides = [1, 1]} : vector<8x5xf32> to vector<8x1xf32>
    %22 = vector.extract_strided_slice %16 {offsets = [0, 1], sizes = [8, 36], strides = [1, 1]} : vector<8x40xf32> to vector<8x36xf32>
    %23 = vector.broadcast %21 : vector<8x1xf32> to vector<8x36xf32>
    %24 = arith.mulf %23, %22 : vector<8x36xf32>
    %25 = arith.addf %20, %24 : vector<8x36xf32>
    %26 = vector.extract_strided_slice %3 {offsets = [0, 2], sizes = [8, 1], strides = [1, 1]} : vector<8x5xf32> to vector<8x1xf32>
    %27 = vector.extract_strided_slice %16 {offsets = [0, 2], sizes = [8, 36], strides = [1, 1]} : vector<8x40xf32> to vector<8x36xf32>
    %28 = vector.broadcast %26 : vector<8x1xf32> to vector<8x36xf32>
    %29 = arith.mulf %28, %27 : vector<8x36xf32>
    %30 = arith.addf %25, %29 : vector<8x36xf32>
    %31 = vector.extract_strided_slice %3 {offsets = [0, 3], sizes = [8, 1], strides = [1, 1]} : vector<8x5xf32> to vector<8x1xf32>
    %32 = vector.extract_strided_slice %16 {offsets = [0, 3], sizes = [8, 36], strides = [1, 1]} : vector<8x40xf32> to vector<8x36xf32>
    %33 = vector.broadcast %31 : vector<8x1xf32> to vector<8x36xf32>
    %34 = arith.mulf %33, %32 : vector<8x36xf32>
    %35 = arith.addf %30, %34 : vector<8x36xf32>
    %36 = vector.extract_strided_slice %3 {offsets = [0, 4], sizes = [8, 1], strides = [1, 1]} : vector<8x5xf32> to vector<8x1xf32>
    %37 = vector.extract_strided_slice %16 {offsets = [0, 4], sizes = [8, 36], strides = [1, 1]} : vector<8x40xf32> to vector<8x36xf32>
    %38 = vector.broadcast %36 : vector<8x1xf32> to vector<8x36xf32>
    %39 = arith.mulf %38, %37 : vector<8x36xf32>
    %40 = arith.addf %35, %39 : vector<8x36xf32>
    %c0_10 = arith.constant 0 : index
    %c0_11 = arith.constant 0 : index
    %41 = vector.load %arg7[%c0_10, %c0_11] : memref<8x8xf32, #tpu.memory_space<vmem>>, vector<8x8xf32>
    %42 = vector.extract_strided_slice %40 {offsets = [0, 0], sizes = [8, 16], strides = [1, 1]} : vector<8x36xf32> to vector<8x16xf32>
    %cst_12 = arith.constant dense<0.000000e+00> : vector<8xf32>
    %43 = vector.multi_reduction <add>, %42, %cst_12 [1] : vector<8x16xf32> to vector<8xf32>
    %44 = vector.shape_cast %43 : vector<8xf32> to vector<8x1xf32>
    %45 = vector.extract_strided_slice %40 {offsets = [0, 20], sizes = [8, 16], strides = [1, 1]} : vector<8x36xf32> to vector<8x16xf32>
    %cst_13 = arith.constant dense<0.000000e+00> : vector<8xf32>
    %46 = vector.multi_reduction <add>, %45, %cst_13 [1] : vector<8x16xf32> to vector<8xf32>
    %47 = vector.shape_cast %46 : vector<8xf32> to vector<8x1xf32>
    %48 = tpu.concatenate %44, %47 in 1 : vector<8x1xf32>, vector<8x1xf32> -> vector<8x2xf32>
    %cst_14 = arith.constant dense<0.000000e+00> : vector<8x2xf32>
    %49 = tpu.matmul %41, %48, %cst_14 {dimension_numbers = #tpu.dot_dimension_numbers<[1], [0], [0], [1], [0, 0, 1, 1], [], []>, precision = #tpu.contract_precision<fp32>} : vector<8x8xf32>, vector<8x2xf32>, vector<8x2xf32> -> vector<8x2xf32>
    %50 = vector.extract_strided_slice %49 {offsets = [0, 0], sizes = [8, 1], strides = [1, 1]} : vector<8x2xf32> to vector<8x1xf32>
    %cst_15 = arith.constant 6.250000e-02 : f32
    %51 = vector.broadcast %cst_15 : f32 to vector<8x1xf32>
    %52 = arith.mulf %50, %51 : vector<8x1xf32>
    %53 = vector.extract_strided_slice %49 {offsets = [0, 1], sizes = [8, 1], strides = [1, 1]} : vector<8x2xf32> to vector<8x1xf32>
    %cst_16 = arith.constant 6.250000e-02 : f32
    %54 = vector.broadcast %cst_16 : f32 to vector<8x1xf32>
    %55 = arith.mulf %53, %54 : vector<8x1xf32>
    %56 = tpu.iota {dimensions = array<i32: 1>} : vector<8x36xi32>
    %c16_i32 = arith.constant 16 : i32
    %57 = vector.broadcast %c16_i32 : i32 to vector<8x36xi32>
    %58 = arith.cmpi slt, %56, %57 : vector<8x36xi32>
    %59 = vector.shape_cast %52 : vector<8x1xf32> to vector<8x1xf32>
    %60 = vector.broadcast %59 : vector<8x1xf32> to vector<8x36xf32>
    %61 = vector.shape_cast %55 : vector<8x1xf32> to vector<8x1xf32>
    %62 = vector.broadcast %61 : vector<8x1xf32> to vector<8x36xf32>
    %63 = arith.select %58, %60, %62 : vector<8x36xi1>, vector<8x36xf32>
    %64 = arith.subf %40, %63 : vector<8x36xf32>
    %65 = vector.extract_strided_slice %64 {offsets = [0, 0], sizes = [8, 16], strides = [1, 1]} : vector<8x36xf32> to vector<8x16xf32>
    %66 = vector.extract_strided_slice %64 {offsets = [0, 0], sizes = [8, 16], strides = [1, 1]} : vector<8x36xf32> to vector<8x16xf32>
    %67 = arith.mulf %65, %66 : vector<8x16xf32>
    %cst_17 = arith.constant dense<0.000000e+00> : vector<8xf32>
    %68 = vector.multi_reduction <add>, %67, %cst_17 [1] : vector<8x16xf32> to vector<8xf32>
    %69 = vector.shape_cast %68 : vector<8xf32> to vector<8x1xf32>
    %70 = vector.extract_strided_slice %64 {offsets = [0, 20], sizes = [8, 16], strides = [1, 1]} : vector<8x36xf32> to vector<8x16xf32>
    %71 = vector.extract_strided_slice %64 {offsets = [0, 20], sizes = [8, 16], strides = [1, 1]} : vector<8x36xf32> to vector<8x16xf32>
    %72 = arith.mulf %70, %71 : vector<8x16xf32>
    %cst_18 = arith.constant dense<0.000000e+00> : vector<8xf32>
    %73 = vector.multi_reduction <add>, %72, %cst_18 [1] : vector<8x16xf32> to vector<8xf32>
    %74 = vector.shape_cast %73 : vector<8xf32> to vector<8x1xf32>
    %75 = tpu.concatenate %69, %74 in 1 : vector<8x1xf32>, vector<8x1xf32> -> vector<8x2xf32>
    %cst_19 = arith.constant dense<0.000000e+00> : vector<8x2xf32>
    %76 = tpu.matmul %41, %75, %cst_19 {dimension_numbers = #tpu.dot_dimension_numbers<[1], [0], [0], [1], [0, 0, 1, 1], [], []>, precision = #tpu.contract_precision<fp32>} : vector<8x8xf32>, vector<8x2xf32>, vector<8x2xf32> -> vector<8x2xf32>
    %77 = vector.extract_strided_slice %76 {offsets = [0, 0], sizes = [8, 1], strides = [1, 1]} : vector<8x2xf32> to vector<8x1xf32>
    %cst_20 = arith.constant 6.250000e-02 : f32
    %78 = vector.broadcast %cst_20 : f32 to vector<8x1xf32>
    %79 = arith.mulf %77, %78 : vector<8x1xf32>
    %cst_21 = arith.constant 9.99999974E-6 : f32
    %80 = vector.broadcast %cst_21 : f32 to vector<8x1xf32>
    %81 = arith.addf %79, %80 : vector<8x1xf32>
    %82 = math.rsqrt %81 : vector<8x1xf32>
    %83 = vector.extract_strided_slice %76 {offsets = [0, 1], sizes = [8, 1], strides = [1, 1]} : vector<8x2xf32> to vector<8x1xf32>
    %cst_22 = arith.constant 6.250000e-02 : f32
    %84 = vector.broadcast %cst_22 : f32 to vector<8x1xf32>
    %85 = arith.mulf %83, %84 : vector<8x1xf32>
    %cst_23 = arith.constant 9.99999974E-6 : f32
    %86 = vector.broadcast %cst_23 : f32 to vector<8x1xf32>
    %87 = arith.addf %85, %86 : vector<8x1xf32>
    %88 = math.rsqrt %87 : vector<8x1xf32>
    %89 = vector.shape_cast %82 : vector<8x1xf32> to vector<8x1xf32>
    %90 = vector.broadcast %89 : vector<8x1xf32> to vector<8x36xf32>
    %91 = vector.shape_cast %88 : vector<8x1xf32> to vector<8x1xf32>
    %92 = vector.broadcast %91 : vector<8x1xf32> to vector<8x36xf32>
    %93 = arith.select %58, %90, %92 : vector<8x36xi1>, vector<8x36xf32>
    %94 = arith.mulf %64, %93 : vector<8x36xf32>
    %95 = vector.broadcast %4 : vector<8x1xf32> to vector<8x36xf32>
    %96 = arith.mulf %95, %94 : vector<8x36xf32>
    %97 = vector.broadcast %5 : vector<8x1xf32> to vector<8x36xf32>
    %98 = arith.addf %96, %97 : vector<8x36xf32>
    %99 = arith.negf %98 : vector<8x36xf32>
    %100 = math.exp %99 : vector<8x36xf32>
    %cst_24 = arith.constant 1.000000e+00 : f32
    %101 = vector.broadcast %cst_24 : f32 to vector<8x36xf32>
    %102 = arith.addf %101, %100 : vector<8x36xf32>
    %103 = arith.divf %101, %102 : vector<8x36xf32>
    %104 = vector.extract_strided_slice %103 {offsets = [0, 0], sizes = [8, 16], strides = [1, 1]} : vector<8x36xf32> to vector<8x16xf32>
    %c0_25 = arith.constant 0 : index
    %c0_26 = arith.constant 0 : index
    %105 = vector.load %arg5[%c0_25, %c0_26] : memref<16x256xf32, #tpu.memory_space<vmem>>, vector<16x256xf32>
    %cst_27 = arith.constant dense<0.000000e+00> : vector<8x256xf32>
    %106 = tpu.matmul %104, %105, %cst_27 {dimension_numbers = #tpu.dot_dimension_numbers<[1], [0], [0], [1], [0, 0, 1, 1], [], []>, precision = #tpu.contract_precision<fp32>} : vector<8x16xf32>, vector<16x256xf32>, vector<8x256xf32> -> vector<8x256xf32>
    %107 = vector.extract_strided_slice %103 {offsets = [0, 20], sizes = [8, 16], strides = [1, 1]} : vector<8x36xf32> to vector<8x16xf32>
    %c0_28 = arith.constant 0 : index
    %c0_29 = arith.constant 0 : index
    %108 = vector.load %arg6[%c0_28, %c0_29] : memref<16x256xf32, #tpu.memory_space<vmem>>, vector<16x256xf32>
    %cst_30 = arith.constant dense<0.000000e+00> : vector<8x256xf32>
    %109 = tpu.matmul %107, %108, %cst_30 {dimension_numbers = #tpu.dot_dimension_numbers<[1], [0], [0], [1], [0, 0, 1, 1], [], []>, precision = #tpu.contract_precision<fp32>} : vector<8x16xf32>, vector<16x256xf32>, vector<8x256xf32> -> vector<8x256xf32>
    %110 = arith.mulf %106, %109 : vector<8x256xf32>
    %111 = arith.mulf %110, %1 : vector<8x256xf32>
    %c0_31 = arith.constant 0 : index
    %c0_32 = arith.constant 0 : index
    %c0_33 = arith.constant 0 : index
    %112 = vector.load %arg8[%c0_31, %c0_32, %c0_33] : memref<1x8x256xf32, #tpu.memory_space<vmem>>, vector<1x8x256xf32>
    %113 = vector.shape_cast %112 : vector<1x8x256xf32> to vector<8x256xf32>
    %114 = vector.shape_cast %111 : vector<8x256xf32> to vector<1x8x256xf32>
    tpu.vector_store %arg8[%c0_31, %c0_32, %c0_33], %114 {strides = array<i32>} : memref<1x8x256xf32, #tpu.memory_space<vmem>>, vector<1x8x256xf32>,
    return
  }
  func.func @transform_0(%arg0: i32, %arg1: i32) -> (i32, i32, i32) {
    %c0_i32 = arith.constant 0 : i32
    %c0_i32_0 = arith.constant 0 : i32
    return %arg0, %arg1, %c0_i32 : i32, i32, i32
  }
  func.func @transform_1(%arg0: i32, %arg1: i32) -> (i32, i32) {
    %c0_i32 = arith.constant 0 : i32
    %c0_i32_0 = arith.constant 0 : i32
    return %arg1, %c0_i32 : i32, i32
  }
  func.func @transform_2(%arg0: i32, %arg1: i32) -> (i32, i32) {
    %c0_i32 = arith.constant 0 : i32
    %c0_i32_0 = arith.constant 0 : i32
    %c0_i32_1 = arith.constant 0 : i32
    return %c0_i32, %c0_i32_0 : i32, i32
  }
  func.func @transform_3(%arg0: i32, %arg1: i32) -> (i32, i32) {
    %c0_i32 = arith.constant 0 : i32
    %c0_i32_0 = arith.constant 0 : i32
    %c0_i32_1 = arith.constant 0 : i32
    return %c0_i32, %c0_i32_0 : i32, i32
  }
  func.func @transform_4(%arg0: i32, %arg1: i32) -> (i32, i32) {
    %c0_i32 = arith.constant 0 : i32
    %c0_i32_0 = arith.constant 0 : i32
    %c0_i32_1 = arith.constant 0 : i32
    return %c0_i32, %c0_i32_0 : i32, i32
  }
  func.func @transform_5(%arg0: i32, %arg1: i32) -> (i32, i32) {
    %c0_i32 = arith.constant 0 : i32
    %c0_i32_0 = arith.constant 0 : i32
    %c0_i32_1 = arith.constant 0 : i32
    return %c0_i32, %c0_i32_0 : i32, i32
  }
  func.func @transform_6(%arg0: i32, %arg1: i32) -> (i32, i32, i32) {
    %c0_i32 = arith.constant 0 : i32
    %c0_i32_0 = arith.constant 0 : i32
    return %arg0, %arg1, %c0_i32 : i32, i32, i32
  }
}

module attributes {stable_mosaic.version = 11 : i64} {
  func.func @_ela_kernel(%arg0: i32, %arg1: i32, %arg2: memref<1x8x256xf32, #tpu.memory_space<vmem>>, %arg3: memref<8x7xf32, #tpu.memory_space<vmem>>, %arg4: memref<256x32xf32, #tpu.memory_space<vmem>>, %arg5: memref<16x256xf32, #tpu.memory_space<vmem>>, %arg6: memref<16x256xf32, #tpu.memory_space<vmem>>, %arg7: memref<8x8xf32, #tpu.memory_space<vmem>>, %arg8: memref<1x8x256xf32, #tpu.memory_space<vmem>>) attributes {dimension_semantics = [#tpu.dimension_semantics<parallel>, #tpu.dimension_semantics<parallel>], iteration_bounds = array<i64: 2, 4>, scalar_prefetch = 0 : i64, scratch_operands = 0 : i64, tpu.core_type = #tpu.core_type<tc>, window_params = [{transform_indices = @transform_0, window_bounds = array<i64: 1, 8, 256>}, {transform_indices = @transform_1, window_bounds = array<i64: 8, 7>}, {pipeline_mode = #tpu.pipeline_mode<synchronous>, transform_indices = @transform_2, window_bounds = array<i64: 256, 32>}, {pipeline_mode = #tpu.pipeline_mode<synchronous>, transform_indices = @transform_3, window_bounds = array<i64: 16, 256>}, {pipeline_mode = #tpu.pipeline_mode<synchronous>, transform_indices = @transform_4, window_bounds = array<i64: 16, 256>}, {pipeline_mode = #tpu.pipeline_mode<synchronous>, transform_indices = @transform_5, window_bounds = array<i64: 8, 8>}, {transform_indices = @transform_6, window_bounds = array<i64: 1, 8, 256>}]} {
    %c0 = arith.constant 0 : index
    %c0_0 = arith.constant 0 : index
    %c0_1 = arith.constant 0 : index
    %0 = vector.load %arg2[%c0, %c0_0, %c0_1] : memref<1x8x256xf32, #tpu.memory_space<vmem>>, vector<1x8x256xf32>
    %1 = vector.shape_cast %0 : vector<1x8x256xf32> to vector<8x256xf32>
    %c0_2 = arith.constant 0 : index
    %c0_3 = arith.constant 0 : index
    %2 = vector.load %arg3[%c0_2, %c0_3] : memref<8x7xf32, #tpu.memory_space<vmem>>, vector<8x7xf32>
    %3 = vector.extract_strided_slice %2 {offsets = [0, 0], sizes = [8, 5], strides = [1, 1]} : vector<8x7xf32> to vector<8x5xf32>
    %4 = vector.extract_strided_slice %2 {offsets = [0, 5], sizes = [8, 1], strides = [1, 1]} : vector<8x7xf32> to vector<8x1xf32>
    %5 = vector.extract_strided_slice %2 {offsets = [0, 6], sizes = [8, 1], strides = [1, 1]} : vector<8x7xf32> to vector<8x1xf32>
    %c0_4 = arith.constant 0 : index
    %c0_5 = arith.constant 0 : index
    %6 = vector.load %arg4[%c0_4, %c0_5] : memref<256x32xf32, #tpu.memory_space<vmem>>, vector<256x32xf32>
    %cst = arith.constant dense<0.000000e+00> : vector<8x32xf32>
    %7 = tpu.matmul %1, %6, %cst {dimension_numbers = #tpu.dot_dimension_numbers<[1], [0], [0], [1], [0, 0, 1, 1], [], []>, precision = #tpu.contract_precision<fp32>} : vector<8x256xf32>, vector<256x32xf32>, vector<8x32xf32> -> vector<8x32xf32>
    %8 = vector.extract_strided_slice %7 {offsets = [0, 0], sizes = [8, 16], strides = [1, 1]} : vector<8x32xf32> to vector<8x16xf32>
    %cst_6 = arith.constant 6.250000e-02 : f32
    %9 = vector.broadcast %cst_6 : f32 to vector<8x16xf32>
    %10 = arith.mulf %8, %9 : vector<8x16xf32>
    %11 = vector.extract_strided_slice %7 {offsets = [0, 16], sizes = [8, 16], strides = [1, 1]} : vector<8x32xf32> to vector<8x16xf32>
    %cst_7 = arith.constant 6.250000e-02 : f32
    %12 = vector.broadcast %cst_7 : f32 to vector<8x16xf32>
    %13 = arith.mulf %11, %12 : vector<8x16xf32>
    %cst_8 = arith.constant 0.000000e+00 : f32
    %14 = vector.broadcast %cst_8 : f32 to vector<8x2xf32>
    %cst_9 = arith.constant 0.000000e+00 : f32
    %15 = vector.broadcast %cst_9 : f32 to vector<8x4xf32>
    %16 = tpu.concatenate %14, %10, %15, %13, %14 in 1 : vector<8x2xf32>, vector<8x16xf32>, vector<8x4xf32>, vector<8x16xf32>, vector<8x2xf32> -> vector<8x40xf32>
    %17 = vector.extract_strided_slice %3 {offsets = [0, 0], sizes = [8, 1], strides = [1, 1]} : vector<8x5xf32> to vector<8x1xf32>
    %18 = vector.extract_strided_slice %16 {offsets = [0, 0], sizes = [8, 36], strides = [1, 1]} : vector<8x40xf32> to vector<8x36xf32>
    %19 = vector.broadcast %17 : vector<8x1xf32> to vector<8x36xf32>
    %20 = arith.mulf %19, %18 : vector<8x36xf32>
    %21 = vector.extract_strided_slice %3 {offsets = [0, 1], sizes = [8, 1], strides = [1, 1]} : vector<8x5xf32> to vector<8x1xf32>
    %22 = vector.extract_strided_slice %16 {offsets = [0, 1], sizes = [8, 36], strides = [1, 1]} : vector<8x40xf32> to vector<8x36xf32>
    %23 = vector.broadcast %21 : vector<8x1xf32> to vector<8x36xf32>
    %24 = arith.mulf %23, %22 : vector<8x36xf32>
    %25 = arith.addf %20, %24 : vector<8x36xf32>
    %26 = vector.extract_strided_slice %3 {offsets = [0, 2], sizes = [8, 1], strides = [1, 1]} : vector<8x5xf32> to vector<8x1xf32>
    %27 = vector.extract_strided_slice %16 {offsets = [0, 2], sizes = [8, 36], strides = [1, 1]} : vector<8x40xf32> to vector<8x36xf32>
    %28 = vector.broadcast %26 : vector<8x1xf32> to vector<8x36xf32>
    %29 = arith.mulf %28, %27 : vector<8x36xf32>
    %30 = arith.addf %25, %29 : vector<8x36xf32>
    %31 = vector.extract_strided_slice %3 {offsets = [0, 3], sizes = [8, 1], strides = [1, 1]} : vector<8x5xf32> to vector<8x1xf32>
    %32 = vector.extract_strided_slice %16 {offsets = [0, 3], sizes = [8, 36], strides = [1, 1]} : vector<8x40xf32> to vector<8x36xf32>
    %33 = vector.broadcast %31 : vector<8x1xf32> to vector<8x36xf32>
    %34 = arith.mulf %33, %32 : vector<8x36xf32>
    %35 = arith.addf %30, %34 : vector<8x36xf32>
    %36 = vector.extract_strided_slice %3 {offsets = [0, 4], sizes = [8, 1], strides = [1, 1]} : vector<8x5xf32> to vector<8x1xf32>
    %37 = vector.extract_strided_slice %16 {offsets = [0, 4], sizes = [8, 36], strides = [1, 1]} : vector<8x40xf32> to vector<8x36xf32>
    %38 = vector.broadcast %36 : vector<8x1xf32> to vector<8x36xf32>
    %39 = arith.mulf %38, %37 : vector<8x36xf32>
    %40 = arith.addf %35, %39 : vector<8x36xf32>
    %c0_10 = arith.constant 0 : index
    %c0_11 = arith.constant 0 : index
    %41 = vector.load %arg7[%c0_10, %c0_11] : memref<8x8xf32, #tpu.memory_space<vmem>>, vector<8x8xf32>
    %42 = vector.extract_strided_slice %40 {offsets = [0, 0], sizes = [8, 16], strides = [1, 1]} : vector<8x36xf32> to vector<8x16xf32>
    %cst_12 = arith.constant dense<0.000000e+00> : vector<8xf32>
    %43 = vector.multi_reduction <add>, %42, %cst_12 [1] : vector<8x16xf32> to vector<8xf32>
    %44 = vector.shape_cast %43 : vector<8xf32> to vector<8x1xf32>
    %45 = vector.extract_strided_slice %40 {offsets = [0, 20], sizes = [8, 16], strides = [1, 1]} : vector<8x36xf32> to vector<8x16xf32>
    %cst_13 = arith.constant dense<0.000000e+00> : vector<8xf32>
    %46 = vector.multi_reduction <add>, %45, %cst_13 [1] : vector<8x16xf32> to vector<8xf32>
    %47 = vector.shape_cast %46 : vector<8xf32> to vector<8x1xf32>
    %48 = tpu.concatenate %44, %47 in 1 : vector<8x1xf32>, vector<8x1xf32> -> vector<8x2xf32>
    %cst_14 = arith.constant dense<0.000000e+00> : vector<8x2xf32>
    %49 = tpu.matmul %41, %48, %cst_14 {dimension_numbers = #tpu.dot_dimension_numbers<[1], [0], [0], [1], [0, 0, 1, 1], [], []>, precision = #tpu.contract_precision<fp32>} : vector<8x8xf32>, vector<8x2xf32>, vector<8x2xf32> -> vector<8x2xf32>
    %50 = vector.extract_strided_slice %49 {offsets = [0, 0], sizes = [8, 1], strides = [1, 1]} : vector<8x2xf32> to vector<8x1xf32>
    %cst_15 = arith.constant 6.250000e-02 : f32
    %51 = vector.broadcast %cst_15 : f32 to vector<8x1xf32>
    %52 = arith.mulf %50, %51 : vector<8x1xf32>
    %53 = vector.extract_strided_slice %49 {offsets = [0, 1], sizes = [8, 1], strides = [1, 1]} : vector<8x2xf32> to vector<8x1xf32>
    %cst_16 = arith.constant 6.250000e-02 : f32
    %54 = vector.broadcast %cst_16 : f32 to vector<8x1xf32>
    %55 = arith.mulf %53, %54 : vector<8x1xf32>
    %56 = tpu.iota {dimensions = array<i32: 1>} : vector<8x36xi32>
    %c16_i32 = arith.constant 16 : i32
    %57 = vector.broadcast %c16_i32 : i32 to vector<8x36xi32>
    %58 = arith.cmpi slt, %56, %57 : vector<8x36xi32>
    %59 = vector.shape_cast %52 : vector<8x1xf32> to vector<8x1xf32>
    %60 = vector.broadcast %59 : vector<8x1xf32> to vector<8x36xf32>
    %61 = vector.shape_cast %55 : vector<8x1xf32> to vector<8x1xf32>
    %62 = vector.broadcast %61 : vector<8x1xf32> to vector<8x36xf32>
    %63 = arith.select %58, %60, %62 : vector<8x36xi1>, vector<8x36xf32>
    %64 = arith.subf %40, %63 : vector<8x36xf32>
    %65 = vector.extract_strided_slice %64 {offsets = [0, 0], sizes = [8, 16], strides = [1, 1]} : vector<8x36xf32> to vector<8x16xf32>
    %66 = vector.extract_strided_slice %64 {offsets = [0, 0], sizes = [8, 16], strides = [1, 1]} : vector<8x36xf32> to vector<8x16xf32>
    %67 = arith.mulf %65, %66 : vector<8x16xf32>
    %cst_17 = arith.constant dense<0.000000e+00> : vector<8xf32>
    %68 = vector.multi_reduction <add>, %67, %cst_17 [1] : vector<8x16xf32> to vector<8xf32>
    %69 = vector.shape_cast %68 : vector<8xf32> to vector<8x1xf32>
    %70 = vector.extract_strided_slice %64 {offsets = [0, 20], sizes = [8, 16], strides = [1, 1]} : vector<8x36xf32> to vector<8x16xf32>
    %71 = vector.extract_strided_slice %64 {offsets = [0, 20], sizes = [8, 16], strides = [1, 1]} : vector<8x36xf32> to vector<8x16xf32>
    %72 = arith.mulf %70, %71 : vector<8x16xf32>
    %cst_18 = arith.constant dense<0.000000e+00> : vector<8xf32>
    %73 = vector.multi_reduction <add>, %72, %cst_18 [1] : vector<8x16xf32> to vector<8xf32>
    %74 = vector.shape_cast %73 : vector<8xf32> to vector<8x1xf32>
    %75 = tpu.concatenate %69, %74 in 1 : vector<8x1xf32>, vector<8x1xf32> -> vector<8x2xf32>
    %cst_19 = arith.constant dense<0.000000e+00> : vector<8x2xf32>
    %76 = tpu.matmul %41, %75, %cst_19 {dimension_numbers = #tpu.dot_dimension_numbers<[1], [0], [0], [1], [0, 0, 1, 1], [], []>, precision = #tpu.contract_precision<fp32>} : vector<8x8xf32>, vector<8x2xf32>, vector<8x2xf32> -> vector<8x2xf32>
    %77 = vector.extract_strided_slice %76 {offsets = [0, 0], sizes = [8, 1], strides = [1, 1]} : vector<8x2xf32> to vector<8x1xf32>
    %cst_20 = arith.constant 6.250000e-02 : f32
    %78 = vector.broadcast %cst_20 : f32 to vector<8x1xf32>
    %79 = arith.mulf %77, %78 : vector<8x1xf32>
    %cst_21 = arith.constant 9.99999974E-6 : f32
    %80 = vector.broadcast %cst_21 : f32 to vector<8x1xf32>
    %81 = arith.addf %79, %80 : vector<8x1xf32>
    %82 = math.rsqrt %81 : vector<8x1xf32>
    %83 = vector.extract_strided_slice %76 {offsets = [0, 1], sizes = [8, 1], strides = [1, 1]} : vector<8x2xf32> to vector<8x1xf32>
    %cst_22 = arith.constant 6.250000e-02 : f32
    %84 = vector.broadcast %cst_22 : f32 to vector<8x1xf32>
    %85 = arith.mulf %83, %84 : vector<8x1xf32>
    %cst_23 = arith.constant 9.99999974E-6 : f32
    %86 = vector.broadcast %cst_23 : f32 to vector<8x1xf32>
    %87 = arith.addf %85, %86 : vector<8x1xf32>
    %88 = math.rsqrt %87 : vector<8x1xf32>
    %89 = vector.shape_cast %82 : vector<8x1xf32> to vector<8x1xf32>
    %90 = vector.broadcast %89 : vector<8x1xf32> to vector<8x36xf32>
    %91 = vector.shape_cast %88 : vector<8x1xf32> to vector<8x1xf32>
    %92 = vector.broadcast %91 : vector<8x1xf32> to vector<8x36xf32>
    %93 = arith.select %58, %90, %92 : vector<8x36xi1>, vector<8x36xf32>
    %94 = arith.mulf %64, %93 : vector<8x36xf32>
    %95 = vector.broadcast %4 : vector<8x1xf32> to vector<8x36xf32>
    %96 = arith.mulf %95, %94 : vector<8x36xf32>
    %97 = vector.broadcast %5 : vector<8x1xf32> to vector<8x36xf32>
    %98 = arith.addf %96, %97 : vector<8x36xf32>
    %99 = arith.negf %98 : vector<8x36xf32>
    %100 = math.exp %99 : vector<8x36xf32>
    %cst_24 = arith.constant 1.000000e+00 : f32
    %101 = vector.broadcast %cst_24 : f32 to vector<8x36xf32>
    %102 = arith.addf %101, %100 : vector<8x36xf32>
    %103 = arith.divf %101, %102 : vector<8x36xf32>
    %104 = vector.extract_strided_slice %103 {offsets = [0, 0], sizes = [8, 16], strides = [1, 1]} : vector<8x36xf32> to vector<8x16xf32>
    %c0_25 = arith.constant 0 : index
    %c0_26 = arith.constant 0 : index
    %105 = vector.load %arg5[%c0_25, %c0_26] : memref<16x256xf32, #tpu.memory_space<vmem>>, vector<16x256xf32>
    %cst_27 = arith.constant dense<0.000000e+00> : vector<8x256xf32>
    %106 = tpu.matmul %104, %105, %cst_27 {dimension_numbers = #tpu.dot_dimension_numbers<[1], [0], [0], [1], [0, 0, 1, 1], [], []>, precision = #tpu.contract_precision<fp32>} : vector<8x16xf32>, vector<16x256xf32>, vector<8x256xf32> -> vector<8x256xf32>
    %107 = vector.extract_strided_slice %103 {offsets = [0, 20], sizes = [8, 16], strides = [1, 1]} : vector<8x36xf32> to vector<8x16xf32>
    %c0_28 = arith.constant 0 : index
    %c0_29 = arith.constant 0 : index
    %108 = vector.load %arg6[%c0_28, %c0_29] : memref<16x256xf32, #tpu.memory_space<vmem>>, vector<16x256xf32>
    %cst_30 = arith.constant dense<0.000000e+00> : vector<8x256xf32>
    %109 = tpu.matmul %107, %108, %cst_30 {dimension_numbers = #tpu.dot_dimension_numbers<[1], [0], [0], [1], [0, 0, 1, 1], [], []>, precision = #tpu.contract_precision<fp32>} : vector<8x16xf32>, vector<16x256xf32>, vector<8x256xf32> -> vector<8x256xf32>
    %110 = arith.mulf %106, %109 : vector<8x256xf32>
    %111 = arith.mulf %110, %1 : vector<8x256xf32>
    %c0_31 = arith.constant 0 : index
    %c0_32 = arith.constant 0 : index
    %c0_33 = arith.constant 0 : index
    %112 = vector.load %arg8[%c0_31, %c0_32, %c0_33] : memref<1x8x256xf32, #tpu.memory_space<vmem>>, vector<1x8x256xf32>
    %113 = vector.shape_cast %112 : vector<1x8x256xf32> to vector<8x256xf32>
    %114 = vector.shape_cast %111 : vector<8x256xf32> to vector<1x8x256xf32>
    tpu.vector_store %arg8[%c0_31, %c0_32, %c0_33], %114 {strides = array<i32>} : memref<1x8x256xf32, #tpu.memory_space<vmem>>, vector<1x8x256xf32>,
    return
  }
  func.func @transform_0(%arg0: i32, %arg1: i32) -> (i32, i32, i32) {
    %c0_i32 = arith.constant 0 : i32
    %c0_i32_0 = arith.constant 0 : i32
    return %arg0, %arg1, %c0_i32 : i32, i32, i32
  }
  func.func @transform_1(%arg0: i32, %arg1: i32) -> (i32, i32) {
    %c0_i32 = arith.constant 0 : i32
    %c0_i32_0 = arith.constant 0 : i32
    return %arg1, %c0_i32 : i32, i32
  }
  func.func @transform_2(%arg0: i32, %arg1: i32) -> (i32, i32) {
    %c0_i32 = arith.constant 0 : i32
    %c0_i32_0 = arith.constant 0 : i32
    %c0_i32_1 = arith.constant 0 : i32
    return %c0_i32, %c0_i32_0 : i32, i32
  }
  func.func @transform_3(%arg0: i32, %arg1: i32) -> (i32, i32) {
    %c0_i32 = arith.constant 0 : i32
    %c0_i32_0 = arith.constant 0 : i32
    %c0_i32_1 = arith.constant 0 : i32
    return %c0_i32, %c0_i32_0 : i32, i32
  }
  func.func @transform_4(%arg0: i32, %arg1: i32) -> (i32, i32) {
    %c0_i32 = arith.constant 0 : i32
    %c0_i32_0 = arith.constant 0 : i32
    %c0_i32_1 = arith.constant 0 : i32
    return %c0_i32, %c0_i32_0 : i32, i32
  }
  func.func @transform_5(%arg0: i32, %arg1: i32) -> (i32, i32) {
    %c0_i32 = arith.constant 0 : i32
    %c0_i32_0 = arith.constant 0 : i32
    %c0_i32_1 = arith.constant 0 : i32
    return %c0_i32, %c0_i32_0 : i32, i32
  }
  func.func @transform_6(%arg0: i32, %arg1: i32) -> (i32, i32, i32) {
    %c0_i32 = arith.constant 0 : i32
    %c0_i32_0 = arith.constant 0 : i32
    return %arg0, %arg1, %c0_i32 : i32, i32, i32
  }
}

</mosaic_0001>

<llo_original>
// kernel: _ela_impl.1
$region0: #{_ela_impl.1}
  #allocation0 [shape = 'u32[]', space=smem, size = 0x4, offset = 0x4, fixed_abs, tag = 'smem constant byte address 0x4 - core index']
  #allocation1 [shape = 'u32[144,128]{1,0:T(1,128)}', space=vmem, size = 0x12000, scoped, tag = 'internal scratch']
  %s0 = inlined_call_operand.vmem [shape: f32[2,32,256], index: 0, kind: input, shape index: {}]
  %s1 = inlined_call_operand.vmem [shape: f32[32,7], index: 1, kind: input, shape index: {}]
  %s2 = inlined_call_operand.vmem [shape: f32[256,32], index: 2, kind: input, shape index: {}]
  %s3 = inlined_call_operand.vmem [shape: f32[16,256], index: 3, kind: input, shape index: {}]
  %s4 = inlined_call_operand.vmem [shape: f32[16,256], index: 4, kind: input, shape index: {}]
  %s5 = inlined_call_operand.vmem [shape: f32[8,8], index: 5, kind: input, shape index: {}]
  %s6 = inlined_call_operand.vmem [shape: f32[2,32,256], index: 6, kind: output, shape index: {}]
  %s7 = sld [smem:[#allocation0]]
  $region57: #{_ela_impl.1} parent=0
    _
  %s9 = ssub.s32 1, %s7
  %s10 = scalar_select 0, %s9, %s7
  loop: start=0, step=1, limit=10
  $region2: #{_ela_impl.1} parent=0 // loop_pre_header
    _
  $region3: #{_ela_impl.1} parent=0 // loop_header
    %s12 = sphi 0, %s16
    %p13 = scmp.ge.s32.totalorder %s12, 10
    %s19 = sphi 0, %s31
    %s20 = sphi 0, %s27
    %s21 = sphi 0, %s19
    %s22 = sphi 0, %s20
    %s23 = sphi 0, %s21
    %s24 = sphi 0, %s22
    %s36 = sphi 0, %s38
    %s39 = sphi 0, %s36
    %s40 = sphi 0, %s39
    %s56 = sphi 0, %s40
    %s62 = sphi 0, %s64
    %s65 = sphi 0, %s62
    %s66 = sphi 0, %s65
    %s82 = sphi 0, %s66
    %s86 = sphi 0, %s86
    %s88 = sphi 0, %s86
    %s89 = sphi 0, %s88
    %s103 = sphi 0, %s89
    %s107 = sphi 0, %s107
    %s109 = sphi 0, %s107
    %s110 = sphi 0, %s109
    %s124 = sphi 0, %s110
    %s128 = sphi 0, %s128
    %s130 = sphi 0, %s128
    %s131 = sphi 0, %s130
    %s145 = sphi 0, %s131
    %s149 = sphi 0, %s149
    %s151 = sphi 0, %s149
    %s152 = sphi 0, %s151
    %s166 = sphi 0, %s152
    %s174 = sphi 0, %s176
    %s177 = sphi 0, %s174
    %s178 = sphi 0, %s177
    %s194 = sphi 0, %s178
  $region4: #{_ela_impl.1} parent=0 // loop_header_branch
    %15 = sbr.rel (%p13) target = $region8
  $region5: #{_ela_impl.1} parent=0 // loop_body
    %s17 = ssub.s32 %s12, 1
    %s18 = ssub.s32 %s12, 2
    %s25 = sadd.s32 1, %s20
    %p26 = scmp.ge.s32.totalorder %s25, 4
    %s27 = scalar_select %p26, 0, %s25
    %s28 = sadd.s32 1, %s19
    %s29 = scalar_select %p26, %s28, %s19
    %p30 = scmp.ge.s32.totalorder %s29, 2
    %s31 = scalar_select %p30, 0, %s29
    %s32 = ssub.s32 %s19, %s31
    %s33 = ssub.s32 %s20, %s27
    %s34 = sor.u32 %s32, %s33
    %p35 = scmp.eq.s32.totalorder %s34, 0
    %s37 = sadd.s32 %s36, 1
    %s38 = scalar_select %p35, %s36, %s37
    %p41 = pneg %p35
    %p42 = scmp.eq.s32.totalorder %s12, 7
    %p43 = por %p41, %p42
    %p44 = scmp.ne.s32.totalorder %s36, %s39
    %p45 = scmp.eq.s32.totalorder %s12, 0
    %p46 = por %p44, %p45
    %p47 = scmp.ne.s32.totalorder %s36, %s39
    %p48 = scmp.eq.s32.totalorder %s17, 7
    %p49 = por %p47, %p48
    %p50 = scmp.ne.s32.totalorder %s39, %s40
    %p51 = scmp.eq.s32.totalorder %s17, 0
    %p52 = por %p50, %p51
    %p53 = scmp.ne.s32.totalorder %s39, %s40
    %p54 = scmp.eq.s32.totalorder %s18, 7
    %p55 = por %p53, %p54
    %p57 = scmp.ne.s32.totalorder %s40, %s56
    %p58 = scmp.eq.s32.totalorder %s18, 0
    %p59 = por %p57, %p58
    %s60 = ssub.s32 %s20, %s27
    %p61 = scmp.eq.s32.totalorder %s60, 0
    %s63 = sadd.s32 %s62, 1
    %s64 = scalar_select %p61, %s62, %s63
    %p67 = pneg %p61
    %p68 = scmp.eq.s32.totalorder %s12, 7
    %p69 = por %p67, %p68
    %p70 = scmp.ne.s32.totalorder %s62, %s65
    %p71 = scmp.eq.s32.totalorder %s12, 0
    %p72 = por %p70, %p71
    %p73 = scmp.ne.s32.totalorder %s62, %s65
    %p74 = scmp.eq.s32.totalorder %s17, 7
    %p75 = por %p73, %p74
    %p76 = scmp.ne.s32.totalorder %s65, %s66
    %p77 = scmp.eq.s32.totalorder %s17, 0
    %p78 = por %p76, %p77
    %p79 = scmp.ne.s32.totalorder %s65, %s66
    %p80 = scmp.eq.s32.totalorder %s18, 7
    %p81 = por %p79, %p80
    %p83 = scmp.ne.s32.totalorder %s66, %s82
    %p84 = scmp.eq.s32.totalorder %s18, 0
    %p85 = por %p83, %p84
    %s87 = sadd.s32 %s86, 1
    %p90 = scmp.eq.s32.totalorder %s12, 7
    %p91 = scmp.ne.s32.totalorder %s86, %s88
    %p92 = scmp.eq.s32.totalorder %s12, 0
    %p93 = por %p91, %p92
    %p94 = scmp.ne.s32.totalorder %s86, %s88
    %p95 = scmp.eq.s32.totalorder %s17, 7
    %p96 = por %p94, %p95
    %p97 = scmp.ne.s32.totalorder %s88, %s89
    %p98 = scmp.eq.s32.totalorder %s17, 0
    %p99 = por %p97, %p98
    %p100 = scmp.ne.s32.totalorder %s88, %s89
    %p101 = scmp.eq.s32.totalorder %s18, 7
    %p102 = por %p100, %p101
    %p104 = scmp.ne.s32.totalorder %s89, %s103
    %p105 = scmp.eq.s32.totalorder %s18, 0
    %p106 = por %p104, %p105
    %s108 = sadd.s32 %s107, 1
    %p111 = scmp.eq.s32.totalorder %s12, 7
    %p112 = scmp.ne.s32.totalorder %s107, %s109
    %p113 = scmp.eq.s32.totalorder %s12, 0
    %p114 = por %p112, %p113
    %p115 = scmp.ne.s32.totalorder %s107, %s109
    %p116 = scmp.eq.s32.totalorder %s17, 7
    %p117 = por %p115, %p116
    %p118 = scmp.ne.s32.totalorder %s109, %s110
    %p119 = scmp.eq.s32.totalorder %s17, 0
    %p120 = por %p118, %p119
    %p121 = scmp.ne.s32.totalorder %s109, %s110
    %p122 = scmp.eq.s32.totalorder %s18, 7
    %p123 = por %p121, %p122
    %p125 = scmp.ne.s32.totalorder %s110, %s124
    %p126 = scmp.eq.s32.totalorder %s18, 0
    %p127 = por %p125, %p126
    %s129 = sadd.s32 %s128, 1
    %p132 = scmp.eq.s32.totalorder %s12, 7
    %p133 = scmp.ne.s32.totalorder %s128, %s130
    %p134 = scmp.eq.s32.totalorder %s12, 0
    %p135 = por %p133, %p134
    %p136 = scmp.ne.s32.totalorder %s128, %s130
    %p137 = scmp.eq.s32.totalorder %s17, 7
    %p138 = por %p136, %p137
    %p139 = scmp.ne.s32.totalorder %s130, %s131
    %p140 = scmp.eq.s32.totalorder %s17, 0
    %p141 = por %p139, %p140
    %p142 = scmp.ne.s32.totalorder %s130, %s131
    %p143 = scmp.eq.s32.totalorder %s18, 7
    %p144 = por %p142, %p143
    %p146 = scmp.ne.s32.totalorder %s131, %s145
    %p147 = scmp.eq.s32.totalorder %s18, 0
    %p148 = por %p146, %p147
    %s150 = sadd.s32 %s149, 1
    %p153 = scmp.eq.s32.totalorder %s12, 7
    %p154 = scmp.ne.s32.totalorder %s149, %s151
    %p155 = scmp.eq.s32.totalorder %s12, 0
    %p156 = por %p154, %p155
    %p157 = scmp.ne.s32.totalorder %s149, %s151
    %p158 = scmp.eq.s32.totalorder %s17, 7
    %p159 = por %p157, %p158
    %p160 = scmp.ne.s32.totalorder %s151, %s152
    %p161 = scmp.eq.s32.totalorder %s17, 0
    %p162 = por %p160, %p161
    %p163 = scmp.ne.s32.totalorder %s151, %s152
    %p164 = scmp.eq.s32.totalorder %s18, 7
    %p165 = por %p163, %p164
    %p167 = scmp.ne.s32.totalorder %s152, %s166
    %p168 = scmp.eq.s32.totalorder %s18, 0
    %p169 = por %p167, %p168
    %s170 = ssub.s32 %s19, %s31
    %s171 = ssub.s32 %s20, %s27
    %s172 = sor.u32 %s170, %s171
    %p173 = scmp.eq.s32.totalorder %s172, 0
    %s175 = sadd.s32 %s174, 1
    %s176 = scalar_select %p173, %s174, %s175
    %p179 = pneg %p173
    %p180 = scmp.eq.s32.totalorder %s12, 7
    %p181 = por %p179, %p180
    %p182 = scmp.ne.s32.totalorder %s174, %s177
    %p183 = scmp.eq.s32.totalorder %s12, 0
    %p184 = por %p182, %p183
    %p185 = scmp.ne.s32.totalorder %s174, %s177
    %p186 = scmp.eq.s32.totalorder %s17, 7
    %p187 = por %p185, %p186
    %p188 = scmp.ne.s32.totalorder %s177, %s178
    %p189 = scmp.eq.s32.totalorder %s17, 0
    %p190 = por %p188, %p189
    %p191 = scmp.ne.s32.totalorder %s177, %s178
    %p192 = scmp.eq.s32.totalorder %s18, 7
    %p193 = por %p191, %p192
    %p195 = scmp.ne.s32.totalorder %s178, %s194
    %p196 = scmp.eq.s32.totalorder %s18, 0
    %p197 = por %p195, %p196
    %p198 = scmp.le.s32.totalorder 1, %s12
    %p199 = scmp.lt.s32.totalorder %s12, 9
    %p200 = pnand %p198, %p199
    %p201 = pneg %p200
    // Predicated region
    $region9: #{_ela_impl.1} parent=5 // pred_check
      _
    $region10: #{_ela_impl.1} parent=5 // pred_check_branch
      %203 = sbr.rel (%p200) target = $region12
    $region11: #{_ela_impl.1} parent=5 // pred_region
      %s204 = ssub.s32 %s12, 1
      // Predicated region
      $region13: #{_ela_impl.1} parent=11 // pred_check
        %p205 = pneg %p99
      $region14: #{_ela_impl.1} parent=11 // pred_check_branch
        %207 = sbr.rel (%p205) target = $region16
      $region15: #{_ela_impl.1} parent=11 // pred_region
        _
      $region16: #{_ela_impl.1} parent=11 // pred_fallthru
        _
      // Predicated region
      $region17: #{_ela_impl.1} parent=11 // pred_check
        %p208 = pneg %p120
      $region18: #{_ela_impl.1} parent=11 // pred_check_branch
        %210 = sbr.rel (%p208) target = $region20
      $region19: #{_ela_impl.1} parent=11 // pred_region
        _
      $region20: #{_ela_impl.1} parent=11 // pred_fallthru
        _
      // Predicated region
      $region21: #{_ela_impl.1} parent=11 // pred_check
        %p211 = pneg %p141
      $region22: #{_ela_impl.1} parent=11 // pred_check_branch
        %213 = sbr.rel (%p211) target = $region24
      $region23: #{_ela_impl.1} parent=11 // pred_region
        _
      $region24: #{_ela_impl.1} parent=11 // pred_fallthru
        _
      // Predicated region
      $region25: #{_ela_impl.1} parent=11 // pred_check
        %p214 = pneg %p162
      $region26: #{_ela_impl.1} parent=11 // pred_check_branch
        %216 = sbr.rel (%p214) target = $region28
      $region27: #{_ela_impl.1} parent=11 // pred_region
        _
      $region28: #{_ela_impl.1} parent=11 // pred_fallthru
        _
    $region12: #{_ela_impl.1} parent=5 // pred_fallthru
      _
    %p217 = scmp.lt.s32.totalorder %s12, 8
    // Predicated region
    $region29: #{_ela_impl.1} parent=5 // pred_check
      %p218 = pneg %p217
    $region30: #{_ela_impl.1} parent=5 // pred_check_branch
      %220 = sbr.rel (%p218) target = $region32
    $region31: #{_ela_impl.1} parent=5 // pred_region
      // Predicated region
      $region33: #{_ela_impl.1} parent=31 // pred_check
        %p221 = pneg %p46
      $region34: #{_ela_impl.1} parent=31 // pred_check_branch
        %223 = sbr.rel (%p221) target = $region36
      $region35: #{_ela_impl.1} parent=31 // pred_region
        %p224 = scmp.lt.s32.totalorder %s19, 1
        %s225 = scalar_select %p224, %s19, 1
        %p226 = scmp.lt.s32.totalorder %s20, 3
        %s227 = scalar_select %p226, %s20, 3
        %s228 = smul.addr %s227, 2
        %s229 = smul.addr %s225, 8
        %s230 = sadd.s32 %s228, %s229
        %s231 = smul.addr %s230, 8
        %s232 = scalar_lea.vmem %s0, %s231
      $region36: #{_ela_impl.1} parent=31 // pred_fallthru
        _
      // Predicated region
      $region37: #{_ela_impl.1} parent=31 // pred_check
        %p233 = pneg %p72
      $region38: #{_ela_impl.1} parent=31 // pred_check_branch
        %235 = sbr.rel (%p233) target = $region40
      $region39: #{_ela_impl.1} parent=31 // pred_region
        %p236 = scmp.lt.s32.totalorder %s20, 3
        %s237 = scalar_select %p236, %s20, 3
        %s238 = smul.addr %s237, 8
        %s239 = scalar_lea.vmem %s1, %s238
      $region40: #{_ela_impl.1} parent=31 // pred_fallthru
        _
    $region32: #{_ela_impl.1} parent=5 // pred_fallthru
      _
    %p240 = scmp.le.s32.totalorder 1, %s12
    %p241 = scmp.lt.s32.totalorder %s12, 9
    %p242 = pnand %p240, %p241
    %p243 = pneg %p242
    // Predicated region
    $region41: #{_ela_impl.1} parent=5 // pred_check
      _
    $region42: #{_ela_impl.1} parent=5 // pred_check_branch
      %245 = sbr.rel (%p242) target = $region44
    $region43: #{_ela_impl.1} parent=5 // pred_region
      %s246 = ssub.s32 %s12, 1
      %p247 = scmp.lt.s32.totalorder %s21, 1
      %s248 = scalar_select %p247, %s21, 1
      %p249 = scmp.lt.s32.totalorder %s22, 3
      %s250 = scalar_select %p249, %s22, 3
      %s251 = smul.addr %s250, 2
      %s252 = smul.addr %s248, 8
      %s253 = sadd.s32 %s251, %s252
      %s254 = smul.addr %s253, 8
      %s255 = scalar_lea.vmem %s0, %s254
      %p256 = pneg %p52
      %p257 = pneg %p49
      %p258 = scmp.lt.s32.totalorder %s22, 3
      %s259 = scalar_select %p258, %s22, 3
      %s260 = smul.addr %s259, 8
      %s261 = scalar_lea.vmem %s1, %s260
      %p262 = pneg %p78
      %p263 = pneg %p75
      %p264 = pneg %p99
      %p265 = pneg %p96
      %p266 = pneg %p120
      %p267 = pneg %p117
      %p268 = pneg %p141
      %p269 = pneg %p138
      %p270 = pneg %p162
      %p271 = pneg %p159
      %p272 = pneg %p190
      %p273 = pneg %p187
      %p274 = scmp.lt.s32.totalorder %s21, 1
      %s275 = scalar_select %p274, %s21, 1
      %p276 = scmp.lt.s32.totalorder %s22, 3
      %s277 = scalar_select %p276, %s22, 3
      %s278 = smul.addr %s277, 2
      %s279 = smul.addr %s275, 8
      %s280 = sadd.s32 %s278, %s279
      %s281 = smul.addr %s280, 8
      %s282 = scalar_lea.vmem %s6, %s281
      %p283 = scmp.lt.s32.totalorder %s21, 1
      %s284 = scalar_select %p283, %s21, 1
      %p285 = scmp.lt.s32.totalorder %s22, 3
      %s286 = scalar_select %p285, %s22, 3
      %s287 = smul.addr %s286, 2
      %s288 = smul.addr %s284, 8
      %s289 = sadd.s32 %s287, %s288
      %s290 = smul.addr %s289, 8
      %s291 = scalar_lea.vmem %s0, %s290
      %p292 = scmp.lt.s32.totalorder %s22, 3
      %s293 = scalar_select %p292, %s22, 3
      %s294 = smul.addr %s293, 8
      %s295 = scalar_lea.vmem %s1, %s294
      %p296 = scmp.lt.s32.totalorder %s21, 1
      %s297 = scalar_select %p296, %s21, 1
      %p298 = scmp.lt.s32.totalorder %s22, 3
      %s299 = scalar_select %p298, %s22, 3
      %s300 = smul.addr %s299, 2
      %s301 = smul.addr %s297, 8
      %s302 = sadd.s32 %s300, %s301
      %s303 = smul.addr %s302, 8
      %s304 = scalar_lea.vmem %s6, %s303
      %v305 = vld [vmem:[%s291] sm:$0xff]
      %v306 = vld [vmem:[%s291 + $0x8] sm:$0xff]
      %v307 = vld [vmem:[%s295] sm:$0xff]
      %v308 = vld [vmem:[%s2] sm:$0xff]
      %v309 = vld [vmem:[%s2 + $0x8] sm:$0xff]
      %v310 = vld [vmem:[%s2 + $0x10] sm:$0xff]
      %v311 = vld [vmem:[%s2 + $0x18] sm:$0xff]
      %v312 = vld [vmem:[%s2 + $0x20] sm:$0xff]
      %v313 = vld [vmem:[%s2 + $0x28] sm:$0xff]
      %v314 = vld [vmem:[%s2 + $0x30] sm:$0xff]
      %v315 = vld [vmem:[%s2 + $0x38] sm:$0xff]
      %v316 = vld [vmem:[%s2 + $0x40] sm:$0xff]
      %v317 = vld [vmem:[%s2 + $0x48] sm:$0xff]
      %v318 = vld [vmem:[%s2 + $0x50] sm:$0xff]
      %v319 = vld [vmem:[%s2 + $0x58] sm:$0xff]
      %v320 = vld [vmem:[%s2 + $0x60] sm:$0xff]
      %v321 = vld [vmem:[%s2 + $0x68] sm:$0xff]
      %v322 = vld [vmem:[%s2 + $0x70] sm:$0xff]
      %v323 = vld [vmem:[%s2 + $0x78] sm:$0xff]
      %v324 = vld [vmem:[%s2 + $0x80] sm:$0xff]
      %v325 = vld [vmem:[%s2 + $0x88] sm:$0xff]
      %v326 = vld [vmem:[%s2 + $0x90] sm:$0xff]
      %v327 = vld [vmem:[%s2 + $0x98] sm:$0xff]
      %v328 = vld [vmem:[%s2 + $0xa0] sm:$0xff]
      %v329 = vld [vmem:[%s2 + $0xa8] sm:$0xff]
      %v330 = vld [vmem:[%s2 + $0xb0] sm:$0xff]
      %v331 = vld [vmem:[%s2 + $0xb8] sm:$0xff]
      %v332 = vld [vmem:[%s2 + $0xc0] sm:$0xff]
      %v333 = vld [vmem:[%s2 + $0xc8] sm:$0xff]
      %v334 = vld [vmem:[%s2 + $0xd0] sm:$0xff]
      %v335 = vld [vmem:[%s2 + $0xd8] sm:$0xff]
      %v336 = vld [vmem:[%s2 + $0xe0] sm:$0xff]
      %v337 = vld [vmem:[%s2 + $0xe8] sm:$0xff]
      %v338 = vld [vmem:[%s2 + $0xf0] sm:$0xff]
      %v339 = vld [vmem:[%s2 + $0xf8] sm:$0xff]
      %340 = vmatprep.subr.mxu0 0.0
      %v341 = vand.u32 %v308, 4294901760
      %342 = vmatpush1.msra.mxu0 %v341
      %343 = vmatprep.subr.mxu0 0.0
      %v344 = vand.u32 %v309, 4294901760
      %345 = vmatpush1.msra.mxu0 %v344
      %346 = vmatprep.subr.mxu0 0.0
      %v347 = vand.u32 %v310, 4294901760
      %348 = vmatpush1.msra.mxu0 %v347
      %349 = vmatprep.subr.mxu0 0.0
      %v350 = vand.u32 %v311, 4294901760
      %351 = vmatpush1.msra.mxu0 %v350
      %352 = vmatprep.subr.mxu0 0.0
      %v353 = vand.u32 %v312, 4294901760
      %354 = vmatpush1.msra.mxu0 %v353
      %355 = vmatprep.subr.mxu0 0.0
      %v356 = vand.u32 %v313, 4294901760
      %357 = vmatpush1.msra.mxu0 %v356
      %358 = vmatprep.subr.mxu0 0.0
      %v359 = vand.u32 %v314, 4294901760
      %360 = vmatpush1.msra.mxu0 %v359
      %361 = vmatprep.subr.mxu0 0.0
      %v362 = vand.u32 %v315, 4294901760
      %363 = vmatpush1.msra.mxu0 %v362
      %364 = vmatprep.subr.mxu0 0.0
      %v365 = vand.u32 %v316, 4294901760
      %366 = vmatpush1.msra.mxu0 %v365
      %367 = vmatprep.subr.mxu0 0.0
      %v368 = vand.u32 %v317, 4294901760
      %369 = vmatpush1.msra.mxu0 %v368
      %370 = vmatprep.subr.mxu0 0.0
      %v371 = vand.u32 %v318, 4294901760
      %372 = vmatpush1.msra.mxu0 %v371
      %373 = vmatprep.subr.mxu0 0.0
      %v374 = vand.u32 %v319, 4294901760
      %375 = vmatpush1.msra.mxu0 %v374
      %376 = vmatprep.subr.mxu0 0.0
      %v377 = vand.u32 %v320, 4294901760
      %378 = vmatpush1.msra.mxu0 %v377
      %379 = vmatprep.subr.mxu0 0.0
      %v380 = vand.u32 %v321, 4294901760
      %381 = vmatpush1.msra.mxu0 %v380
      %382 = vmatprep.subr.mxu0 0.0
      %v383 = vand.u32 %v322, 4294901760
      %384 = vmatpush1.msra.mxu0 %v383
      %385 = vmatprep.subr.mxu0 0.0
      %v386 = vand.u32 %v323, 4294901760
      %387 = vmatpush1.msra.mxu0 %v386
      %388 = vmatprep.subr.mxu0 0.0
      %v389 = vand.u32 %v324, 4294901760
      %390 = vmatpush1.msra.mxu0 %v389
      %391 = vmatprep.subr.mxu0 0.0
      %v392 = vand.u32 %v325, 4294901760
      %393 = vmatpush1.msra.mxu0 %v392
      %394 = vmatprep.subr.mxu0 0.0
      %v395 = vand.u32 %v326, 4294901760
      %396 = vmatpush1.msra.mxu0 %v395
      %397 = vmatprep.subr.mxu0 0.0
      %v398 = vand.u32 %v327, 4294901760
      %399 = vmatpush1.msra.mxu0 %v398
      %400 = vmatprep.subr.mxu0 0.0
      %v401 = vand.u32 %v328, 4294901760
      %402 = vmatpush1.msra.mxu0 %v401
      %403 = vmatprep.subr.mxu0 0.0
      %v404 = vand.u32 %v329, 4294901760
      %405 = vmatpush1.msra.mxu0 %v404
      %406 = vmatprep.subr.mxu0 0.0
      %v407 = vand.u32 %v330, 4294901760
      %408 = vmatpush1.msra.mxu0 %v407
      %409 = vmatprep.subr.mxu0 0.0
      %v410 = vand.u32 %v331, 4294901760
      %411 = vmatpush1.msra.mxu0 %v410
      %412 = vmatprep.subr.mxu0 0.0
      %v413 = vand.u32 %v332, 4294901760
      %414 = vmatpush1.msra.mxu0 %v413
      %415 = vmatprep.subr.mxu0 0.0
      %v416 = vand.u32 %v333, 4294901760
      %417 = vmatpush1.msra.mxu0 %v416
      %418 = vmatprep.subr.mxu0 0.0
      %v419 = vand.u32 %v334, 4294901760
      %420 = vmatpush1.msra.mxu0 %v419
      %421 = vmatprep.subr.mxu0 0.0
      %v422 = vand.u32 %v335, 4294901760
      %423 = vmatpush1.msra.mxu0 %v422
      %424 = vmatprep.subr.mxu0 0.0
      %v425 = vand.u32 %v336, 4294901760
      %426 = vmatpush1.msra.mxu0 %v425
      %427 = vmatprep.subr.mxu0 0.0
      %v428 = vand.u32 %v337, 4294901760
      %429 = vmatpush1.msra.mxu0 %v428
      %430 = vmatprep.subr.mxu0 0.0
      %v431 = vand.u32 %v338, 4294901760
      %432 = vmatpush1.msra.mxu0 %v431
      %433 = vmatprep.subr.mxu0 0.0
      %v434 = vand.u32 %v339, 4294901760
      %435 = vmatpush1.msra.mxu0 %v434
      %v436 = vand.u32 %v306, 4294901760
      %v437 = vsub.f32 %v306, %v436
      %v438 = vand.u32 %v437, 4294901760
      %v439 = vsub.f32 %v437, %v438
      %v440 = vand.u32 %v439, 4294901760
      %441 = vmatprep.mubr.f32.mxu0 %v440
      %v442 = vand.u32 %v305, 4294901760
      %v443 = vsub.f32 %v305, %v442
      %v444 = vand.u32 %v443, 4294901760
      %v445 = vsub.f32 %v443, %v444
      %v446 = vand.u32 %v445, 4294901760
      %447 = vmatmul.mubr.f32.gmra.mrb[0].mxu0 %v446
      %v448 = vpop.f32.mrb[0].mxu0
      %v449 = vadd.f32 0.0, %v448
      %v450 = vpop.f32.mrb[0].mxu0
      %451 = vdwg.mxu0
      %452 = vmatprep.subr.mxu0 0.0
      %v453 = vand.u32 %v308, 4294901760
      %v454 = vsub.f32 %v308, %v453
      %v455 = vand.u32 %v454, 4294901760
      %v456 = vsub.f32 %v454, %v455
      %v457 = vand.u32 %v456, 4294901760
      %458 = vmatpush1.msra.mxu0 %v457
      %459 = vmatprep.subr.mxu0 0.0
      %v460 = vand.u32 %v309, 4294901760
      %v461 = vsub.f32 %v309, %v460
      %v462 = vand.u32 %v461, 4294901760
      %v463 = vsub.f32 %v461, %v462
      %v464 = vand.u32 %v463, 4294901760
      %465 = vmatpush1.msra.mxu0 %v464
      %466 = vmatprep.subr.mxu0 0.0
      %v467 = vand.u32 %v310, 4294901760
      %v468 = vsub.f32 %v310, %v467
      %v469 = vand.u32 %v468, 4294901760
      %v470 = vsub.f32 %v468, %v469
      %v471 = vand.u32 %v470, 4294901760
      %472 = vmatpush1.msra.mxu0 %v471
      %473 = vmatprep.subr.mxu0 0.0
      %v474 = vand.u32 %v311, 4294901760
      %v475 = vsub.f32 %v311, %v474
      %v476 = vand.u32 %v475, 4294901760
      %v477 = vsub.f32 %v475, %v476
      %v478 = vand.u32 %v477, 4294901760
      %479 = vmatpush1.msra.mxu0 %v478
      %480 = vmatprep.subr.mxu0 0.0
      %v481 = vand.u32 %v312, 4294901760
      %v482 = vsub.f32 %v312, %v481
      %v483 = vand.u32 %v482, 4294901760
      %v484 = vsub.f32 %v482, %v483
      %v485 = vand.u32 %v484, 4294901760
      %486 = vmatpush1.msra.mxu0 %v485
      %487 = vmatprep.subr.mxu0 0.0
      %v488 = vand.u32 %v313, 4294901760
      %v489 = vsub.f32 %v313, %v488
      %v490 = vand.u32 %v489, 4294901760
      %v491 = vsub.f32 %v489, %v490
      %v492 = vand.u32 %v491, 4294901760
      %493 = vmatpush1.msra.mxu0 %v492
      %494 = vmatprep.subr.mxu0 0.0
      %v495 = vand.u32 %v314, 4294901760
      %v496 = vsub.f32 %v314, %v495
      %v497 = vand.u32 %v496, 4294901760
      %v498 = vsub.f32 %v496, %v497
      %v499 = vand.u32 %v498, 4294901760
      %500 = vmatpush1.msra.mxu0 %v499
      %501 = vmatprep.subr.mxu0 0.0
      %v502 = vand.u32 %v315, 4294901760
      %v503 = vsub.f32 %v315, %v502
      %v504 = vand.u32 %v503, 4294901760
      %v505 = vsub.f32 %v503, %v504
      %v506 = vand.u32 %v505, 4294901760
      %507 = vmatpush1.msra.mxu0 %v506
      %508 = vmatprep.subr.mxu0 0.0
      %v509 = vand.u32 %v316, 4294901760
      %v510 = vsub.f32 %v316, %v509
      %v511 = vand.u32 %v510, 4294901760
      %v512 = vsub.f32 %v510, %v511
      %v513 = vand.u32 %v512, 4294901760
      %514 = vmatpush1.msra.mxu0 %v513
      %515 = vmatprep.subr.mxu0 0.0
      %v516 = vand.u32 %v317, 4294901760
      %v517 = vsub.f32 %v317, %v516
      %v518 = vand.u32 %v517, 4294901760
      %v519 = vsub.f32 %v517, %v518
      %v520 = vand.u32 %v519, 4294901760
      %521 = vmatpush1.msra.mxu0 %v520
      %522 = vmatprep.subr.mxu0 0.0
      %v523 = vand.u32 %v318, 4294901760
      %v524 = vsub.f32 %v318, %v523
      %v525 = vand.u32 %v524, 4294901760
      %v526 = vsub.f32 %v524, %v525
      %v527 = vand.u32 %v526, 4294901760
      %528 = vmatpush1.msra.mxu0 %v527
      %529 = vmatprep.subr.mxu0 0.0
      %v530 = vand.u32 %v319, 4294901760
      %v531 = vsub.f32 %v319, %v530
      %v532 = vand.u32 %v531, 4294901760
      %v533 = vsub.f32 %v531, %v532
      %v534 = vand.u32 %v533, 4294901760
      %535 = vmatpush1.msra.mxu0 %v534
      %536 = vmatprep.subr.mxu0 0.0
      %v537 = vand.u32 %v320, 4294901760
      %v538 = vsub.f32 %v320, %v537
      %v539 = vand.u32 %v538, 4294901760
      %v540 = vsub.f32 %v538, %v539
      %v541 = vand.u32 %v540, 4294901760
      %542 = vmatpush1.msra.mxu0 %v541
      %543 = vmatprep.subr.mxu0 0.0
      %v544 = vand.u32 %v321, 4294901760
      %v545 = vsub.f32 %v321, %v544
      %v546 = vand.u32 %v545, 4294901760
      %v547 = vsub.f32 %v545, %v546
      %v548 = vand.u32 %v547, 4294901760
      %549 = vmatpush1.msra.mxu0 %v548
      %550 = vmatprep.subr.mxu0 0.0
      %v551 = vand.u32 %v322, 4294901760
      %v552 = vsub.f32 %v322, %v551
      %v553 = vand.u32 %v552, 4294901760
      %v554 = vsub.f32 %v552, %v553
      %v555 = vand.u32 %v554, 4294901760
      %556 = vmatpush1.msra.mxu0 %v555
      %557 = vmatprep.subr.mxu0 0.0
      %v558 = vand.u32 %v323, 4294901760
      %v559 = vsub.f32 %v323, %v558
      %v560 = vand.u32 %v559, 4294901760
      %v561 = vsub.f32 %v559, %v560
      %v562 = vand.u32 %v561, 4294901760
      %563 = vmatpush1.msra.mxu0 %v562
      %564 = vmatprep.subr.mxu0 0.0
      %v565 = vand.u32 %v324, 4294901760
      %v566 = vsub.f32 %v324, %v565
      %v567 = vand.u32 %v566, 4294901760
      %v568 = vsub.f32 %v566, %v567
      %v569 = vand.u32 %v568, 4294901760
      %570 = vmatpush1.msra.mxu0 %v569
      %571 = vmatprep.subr.mxu0 0.0
      %v572 = vand.u32 %v325, 4294901760
      %v573 = vsub.f32 %v325, %v572
      %v574 = vand.u32 %v573, 4294901760
      %v575 = vsub.f32 %v573, %v574
      %v576 = vand.u32 %v575, 4294901760
      %577 = vmatpush1.msra.mxu0 %v576
      %578 = vmatprep.subr.mxu0 0.0
      %v579 = vand.u32 %v326, 4294901760
      %v580 = vsub.f32 %v326, %v579
      %v581 = vand.u32 %v580, 4294901760
      %v582 = vsub.f32 %v580, %v581
      %v583 = vand.u32 %v582, 4294901760
      %584 = vmatpush1.msra.mxu0 %v583
      %585 = vmatprep.subr.mxu0 0.0
      %v586 = vand.u32 %v327, 4294901760
      %v587 = vsub.f32 %v327, %v586
      %v588 = vand.u32 %v587, 4294901760
      %v589 = vsub.f32 %v587, %v588
      %v590 = vand.u32 %v589, 4294901760
      %591 = vmatpush1.msra.mxu0 %v590
      %592 = vmatprep.subr.mxu0 0.0
      %v593 = vand.u32 %v328, 4294901760
      %v594 = vsub.f32 %v328, %v593
      %v595 = vand.u32 %v594, 4294901760
      %v596 = vsub.f32 %v594, %v595
      %v597 = vand.u32 %v596, 4294901760
      %598 = vmatpush1.msra.mxu0 %v597
      %599 = vmatprep.subr.mxu0 0.0
      %v600 = vand.u32 %v329, 4294901760
      %v601 = vsub.f32 %v329, %v600
      %v602 = vand.u32 %v601, 4294901760
      %v603 = vsub.f32 %v601, %v602
      %v604 = vand.u32 %v603, 4294901760
      %605 = vmatpush1.msra.mxu0 %v604
      %606 = vmatprep.subr.mxu0 0.0
      %v607 = vand.u32 %v330, 4294901760
      %v608 = vsub.f32 %v330, %v607
      %v609 = vand.u32 %v608, 4294901760
      %v610 = vsub.f32 %v608, %v609
      %v611 = vand.u32 %v610, 4294901760
      %612 = vmatpush1.msra.mxu0 %v611
      %613 = vmatprep.subr.mxu0 0.0
      %v614 = vand.u32 %v331, 4294901760
      %v615 = vsub.f32 %v331, %v614
      %v616 = vand.u32 %v615, 4294901760
      %v617 = vsub.f32 %v615, %v616
      %v618 = vand.u32 %v617, 4294901760
      %619 = vmatpush1.msra.mxu0 %v618
      %620 = vmatprep.subr.mxu0 0.0
      %v621 = vand.u32 %v332, 4294901760
      %v622 = vsub.f32 %v332, %v621
      %v623 = vand.u32 %v622, 4294901760
      %v624 = vsub.f32 %v622, %v623
      %v625 = vand.u32 %v624, 4294901760
      %626 = vmatpush1.msra.mxu0 %v625
      %627 = vmatprep.subr.mxu0 0.0
      %v628 = vand.u32 %v333, 4294901760
      %v629 = vsub.f32 %v333, %v628
      %v630 = vand.u32 %v629, 4294901760
      %v631 = vsub.f32 %v629, %v630
      %v632 = vand.u32 %v631, 4294901760
      %633 = vmatpush1.msra.mxu0 %v632
      %634 = vmatprep.subr.mxu0 0.0
      %v635 = vand.u32 %v334, 4294901760
      %v636 = vsub.f32 %v334, %v635
      %v637 = vand.u32 %v636, 4294901760
      %v638 = vsub.f32 %v636, %v637
      %v639 = vand.u32 %v638, 4294901760
      %640 = vmatpush1.msra.mxu0 %v639
      %641 = vmatprep.subr.mxu0 0.0
      %v642 = vand.u32 %v335, 4294901760
      %v643 = vsub.f32 %v335, %v642
      %v644 = vand.u32 %v643, 4294901760
      %v645 = vsub.f32 %v643, %v644
      %v646 = vand.u32 %v645, 4294901760
      %647 = vmatpush1.msra.mxu0 %v646
      %648 = vmatprep.subr.mxu0 0.0
      %v649 = vand.u32 %v336, 4294901760
      %v650 = vsub.f32 %v336, %v649
      %v651 = vand.u32 %v650, 4294901760
      %v652 = vsub.f32 %v650, %v651
      %v653 = vand.u32 %v652, 4294901760
      %654 = vmatpush1.msra.mxu0 %v653
      %655 = vmatprep.subr.mxu0 0.0
      %v656 = vand.u32 %v337, 4294901760
      %v657 = vsub.f32 %v337, %v656
      %v658 = vand.u32 %v657, 4294901760
      %v659 = vsub.f32 %v657, %v658
      %v660 = vand.u32 %v659, 4294901760
      %661 = vmatpush1.msra.mxu0 %v660
      %662 = vmatprep.subr.mxu0 0.0
      %v663 = vand.u32 %v338, 4294901760
      %v664 = vsub.f32 %v338, %v663
      %v665 = vand.u32 %v664, 4294901760
      %v666 = vsub.f32 %v664, %v665
      %v667 = vand.u32 %v666, 4294901760
      %668 = vmatpush1.msra.mxu0 %v667
      %669 = vmatprep.subr.mxu0 0.0
      %v670 = vand.u32 %v339, 4294901760
      %v671 = vsub.f32 %v339, %v670
      %v672 = vand.u32 %v671, 4294901760
      %v673 = vsub.f32 %v671, %v672
      %v674 = vand.u32 %v673, 4294901760
      %675 = vmatpush1.msra.mxu0 %v674
      %v676 = vand.u32 %v306, 4294901760
      %677 = vmatprep.mubr.f32.mxu0 %v676
      %v678 = vand.u32 %v305, 4294901760
      %679 = vmatmul.mubr.f32.gmra.mrb[0].mxu0 %v678
      %v680 = vpop.f32.mrb[0].mxu0
      %v681 = vadd.f32 %v449, %v680
      %v682 = vpop.f32.mrb[0].mxu0
      %683 = vdwg.mxu0
      %684 = vmatprep.subr.mxu0 0.0
      %v685 = vand.u32 %v308, 4294901760
      %v686 = vsub.f32 %v308, %v685
      %687 = vmatpush1.msra.mxu0 %v686
      %688 = vmatprep.subr.mxu0 0.0
      %v689 = vand.u32 %v309, 4294901760
      %v690 = vsub.f32 %v309, %v689
      %691 = vmatpush1.msra.mxu0 %v690
      %692 = vmatprep.subr.mxu0 0.0
      %v693 = vand.u32 %v310, 4294901760
      %v694 = vsub.f32 %v310, %v693
      %695 = vmatpush1.msra.mxu0 %v694
      %696 = vmatprep.subr.mxu0 0.0
      %v697 = vand.u32 %v311, 4294901760
      %v698 = vsub.f32 %v311, %v697
      %699 = vmatpush1.msra.mxu0 %v698
      %700 = vmatprep.subr.mxu0 0.0
      %v701 = vand.u32 %v312, 4294901760
      %v702 = vsub.f32 %v312, %v701
      %703 = vmatpush1.msra.mxu0 %v702
      %704 = vmatprep.subr.mxu0 0.0
      %v705 = vand.u32 %v313, 4294901760
      %v706 = vsub.f32 %v313, %v705
      %707 = vmatpush1.msra.mxu0 %v706
      %708 = vmatprep.subr.mxu0 0.0
      %v709 = vand.u32 %v314, 4294901760
      %v710 = vsub.f32 %v314, %v709
      %711 = vmatpush1.msra.mxu0 %v710
      %712 = vmatprep.subr.mxu0 0.0
      %v713 = vand.u32 %v315, 4294901760
      %v714 = vsub.f32 %v315, %v713
      %715 = vmatpush1.msra.mxu0 %v714
      %716 = vmatprep.subr.mxu0 0.0
      %v717 = vand.u32 %v316, 4294901760
      %v718 = vsub.f32 %v316, %v717
      %719 = vmatpush1.msra.mxu0 %v718
      %720 = vmatprep.subr.mxu0 0.0
      %v721 = vand.u32 %v317, 4294901760
      %v722 = vsub.f32 %v317, %v721
      %723 = vmatpush1.msra.mxu0 %v722
      %724 = vmatprep.subr.mxu0 0.0
      %v725 = vand.u32 %v318, 4294901760
      %v726 = vsub.f32 %v318, %v725
      %727 = vmatpush1.msra.mxu0 %v726
      %728 = vmatprep.subr.mxu0 0.0
      %v729 = vand.u32 %v319, 4294901760
      %v730 = vsub.f32 %v319, %v729
      %731 = vmatpush1.msra.mxu0 %v730
      %732 = vmatprep.subr.mxu0 0.0
      %v733 = vand.u32 %v320, 4294901760
      %v734 = vsub.f32 %v320, %v733
      %735 = vmatpush1.msra.mxu0 %v734
      %736 = vmatprep.subr.mxu0 0.0
      %v737 = vand.u32 %v321, 4294901760
      %v738 = vsub.f32 %v321, %v737
      %739 = vmatpush1.msra.mxu0 %v738
      %740 = vmatprep.subr.mxu0 0.0
      %v741 = vand.u32 %v322, 4294901760
      %v742 = vsub.f32 %v322, %v741
      %743 = vmatpush1.msra.mxu0 %v742
      %744 = vmatprep.subr.mxu0 0.0
      %v745 = vand.u32 %v323, 4294901760
      %v746 = vsub.f32 %v323, %v745
      %747 = vmatpush1.msra.mxu0 %v746
      %748 = vmatprep.subr.mxu0 0.0
      %v749 = vand.u32 %v324, 4294901760
      %v750 = vsub.f32 %v324, %v749
      %751 = vmatpush1.msra.mxu0 %v750
      %752 = vmatprep.subr.mxu0 0.0
      %v753 = vand.u32 %v325, 4294901760
      %v754 = vsub.f32 %v325, %v753
      %755 = vmatpush1.msra.mxu0 %v754
      %756 = vmatprep.subr.mxu0 0.0
      %v757 = vand.u32 %v326, 4294901760
      %v758 = vsub.f32 %v326, %v757
      %759 = vmatpush1.msra.mxu0 %v758
      %760 = vmatprep.subr.mxu0 0.0
      %v761 = vand.u32 %v327, 4294901760
      %v762 = vsub.f32 %v327, %v761
      %763 = vmatpush1.msra.mxu0 %v762
      %764 = vmatprep.subr.mxu0 0.0
      %v765 = vand.u32 %v328, 4294901760
      %v766 = vsub.f32 %v328, %v765
      %767 = vmatpush1.msra.mxu0 %v766
      %768 = vmatprep.subr.mxu0 0.0
      %v769 = vand.u32 %v329, 4294901760
      %v770 = vsub.f32 %v329, %v769
      %771 = vmatpush1.msra.mxu0 %v770
      %772 = vmatprep.subr.mxu0 0.0
      %v773 = vand.u32 %v330, 4294901760
      %v774 = vsub.f32 %v330, %v773
      %775 = vmatpush1.msra.mxu0 %v774
      %776 = vmatprep.subr.mxu0 0.0
      %v777 = vand.u32 %v331, 4294901760
      %v778 = vsub.f32 %v331, %v777
      %779 = vmatpush1.msra.mxu0 %v778
      %780 = vmatprep.subr.mxu0 0.0
      %v781 = vand.u32 %v332, 4294901760
      %v782 = vsub.f32 %v332, %v781
      %783 = vmatpush1.msra.mxu0 %v782
      %784 = vmatprep.subr.mxu0 0.0
      %v785 = vand.u32 %v333, 4294901760
      %v786 = vsub.f32 %v333, %v785
      %787 = vmatpush1.msra.mxu0 %v786
      %788 = vmatprep.subr.mxu0 0.0
      %v789 = vand.u32 %v334, 4294901760
      %v790 = vsub.f32 %v334, %v789
      %791 = vmatpush1.msra.mxu0 %v790
      %792 = vmatprep.subr.mxu0 0.0
      %v793 = vand.u32 %v335, 4294901760
      %v794 = vsub.f32 %v335, %v793
      %795 = vmatpush1.msra.mxu0 %v794
      %796 = vmatprep.subr.mxu0 0.0
      %v797 = vand.u32 %v336, 4294901760
      %v798 = vsub.f32 %v336, %v797
      %799 = vmatpush1.msra.mxu0 %v798
      %800 = vmatprep.subr.mxu0 0.0
      %v801 = vand.u32 %v337, 4294901760
      %v802 = vsub.f32 %v337, %v801
      %803 = vmatpush1.msra.mxu0 %v802
      %804 = vmatprep.subr.mxu0 0.0
      %v805 = vand.u32 %v338, 4294901760
      %v806 = vsub.f32 %v338, %v805
      %807 = vmatpush1.msra.mxu0 %v806
      %808 = vmatprep.subr.mxu0 0.0
      %v809 = vand.u32 %v339, 4294901760
      %v810 = vsub.f32 %v339, %v809
      %811 = vmatpush1.msra.mxu0 %v810
      %v812 = vand.u32 %v306, 4294901760
      %v813 = vsub.f32 %v306, %v812
      %814 = vmatprep.mubr.f32.mxu0 %v813
      %v815 = vand.u32 %v305, 4294901760
      %v816 = vsub.f32 %v305, %v815
      %817 = vmatmul.mubr.f32.gmra.mrb[0].mxu0 %v816
      %v818 = vpop.f32.mrb[0].mxu0
      %v819 = vadd.f32 %v681, %v818
      %v820 = vpop.f32.mrb[0].mxu0
      %821 = vdwg.mxu0
      %822 = vmatprep.subr.mxu0 0.0
      %v823 = vand.u32 %v308, 4294901760
      %824 = vmatpush1.msra.mxu0 %v823
      %825 = vmatprep.subr.mxu0 0.0
      %v826 = vand.u32 %v309, 4294901760
      %827 = vmatpush1.msra.mxu0 %v826
      %828 = vmatprep.subr.mxu0 0.0
      %v829 = vand.u32 %v310, 4294901760
      %830 = vmatpush1.msra.mxu0 %v829
      %831 = vmatprep.subr.mxu0 0.0
      %v832 = vand.u32 %v311, 4294901760
      %833 = vmatpush1.msra.mxu0 %v832
      %834 = vmatprep.subr.mxu0 0.0
      %v835 = vand.u32 %v312, 4294901760
      %836 = vmatpush1.msra.mxu0 %v835
      %837 = vmatprep.subr.mxu0 0.0
      %v838 = vand.u32 %v313, 4294901760
      %839 = vmatpush1.msra.mxu0 %v838
      %840 = vmatprep.subr.mxu0 0.0
      %v841 = vand.u32 %v314, 4294901760
      %842 = vmatpush1.msra.mxu0 %v841
      %843 = vmatprep.subr.mxu0 0.0
      %v844 = vand.u32 %v315, 4294901760
      %845 = vmatpush1.msra.mxu0 %v844
      %846 = vmatprep.subr.mxu0 0.0
      %v847 = vand.u32 %v316, 4294901760
      %848 = vmatpush1.msra.mxu0 %v847
      %849 = vmatprep.subr.mxu0 0.0
      %v850 = vand.u32 %v317, 4294901760
      %851 = vmatpush1.msra.mxu0 %v850
      %852 = vmatprep.subr.mxu0 0.0
      %v853 = vand.u32 %v318, 4294901760
      %854 = vmatpush1.msra.mxu0 %v853
      %855 = vmatprep.subr.mxu0 0.0
      %v856 = vand.u32 %v319, 4294901760
      %857 = vmatpush1.msra.mxu0 %v856
      %858 = vmatprep.subr.mxu0 0.0
      %v859 = vand.u32 %v320, 4294901760
      %860 = vmatpush1.msra.mxu0 %v859
      %861 = vmatprep.subr.mxu0 0.0
      %v862 = vand.u32 %v321, 4294901760
      %863 = vmatpush1.msra.mxu0 %v862
      %864 = vmatprep.subr.mxu0 0.0
      %v865 = vand.u32 %v322, 4294901760
      %866 = vmatpush1.msra.mxu0 %v865
      %867 = vmatprep.subr.mxu0 0.0
      %v868 = vand.u32 %v323, 4294901760
      %869 = vmatpush1.msra.mxu0 %v868
      %870 = vmatprep.subr.mxu0 0.0
      %v871 = vand.u32 %v324, 4294901760
      %872 = vmatpush1.msra.mxu0 %v871
      %873 = vmatprep.subr.mxu0 0.0
      %v874 = vand.u32 %v325, 4294901760
      %875 = vmatpush1.msra.mxu0 %v874
      %876 = vmatprep.subr.mxu0 0.0
      %v877 = vand.u32 %v326, 4294901760
      %878 = vmatpush1.msra.mxu0 %v877
      %879 = vmatprep.subr.mxu0 0.0
      %v880 = vand.u32 %v327, 4294901760
      %881 = vmatpush1.msra.mxu0 %v880
      %882 = vmatprep.subr.mxu0 0.0
      %v883 = vand.u32 %v328, 4294901760
      %884 = vmatpush1.msra.mxu0 %v883
      %885 = vmatprep.subr.mxu0 0.0
      %v886 = vand.u32 %v329, 4294901760
      %887 = vmatpush1.msra.mxu0 %v886
      %888 = vmatprep.subr.mxu0 0.0
      %v889 = vand.u32 %v330, 4294901760
      %890 = vmatpush1.msra.mxu0 %v889
      %891 = vmatprep.subr.mxu0 0.0
      %v892 = vand.u32 %v331, 4294901760
      %893 = vmatpush1.msra.mxu0 %v892
      %894 = vmatprep.subr.mxu0 0.0
      %v895 = vand.u32 %v332, 4294901760
      %896 = vmatpush1.msra.mxu0 %v895
      %897 = vmatprep.subr.mxu0 0.0
      %v898 = vand.u32 %v333, 4294901760
      %899 = vmatpush1.msra.mxu0 %v898
      %900 = vmatprep.subr.mxu0 0.0
      %v901 = vand.u32 %v334, 4294901760
      %902 = vmatpush1.msra.mxu0 %v901
      %903 = vmatprep.subr.mxu0 0.0
      %v904 = vand.u32 %v335, 4294901760
      %905 = vmatpush1.msra.mxu0 %v904
      %906 = vmatprep.subr.mxu0 0.0
      %v907 = vand.u32 %v336, 4294901760
      %908 = vmatpush1.msra.mxu0 %v907
      %909 = vmatprep.subr.mxu0 0.0
      %v910 = vand.u32 %v337, 4294901760
      %911 = vmatpush1.msra.mxu0 %v910
      %912 = vmatprep.subr.mxu0 0.0
      %v913 = vand.u32 %v338, 4294901760
      %914 = vmatpush1.msra.mxu0 %v913
      %915 = vmatprep.subr.mxu0 0.0
      %v916 = vand.u32 %v339, 4294901760
      %917 = vmatpush1.msra.mxu0 %v916
      %v918 = vand.u32 %v306, 4294901760
      %v919 = vsub.f32 %v306, %v918
      %v920 = vand.u32 %v919, 4294901760
      %921 = vmatprep.mubr.f32.mxu0 %v920
      %v922 = vand.u32 %v305, 4294901760
      %v923 = vsub.f32 %v305, %v922
      %v924 = vand.u32 %v923, 4294901760
      %925 = vmatmul.mubr.f32.gmra.mrb[0].mxu0 %v924
      %v926 = vpop.f32.mrb[0].mxu0
      %v927 = vadd.f32 %v819, %v926
      %v928 = vpop.f32.mrb[0].mxu0
      %929 = vdwg.mxu0
      %930 = vmatprep.subr.mxu0 0.0
      %v931 = vand.u32 %v308, 4294901760
      %v932 = vsub.f32 %v308, %v931
      %v933 = vand.u32 %v932, 4294901760
      %934 = vmatpush1.msra.mxu0 %v933
      %935 = vmatprep.subr.mxu0 0.0
      %v936 = vand.u32 %v309, 4294901760
      %v937 = vsub.f32 %v309, %v936
      %v938 = vand.u32 %v937, 4294901760
      %939 = vmatpush1.msra.mxu0 %v938
      %940 = vmatprep.subr.mxu0 0.0
      %v941 = vand.u32 %v310, 4294901760
      %v942 = vsub.f32 %v310, %v941
      %v943 = vand.u32 %v942, 4294901760
      %944 = vmatpush1.msra.mxu0 %v943
      %945 = vmatprep.subr.mxu0 0.0
      %v946 = vand.u32 %v311, 4294901760
      %v947 = vsub.f32 %v311, %v946
      %v948 = vand.u32 %v947, 4294901760
      %949 = vmatpush1.msra.mxu0 %v948
      %950 = vmatprep.subr.mxu0 0.0
      %v951 = vand.u32 %v312, 4294901760
      %v952 = vsub.f32 %v312, %v951
      %v953 = vand.u32 %v952, 4294901760
      %954 = vmatpush1.msra.mxu0 %v953
      %955 = vmatprep.subr.mxu0 0.0
      %v956 = vand.u32 %v313, 4294901760
      %v957 = vsub.f32 %v313, %v956
      %v958 = vand.u32 %v957, 4294901760
      %959 = vmatpush1.msra.mxu0 %v958
      %960 = vmatprep.subr.mxu0 0.0
      %v961 = vand.u32 %v314, 4294901760
      %v962 = vsub.f32 %v314, %v961
      %v963 = vand.u32 %v962, 4294901760
      %964 = vmatpush1.msra.mxu0 %v963
      %965 = vmatprep.subr.mxu0 0.0
      %v966 = vand.u32 %v315, 4294901760
      %v967 = vsub.f32 %v315, %v966
      %v968 = vand.u32 %v967, 4294901760
      %969 = vmatpush1.msra.mxu0 %v968
      %970 = vmatprep.subr.mxu0 0.0
      %v971 = vand.u32 %v316, 4294901760
      %v972 = vsub.f32 %v316, %v971
      %v973 = vand.u32 %v972, 4294901760
      %974 = vmatpush1.msra.mxu0 %v973
      %975 = vmatprep.subr.mxu0 0.0
      %v976 = vand.u32 %v317, 4294901760
      %v977 = vsub.f32 %v317, %v976
      %v978 = vand.u32 %v977, 4294901760
      %979 = vmatpush1.msra.mxu0 %v978
      %980 = vmatprep.subr.mxu0 0.0
      %v981 = vand.u32 %v318, 4294901760
      %v982 = vsub.f32 %v318, %v981
      %v983 = vand.u32 %v982, 4294901760
      %984 = vmatpush1.msra.mxu0 %v983
      %985 = vmatprep.subr.mxu0 0.0
      %v986 = vand.u32 %v319, 4294901760
      %v987 = vsub.f32 %v319, %v986
      %v988 = vand.u32 %v987, 4294901760
      %989 = vmatpush1.msra.mxu0 %v988
      %990 = vmatprep.subr.mxu0 0.0
      %v991 = vand.u32 %v320, 4294901760
      %v992 = vsub.f32 %v320, %v991
      %v993 = vand.u32 %v992, 4294901760
      %994 = vmatpush1.msra.mxu0 %v993
      %995 = vmatprep.subr.mxu0 0.0
      %v996 = vand.u32 %v321, 4294901760
      %v997 = vsub.f32 %v321, %v996
      %v998 = vand.u32 %v997, 4294901760
      %999 = vmatpush1.msra.mxu0 %v998
      %1000 = vmatprep.subr.mxu0 0.0
      %v1001 = vand.u32 %v322, 4294901760
      %v1002 = vsub.f32 %v322, %v1001
      %v1003 = vand.u32 %v1002, 4294901760
      %1004 = vmatpush1.msra.mxu0 %v1003
      %1005 = vmatprep.subr.mxu0 0.0
      %v1006 = vand.u32 %v323, 4294901760
      %v1007 = vsub.f32 %v323, %v1006
      %v1008 = vand.u32 %v1007, 4294901760
      %1009 = vmatpush1.msra.mxu0 %v1008
      %1010 = vmatprep.subr.mxu0 0.0
      %v1011 = vand.u32 %v324, 4294901760
      %v1012 = vsub.f32 %v324, %v1011
      %v1013 = vand.u32 %v1012, 4294901760
      %1014 = vmatpush1.msra.mxu0 %v1013
      %1015 = vmatprep.subr.mxu0 0.0
      %v1016 = vand.u32 %v325, 4294901760
      %v1017 = vsub.f32 %v325, %v1016
      %v1018 = vand.u32 %v1017, 4294901760
      %1019 = vmatpush1.msra.mxu0 %v1018
      %1020 = vmatprep.subr.mxu0 0.0
      %v1021 = vand.u32 %v326, 4294901760
      %v1022 = vsub.f32 %v326, %v1021
      %v1023 = vand.u32 %v1022, 4294901760
      %1024 = vmatpush1.msra.mxu0 %v1023
      %1025 = vmatprep.subr.mxu0 0.0
      %v1026 = vand.u32 %v327, 4294901760
      %v1027 = vsub.f32 %v327, %v1026
      %v1028 = vand.u32 %v1027, 4294901760
      %1029 = vmatpush1.msra.mxu0 %v1028
      %1030 = vmatprep.subr.mxu0 0.0
      %v1031 = vand.u32 %v328, 4294901760
      %v1032 = vsub.f32 %v328, %v1031
      %v1033 = vand.u32 %v1032, 4294901760
      %1034 = vmatpush1.msra.mxu0 %v1033
      %1035 = vmatprep.subr.mxu0 0.0
      %v1036 = vand.u32 %v329, 4294901760
      %v1037 = vsub.f32 %v329, %v1036
      %v1038 = vand.u32 %v1037, 4294901760
      %1039 = vmatpush1.msra.mxu0 %v1038
      %1040 = vmatprep.subr.mxu0 0.0
      %v1041 = vand.u32 %v330, 4294901760
      %v1042 = vsub.f32 %v330, %v1041
      %v1043 = vand.u32 %v1042, 4294901760
      %1044 = vmatpush1.msra.mxu0 %v1043
      %1045 = vmatprep.subr.mxu0 0.0
      %v1046 = vand.u32 %v331, 4294901760
      %v1047 = vsub.f32 %v331, %v1046
      %v1048 = vand.u32 %v1047, 4294901760
      %1049 = vmatpush1.msra.mxu0 %v1048
      %1050 = vmatprep.subr.mxu0 0.0
      %v1051 = vand.u32 %v332, 4294901760
      %v1052 = vsub.f32 %v332, %v1051
      %v1053 = vand.u32 %v1052, 4294901760
      %1054 = vmatpush1.msra.mxu0 %v1053
      %1055 = vmatprep.subr.mxu0 0.0
      %v1056 = vand.u32 %v333, 4294901760
      %v1057 = vsub.f32 %v333, %v1056
      %v1058 = vand.u32 %v1057, 4294901760
      %1059 = vmatpush1.msra.mxu0 %v1058
      %1060 = vmatprep.subr.mxu0 0.0
      %v1061 = vand.u32 %v334, 4294901760
      %v1062 = vsub.f32 %v334, %v1061
      %v1063 = vand.u32 %v1062, 4294901760
      %1064 = vmatpush1.msra.mxu0 %v1063
      %1065 = vmatprep.subr.mxu0 0.0
      %v1066 = vand.u32 %v335, 4294901760
      %v1067 = vsub.f32 %v335, %v1066
      %v1068 = vand.u32 %v1067, 4294901760
      %1069 = vmatpush1.msra.mxu0 %v1068
      %1070 = vmatprep.subr.mxu0 0.0
      %v1071 = vand.u32 %v336, 4294901760
      %v1072 = vsub.f32 %v336, %v1071
      %v1073 = vand.u32 %v1072, 4294901760
      %1074 = vmatpush1.msra.mxu0 %v1073
      %1075 = vmatprep.subr.mxu0 0.0
      %v1076 = vand.u32 %v337, 4294901760
      %v1077 = vsub.f32 %v337, %v1076
      %v1078 = vand.u32 %v1077, 4294901760
      %1079 = vmatpush1.msra.mxu0 %v1078
      %1080 = vmatprep.subr.mxu0 0.0
      %v1081 = vand.u32 %v338, 4294901760
      %v1082 = vsub.f32 %v338, %v1081
      %v1083 = vand.u32 %v1082, 4294901760
      %1084 = vmatpush1.msra.mxu0 %v1083
      %1085 = vmatprep.subr.mxu0 0.0
      %v1086 = vand.u32 %v339, 4294901760
      %v1087 = vsub.f32 %v339, %v1086
      %v1088 = vand.u32 %v1087, 4294901760
      %1089 = vmatpush1.msra.mxu0 %v1088
      %v1090 = vand.u32 %v306, 4294901760
      %1091 = vmatprep.mubr.f32.mxu0 %v1090
      %v1092 = vand.u32 %v305, 4294901760
      %1093 = vmatmul.mubr.f32.gmra.mrb[0].mxu0 %v1092
      %v1094 = vpop.f32.mrb[0].mxu0
      %v1095 = vadd.f32 %v927, %v1094
      %v1096 = vpop.f32.mrb[0].mxu0
      %1097 = vdwg.mxu0
      %1098 = vmatprep.subr.mxu0 0.0
      %v1099 = vand.u32 %v308, 4294901760
      %1100 = vmatpush1.msra.mxu0 %v1099
      %1101 = vmatprep.subr.mxu0 0.0
      %v1102 = vand.u32 %v309, 4294901760
      %1103 = vmatpush1.msra.mxu0 %v1102
      %1104 = vmatprep.subr.mxu0 0.0
      %v1105 = vand.u32 %v310, 4294901760
      %1106 = vmatpush1.msra.mxu0 %v1105
      %1107 = vmatprep.subr.mxu0 0.0
      %v1108 = vand.u32 %v311, 4294901760
      %1109 = vmatpush1.msra.mxu0 %v1108
      %1110 = vmatprep.subr.mxu0 0.0
      %v1111 = vand.u32 %v312, 4294901760
      %1112 = vmatpush1.msra.mxu0 %v1111
      %1113 = vmatprep.subr.mxu0 0.0
      %v1114 = vand.u32 %v313, 4294901760
      %1115 = vmatpush1.msra.mxu0 %v1114
      %1116 = vmatprep.subr.mxu0 0.0
      %v1117 = vand.u32 %v314, 4294901760
      %1118 = vmatpush1.msra.mxu0 %v1117
      %1119 = vmatprep.subr.mxu0 0.0
      %v1120 = vand.u32 %v315, 4294901760
      %1121 = vmatpush1.msra.mxu0 %v1120
      %1122 = vmatprep.subr.mxu0 0.0
      %v1123 = vand.u32 %v316, 4294901760
      %1124 = vmatpush1.msra.mxu0 %v1123
      %1125 = vmatprep.subr.mxu0 0.0
      %v1126 = vand.u32 %v317, 4294901760
      %1127 = vmatpush1.msra.mxu0 %v1126
      %1128 = vmatprep.subr.mxu0 0.0
      %v1129 = vand.u32 %v318, 4294901760
      %1130 = vmatpush1.msra.mxu0 %v1129
      %1131 = vmatprep.subr.mxu0 0.0
      %v1132 = vand.u32 %v319, 4294901760
      %1133 = vmatpush1.msra.mxu0 %v1132
      %1134 = vmatprep.subr.mxu0 0.0
      %v1135 = vand.u32 %v320, 4294901760
      %1136 = vmatpush1.msra.mxu0 %v1135
      %1137 = vmatprep.subr.mxu0 0.0
      %v1138 = vand.u32 %v321, 4294901760
      %1139 = vmatpush1.msra.mxu0 %v1138
      %1140 = vmatprep.subr.mxu0 0.0
      %v1141 = vand.u32 %v322, 4294901760
      %1142 = vmatpush1.msra.mxu0 %v1141
      %1143 = vmatprep.subr.mxu0 0.0
      %v1144 = vand.u32 %v323, 4294901760
      %1145 = vmatpush1.msra.mxu0 %v1144
      %1146 = vmatprep.subr.mxu0 0.0
      %v1147 = vand.u32 %v324, 4294901760
      %1148 = vmatpush1.msra.mxu0 %v1147
      %1149 = vmatprep.subr.mxu0 0.0
      %v1150 = vand.u32 %v325, 4294901760
      %1151 = vmatpush1.msra.mxu0 %v1150
      %1152 = vmatprep.subr.mxu0 0.0
      %v1153 = vand.u32 %v326, 4294901760
      %1154 = vmatpush1.msra.mxu0 %v1153
      %1155 = vmatprep.subr.mxu0 0.0
      %v1156 = vand.u32 %v327, 4294901760
      %1157 = vmatpush1.msra.mxu0 %v1156
      %1158 = vmatprep.subr.mxu0 0.0
      %v1159 = vand.u32 %v328, 4294901760
      %1160 = vmatpush1.msra.mxu0 %v1159
      %1161 = vmatprep.subr.mxu0 0.0
      %v1162 = vand.u32 %v329, 4294901760
      %1163 = vmatpush1.msra.mxu0 %v1162
      %1164 = vmatprep.subr.mxu0 0.0
      %v1165 = vand.u32 %v330, 4294901760
      %1166 = vmatpush1.msra.mxu0 %v1165
      %1167 = vmatprep.subr.mxu0 0.0
      %v1168 = vand.u32 %v331, 4294901760
      %1169 = vmatpush1.msra.mxu0 %v1168
      %1170 = vmatprep.subr.mxu0 0.0
      %v1171 = vand.u32 %v332, 4294901760
      %1172 = vmatpush1.msra.mxu0 %v1171
      %1173 = vmatprep.subr.mxu0 0.0
      %v1174 = vand.u32 %v333, 4294901760
      %1175 = vmatpush1.msra.mxu0 %v1174
      %1176 = vmatprep.subr.mxu0 0.0
      %v1177 = vand.u32 %v334, 4294901760
      %1178 = vmatpush1.msra.mxu0 %v1177
      %1179 = vmatprep.subr.mxu0 0.0
      %v1180 = vand.u32 %v335, 4294901760
      %1181 = vmatpush1.msra.mxu0 %v1180
      %1182 = vmatprep.subr.mxu0 0.0
      %v1183 = vand.u32 %v336, 4294901760
      %1184 = vmatpush1.msra.mxu0 %v1183
      %1185 = vmatprep.subr.mxu0 0.0
      %v1186 = vand.u32 %v337, 4294901760
      %1187 = vmatpush1.msra.mxu0 %v1186
      %1188 = vmatprep.subr.mxu0 0.0
      %v1189 = vand.u32 %v338, 4294901760
      %1190 = vmatpush1.msra.mxu0 %v1189
      %1191 = vmatprep.subr.mxu0 0.0
      %v1192 = vand.u32 %v339, 4294901760
      %1193 = vmatpush1.msra.mxu0 %v1192
      %v1194 = vand.u32 %v306, 4294901760
      %1195 = vmatprep.mubr.f32.mxu0 %v1194
      %v1196 = vand.u32 %v305, 4294901760
      %1197 = vmatmul.mubr.f32.gmra.mrb[0].mxu0 %v1196
      %v1198 = vpop.f32.mrb[0].mxu0
      %v1199 = vadd.f32 %v1095, %v1198
      %v1200 = vpop.f32.mrb[0].mxu0
      %1201 = vdwg.mxu0
      %v1202 = vmul.f32 %v1199, 0.0625
      %1204 = vrot.lane.b32.xlu0 %v1202, 2
      %v1205 = vpop.permute.xlu0 %1204
      %1207 = vrot.lane.b32.xlu0 %v1202, 6
      %v1208 = vpop.permute.xlu0 %1207
      %vm1210 = vcmask 15360
      %v1211 = vsel %vm1210, 0.0, %v1205
      %vm1212 = vcmask 146432
      %v1213 = vsel %vm1212, %v1211, 0.0
      %vm1214 = vcmask 179200
      %v1215 = vsel %vm1214, %v1213, %v1208
      %vm1216 = vcmask 310272
      %v1217 = vsel %vm1216, %v1215, 0.0
      %1219 = vset.pattern.permute.xlu0 0
      %1220 = vperm.xlu0 %1219, %v307
      %v1221 = vpop.permute.xlu0 %1220
      %v1223 = vmul.f32 %v1221, %v1217
      %1224 = vset.pattern.permute.xlu0 1
      %1225 = vperm.xlu0 %1224, %v307
      %v1226 = vpop.permute.xlu0 %1225
      %v1228 = vmul.f32 %v1226, %v1217
      %1230 = vrot.lane.b32.xlu0 %v1228, 127
      %v1231 = vpop.permute.xlu0 %1230
      %v1233 = vadd.f32 %v1223, %v1231
      %1234 = vset.pattern.permute.xlu0 2
      %1235 = vperm.xlu0 %1234, %v307
      %v1236 = vpop.permute.xlu0 %1235
      %v1238 = vmul.f32 %v1236, %v1217
      %1240 = vrot.lane.b32.xlu0 %v1238, 126
      %v1241 = vpop.permute.xlu0 %1240
      %v1243 = vadd.f32 %v1233, %v1241
      %1244 = vset.pattern.permute.xlu0 3
      %1245 = vperm.xlu0 %1244, %v307
      %v1246 = vpop.permute.xlu0 %1245
      %v1248 = vmul.f32 %v1246, %v1217
      %1250 = vrot.lane.b32.xlu0 %v1248, 125
      %v1251 = vpop.permute.xlu0 %1250
      %v1253 = vadd.f32 %v1243, %v1251
      %1254 = vset.pattern.permute.xlu0 4
      %1255 = vperm.xlu0 %1254, %v307
      %v1256 = vpop.permute.xlu0 %1255
      %v1258 = vmul.f32 %v1256, %v1217
      %1260 = vrot.lane.b32.xlu0 %v1258, 124
      %v1261 = vpop.permute.xlu0 %1260
      %v1263 = vadd.f32 %v1253, %v1261
      %v1264 = vld [vmem:[%s5] sm:$0xff]
      %vm1265 = vcmask 130048
      %v1266 = vsel %vm1265, %v1263, 0.0
      %1267 = vadd.xlane.f32.xlu0 %v1266
      %v1268 = vpop.xlane.xlu0 %1267
      %1270 = vrot.lane.b32.xlu0 %v1263, 108
      %v1271 = vpop.permute.xlu0 %1270
      %v1273 = vsel %vm1265, %v1271, 0.0
      %1274 = vadd.xlane.f32.xlu0 %v1273
      %v1275 = vpop.xlane.xlu0 %1274
      %vm1276 = vcmask 7168
      %v1277 = vsel %vm1276, %v1268, %v1275
      %vm1278 = vcmask 64512
      %v1280 = vsel %vm1278, %v1264, 0
      %1282 = vmatprep.subr.mxu0 0.0
      %v1283 = vand.u32 %v1277, 4294901760
      %1284 = vmatpush1.msra.mxu0 %v1283
      %1285 = vmatprep.subr.mxu0 0.0
      %1286 = vmatpush1.msra.mxu0 0.0
      %1287 = vmatprep.subr.mxu0 0.0
      %1288 = vmatpush1.msra.mxu0 0.0
      %1289 = vmatprep.subr.mxu0 0.0
      %1290 = vmatpush1.msra.mxu0 0.0
      %1291 = vmatprep.subr.mxu0 0.0
      %1292 = vmatpush1.msra.mxu0 0.0
      %1293 = vmatprep.subr.mxu0 0.0
      %1294 = vmatpush1.msra.mxu0 0.0
      %1295 = vmatprep.subr.mxu0 0.0
      %1296 = vmatpush1.msra.mxu0 0.0
      %1297 = vmatprep.subr.mxu0 0.0
      %1298 = vmatpush1.msra.mxu0 0.0
      %1299 = vmatprep.subr.mxu0 0.0
      %1300 = vmatpush1.msra.mxu0 0.0
      %1301 = vmatprep.subr.mxu0 0.0
      %1302 = vmatpush1.msra.mxu0 0.0
      %1303 = vmatprep.subr.mxu0 0.0
      %1304 = vmatpush1.msra.mxu0 0.0
      %1305 = vmatprep.subr.mxu0 0.0
      %1306 = vmatpush1.msra.mxu0 0.0
      %1307 = vmatprep.subr.mxu0 0.0
      %1308 = vmatpush1.msra.mxu0 0.0
      %1309 = vmatprep.subr.mxu0 0.0
      %1310 = vmatpush1.msra.mxu0 0.0
      %1311 = vmatprep.subr.mxu0 0.0
      %1312 = vmatpush1.msra.mxu0 0.0
      %1313 = vmatprep.subr.mxu0 0.0
      %1314 = vmatpush1.msra.mxu0 0.0
      %1315 = vmatprep.subr.mxu0 0.0
      %1316 = vmatpush1.msra.mxu0 0.0
      %1317 = vmatprep.subr.mxu0 0.0
      %1318 = vmatpush1.msra.mxu0 0.0
      %1319 = vmatprep.subr.mxu0 0.0
      %1320 = vmatpush1.msra.mxu0 0.0
      %1321 = vmatprep.subr.mxu0 0.0
      %1322 = vmatpush1.msra.mxu0 0.0
      %1323 = vmatprep.subr.mxu0 0.0
      %1324 = vmatpush1.msra.mxu0 0.0
      %1325 = vmatprep.subr.mxu0 0.0
      %1326 = vmatpush1.msra.mxu0 0.0
      %1327 = vmatprep.subr.mxu0 0.0
      %1328 = vmatpush1.msra.mxu0 0.0
      %1329 = vmatprep.subr.mxu0 0.0
      %1330 = vmatpush1.msra.mxu0 0.0
      %1331 = vmatprep.subr.mxu0 0.0
      %1332 = vmatpush1.msra.mxu0 0.0
      %1333 = vmatprep.subr.mxu0 0.0
      %1334 = vmatpush1.msra.mxu0 0.0
      %1335 = vmatprep.subr.mxu0 0.0
      %1336 = vmatpush1.msra.mxu0 0.0
      %1337 = vmatprep.subr.mxu0 0.0
      %1338 = vmatpush1.msra.mxu0 0.0
      %1339 = vmatprep.subr.mxu0 0.0
      %1340 = vmatpush1.msra.mxu0 0.0
      %1341 = vmatprep.subr.mxu0 0.0
      %1342 = vmatpush1.msra.mxu0 0.0
      %1343 = vmatprep.subr.mxu0 0.0
      %1344 = vmatpush1.msra.mxu0 0.0
      %1345 = vmatprep.subr.mxu0 0.0
      %1346 = vmatpush1.msra.mxu0 0.0
      %1347 = vmatprep.mubr.f32.mxu0 0.0
      %v1348 = vand.u32 %v1280, 4294901760
      %v1349 = vsub.f32 %v1280, %v1348
      %v1350 = vand.u32 %v1349, 4294901760
      %v1351 = vsub.f32 %v1349, %v1350
      %v1352 = vand.u32 %v1351, 4294901760
      %1353 = vmatmul.mubr.f32.gmra.mrb[0].mxu0 %v1352
      %v1354 = vpop.f32.mrb[0].mxu0
      %v1355 = vadd.f32 0.0, %v1354
      %v1356 = vpop.f32.mrb[0].mxu0
      %1357 = vdwg.mxu0
      %1358 = vmatprep.subr.mxu0 0.0
      %v1359 = vand.u32 %v1277, 4294901760
      %v1360 = vsub.f32 %v1277, %v1359
      %v1361 = vand.u32 %v1360, 4294901760
      %v1362 = vsub.f32 %v1360, %v1361
      %v1363 = vand.u32 %v1362, 4294901760
      %1364 = vmatpush1.msra.mxu0 %v1363
      %1365 = vmatprep.subr.mxu0 0.0
      %1366 = vmatpush1.msra.mxu0 0.0
      %1367 = vmatprep.subr.mxu0 0.0
      %1368 = vmatpush1.msra.mxu0 0.0
      %1369 = vmatprep.subr.mxu0 0.0
      %1370 = vmatpush1.msra.mxu0 0.0
      %1371 = vmatprep.subr.mxu0 0.0
      %1372 = vmatpush1.msra.mxu0 0.0
      %1373 = vmatprep.subr.mxu0 0.0
      %1374 = vmatpush1.msra.mxu0 0.0
      %1375 = vmatprep.subr.mxu0 0.0
      %1376 = vmatpush1.msra.mxu0 0.0
      %1377 = vmatprep.subr.mxu0 0.0
      %1378 = vmatpush1.msra.mxu0 0.0
      %1379 = vmatprep.subr.mxu0 0.0
      %1380 = vmatpush1.msra.mxu0 0.0
      %1381 = vmatprep.subr.mxu0 0.0
      %1382 = vmatpush1.msra.mxu0 0.0
      %1383 = vmatprep.subr.mxu0 0.0
      %1384 = vmatpush1.msra.mxu0 0.0
      %1385 = vmatprep.subr.mxu0 0.0
      %1386 = vmatpush1.msra.mxu0 0.0
      %1387 = vmatprep.subr.mxu0 0.0
      %1388 = vmatpush1.msra.mxu0 0.0
      %1389 = vmatprep.subr.mxu0 0.0
      %1390 = vmatpush1.msra.mxu0 0.0
      %1391 = vmatprep.subr.mxu0 0.0
      %1392 = vmatpush1.msra.mxu0 0.0
      %1393 = vmatprep.subr.mxu0 0.0
      %1394 = vmatpush1.msra.mxu0 0.0
      %1395 = vmatprep.subr.mxu0 0.0
      %1396 = vmatpush1.msra.mxu0 0.0
      %1397 = vmatprep.subr.mxu0 0.0
      %1398 = vmatpush1.msra.mxu0 0.0
      %1399 = vmatprep.subr.mxu0 0.0
      %1400 = vmatpush1.msra.mxu0 0.0
      %1401 = vmatprep.subr.mxu0 0.0
      %1402 = vmatpush1.msra.mxu0 0.0
      %1403 = vmatprep.subr.mxu0 0.0
      %1404 = vmatpush1.msra.mxu0 0.0
      %1405 = vmatprep.subr.mxu0 0.0
      %1406 = vmatpush1.msra.mxu0 0.0
      %1407 = vmatprep.subr.mxu0 0.0
      %1408 = vmatpush1.msra.mxu0 0.0
      %1409 = vmatprep.subr.mxu0 0.0
      %1410 = vmatpush1.msra.mxu0 0.0
      %1411 = vmatprep.subr.mxu0 0.0
      %1412 = vmatpush1.msra.mxu0 0.0
      %1413 = vmatprep.subr.mxu0 0.0
      %1414 = vmatpush1.msra.mxu0 0.0
      %1415 = vmatprep.subr.mxu0 0.0
      %1416 = vmatpush1.msra.mxu0 0.0
      %1417 = vmatprep.subr.mxu0 0.0
      %1418 = vmatpush1.msra.mxu0 0.0
      %1419 = vmatprep.subr.mxu0 0.0
      %1420 = vmatpush1.msra.mxu0 0.0
      %1421 = vmatprep.subr.mxu0 0.0
      %1422 = vmatpush1.msra.mxu0 0.0
      %1423 = vmatprep.subr.mxu0 0.0
      %1424 = vmatpush1.msra.mxu0 0.0
      %1425 = vmatprep.subr.mxu0 0.0
      %1426 = vmatpush1.msra.mxu0 0.0
      %1427 = vmatprep.mubr.f32.mxu0 0.0
      %v1428 = vand.u32 %v1280, 4294901760
      %1429 = vmatmul.mubr.f32.gmra.mrb[0].mxu0 %v1428
      %v1430 = vpop.f32.mrb[0].mxu0
      %v1431 = vadd.f32 %v1355, %v1430
      %v1432 = vpop.f32.mrb[0].mxu0
      %1433 = vdwg.mxu0
      %1434 = vmatprep.subr.mxu0 0.0
      %v1435 = vand.u32 %v1277, 4294901760
      %v1436 = vsub.f32 %v1277, %v1435
      %1437 = vmatpush1.msra.mxu0 %v1436
      %1438 = vmatprep.subr.mxu0 0.0
      %1439 = vmatpush1.msra.mxu0 0.0
      %1440 = vmatprep.subr.mxu0 0.0
      %1441 = vmatpush1.msra.mxu0 0.0
      %1442 = vmatprep.subr.mxu0 0.0
      %1443 = vmatpush1.msra.mxu0 0.0
      %1444 = vmatprep.subr.mxu0 0.0
      %1445 = vmatpush1.msra.mxu0 0.0
      %1446 = vmatprep.subr.mxu0 0.0
      %1447 = vmatpush1.msra.mxu0 0.0
      %1448 = vmatprep.subr.mxu0 0.0
      %1449 = vmatpush1.msra.mxu0 0.0
      %1450 = vmatprep.subr.mxu0 0.0
      %1451 = vmatpush1.msra.mxu0 0.0
      %1452 = vmatprep.subr.mxu0 0.0
      %1453 = vmatpush1.msra.mxu0 0.0
      %1454 = vmatprep.subr.mxu0 0.0
      %1455 = vmatpush1.msra.mxu0 0.0
      %1456 = vmatprep.subr.mxu0 0.0
      %1457 = vmatpush1.msra.mxu0 0.0
      %1458 = vmatprep.subr.mxu0 0.0
      %1459 = vmatpush1.msra.mxu0 0.0
      %1460 = vmatprep.subr.mxu0 0.0
      %1461 = vmatpush1.msra.mxu0 0.0
      %1462 = vmatprep.subr.mxu0 0.0
      %1463 = vmatpush1.msra.mxu0 0.0
      %1464 = vmatprep.subr.mxu0 0.0
      %1465 = vmatpush1.msra.mxu0 0.0
      %1466 = vmatprep.subr.mxu0 0.0
      %1467 = vmatpush1.msra.mxu0 0.0
      %1468 = vmatprep.subr.mxu0 0.0
      %1469 = vmatpush1.msra.mxu0 0.0
      %1470 = vmatprep.subr.mxu0 0.0
      %1471 = vmatpush1.msra.mxu0 0.0
      %1472 = vmatprep.subr.mxu0 0.0
      %1473 = vmatpush1.msra.mxu0 0.0
      %1474 = vmatprep.subr.mxu0 0.0
      %1475 = vmatpush1.msra.mxu0 0.0
      %1476 = vmatprep.subr.mxu0 0.0
      %1477 = vmatpush1.msra.mxu0 0.0
      %1478 = vmatprep.subr.mxu0 0.0
      %1479 = vmatpush1.msra.mxu0 0.0
      %1480 = vmatprep.subr.mxu0 0.0
      %1481 = vmatpush1.msra.mxu0 0.0
      %1482 = vmatprep.subr.mxu0 0.0
      %1483 = vmatpush1.msra.mxu0 0.0
      %1484 = vmatprep.subr.mxu0 0.0
      %1485 = vmatpush1.msra.mxu0 0.0
      %1486 = vmatprep.subr.mxu0 0.0
      %1487 = vmatpush1.msra.mxu0 0.0
      %1488 = vmatprep.subr.mxu0 0.0
      %1489 = vmatpush1.msra.mxu0 0.0
      %1490 = vmatprep.subr.mxu0 0.0
      %1491 = vmatpush1.msra.mxu0 0.0
      %1492 = vmatprep.subr.mxu0 0.0
      %1493 = vmatpush1.msra.mxu0 0.0
      %1494 = vmatprep.subr.mxu0 0.0
      %1495 = vmatpush1.msra.mxu0 0.0
      %1496 = vmatprep.subr.mxu0 0.0
      %1497 = vmatpush1.msra.mxu0 0.0
      %1498 = vmatprep.subr.mxu0 0.0
      %1499 = vmatpush1.msra.mxu0 0.0
      %1500 = vmatprep.mubr.f32.mxu0 0.0
      %v1501 = vand.u32 %v1280, 4294901760
      %v1502 = vsub.f32 %v1280, %v1501
      %1503 = vmatmul.mubr.f32.gmra.mrb[0].mxu0 %v1502
      %v1504 = vpop.f32.mrb[0].mxu0
      %v1505 = vadd.f32 %v1431, %v1504
      %v1506 = vpop.f32.mrb[0].mxu0
      %1507 = vdwg.mxu0
      %1508 = vmatprep.subr.mxu0 0.0
      %v1509 = vand.u32 %v1277, 4294901760
      %1510 = vmatpush1.msra.mxu0 %v1509
      %1511 = vmatprep.subr.mxu0 0.0
      %1512 = vmatpush1.msra.mxu0 0.0
      %1513 = vmatprep.subr.mxu0 0.0
      %1514 = vmatpush1.msra.mxu0 0.0
      %1515 = vmatprep.subr.mxu0 0.0
      %1516 = vmatpush1.msra.mxu0 0.0
      %1517 = vmatprep.subr.mxu0 0.0
      %1518 = vmatpush1.msra.mxu0 0.0
      %1519 = vmatprep.subr.mxu0 0.0
      %1520 = vmatpush1.msra.mxu0 0.0
      %1521 = vmatprep.subr.mxu0 0.0
      %1522 = vmatpush1.msra.mxu0 0.0
      %1523 = vmatprep.subr.mxu0 0.0
      %1524 = vmatpush1.msra.mxu0 0.0
      %1525 = vmatprep.subr.mxu0 0.0
      %1526 = vmatpush1.msra.mxu0 0.0
      %1527 = vmatprep.subr.mxu0 0.0
      %1528 = vmatpush1.msra.mxu0 0.0
      %1529 = vmatprep.subr.mxu0 0.0
      %1530 = vmatpush1.msra.mxu0 0.0
      %1531 = vmatprep.subr.mxu0 0.0
      %1532 = vmatpush1.msra.mxu0 0.0
      %1533 = vmatprep.subr.mxu0 0.0
      %1534 = vmatpush1.msra.mxu0 0.0
      %1535 = vmatprep.subr.mxu0 0.0
      %1536 = vmatpush1.msra.mxu0 0.0
      %1537 = vmatprep.subr.mxu0 0.0
      %1538 = vmatpush1.msra.mxu0 0.0
      %1539 = vmatprep.subr.mxu0 0.0
      %1540 = vmatpush1.msra.mxu0 0.0
      %1541 = vmatprep.subr.mxu0 0.0
      %1542 = vmatpush1.msra.mxu0 0.0
      %1543 = vmatprep.subr.mxu0 0.0
      %1544 = vmatpush1.msra.mxu0 0.0
      %1545 = vmatprep.subr.mxu0 0.0
      %1546 = vmatpush1.msra.mxu0 0.0
      %1547 = vmatprep.subr.mxu0 0.0
      %1548 = vmatpush1.msra.mxu0 0.0
      %1549 = vmatprep.subr.mxu0 0.0
      %1550 = vmatpush1.msra.mxu0 0.0
      %1551 = vmatprep.subr.mxu0 0.0
      %1552 = vmatpush1.msra.mxu0 0.0
      %1553 = vmatprep.subr.mxu0 0.0
      %1554 = vmatpush1.msra.mxu0 0.0
      %1555 = vmatprep.subr.mxu0 0.0
      %1556 = vmatpush1.msra.mxu0 0.0
      %1557 = vmatprep.subr.mxu0 0.0
      %1558 = vmatpush1.msra.mxu0 0.0
      %1559 = vmatprep.subr.mxu0 0.0
      %1560 = vmatpush1.msra.mxu0 0.0
      %1561 = vmatprep.subr.mxu0 0.0
      %1562 = vmatpush1.msra.mxu0 0.0
      %1563 = vmatprep.subr.mxu0 0.0
      %1564 = vmatpush1.msra.mxu0 0.0
      %1565 = vmatprep.subr.mxu0 0.0
      %1566 = vmatpush1.msra.mxu0 0.0
      %1567 = vmatprep.subr.mxu0 0.0
      %1568 = vmatpush1.msra.mxu0 0.0
      %1569 = vmatprep.subr.mxu0 0.0
      %1570 = vmatpush1.msra.mxu0 0.0
      %1571 = vmatprep.subr.mxu0 0.0
      %1572 = vmatpush1.msra.mxu0 0.0
      %1573 = vmatprep.mubr.f32.mxu0 0.0
      %v1574 = vand.u32 %v1280, 4294901760
      %v1575 = vsub.f32 %v1280, %v1574
      %v1576 = vand.u32 %v1575, 4294901760
      %1577 = vmatmul.mubr.f32.gmra.mrb[0].mxu0 %v1576
      %v1578 = vpop.f32.mrb[0].mxu0
      %v1579 = vadd.f32 %v1505, %v1578
      %v1580 = vpop.f32.mrb[0].mxu0
      %1581 = vdwg.mxu0
      %1582 = vmatprep.subr.mxu0 0.0
      %v1583 = vand.u32 %v1277, 4294901760
      %v1584 = vsub.f32 %v1277, %v1583
      %v1585 = vand.u32 %v1584, 4294901760
      %1586 = vmatpush1.msra.mxu0 %v1585
      %1587 = vmatprep.subr.mxu0 0.0
      %1588 = vmatpush1.msra.mxu0 0.0
      %1589 = vmatprep.subr.mxu0 0.0
      %1590 = vmatpush1.msra.mxu0 0.0
      %1591 = vmatprep.subr.mxu0 0.0
      %1592 = vmatpush1.msra.mxu0 0.0
      %1593 = vmatprep.subr.mxu0 0.0
      %1594 = vmatpush1.msra.mxu0 0.0
      %1595 = vmatprep.subr.mxu0 0.0
      %1596 = vmatpush1.msra.mxu0 0.0
      %1597 = vmatprep.subr.mxu0 0.0
      %1598 = vmatpush1.msra.mxu0 0.0
      %1599 = vmatprep.subr.mxu0 0.0
      %1600 = vmatpush1.msra.mxu0 0.0
      %1601 = vmatprep.subr.mxu0 0.0
      %1602 = vmatpush1.msra.mxu0 0.0
      %1603 = vmatprep.subr.mxu0 0.0
      %1604 = vmatpush1.msra.mxu0 0.0
      %1605 = vmatprep.subr.mxu0 0.0
      %1606 = vmatpush1.msra.mxu0 0.0
      %1607 = vmatprep.subr.mxu0 0.0
      %1608 = vmatpush1.msra.mxu0 0.0
      %1609 = vmatprep.subr.mxu0 0.0
      %1610 = vmatpush1.msra.mxu0 0.0
      %1611 = vmatprep.subr.mxu0 0.0
      %1612 = vmatpush1.msra.mxu0 0.0
      %1613 = vmatprep.subr.mxu0 0.0
      %1614 = vmatpush1.msra.mxu0 0.0
      %1615 = vmatprep.subr.mxu0 0.0
      %1616 = vmatpush1.msra.mxu0 0.0
      %1617 = vmatprep.subr.mxu0 0.0
      %1618 = vmatpush1.msra.mxu0 0.0
      %1619 = vmatprep.subr.mxu0 0.0
      %1620 = vmatpush1.msra.mxu0 0.0
      %1621 = vmatprep.subr.mxu0 0.0
      %1622 = vmatpush1.msra.mxu0 0.0
      %1623 = vmatprep.subr.mxu0 0.0
      %1624 = vmatpush1.msra.mxu0 0.0
      %1625 = vmatprep.subr.mxu0 0.0
      %1626 = vmatpush1.msra.mxu0 0.0
      %1627 = vmatprep.subr.mxu0 0.0
      %1628 = vmatpush1.msra.mxu0 0.0
      %1629 = vmatprep.subr.mxu0 0.0
      %1630 = vmatpush1.msra.mxu0 0.0
      %1631 = vmatprep.subr.mxu0 0.0
      %1632 = vmatpush1.msra.mxu0 0.0
      %1633 = vmatprep.subr.mxu0 0.0
      %1634 = vmatpush1.msra.mxu0 0.0
      %1635 = vmatprep.subr.mxu0 0.0
      %1636 = vmatpush1.msra.mxu0 0.0
      %1637 = vmatprep.subr.mxu0 0.0
      %1638 = vmatpush1.msra.mxu0 0.0
      %1639 = vmatprep.subr.mxu0 0.0
      %1640 = vmatpush1.msra.mxu0 0.0
      %1641 = vmatprep.subr.mxu0 0.0
      %1642 = vmatpush1.msra.mxu0 0.0
      %1643 = vmatprep.subr.mxu0 0.0
      %1644 = vmatpush1.msra.mxu0 0.0
      %1645 = vmatprep.subr.mxu0 0.0
      %1646 = vmatpush1.msra.mxu0 0.0
      %1647 = vmatprep.subr.mxu0 0.0
      %1648 = vmatpush1.msra.mxu0 0.0
      %1649 = vmatprep.mubr.f32.mxu0 0.0
      %v1650 = vand.u32 %v1280, 4294901760
      %1651 = vmatmul.mubr.f32.gmra.mrb[0].mxu0 %v1650
      %v1652 = vpop.f32.mrb[0].mxu0
      %v1653 = vadd.f32 %v1579, %v1652
      %v1654 = vpop.f32.mrb[0].mxu0
      %1655 = vdwg.mxu0
      %1656 = vmatprep.subr.mxu0 0.0
      %v1657 = vand.u32 %v1277, 4294901760
      %1658 = vmatpush1.msra.mxu0 %v1657
      %1659 = vmatprep.subr.mxu0 0.0
      %1660 = vmatpush1.msra.mxu0 0.0
      %1661 = vmatprep.subr.mxu0 0.0
      %1662 = vmatpush1.msra.mxu0 0.0
      %1663 = vmatprep.subr.mxu0 0.0
      %1664 = vmatpush1.msra.mxu0 0.0
      %1665 = vmatprep.subr.mxu0 0.0
      %1666 = vmatpush1.msra.mxu0 0.0
      %1667 = vmatprep.subr.mxu0 0.0
      %1668 = vmatpush1.msra.mxu0 0.0
      %1669 = vmatprep.subr.mxu0 0.0
      %1670 = vmatpush1.msra.mxu0 0.0
      %1671 = vmatprep.subr.mxu0 0.0
      %1672 = vmatpush1.msra.mxu0 0.0
      %1673 = vmatprep.subr.mxu0 0.0
      %1674 = vmatpush1.msra.mxu0 0.0
      %1675 = vmatprep.subr.mxu0 0.0
      %1676 = vmatpush1.msra.mxu0 0.0
      %1677 = vmatprep.subr.mxu0 0.0
      %1678 = vmatpush1.msra.mxu0 0.0
      %1679 = vmatprep.subr.mxu0 0.0
      %1680 = vmatpush1.msra.mxu0 0.0
      %1681 = vmatprep.subr.mxu0 0.0
      %1682 = vmatpush1.msra.mxu0 0.0
      %1683 = vmatprep.subr.mxu0 0.0
      %1684 = vmatpush1.msra.mxu0 0.0
      %1685 = vmatprep.subr.mxu0 0.0
      %1686 = vmatpush1.msra.mxu0 0.0
      %1687 = vmatprep.subr.mxu0 0.0
      %1688 = vmatpush1.msra.mxu0 0.0
      %1689 = vmatprep.subr.mxu0 0.0
      %1690 = vmatpush1.msra.mxu0 0.0
      %1691 = vmatprep.subr.mxu0 0.0
      %1692 = vmatpush1.msra.mxu0 0.0
      %1693 = vmatprep.subr.mxu0 0.0
      %1694 = vmatpush1.msra.mxu0 0.0
      %1695 = vmatprep.subr.mxu0 0.0
      %1696 = vmatpush1.msra.mxu0 0.0
      %1697 = vmatprep.subr.mxu0 0.0
      %1698 = vmatpush1.msra.mxu0 0.0
      %1699 = vmatprep.subr.mxu0 0.0
      %1700 = vmatpush1.msra.mxu0 0.0
      %1701 = vmatprep.subr.mxu0 0.0
      %1702 = vmatpush1.msra.mxu0 0.0
      %1703 = vmatprep.subr.mxu0 0.0
      %1704 = vmatpush1.msra.mxu0 0.0
      %1705 = vmatprep.subr.mxu0 0.0
      %1706 = vmatpush1.msra.mxu0 0.0
      %1707 = vmatprep.subr.mxu0 0.0
      %1708 = vmatpush1.msra.mxu0 0.0
      %1709 = vmatprep.subr.mxu0 0.0
      %1710 = vmatpush1.msra.mxu0 0.0
      %1711 = vmatprep.subr.mxu0 0.0
      %1712 = vmatpush1.msra.mxu0 0.0
      %1713 = vmatprep.subr.mxu0 0.0
      %1714 = vmatpush1.msra.mxu0 0.0
      %1715 = vmatprep.subr.mxu0 0.0
      %1716 = vmatpush1.msra.mxu0 0.0
      %1717 = vmatprep.subr.mxu0 0.0
      %1718 = vmatpush1.msra.mxu0 0.0
      %1719 = vmatprep.subr.mxu0 0.0
      %1720 = vmatpush1.msra.mxu0 0.0
      %1721 = vmatprep.mubr.f32.mxu0 0.0
      %v1722 = vand.u32 %v1280, 4294901760
      %1723 = vmatmul.mubr.f32.gmra.mrb[0].mxu0 %v1722
      %v1724 = vpop.f32.mrb[0].mxu0
      %v1725 = vadd.f32 %v1653, %v1724
      %v1726 = vpop.f32.mrb[0].mxu0
      %1727 = vdwg.mxu0
      %v1728 = vmul.f32 %v1725, 0.0625
      %v1729 = vlaneseq
      %v1730 = vand.u32 %v1729, 127
      %vm1731 = vcmp.lt.s32.totalorder %v1730, 16
      %1733 = vset.pattern.permute.xlu0 0
      %1734 = vperm.xlu0 %1733, %v1728
      %v1735 = vpop.permute.xlu0 %1734
      %1737 = vset.pattern.permute.xlu0 1
      %1738 = vperm.xlu0 %1737, %v1728
      %v1739 = vpop.permute.xlu0 %1738
      %v1741 = vsel %vm1731, %v1735, %v1739
      %v1742 = vsub.f32 %v1263, %v1741
      %v1743 = vmul.f32 %v1742, %v1742
      %v1744 = vsel %vm1265, %v1743, 0.0
      %1745 = vadd.xlane.f32.xlu0 %v1744
      %v1746 = vpop.xlane.xlu0 %1745
      %1748 = vrot.lane.b32.xlu0 %v1743, 108
      %v1749 = vpop.permute.xlu0 %1748
      %v1751 = vsel %vm1265, %v1749, 0.0
      %1752 = vadd.xlane.f32.xlu0 %v1751
      %v1753 = vpop.xlane.xlu0 %1752
      %v1754 = vsel %vm1276, %v1746, %v1753
      %1755 = vmatprep.subr.mxu0 0.0
      %v1756 = vand.u32 %v1754, 4294901760
      %1757 = vmatpush1.msra.mxu0 %v1756
      %1758 = vmatprep.subr.mxu0 0.0
      %1759 = vmatpush1.msra.mxu0 0.0
      %1760 = vmatprep.subr.mxu0 0.0
      %1761 = vmatpush1.msra.mxu0 0.0
      %1762 = vmatprep.subr.mxu0 0.0
      %1763 = vmatpush1.msra.mxu0 0.0
      %1764 = vmatprep.subr.mxu0 0.0
      %1765 = vmatpush1.msra.mxu0 0.0
      %1766 = vmatprep.subr.mxu0 0.0
      %1767 = vmatpush1.msra.mxu0 0.0
      %1768 = vmatprep.subr.mxu0 0.0
      %1769 = vmatpush1.msra.mxu0 0.0
      %1770 = vmatprep.subr.mxu0 0.0
      %1771 = vmatpush1.msra.mxu0 0.0
      %1772 = vmatprep.subr.mxu0 0.0
      %1773 = vmatpush1.msra.mxu0 0.0
      %1774 = vmatprep.subr.mxu0 0.0
      %1775 = vmatpush1.msra.mxu0 0.0
      %1776 = vmatprep.subr.mxu0 0.0
      %1777 = vmatpush1.msra.mxu0 0.0
      %1778 = vmatprep.subr.mxu0 0.0
      %1779 = vmatpush1.msra.mxu0 0.0
      %1780 = vmatprep.subr.mxu0 0.0
      %1781 = vmatpush1.msra.mxu0 0.0
      %1782 = vmatprep.subr.mxu0 0.0
      %1783 = vmatpush1.msra.mxu0 0.0
      %1784 = vmatprep.subr.mxu0 0.0
      %1785 = vmatpush1.msra.mxu0 0.0
      %1786 = vmatprep.subr.mxu0 0.0
      %1787 = vmatpush1.msra.mxu0 0.0
      %1788 = vmatprep.subr.mxu0 0.0
      %1789 = vmatpush1.msra.mxu0 0.0
      %1790 = vmatprep.subr.mxu0 0.0
      %1791 = vmatpush1.msra.mxu0 0.0
      %1792 = vmatprep.subr.mxu0 0.0
      %1793 = vmatpush1.msra.mxu0 0.0
      %1794 = vmatprep.subr.mxu0 0.0
      %1795 = vmatpush1.msra.mxu0 0.0
      %1796 = vmatprep.subr.mxu0 0.0
      %1797 = vmatpush1.msra.mxu0 0.0
      %1798 = vmatprep.subr.mxu0 0.0
      %1799 = vmatpush1.msra.mxu0 0.0
      %1800 = vmatprep.subr.mxu0 0.0
      %1801 = vmatpush1.msra.mxu0 0.0
      %1802 = vmatprep.subr.mxu0 0.0
      %1803 = vmatpush1.msra.mxu0 0.0
      %1804 = vmatprep.subr.mxu0 0.0
      %1805 = vmatpush1.msra.mxu0 0.0
      %1806 = vmatprep.subr.mxu0 0.0
      %1807 = vmatpush1.msra.mxu0 0.0
      %1808 = vmatprep.subr.mxu0 0.0
      %1809 = vmatpush1.msra.mxu0 0.0
      %1810 = vmatprep.subr.mxu0 0.0
      %1811 = vmatpush1.msra.mxu0 0.0
      %1812 = vmatprep.subr.mxu0 0.0
      %1813 = vmatpush1.msra.mxu0 0.0
      %1814 = vmatprep.subr.mxu0 0.0
      %1815 = vmatpush1.msra.mxu0 0.0
      %1816 = vmatprep.subr.mxu0 0.0
      %1817 = vmatpush1.msra.mxu0 0.0
      %1818 = vmatprep.subr.mxu0 0.0
      %1819 = vmatpush1.msra.mxu0 0.0
      %1820 = vmatprep.mubr.f32.mxu0 0.0
      %v1821 = vand.u32 %v1280, 4294901760
      %v1822 = vsub.f32 %v1280, %v1821
      %v1823 = vand.u32 %v1822, 4294901760
      %v1824 = vsub.f32 %v1822, %v1823
      %v1825 = vand.u32 %v1824, 4294901760
      %1826 = vmatmul.mubr.f32.gmra.mrb[0].mxu0 %v1825
      %v1827 = vpop.f32.mrb[0].mxu0
      %v1828 = vadd.f32 0.0, %v1827
      %v1829 = vpop.f32.mrb[0].mxu0
      %1830 = vdwg.mxu0
      %1831 = vmatprep.subr.mxu0 0.0
      %v1832 = vand.u32 %v1754, 4294901760
      %v1833 = vsub.f32 %v1754, %v1832
      %v1834 = vand.u32 %v1833, 4294901760
      %v1835 = vsub.f32 %v1833, %v1834
      %v1836 = vand.u32 %v1835, 4294901760
      %1837 = vmatpush1.msra.mxu0 %v1836
      %1838 = vmatprep.subr.mxu0 0.0
      %1839 = vmatpush1.msra.mxu0 0.0
      %1840 = vmatprep.subr.mxu0 0.0
      %1841 = vmatpush1.msra.mxu0 0.0
      %1842 = vmatprep.subr.mxu0 0.0
      %1843 = vmatpush1.msra.mxu0 0.0
      %1844 = vmatprep.subr.mxu0 0.0
      %1845 = vmatpush1.msra.mxu0 0.0
      %1846 = vmatprep.subr.mxu0 0.0
      %1847 = vmatpush1.msra.mxu0 0.0
      %1848 = vmatprep.subr.mxu0 0.0
      %1849 = vmatpush1.msra.mxu0 0.0
      %1850 = vmatprep.subr.mxu0 0.0
      %1851 = vmatpush1.msra.mxu0 0.0
      %1852 = vmatprep.subr.mxu0 0.0
      %1853 = vmatpush1.msra.mxu0 0.0
      %1854 = vmatprep.subr.mxu0 0.0
      %1855 = vmatpush1.msra.mxu0 0.0
      %1856 = vmatprep.subr.mxu0 0.0
      %1857 = vmatpush1.msra.mxu0 0.0
      %1858 = vmatprep.subr.mxu0 0.0
      %1859 = vmatpush1.msra.mxu0 0.0
      %1860 = vmatprep.subr.mxu0 0.0
      %1861 = vmatpush1.msra.mxu0 0.0
      %1862 = vmatprep.subr.mxu0 0.0
      %1863 = vmatpush1.msra.mxu0 0.0
      %1864 = vmatprep.subr.mxu0 0.0
      %1865 = vmatpush1.msra.mxu0 0.0
      %1866 = vmatprep.subr.mxu0 0.0
      %1867 = vmatpush1.msra.mxu0 0.0
      %1868 = vmatprep.subr.mxu0 0.0
      %1869 = vmatpush1.msra.mxu0 0.0
      %1870 = vmatprep.subr.mxu0 0.0
      %1871 = vmatpush1.msra.mxu0 0.0
      %1872 = vmatprep.subr.mxu0 0.0
      %1873 = vmatpush1.msra.mxu0 0.0
      %1874 = vmatprep.subr.mxu0 0.0
      %1875 = vmatpush1.msra.mxu0 0.0
      %1876 = vmatprep.subr.mxu0 0.0
      %1877 = vmatpush1.msra.mxu0 0.0
      %1878 = vmatprep.subr.mxu0 0.0
      %1879 = vmatpush1.msra.mxu0 0.0
      %1880 = vmatprep.subr.mxu0 0.0
      %1881 = vmatpush1.msra.mxu0 0.0
      %1882 = vmatprep.subr.mxu0 0.0
      %1883 = vmatpush1.msra.mxu0 0.0
      %1884 = vmatprep.subr.mxu0 0.0
      %1885 = vmatpush1.msra.mxu0 0.0
      %1886 = vmatprep.subr.mxu0 0.0
      %1887 = vmatpush1.msra.mxu0 0.0
      %1888 = vmatprep.subr.mxu0 0.0
      %1889 = vmatpush1.msra.mxu0 0.0
      %1890 = vmatprep.subr.mxu0 0.0
      %1891 = vmatpush1.msra.mxu0 0.0
      %1892 = vmatprep.subr.mxu0 0.0
      %1893 = vmatpush1.msra.mxu0 0.0
      %1894 = vmatprep.subr.mxu0 0.0
      %1895 = vmatpush1.msra.mxu0 0.0
      %1896 = vmatprep.subr.mxu0 0.0
      %1897 = vmatpush1.msra.mxu0 0.0
      %1898 = vmatprep.subr.mxu0 0.0
      %1899 = vmatpush1.msra.mxu0 0.0
      %1900 = vmatprep.mubr.f32.mxu0 0.0
      %v1901 = vand.u32 %v1280, 4294901760
      %1902 = vmatmul.mubr.f32.gmra.mrb[0].mxu0 %v1901
      %v1903 = vpop.f32.mrb[0].mxu0
      %v1904 = vadd.f32 %v1828, %v1903
      %v1905 = vpop.f32.mrb[0].mxu0
      %1906 = vdwg.mxu0
      %1907 = vmatprep.subr.mxu0 0.0
      %v1908 = vand.u32 %v1754, 4294901760
      %v1909 = vsub.f32 %v1754, %v1908
      %1910 = vmatpush1.msra.mxu0 %v1909
      %1911 = vmatprep.subr.mxu0 0.0
      %1912 = vmatpush1.msra.mxu0 0.0
      %1913 = vmatprep.subr.mxu0 0.0
      %1914 = vmatpush1.msra.mxu0 0.0
      %1915 = vmatprep.subr.mxu0 0.0
      %1916 = vmatpush1.msra.mxu0 0.0
      %1917 = vmatprep.subr.mxu0 0.0
      %1918 = vmatpush1.msra.mxu0 0.0
      %1919 = vmatprep.subr.mxu0 0.0
      %1920 = vmatpush1.msra.mxu0 0.0
      %1921 = vmatprep.subr.mxu0 0.0
      %1922 = vmatpush1.msra.mxu0 0.0
      %1923 = vmatprep.subr.mxu0 0.0
      %1924 = vmatpush1.msra.mxu0 0.0
      %1925 = vmatprep.subr.mxu0 0.0
      %1926 = vmatpush1.msra.mxu0 0.0
      %1927 = vmatprep.subr.mxu0 0.0
      %1928 = vmatpush1.msra.mxu0 0.0
      %1929 = vmatprep.subr.mxu0 0.0
      %1930 = vmatpush1.msra.mxu0 0.0
      %1931 = vmatprep.subr.mxu0 0.0
      %1932 = vmatpush1.msra.mxu0 0.0
      %1933 = vmatprep.subr.mxu0 0.0
      %1934 = vmatpush1.msra.mxu0 0.0
      %1935 = vmatprep.subr.mxu0 0.0
      %1936 = vmatpush1.msra.mxu0 0.0
      %1937 = vmatprep.subr.mxu0 0.0
      %1938 = vmatpush1.msra.mxu0 0.0
      %1939 = vmatprep.subr.mxu0 0.0
      %1940 = vmatpush1.msra.mxu0 0.0
      %1941 = vmatprep.subr.mxu0 0.0
      %1942 = vmatpush1.msra.mxu0 0.0
      %1943 = vmatprep.subr.mxu0 0.0
      %1944 = vmatpush1.msra.mxu0 0.0
      %1945 = vmatprep.subr.mxu0 0.0
      %1946 = vmatpush1.msra.mxu0 0.0
      %1947 = vmatprep.subr.mxu0 0.0
      %1948 = vmatpush1.msra.mxu0 0.0
      %1949 = vmatprep.subr.mxu0 0.0
      %1950 = vmatpush1.msra.mxu0 0.0
      %1951 = vmatprep.subr.mxu0 0.0
      %1952 = vmatpush1.msra.mxu0 0.0
      %1953 = vmatprep.subr.mxu0 0.0
      %1954 = vmatpush1.msra.mxu0 0.0
      %1955 = vmatprep.subr.mxu0 0.0
      %1956 = vmatpush1.msra.mxu0 0.0
      %1957 = vmatprep.subr.mxu0 0.0
      %1958 = vmatpush1.msra.mxu0 0.0
      %1959 = vmatprep.subr.mxu0 0.0
      %1960 = vmatpush1.msra.mxu0 0.0
      %1961 = vmatprep.subr.mxu0 0.0
      %1962 = vmatpush1.msra.mxu0 0.0
      %1963 = vmatprep.subr.mxu0 0.0
      %1964 = vmatpush1.msra.mxu0 0.0
      %1965 = vmatprep.subr.mxu0 0.0
      %1966 = vmatpush1.msra.mxu0 0.0
      %1967 = vmatprep.subr.mxu0 0.0
      %1968 = vmatpush1.msra.mxu0 0.0
      %1969 = vmatprep.subr.mxu0 0.0
      %1970 = vmatpush1.msra.mxu0 0.0
      %1971 = vmatprep.subr.mxu0 0.0
      %1972 = vmatpush1.msra.mxu0 0.0
      %1973 = vmatprep.mubr.f32.mxu0 0.0
      %v1974 = vand.u32 %v1280, 4294901760
      %v1975 = vsub.f32 %v1280, %v1974
      %1976 = vmatmul.mubr.f32.gmra.mrb[0].mxu0 %v1975
      %v1977 = vpop.f32.mrb[0].mxu0
      %v1978 = vadd.f32 %v1904, %v1977
      %v1979 = vpop.f32.mrb[0].mxu0
      %1980 = vdwg.mxu0
      %1981 = vmatprep.subr.mxu0 0.0
      %v1982 = vand.u32 %v1754, 4294901760
      %1983 = vmatpush1.msra.mxu0 %v1982
      %1984 = vmatprep.subr.mxu0 0.0
      %1985 = vmatpush1.msra.mxu0 0.0
      %1986 = vmatprep.subr.mxu0 0.0
      %1987 = vmatpush1.msra.mxu0 0.0
      %1988 = vmatprep.subr.mxu0 0.0
      %1989 = vmatpush1.msra.mxu0 0.0
      %1990 = vmatprep.subr.mxu0 0.0
      %1991 = vmatpush1.msra.mxu0 0.0
      %1992 = vmatprep.subr.mxu0 0.0
      %1993 = vmatpush1.msra.mxu0 0.0
      %1994 = vmatprep.subr.mxu0 0.0
      %1995 = vmatpush1.msra.mxu0 0.0
      %1996 = vmatprep.subr.mxu0 0.0
      %1997 = vmatpush1.msra.mxu0 0.0
      %1998 = vmatprep.subr.mxu0 0.0
      %1999 = vmatpush1.msra.mxu0 0.0
      %2000 = vmatprep.subr.mxu0 0.0
      %2001 = vmatpush1.msra.mxu0 0.0
      %2002 = vmatprep.subr.mxu0 0.0
      %2003 = vmatpush1.msra.mxu0 0.0
      %2004 = vmatprep.subr.mxu0 0.0
      %2005 = vmatpush1.msra.mxu0 0.0
      %2006 = vmatprep.subr.mxu0 0.0
      %2007 = vmatpush1.msra.mxu0 0.0
      %2008 = vmatprep.subr.mxu0 0.0
      %2009 = vmatpush1.msra.mxu0 0.0
      %2010 = vmatprep.subr.mxu0 0.0
      %2011 = vmatpush1.msra.mxu0 0.0
      %2012 = vmatprep.subr.mxu0 0.0
      %2013 = vmatpush1.msra.mxu0 0.0
      %2014 = vmatprep.subr.mxu0 0.0
      %2015 = vmatpush1.msra.mxu0 0.0
      %2016 = vmatprep.subr.mxu0 0.0
      %2017 = vmatpush1.msra.mxu0 0.0
      %2018 = vmatprep.subr.mxu0 0.0
      %2019 = vmatpush1.msra.mxu0 0.0
      %2020 = vmatprep.subr.mxu0 0.0
      %2021 = vmatpush1.msra.mxu0 0.0
      %2022 = vmatprep.subr.mxu0 0.0
      %2023 = vmatpush1.msra.mxu0 0.0
      %2024 = vmatprep.subr.mxu0 0.0
      %2025 = vmatpush1.msra.mxu0 0.0
      %2026 = vmatprep.subr.mxu0 0.0
      %2027 = vmatpush1.msra.mxu0 0.0
      %2028 = vmatprep.subr.mxu0 0.0
      %2029 = vmatpush1.msra.mxu0 0.0
      %2030 = vmatprep.subr.mxu0 0.0
      %2031 = vmatpush1.msra.mxu0 0.0
      %2032 = vmatprep.subr.mxu0 0.0
      %2033 = vmatpush1.msra.mxu0 0.0
      %2034 = vmatprep.subr.mxu0 0.0
      %2035 = vmatpush1.msra.mxu0 0.0
      %2036 = vmatprep.subr.mxu0 0.0
      %2037 = vmatpush1.msra.mxu0 0.0
      %2038 = vmatprep.subr.mxu0 0.0
      %2039 = vmatpush1.msra.mxu0 0.0
      %2040 = vmatprep.subr.mxu0 0.0
      %2041 = vmatpush1.msra.mxu0 0.0
      %2042 = vmatprep.subr.mxu0 0.0
      %2043 = vmatpush1.msra.mxu0 0.0
      %2044 = vmatprep.subr.mxu0 0.0
      %2045 = vmatpush1.msra.mxu0 0.0
      %2046 = vmatprep.mubr.f32.mxu0 0.0
      %v2047 = vand.u32 %v1280, 4294901760
      %v2048 = vsub.f32 %v1280, %v2047
      %v2049 = vand.u32 %v2048, 4294901760
      %2050 = vmatmul.mubr.f32.gmra.mrb[0].mxu0 %v2049
      %v2051 = vpop.f32.mrb[0].mxu0
      %v2052 = vadd.f32 %v1978, %v2051
      %v2053 = vpop.f32.mrb[0].mxu0
      %2054 = vdwg.mxu0
      %2055 = vmatprep.subr.mxu0 0.0
      %v2056 = vand.u32 %v1754, 4294901760
      %v2057 = vsub.f32 %v1754, %v2056
      %v2058 = vand.u32 %v2057, 4294901760
      %2059 = vmatpush1.msra.mxu0 %v2058
      %2060 = vmatprep.subr.mxu0 0.0
      %2061 = vmatpush1.msra.mxu0 0.0
      %2062 = vmatprep.subr.mxu0 0.0
      %2063 = vmatpush1.msra.mxu0 0.0
      %2064 = vmatprep.subr.mxu0 0.0
      %2065 = vmatpush1.msra.mxu0 0.0
      %2066 = vmatprep.subr.mxu0 0.0
      %2067 = vmatpush1.msra.mxu0 0.0
      %2068 = vmatprep.subr.mxu0 0.0
      %2069 = vmatpush1.msra.mxu0 0.0
      %2070 = vmatprep.subr.mxu0 0.0
      %2071 = vmatpush1.msra.mxu0 0.0
      %2072 = vmatprep.subr.mxu0 0.0
      %2073 = vmatpush1.msra.mxu0 0.0
      %2074 = vmatprep.subr.mxu0 0.0
      %2075 = vmatpush1.msra.mxu0 0.0
      %2076 = vmatprep.subr.mxu0 0.0
      %2077 = vmatpush1.msra.mxu0 0.0
      %2078 = vmatprep.subr.mxu0 0.0
      %2079 = vmatpush1.msra.mxu0 0.0
      %2080 = vmatprep.subr.mxu0 0.0
      %2081 = vmatpush1.msra.mxu0 0.0
      %2082 = vmatprep.subr.mxu0 0.0
      %2083 = vmatpush1.msra.mxu0 0.0
      %2084 = vmatprep.subr.mxu0 0.0
      %2085 = vmatpush1.msra.mxu0 0.0
      %2086 = vmatprep.subr.mxu0 0.0
      %2087 = vmatpush1.msra.mxu0 0.0
      %2088 = vmatprep.subr.mxu0 0.0
      %2089 = vmatpush1.msra.mxu0 0.0
      %2090 = vmatprep.subr.mxu0 0.0
      %2091 = vmatpush1.msra.mxu0 0.0
      %2092 = vmatprep.subr.mxu0 0.0
      %2093 = vmatpush1.msra.mxu0 0.0
      %2094 = vmatprep.subr.mxu0 0.0
      %2095 = vmatpush1.msra.mxu0 0.0
      %2096 = vmatprep.subr.mxu0 0.0
      %2097 = vmatpush1.msra.mxu0 0.0
      %2098 = vmatprep.subr.mxu0 0.0
      %2099 = vmatpush1.msra.mxu0 0.0
      %2100 = vmatprep.subr.mxu0 0.0
      %2101 = vmatpush1.msra.mxu0 0.0
      %2102 = vmatprep.subr.mxu0 0.0
      %2103 = vmatpush1.msra.mxu0 0.0
      %2104 = vmatprep.subr.mxu0 0.0
      %2105 = vmatpush1.msra.mxu0 0.0
      %2106 = vmatprep.subr.mxu0 0.0
      %2107 = vmatpush1.msra.mxu0 0.0
      %2108 = vmatprep.subr.mxu0 0.0
      %2109 = vmatpush1.msra.mxu0 0.0
      %2110 = vmatprep.subr.mxu0 0.0
      %2111 = vmatpush1.msra.mxu0 0.0
      %2112 = vmatprep.subr.mxu0 0.0
      %2113 = vmatpush1.msra.mxu0 0.0
      %2114 = vmatprep.subr.mxu0 0.0
      %2115 = vmatpush1.msra.mxu0 0.0
      %2116 = vmatprep.subr.mxu0 0.0
      %2117 = vmatpush1.msra.mxu0 0.0
      %2118 = vmatprep.subr.mxu0 0.0
      %2119 = vmatpush1.msra.mxu0 0.0
      %2120 = vmatprep.subr.mxu0 0.0
      %2121 = vmatpush1.msra.mxu0 0.0
      %2122 = vmatprep.mubr.f32.mxu0 0.0
      %v2123 = vand.u32 %v1280, 4294901760
      %2124 = vmatmul.mubr.f32.gmra.mrb[0].mxu0 %v2123
      %v2125 = vpop.f32.mrb[0].mxu0
      %v2126 = vadd.f32 %v2052, %v2125
      %v2127 = vpop.f32.mrb[0].mxu0
      %2128 = vdwg.mxu0
      %2129 = vmatprep.subr.mxu0 0.0
      %v2130 = vand.u32 %v1754, 4294901760
      %2131 = vmatpush1.msra.mxu0 %v2130
      %2132 = vmatprep.subr.mxu0 0.0
      %2133 = vmatpush1.msra.mxu0 0.0
      %2134 = vmatprep.subr.mxu0 0.0
      %2135 = vmatpush1.msra.mxu0 0.0
      %2136 = vmatprep.subr.mxu0 0.0
      %2137 = vmatpush1.msra.mxu0 0.0
      %2138 = vmatprep.subr.mxu0 0.0
      %2139 = vmatpush1.msra.mxu0 0.0
      %2140 = vmatprep.subr.mxu0 0.0
      %2141 = vmatpush1.msra.mxu0 0.0
      %2142 = vmatprep.subr.mxu0 0.0
      %2143 = vmatpush1.msra.mxu0 0.0
      %2144 = vmatprep.subr.mxu0 0.0
      %2145 = vmatpush1.msra.mxu0 0.0
      %2146 = vmatprep.subr.mxu0 0.0
      %2147 = vmatpush1.msra.mxu0 0.0
      %2148 = vmatprep.subr.mxu0 0.0
      %2149 = vmatpush1.msra.mxu0 0.0
      %2150 = vmatprep.subr.mxu0 0.0
      %2151 = vmatpush1.msra.mxu0 0.0
      %2152 = vmatprep.subr.mxu0 0.0
      %2153 = vmatpush1.msra.mxu0 0.0
      %2154 = vmatprep.subr.mxu0 0.0
      %2155 = vmatpush1.msra.mxu0 0.0
      %2156 = vmatprep.subr.mxu0 0.0
      %2157 = vmatpush1.msra.mxu0 0.0
      %2158 = vmatprep.subr.mxu0 0.0
      %2159 = vmatpush1.msra.mxu0 0.0
      %2160 = vmatprep.subr.mxu0 0.0
      %2161 = vmatpush1.msra.mxu0 0.0
      %2162 = vmatprep.subr.mxu0 0.0
      %2163 = vmatpush1.msra.mxu0 0.0
      %2164 = vmatprep.subr.mxu0 0.0
      %2165 = vmatpush1.msra.mxu0 0.0
      %2166 = vmatprep.subr.mxu0 0.0
      %2167 = vmatpush1.msra.mxu0 0.0
      %2168 = vmatprep.subr.mxu0 0.0
      %2169 = vmatpush1.msra.mxu0 0.0
      %2170 = vmatprep.subr.mxu0 0.0
      %2171 = vmatpush1.msra.mxu0 0.0
      %2172 = vmatprep.subr.mxu0 0.0
      %2173 = vmatpush1.msra.mxu0 0.0
      %2174 = vmatprep.subr.mxu0 0.0
      %2175 = vmatpush1.msra.mxu0 0.0
      %2176 = vmatprep.subr.mxu0 0.0
      %2177 = vmatpush1.msra.mxu0 0.0
      %2178 = vmatprep.subr.mxu0 0.0
      %2179 = vmatpush1.msra.mxu0 0.0
      %2180 = vmatprep.subr.mxu0 0.0
      %2181 = vmatpush1.msra.mxu0 0.0
      %2182 = vmatprep.subr.mxu0 0.0
      %2183 = vmatpush1.msra.mxu0 0.0
      %2184 = vmatprep.subr.mxu0 0.0
      %2185 = vmatpush1.msra.mxu0 0.0
      %2186 = vmatprep.subr.mxu0 0.0
      %2187 = vmatpush1.msra.mxu0 0.0
      %2188 = vmatprep.subr.mxu0 0.0
      %2189 = vmatpush1.msra.mxu0 0.0
      %2190 = vmatprep.subr.mxu0 0.0
      %2191 = vmatpush1.msra.mxu0 0.0
      %2192 = vmatprep.subr.mxu0 0.0
      %2193 = vmatpush1.msra.mxu0 0.0
      %2194 = vmatprep.mubr.f32.mxu0 0.0
      %v2195 = vand.u32 %v1280, 4294901760
      %2196 = vmatmul.mubr.f32.gmra.mrb[0].mxu0 %v2195
      %v2197 = vpop.f32.mrb[0].mxu0
      %v2198 = vadd.f32 %v2126, %v2197
      %v2199 = vpop.f32.mrb[0].mxu0
      %2200 = vdwg.mxu0
      %v2201 = vmul.f32 %v2198, 0.0625
      %v2202 = vadd.f32 %v2201, 1e-05
      %v2203 = vrsqrt.pop %v2202
      %2205 = vset.pattern.permute.xlu0 0
      %2206 = vperm.xlu0 %2205, %v2203
      %v2207 = vpop.permute.xlu0 %2206
      %2209 = vset.pattern.permute.xlu0 1
      %2210 = vperm.xlu0 %2209, %v2203
      %v2211 = vpop.permute.xlu0 %2210
      %v2213 = vsel %vm1731, %v2207, %v2211
      %v2214 = vmul.f32 %v1742, %v2213
      %2215 = vset.pattern.permute.xlu0 5
      %2216 = vperm.xlu0 %2215, %v307
      %v2217 = vpop.permute.xlu0 %2216
      %v2219 = vmul.f32 %v2217, %v2214
      %2220 = vset.pattern.permute.xlu0 6
      %2221 = vperm.xlu0 %2220, %v307
      %v2222 = vpop.permute.xlu0 %2221
      %v2224 = vadd.f32 %v2219, %v2222
      %v2225 = vxor.u32 %v2224, 2147483648
      %v2226 = vmul.f32 %v2225, 1.442695
      %v2227 = vpow.pop %v2226
      %v2228 = vadd.f32 %v2227, 1.0
      %v2229 = vrcp.pop %v2228
      %v2230 = vmul.f32 1.0, %v2229
      %v2231 = vld [vmem:[%s3] sm:$0xff]
      %v2232 = vld [vmem:[%s3 + $0x8] sm:$0xff]
      %v2233 = vld [vmem:[%s3 + $0x10] sm:$0xff]
      %v2234 = vld [vmem:[%s3 + $0x18] sm:$0xff]
      %v2236 = vsel %vm1265, %v2230, 0
      %v2238 = vand.u32 %v2232, 4294901760
      %2239 = vmatprep.subr.mxu0 %v2238
      %v2240 = vand.u32 %v2231, 4294901760
      %2241 = vmatpush1.msra.mxu0 %v2240
      %v2242 = vand.u32 %v2234, 4294901760
      %2243 = vmatprep.subr.mxu0 %v2242
      %v2244 = vand.u32 %v2233, 4294901760
      %2245 = vmatpush1.msra.mxu0 %v2244
      %2246 = vmatprep.subr.mxu0 0.0
      %2247 = vmatpush1.msra.mxu0 0.0
      %2248 = vmatprep.subr.mxu0 0.0
      %2249 = vmatpush1.msra.mxu0 0.0
      %2250 = vmatprep.subr.mxu0 0.0
      %2251 = vmatpush1.msra.mxu0 0.0
      %2252 = vmatprep.subr.mxu0 0.0
      %2253 = vmatpush1.msra.mxu0 0.0
      %2254 = vmatprep.subr.mxu0 0.0
      %2255 = vmatpush1.msra.mxu0 0.0
      %2256 = vmatprep.subr.mxu0 0.0
      %2257 = vmatpush1.msra.mxu0 0.0
      %2258 = vmatprep.subr.mxu0 0.0
      %2259 = vmatpush1.msra.mxu0 0.0
      %2260 = vmatprep.subr.mxu0 0.0
      %2261 = vmatpush1.msra.mxu0 0.0
      %2262 = vmatprep.subr.mxu0 0.0
      %2263 = vmatpush1.msra.mxu0 0.0
      %2264 = vmatprep.subr.mxu0 0.0
      %2265 = vmatpush1.msra.mxu0 0.0
      %2266 = vmatprep.subr.mxu0 0.0
      %2267 = vmatpush1.msra.mxu0 0.0
      %2268 = vmatprep.subr.mxu0 0.0
      %2269 = vmatpush1.msra.mxu0 0.0
      %2270 = vmatprep.subr.mxu0 0.0
      %2271 = vmatpush1.msra.mxu0 0.0
      %2272 = vmatprep.subr.mxu0 0.0
      %2273 = vmatpush1.msra.mxu0 0.0
      %2274 = vmatprep.subr.mxu0 0.0
      %2275 = vmatpush1.msra.mxu0 0.0
      %2276 = vmatprep.subr.mxu0 0.0
      %2277 = vmatpush1.msra.mxu0 0.0
      %2278 = vmatprep.subr.mxu0 0.0
      %2279 = vmatpush1.msra.mxu0 0.0
      %2280 = vmatprep.subr.mxu0 0.0
      %2281 = vmatpush1.msra.mxu0 0.0
      %2282 = vmatprep.subr.mxu0 0.0
      %2283 = vmatpush1.msra.mxu0 0.0
      %2284 = vmatprep.subr.mxu0 0.0
      %2285 = vmatpush1.msra.mxu0 0.0
      %2286 = vmatprep.subr.mxu0 0.0
      %2287 = vmatpush1.msra.mxu0 0.0
      %2288 = vmatprep.subr.mxu0 0.0
      %2289 = vmatpush1.msra.mxu0 0.0
      %2290 = vmatprep.subr.mxu0 0.0
      %2291 = vmatpush1.msra.mxu0 0.0
      %2292 = vmatprep.subr.mxu0 0.0
      %2293 = vmatpush1.msra.mxu0 0.0
      %2294 = vmatprep.subr.mxu0 0.0
      %2295 = vmatpush1.msra.mxu0 0.0
      %2296 = vmatprep.subr.mxu0 0.0
      %2297 = vmatpush1.msra.mxu0 0.0
      %2298 = vmatprep.subr.mxu0 0.0
      %2299 = vmatpush1.msra.mxu0 0.0
      %2300 = vmatprep.subr.mxu0 0.0
      %2301 = vmatpush1.msra.mxu0 0.0
      %2302 = vmatprep.subr.mxu0 0.0
      %2303 = vmatpush1.msra.mxu0 0.0
      %2304 = vmatprep.subr.mxu0 0.0
      %2305 = vmatpush1.msra.mxu0 0.0
      %2306 = vmatprep.mubr.f32.mxu0 0.0
      %v2307 = vand.u32 %v2236, 4294901760
      %v2308 = vsub.f32 %v2236, %v2307
      %v2309 = vand.u32 %v2308, 4294901760
      %v2310 = vsub.f32 %v2308, %v2309
      %v2311 = vand.u32 %v2310, 4294901760
      %2312 = vmatmul.mubr.f32.gmra.mrb[0].mxu0 %v2311
      %v2313 = vpop.f32.mrb[0].mxu0
      %v2314 = vadd.f32 0.0, %v2313
      %v2315 = vpop.f32.mrb[0].mxu0
      %v2316 = vadd.f32 0.0, %v2315
      %2317 = vdwg.mxu0
      %v2318 = vand.u32 %v2232, 4294901760
      %v2319 = vsub.f32 %v2232, %v2318
      %v2320 = vand.u32 %v2319, 4294901760
      %v2321 = vsub.f32 %v2319, %v2320
      %v2322 = vand.u32 %v2321, 4294901760
      %2323 = vmatprep.subr.mxu0 %v2322
      %v2324 = vand.u32 %v2231, 4294901760
      %v2325 = vsub.f32 %v2231, %v2324
      %v2326 = vand.u32 %v2325, 4294901760
      %v2327 = vsub.f32 %v2325, %v2326
      %v2328 = vand.u32 %v2327, 4294901760
      %2329 = vmatpush1.msra.mxu0 %v2328
      %v2330 = vand.u32 %v2234, 4294901760
      %v2331 = vsub.f32 %v2234, %v2330
      %v2332 = vand.u32 %v2331, 4294901760
      %v2333 = vsub.f32 %v2331, %v2332
      %v2334 = vand.u32 %v2333, 4294901760
      %2335 = vmatprep.subr.mxu0 %v2334
      %v2336 = vand.u32 %v2233, 4294901760
      %v2337 = vsub.f32 %v2233, %v2336
      %v2338 = vand.u32 %v2337, 4294901760
      %v2339 = vsub.f32 %v2337, %v2338
      %v2340 = vand.u32 %v2339, 4294901760
      %2341 = vmatpush1.msra.mxu0 %v2340
      %2342 = vmatprep.subr.mxu0 0.0
      %2343 = vmatpush1.msra.mxu0 0.0
      %2344 = vmatprep.subr.mxu0 0.0
      %2345 = vmatpush1.msra.mxu0 0.0
      %2346 = vmatprep.subr.mxu0 0.0
      %2347 = vmatpush1.msra.mxu0 0.0
      %2348 = vmatprep.subr.mxu0 0.0
      %2349 = vmatpush1.msra.mxu0 0.0
      %2350 = vmatprep.subr.mxu0 0.0
      %2351 = vmatpush1.msra.mxu0 0.0
      %2352 = vmatprep.subr.mxu0 0.0
      %2353 = vmatpush1.msra.mxu0 0.0
      %2354 = vmatprep.subr.mxu0 0.0
      %2355 = vmatpush1.msra.mxu0 0.0
      %2356 = vmatprep.subr.mxu0 0.0
      %2357 = vmatpush1.msra.mxu0 0.0
      %2358 = vmatprep.subr.mxu0 0.0
      %2359 = vmatpush1.msra.mxu0 0.0
      %2360 = vmatprep.subr.mxu0 0.0
      %2361 = vmatpush1.msra.mxu0 0.0
      %2362 = vmatprep.subr.mxu0 0.0
      %2363 = vmatpush1.msra.mxu0 0.0
      %2364 = vmatprep.subr.mxu0 0.0
      %2365 = vmatpush1.msra.mxu0 0.0
      %2366 = vmatprep.subr.mxu0 0.0
      %2367 = vmatpush1.msra.mxu0 0.0
      %2368 = vmatprep.subr.mxu0 0.0
      %2369 = vmatpush1.msra.mxu0 0.0
      %2370 = vmatprep.subr.mxu0 0.0
      %2371 = vmatpush1.msra.mxu0 0.0
      %2372 = vmatprep.subr.mxu0 0.0
      %2373 = vmatpush1.msra.mxu0 0.0
      %2374 = vmatprep.subr.mxu0 0.0
      %2375 = vmatpush1.msra.mxu0 0.0
      %2376 = vmatprep.subr.mxu0 0.0
      %2377 = vmatpush1.msra.mxu0 0.0
      %2378 = vmatprep.subr.mxu0 0.0
      %2379 = vmatpush1.msra.mxu0 0.0
      %2380 = vmatprep.subr.mxu0 0.0
      %2381 = vmatpush1.msra.mxu0 0.0
      %2382 = vmatprep.subr.mxu0 0.0
      %2383 = vmatpush1.msra.mxu0 0.0
      %2384 = vmatprep.subr.mxu0 0.0
      %2385 = vmatpush1.msra.mxu0 0.0
      %2386 = vmatprep.subr.mxu0 0.0
      %2387 = vmatpush1.msra.mxu0 0.0
      %2388 = vmatprep.subr.mxu0 0.0
      %2389 = vmatpush1.msra.mxu0 0.0
      %2390 = vmatprep.subr.mxu0 0.0
      %2391 = vmatpush1.msra.mxu0 0.0
      %2392 = vmatprep.subr.mxu0 0.0
      %2393 = vmatpush1.msra.mxu0 0.0
      %2394 = vmatprep.subr.mxu0 0.0
      %2395 = vmatpush1.msra.mxu0 0.0
      %2396 = vmatprep.subr.mxu0 0.0
      %2397 = vmatpush1.msra.mxu0 0.0
      %2398 = vmatprep.subr.mxu0 0.0
      %2399 = vmatpush1.msra.mxu0 0.0
      %2400 = vmatprep.subr.mxu0 0.0
      %2401 = vmatpush1.msra.mxu0 0.0
      %2402 = vmatprep.mubr.f32.mxu0 0.0
      %v2403 = vand.u32 %v2236, 4294901760
      %2404 = vmatmul.mubr.f32.gmra.mrb[0].mxu0 %v2403
      %v2405 = vpop.f32.mrb[0].mxu0
      %v2406 = vadd.f32 %v2314, %v2405
      %v2407 = vpop.f32.mrb[0].mxu0
      %v2408 = vadd.f32 %v2316, %v2407
      %2409 = vdwg.mxu0
      %v2410 = vand.u32 %v2232, 4294901760
      %v2411 = vsub.f32 %v2232, %v2410
      %2412 = vmatprep.subr.mxu0 %v2411
      %v2413 = vand.u32 %v2231, 4294901760
      %v2414 = vsub.f32 %v2231, %v2413
      %2415 = vmatpush1.msra.mxu0 %v2414
      %v2416 = vand.u32 %v2234, 4294901760
      %v2417 = vsub.f32 %v2234, %v2416
      %2418 = vmatprep.subr.mxu0 %v2417
      %v2419 = vand.u32 %v2233, 4294901760
      %v2420 = vsub.f32 %v2233, %v2419
      %2421 = vmatpush1.msra.mxu0 %v2420
      %2422 = vmatprep.subr.mxu0 0.0
      %2423 = vmatpush1.msra.mxu0 0.0
      %2424 = vmatprep.subr.mxu0 0.0
      %2425 = vmatpush1.msra.mxu0 0.0
      %2426 = vmatprep.subr.mxu0 0.0
      %2427 = vmatpush1.msra.mxu0 0.0
      %2428 = vmatprep.subr.mxu0 0.0
      %2429 = vmatpush1.msra.mxu0 0.0
      %2430 = vmatprep.subr.mxu0 0.0
      %2431 = vmatpush1.msra.mxu0 0.0
      %2432 = vmatprep.subr.mxu0 0.0
      %2433 = vmatpush1.msra.mxu0 0.0
      %2434 = vmatprep.subr.mxu0 0.0
      %2435 = vmatpush1.msra.mxu0 0.0
      %2436 = vmatprep.subr.mxu0 0.0
      %2437 = vmatpush1.msra.mxu0 0.0
      %2438 = vmatprep.subr.mxu0 0.0
      %2439 = vmatpush1.msra.mxu0 0.0
      %2440 = vmatprep.subr.mxu0 0.0
      %2441 = vmatpush1.msra.mxu0 0.0
      %2442 = vmatprep.subr.mxu0 0.0
      %2443 = vmatpush1.msra.mxu0 0.0
      %2444 = vmatprep.subr.mxu0 0.0
      %2445 = vmatpush1.msra.mxu0 0.0
      %2446 = vmatprep.subr.mxu0 0.0
      %2447 = vmatpush1.msra.mxu0 0.0
      %2448 = vmatprep.subr.mxu0 0.0
      %2449 = vmatpush1.msra.mxu0 0.0
      %2450 = vmatprep.subr.mxu0 0.0
      %2451 = vmatpush1.msra.mxu0 0.0
      %2452 = vmatprep.subr.mxu0 0.0
      %2453 = vmatpush1.msra.mxu0 0.0
      %2454 = vmatprep.subr.mxu0 0.0
      %2455 = vmatpush1.msra.mxu0 0.0
      %2456 = vmatprep.subr.mxu0 0.0
      %2457 = vmatpush1.msra.mxu0 0.0
      %2458 = vmatprep.subr.mxu0 0.0
      %2459 = vmatpush1.msra.mxu0 0.0
      %2460 = vmatprep.subr.mxu0 0.0
      %2461 = vmatpush1.msra.mxu0 0.0
      %2462 = vmatprep.subr.mxu0 0.0
      %2463 = vmatpush1.msra.mxu0 0.0
      %2464 = vmatprep.subr.mxu0 0.0
      %2465 = vmatpush1.msra.mxu0 0.0
      %2466 = vmatprep.subr.mxu0 0.0
      %2467 = vmatpush1.msra.mxu0 0.0
      %2468 = vmatprep.subr.mxu0 0.0
      %2469 = vmatpush1.msra.mxu0 0.0
      %2470 = vmatprep.subr.mxu0 0.0
      %2471 = vmatpush1.msra.mxu0 0.0
      %2472 = vmatprep.subr.mxu0 0.0
      %2473 = vmatpush1.msra.mxu0 0.0
      %2474 = vmatprep.subr.mxu0 0.0
      %2475 = vmatpush1.msra.mxu0 0.0
      %2476 = vmatprep.subr.mxu0 0.0
      %2477 = vmatpush1.msra.mxu0 0.0
      %2478 = vmatprep.subr.mxu0 0.0
      %2479 = vmatpush1.msra.mxu0 0.0
      %2480 = vmatprep.subr.mxu0 0.0
      %2481 = vmatpush1.msra.mxu0 0.0
      %2482 = vmatprep.mubr.f32.mxu0 0.0
      %v2483 = vand.u32 %v2236, 4294901760
      %v2484 = vsub.f32 %v2236, %v2483
      %2485 = vmatmul.mubr.f32.gmra.mrb[0].mxu0 %v2484
      %v2486 = vpop.f32.mrb[0].mxu0
      %v2487 = vadd.f32 %v2406, %v2486
      %v2488 = vpop.f32.mrb[0].mxu0
      %v2489 = vadd.f32 %v2408, %v2488
      %2490 = vdwg.mxu0
      %v2491 = vand.u32 %v2232, 4294901760
      %2492 = vmatprep.subr.mxu0 %v2491
      %v2493 = vand.u32 %v2231, 4294901760
      %2494 = vmatpush1.msra.mxu0 %v2493
      %v2495 = vand.u32 %v2234, 4294901760
      %2496 = vmatprep.subr.mxu0 %v2495
      %v2497 = vand.u32 %v2233, 4294901760
      %2498 = vmatpush1.msra.mxu0 %v2497
      %2499 = vmatprep.subr.mxu0 0.0
      %2500 = vmatpush1.msra.mxu0 0.0
      %2501 = vmatprep.subr.mxu0 0.0
      %2502 = vmatpush1.msra.mxu0 0.0
      %2503 = vmatprep.subr.mxu0 0.0
      %2504 = vmatpush1.msra.mxu0 0.0
      %2505 = vmatprep.subr.mxu0 0.0
      %2506 = vmatpush1.msra.mxu0 0.0
      %2507 = vmatprep.subr.mxu0 0.0
      %2508 = vmatpush1.msra.mxu0 0.0
      %2509 = vmatprep.subr.mxu0 0.0
      %2510 = vmatpush1.msra.mxu0 0.0
      %2511 = vmatprep.subr.mxu0 0.0
      %2512 = vmatpush1.msra.mxu0 0.0
      %2513 = vmatprep.subr.mxu0 0.0
      %2514 = vmatpush1.msra.mxu0 0.0
      %2515 = vmatprep.subr.mxu0 0.0
      %2516 = vmatpush1.msra.mxu0 0.0
      %2517 = vmatprep.subr.mxu0 0.0
      %2518 = vmatpush1.msra.mxu0 0.0
      %2519 = vmatprep.subr.mxu0 0.0
      %2520 = vmatpush1.msra.mxu0 0.0
      %2521 = vmatprep.subr.mxu0 0.0
      %2522 = vmatpush1.msra.mxu0 0.0
      %2523 = vmatprep.subr.mxu0 0.0
      %2524 = vmatpush1.msra.mxu0 0.0
      %2525 = vmatprep.subr.mxu0 0.0
      %2526 = vmatpush1.msra.mxu0 0.0
      %2527 = vmatprep.subr.mxu0 0.0
      %2528 = vmatpush1.msra.mxu0 0.0
      %2529 = vmatprep.subr.mxu0 0.0
      %2530 = vmatpush1.msra.mxu0 0.0
      %2531 = vmatprep.subr.mxu0 0.0
      %2532 = vmatpush1.msra.mxu0 0.0
      %2533 = vmatprep.subr.mxu0 0.0
      %2534 = vmatpush1.msra.mxu0 0.0
      %2535 = vmatprep.subr.mxu0 0.0
      %2536 = vmatpush1.msra.mxu0 0.0
      %2537 = vmatprep.subr.mxu0 0.0
      %2538 = vmatpush1.msra.mxu0 0.0
      %2539 = vmatprep.subr.mxu0 0.0
      %2540 = vmatpush1.msra.mxu0 0.0
      %2541 = vmatprep.subr.mxu0 0.0
      %2542 = vmatpush1.msra.mxu0 0.0
      %2543 = vmatprep.subr.mxu0 0.0
      %2544 = vmatpush1.msra.mxu0 0.0
      %2545 = vmatprep.subr.mxu0 0.0
      %2546 = vmatpush1.msra.mxu0 0.0
      %2547 = vmatprep.subr.mxu0 0.0
      %2548 = vmatpush1.msra.mxu0 0.0
      %2549 = vmatprep.subr.mxu0 0.0
      %2550 = vmatpush1.msra.mxu0 0.0
      %2551 = vmatprep.subr.mxu0 0.0
      %2552 = vmatpush1.msra.mxu0 0.0
      %2553 = vmatprep.subr.mxu0 0.0
      %2554 = vmatpush1.msra.mxu0 0.0
      %2555 = vmatprep.subr.mxu0 0.0
      %2556 = vmatpush1.msra.mxu0 0.0
      %2557 = vmatprep.subr.mxu0 0.0
      %2558 = vmatpush1.msra.mxu0 0.0
      %2559 = vmatprep.mubr.f32.mxu0 0.0
      %v2560 = vand.u32 %v2236, 4294901760
      %v2561 = vsub.f32 %v2236, %v2560
      %v2562 = vand.u32 %v2561, 4294901760
      %2563 = vmatmul.mubr.f32.gmra.mrb[0].mxu0 %v2562
      %v2564 = vpop.f32.mrb[0].mxu0
      %v2565 = vadd.f32 %v2487, %v2564
      %v2566 = vpop.f32.mrb[0].mxu0
      %v2567 = vadd.f32 %v2489, %v2566
      %2568 = vdwg.mxu0
      %v2569 = vand.u32 %v2232, 4294901760
      %v2570 = vsub.f32 %v2232, %v2569
      %v2571 = vand.u32 %v2570, 4294901760
      %2572 = vmatprep.subr.mxu0 %v2571
      %v2573 = vand.u32 %v2231, 4294901760
      %v2574 = vsub.f32 %v2231, %v2573
      %v2575 = vand.u32 %v2574, 4294901760
      %2576 = vmatpush1.msra.mxu0 %v2575
      %v2577 = vand.u32 %v2234, 4294901760
      %v2578 = vsub.f32 %v2234, %v2577
      %v2579 = vand.u32 %v2578, 4294901760
      %2580 = vmatprep.subr.mxu0 %v2579
      %v2581 = vand.u32 %v2233, 4294901760
      %v2582 = vsub.f32 %v2233, %v2581
      %v2583 = vand.u32 %v2582, 4294901760
      %2584 = vmatpush1.msra.mxu0 %v2583
      %2585 = vmatprep.subr.mxu0 0.0
      %2586 = vmatpush1.msra.mxu0 0.0
      %2587 = vmatprep.subr.mxu0 0.0
      %2588 = vmatpush1.msra.mxu0 0.0
      %2589 = vmatprep.subr.mxu0 0.0
      %2590 = vmatpush1.msra.mxu0 0.0
      %2591 = vmatprep.subr.mxu0 0.0
      %2592 = vmatpush1.msra.mxu0 0.0
      %2593 = vmatprep.subr.mxu0 0.0
      %2594 = vmatpush1.msra.mxu0 0.0
      %2595 = vmatprep.subr.mxu0 0.0
      %2596 = vmatpush1.msra.mxu0 0.0
      %2597 = vmatprep.subr.mxu0 0.0
      %2598 = vmatpush1.msra.mxu0 0.0
      %2599 = vmatprep.subr.mxu0 0.0
      %2600 = vmatpush1.msra.mxu0 0.0
      %2601 = vmatprep.subr.mxu0 0.0
      %2602 = vmatpush1.msra.mxu0 0.0
      %2603 = vmatprep.subr.mxu0 0.0
      %2604 = vmatpush1.msra.mxu0 0.0
      %2605 = vmatprep.subr.mxu0 0.0
      %2606 = vmatpush1.msra.mxu0 0.0
      %2607 = vmatprep.subr.mxu0 0.0
      %2608 = vmatpush1.msra.mxu0 0.0
      %2609 = vmatprep.subr.mxu0 0.0
      %2610 = vmatpush1.msra.mxu0 0.0
      %2611 = vmatprep.subr.mxu0 0.0
      %2612 = vmatpush1.msra.mxu0 0.0
      %2613 = vmatprep.subr.mxu0 0.0
      %2614 = vmatpush1.msra.mxu0 0.0
      %2615 = vmatprep.subr.mxu0 0.0
      %2616 = vmatpush1.msra.mxu0 0.0
      %2617 = vmatprep.subr.mxu0 0.0
      %2618 = vmatpush1.msra.mxu0 0.0
      %2619 = vmatprep.subr.mxu0 0.0
      %2620 = vmatpush1.msra.mxu0 0.0
      %2621 = vmatprep.subr.mxu0 0.0
      %2622 = vmatpush1.msra.mxu0 0.0
      %2623 = vmatprep.subr.mxu0 0.0
      %2624 = vmatpush1.msra.mxu0 0.0
      %2625 = vmatprep.subr.mxu0 0.0
      %2626 = vmatpush1.msra.mxu0 0.0
      %2627 = vmatprep.subr.mxu0 0.0
      %2628 = vmatpush1.msra.mxu0 0.0
      %2629 = vmatprep.subr.mxu0 0.0
      %2630 = vmatpush1.msra.mxu0 0.0
      %2631 = vmatprep.subr.mxu0 0.0
      %2632 = vmatpush1.msra.mxu0 0.0
      %2633 = vmatprep.subr.mxu0 0.0
      %2634 = vmatpush1.msra.mxu0 0.0
      %2635 = vmatprep.subr.mxu0 0.0
      %2636 = vmatpush1.msra.mxu0 0.0
      %2637 = vmatprep.subr.mxu0 0.0
      %2638 = vmatpush1.msra.mxu0 0.0
      %2639 = vmatprep.subr.mxu0 0.0
      %2640 = vmatpush1.msra.mxu0 0.0
      %2641 = vmatprep.subr.mxu0 0.0
      %2642 = vmatpush1.msra.mxu0 0.0
      %2643 = vmatprep.subr.mxu0 0.0
      %2644 = vmatpush1.msra.mxu0 0.0
      %2645 = vmatprep.mubr.f32.mxu0 0.0
      %v2646 = vand.u32 %v2236, 4294901760
      %2647 = vmatmul.mubr.f32.gmra.mrb[0].mxu0 %v2646
      %v2648 = vpop.f32.mrb[0].mxu0
      %v2649 = vadd.f32 %v2565, %v2648
      %v2650 = vpop.f32.mrb[0].mxu0
      %v2651 = vadd.f32 %v2567, %v2650
      %2652 = vdwg.mxu0
      %v2653 = vand.u32 %v2232, 4294901760
      %2654 = vmatprep.subr.mxu0 %v2653
      %v2655 = vand.u32 %v2231, 4294901760
      %2656 = vmatpush1.msra.mxu0 %v2655
      %v2657 = vand.u32 %v2234, 4294901760
      %2658 = vmatprep.subr.mxu0 %v2657
      %v2659 = vand.u32 %v2233, 4294901760
      %2660 = vmatpush1.msra.mxu0 %v2659
      %2661 = vmatprep.subr.mxu0 0.0
      %2662 = vmatpush1.msra.mxu0 0.0
      %2663 = vmatprep.subr.mxu0 0.0
      %2664 = vmatpush1.msra.mxu0 0.0
      %2665 = vmatprep.subr.mxu0 0.0
      %2666 = vmatpush1.msra.mxu0 0.0
      %2667 = vmatprep.subr.mxu0 0.0
      %2668 = vmatpush1.msra.mxu0 0.0
      %2669 = vmatprep.subr.mxu0 0.0
      %2670 = vmatpush1.msra.mxu0 0.0
      %2671 = vmatprep.subr.mxu0 0.0
      %2672 = vmatpush1.msra.mxu0 0.0
      %2673 = vmatprep.subr.mxu0 0.0
      %2674 = vmatpush1.msra.mxu0 0.0
      %2675 = vmatprep.subr.mxu0 0.0
      %2676 = vmatpush1.msra.mxu0 0.0
      %2677 = vmatprep.subr.mxu0 0.0
      %2678 = vmatpush1.msra.mxu0 0.0
      %2679 = vmatprep.subr.mxu0 0.0
      %2680 = vmatpush1.msra.mxu0 0.0
      %2681 = vmatprep.subr.mxu0 0.0
      %2682 = vmatpush1.msra.mxu0 0.0
      %2683 = vmatprep.subr.mxu0 0.0
      %2684 = vmatpush1.msra.mxu0 0.0
      %2685 = vmatprep.subr.mxu0 0.0
      %2686 = vmatpush1.msra.mxu0 0.0
      %2687 = vmatprep.subr.mxu0 0.0
      %2688 = vmatpush1.msra.mxu0 0.0
      %2689 = vmatprep.subr.mxu0 0.0
      %2690 = vmatpush1.msra.mxu0 0.0
      %2691 = vmatprep.subr.mxu0 0.0
      %2692 = vmatpush1.msra.mxu0 0.0
      %2693 = vmatprep.subr.mxu0 0.0
      %2694 = vmatpush1.msra.mxu0 0.0
      %2695 = vmatprep.subr.mxu0 0.0
      %2696 = vmatpush1.msra.mxu0 0.0
      %2697 = vmatprep.subr.mxu0 0.0
      %2698 = vmatpush1.msra.mxu0 0.0
      %2699 = vmatprep.subr.mxu0 0.0
      %2700 = vmatpush1.msra.mxu0 0.0
      %2701 = vmatprep.subr.mxu0 0.0
      %2702 = vmatpush1.msra.mxu0 0.0
      %2703 = vmatprep.subr.mxu0 0.0
      %2704 = vmatpush1.msra.mxu0 0.0
      %2705 = vmatprep.subr.mxu0 0.0
      %2706 = vmatpush1.msra.mxu0 0.0
      %2707 = vmatprep.subr.mxu0 0.0
      %2708 = vmatpush1.msra.mxu0 0.0
      %2709 = vmatprep.subr.mxu0 0.0
      %2710 = vmatpush1.msra.mxu0 0.0
      %2711 = vmatprep.subr.mxu0 0.0
      %2712 = vmatpush1.msra.mxu0 0.0
      %2713 = vmatprep.subr.mxu0 0.0
      %2714 = vmatpush1.msra.mxu0 0.0
      %2715 = vmatprep.subr.mxu0 0.0
      %2716 = vmatpush1.msra.mxu0 0.0
      %2717 = vmatprep.subr.mxu0 0.0
      %2718 = vmatpush1.msra.mxu0 0.0
      %2719 = vmatprep.subr.mxu0 0.0
      %2720 = vmatpush1.msra.mxu0 0.0
      %2721 = vmatprep.mubr.f32.mxu0 0.0
      %v2722 = vand.u32 %v2236, 4294901760
      %2723 = vmatmul.mubr.f32.gmra.mrb[0].mxu0 %v2722
      %v2724 = vpop.f32.mrb[0].mxu0
      %v2725 = vadd.f32 %v2649, %v2724
      %v2726 = vpop.f32.mrb[0].mxu0
      %v2727 = vadd.f32 %v2651, %v2726
      %2728 = vdwg.mxu0
      %v2729 = vld [vmem:[%s4] sm:$0xff]
      %v2730 = vld [vmem:[%s4 + $0x8] sm:$0xff]
      %v2731 = vld [vmem:[%s4 + $0x10] sm:$0xff]
      %v2732 = vld [vmem:[%s4 + $0x18] sm:$0xff]
      %2733 = vrot.lane.b32.xlu0 %v2230, 108
      %v2734 = vpop.permute.xlu0 %2733
      %v2735 = vsel %vm1265, %v2734, 0
      %v2737 = vand.u32 %v2730, 4294901760
      %2738 = vmatprep.subr.mxu0 %v2737
      %v2739 = vand.u32 %v2729, 4294901760
      %2740 = vmatpush1.msra.mxu0 %v2739
      %v2741 = vand.u32 %v2732, 4294901760
      %2742 = vmatprep.subr.mxu0 %v2741
      %v2743 = vand.u32 %v2731, 4294901760
      %2744 = vmatpush1.msra.mxu0 %v2743
      %2745 = vmatprep.subr.mxu0 0.0
      %2746 = vmatpush1.msra.mxu0 0.0
      %2747 = vmatprep.subr.mxu0 0.0
      %2748 = vmatpush1.msra.mxu0 0.0
      %2749 = vmatprep.subr.mxu0 0.0
      %2750 = vmatpush1.msra.mxu0 0.0
      %2751 = vmatprep.subr.mxu0 0.0
      %2752 = vmatpush1.msra.mxu0 0.0
      %2753 = vmatprep.subr.mxu0 0.0
      %2754 = vmatpush1.msra.mxu0 0.0
      %2755 = vmatprep.subr.mxu0 0.0
      %2756 = vmatpush1.msra.mxu0 0.0
      %2757 = vmatprep.subr.mxu0 0.0
      %2758 = vmatpush1.msra.mxu0 0.0
      %2759 = vmatprep.subr.mxu0 0.0
      %2760 = vmatpush1.msra.mxu0 0.0
      %2761 = vmatprep.subr.mxu0 0.0
      %2762 = vmatpush1.msra.mxu0 0.0
      %2763 = vmatprep.subr.mxu0 0.0
      %2764 = vmatpush1.msra.mxu0 0.0
      %2765 = vmatprep.subr.mxu0 0.0
      %2766 = vmatpush1.msra.mxu0 0.0
      %2767 = vmatprep.subr.mxu0 0.0
      %2768 = vmatpush1.msra.mxu0 0.0
      %2769 = vmatprep.subr.mxu0 0.0
      %2770 = vmatpush1.msra.mxu0 0.0
      %2771 = vmatprep.subr.mxu0 0.0
      %2772 = vmatpush1.msra.mxu0 0.0
      %2773 = vmatprep.subr.mxu0 0.0
      %2774 = vmatpush1.msra.mxu0 0.0
      %2775 = vmatprep.subr.mxu0 0.0
      %2776 = vmatpush1.msra.mxu0 0.0
      %2777 = vmatprep.subr.mxu0 0.0
      %2778 = vmatpush1.msra.mxu0 0.0
      %2779 = vmatprep.subr.mxu0 0.0
      %2780 = vmatpush1.msra.mxu0 0.0
      %2781 = vmatprep.subr.mxu0 0.0
      %2782 = vmatpush1.msra.mxu0 0.0
      %2783 = vmatprep.subr.mxu0 0.0
      %2784 = vmatpush1.msra.mxu0 0.0
      %2785 = vmatprep.subr.mxu0 0.0
      %2786 = vmatpush1.msra.mxu0 0.0
      %2787 = vmatprep.subr.mxu0 0.0
      %2788 = vmatpush1.msra.mxu0 0.0
      %2789 = vmatprep.subr.mxu0 0.0
      %2790 = vmatpush1.msra.mxu0 0.0
      %2791 = vmatprep.subr.mxu0 0.0
      %2792 = vmatpush1.msra.mxu0 0.0
      %2793 = vmatprep.subr.mxu0 0.0
      %2794 = vmatpush1.msra.mxu0 0.0
      %2795 = vmatprep.subr.mxu0 0.0
      %2796 = vmatpush1.msra.mxu0 0.0
      %2797 = vmatprep.subr.mxu0 0.0
      %2798 = vmatpush1.msra.mxu0 0.0
      %2799 = vmatprep.subr.mxu0 0.0
      %2800 = vmatpush1.msra.mxu0 0.0
      %2801 = vmatprep.subr.mxu0 0.0
      %2802 = vmatpush1.msra.mxu0 0.0
      %2803 = vmatprep.subr.mxu0 0.0
      %2804 = vmatpush1.msra.mxu0 0.0
      %2805 = vmatprep.mubr.f32.mxu0 0.0
      %v2806 = vand.u32 %v2735, 4294901760
      %v2807 = vsub.f32 %v2735, %v2806
      %v2808 = vand.u32 %v2807, 4294901760
      %v2809 = vsub.f32 %v2807, %v2808
      %v2810 = vand.u32 %v2809, 4294901760
      %2811 = vmatmul.mubr.f32.gmra.mrb[0].mxu0 %v2810
      %v2812 = vpop.f32.mrb[0].mxu0
      %v2813 = vadd.f32 0.0, %v2812
      %v2814 = vpop.f32.mrb[0].mxu0
      %v2815 = vadd.f32 0.0, %v2814
      %2816 = vdwg.mxu0
      %v2817 = vand.u32 %v2730, 4294901760
      %v2818 = vsub.f32 %v2730, %v2817
      %v2819 = vand.u32 %v2818, 4294901760
      %v2820 = vsub.f32 %v2818, %v2819
      %v2821 = vand.u32 %v2820, 4294901760
      %2822 = vmatprep.subr.mxu0 %v2821
      %v2823 = vand.u32 %v2729, 4294901760
      %v2824 = vsub.f32 %v2729, %v2823
      %v2825 = vand.u32 %v2824, 4294901760
      %v2826 = vsub.f32 %v2824, %v2825
      %v2827 = vand.u32 %v2826, 4294901760
      %2828 = vmatpush1.msra.mxu0 %v2827
      %v2829 = vand.u32 %v2732, 4294901760
      %v2830 = vsub.f32 %v2732, %v2829
      %v2831 = vand.u32 %v2830, 4294901760
      %v2832 = vsub.f32 %v2830, %v2831
      %v2833 = vand.u32 %v2832, 4294901760
      %2834 = vmatprep.subr.mxu0 %v2833
      %v2835 = vand.u32 %v2731, 4294901760
      %v2836 = vsub.f32 %v2731, %v2835
      %v2837 = vand.u32 %v2836, 4294901760
      %v2838 = vsub.f32 %v2836, %v2837
      %v2839 = vand.u32 %v2838, 4294901760
      %2840 = vmatpush1.msra.mxu0 %v2839
      %2841 = vmatprep.subr.mxu0 0.0
      %2842 = vmatpush1.msra.mxu0 0.0
      %2843 = vmatprep.subr.mxu0 0.0
      %2844 = vmatpush1.msra.mxu0 0.0
      %2845 = vmatprep.subr.mxu0 0.0
      %2846 = vmatpush1.msra.mxu0 0.0
      %2847 = vmatprep.subr.mxu0 0.0
      %2848 = vmatpush1.msra.mxu0 0.0
      %2849 = vmatprep.subr.mxu0 0.0
      %2850 = vmatpush1.msra.mxu0 0.0
      %2851 = vmatprep.subr.mxu0 0.0
      %2852 = vmatpush1.msra.mxu0 0.0
      %2853 = vmatprep.subr.mxu0 0.0
      %2854 = vmatpush1.msra.mxu0 0.0
      %2855 = vmatprep.subr.mxu0 0.0
      %2856 = vmatpush1.msra.mxu0 0.0
      %2857 = vmatprep.subr.mxu0 0.0
      %2858 = vmatpush1.msra.mxu0 0.0
      %2859 = vmatprep.subr.mxu0 0.0
      %2860 = vmatpush1.msra.mxu0 0.0
      %2861 = vmatprep.subr.mxu0 0.0
      %2862 = vmatpush1.msra.mxu0 0.0
      %2863 = vmatprep.subr.mxu0 0.0
      %2864 = vmatpush1.msra.mxu0 0.0
      %2865 = vmatprep.subr.mxu0 0.0
      %2866 = vmatpush1.msra.mxu0 0.0
      %2867 = vmatprep.subr.mxu0 0.0
      %2868 = vmatpush1.msra.mxu0 0.0
      %2869 = vmatprep.subr.mxu0 0.0
      %2870 = vmatpush1.msra.mxu0 0.0
      %2871 = vmatprep.subr.mxu0 0.0
      %2872 = vmatpush1.msra.mxu0 0.0
      %2873 = vmatprep.subr.mxu0 0.0
      %2874 = vmatpush1.msra.mxu0 0.0
      %2875 = vmatprep.subr.mxu0 0.0
      %2876 = vmatpush1.msra.mxu0 0.0
      %2877 = vmatprep.subr.mxu0 0.0
      %2878 = vmatpush1.msra.mxu0 0.0
      %2879 = vmatprep.subr.mxu0 0.0
      %2880 = vmatpush1.msra.mxu0 0.0
      %2881 = vmatprep.subr.mxu0 0.0
      %2882 = vmatpush1.msra.mxu0 0.0
      %2883 = vmatprep.subr.mxu0 0.0
      %2884 = vmatpush1.msra.mxu0 0.0
      %2885 = vmatprep.subr.mxu0 0.0
      %2886 = vmatpush1.msra.mxu0 0.0
      %2887 = vmatprep.subr.mxu0 0.0
      %2888 = vmatpush1.msra.mxu0 0.0
      %2889 = vmatprep.subr.mxu0 0.0
      %2890 = vmatpush1.msra.mxu0 0.0
      %2891 = vmatprep.subr.mxu0 0.0
      %2892 = vmatpush1.msra.mxu0 0.0
      %2893 = vmatprep.subr.mxu0 0.0
      %2894 = vmatpush1.msra.mxu0 0.0
      %2895 = vmatprep.subr.mxu0 0.0
      %2896 = vmatpush1.msra.mxu0 0.0
      %2897 = vmatprep.subr.mxu0 0.0
      %2898 = vmatpush1.msra.mxu0 0.0
      %2899 = vmatprep.subr.mxu0 0.0
      %2900 = vmatpush1.msra.mxu0 0.0
      %2901 = vmatprep.mubr.f32.mxu0 0.0
      %v2902 = vand.u32 %v2735, 4294901760
      %2903 = vmatmul.mubr.f32.gmra.mrb[0].mxu0 %v2902
      %v2904 = vpop.f32.mrb[0].mxu0
      %v2905 = vadd.f32 %v2813, %v2904
      %v2906 = vpop.f32.mrb[0].mxu0
      %v2907 = vadd.f32 %v2815, %v2906
      %2908 = vdwg.mxu0
      %v2909 = vand.u32 %v2730, 4294901760
      %v2910 = vsub.f32 %v2730, %v2909
      %2911 = vmatprep.subr.mxu0 %v2910
      %v2912 = vand.u32 %v2729, 4294901760
      %v2913 = vsub.f32 %v2729, %v2912
      %2914 = vmatpush1.msra.mxu0 %v2913
      %v2915 = vand.u32 %v2732, 4294901760
      %v2916 = vsub.f32 %v2732, %v2915
      %2917 = vmatprep.subr.mxu0 %v2916
      %v2918 = vand.u32 %v2731, 4294901760
      %v2919 = vsub.f32 %v2731, %v2918
      %2920 = vmatpush1.msra.mxu0 %v2919
      %2921 = vmatprep.subr.mxu0 0.0
      %2922 = vmatpush1.msra.mxu0 0.0
      %2923 = vmatprep.subr.mxu0 0.0
      %2924 = vmatpush1.msra.mxu0 0.0
      %2925 = vmatprep.subr.mxu0 0.0
      %2926 = vmatpush1.msra.mxu0 0.0
      %2927 = vmatprep.subr.mxu0 0.0
      %2928 = vmatpush1.msra.mxu0 0.0
      %2929 = vmatprep.subr.mxu0 0.0
      %2930 = vmatpush1.msra.mxu0 0.0
      %2931 = vmatprep.subr.mxu0 0.0
      %2932 = vmatpush1.msra.mxu0 0.0
      %2933 = vmatprep.subr.mxu0 0.0
      %2934 = vmatpush1.msra.mxu0 0.0
      %2935 = vmatprep.subr.mxu0 0.0
      %2936 = vmatpush1.msra.mxu0 0.0
      %2937 = vmatprep.subr.mxu0 0.0
      %2938 = vmatpush1.msra.mxu0 0.0
      %2939 = vmatprep.subr.mxu0 0.0
      %2940 = vmatpush1.msra.mxu0 0.0
      %2941 = vmatprep.subr.mxu0 0.0
      %2942 = vmatpush1.msra.mxu0 0.0
      %2943 = vmatprep.subr.mxu0 0.0
      %2944 = vmatpush1.msra.mxu0 0.0
      %2945 = vmatprep.subr.mxu0 0.0
      %2946 = vmatpush1.msra.mxu0 0.0
      %2947 = vmatprep.subr.mxu0 0.0
      %2948 = vmatpush1.msra.mxu0 0.0
      %2949 = vmatprep.subr.mxu0 0.0
      %2950 = vmatpush1.msra.mxu0 0.0
      %2951 = vmatprep.subr.mxu0 0.0
      %2952 = vmatpush1.msra.mxu0 0.0
      %2953 = vmatprep.subr.mxu0 0.0
      %2954 = vmatpush1.msra.mxu0 0.0
      %2955 = vmatprep.subr.mxu0 0.0
      %2956 = vmatpush1.msra.mxu0 0.0
      %2957 = vmatprep.subr.mxu0 0.0
      %2958 = vmatpush1.msra.mxu0 0.0
      %2959 = vmatprep.subr.mxu0 0.0
      %2960 = vmatpush1.msra.mxu0 0.0
      %2961 = vmatprep.subr.mxu0 0.0
      %2962 = vmatpush1.msra.mxu0 0.0
      %2963 = vmatprep.subr.mxu0 0.0
      %2964 = vmatpush1.msra.mxu0 0.0
      %2965 = vmatprep.subr.mxu0 0.0
      %2966 = vmatpush1.msra.mxu0 0.0
      %2967 = vmatprep.subr.mxu0 0.0
      %2968 = vmatpush1.msra.mxu0 0.0
      %2969 = vmatprep.subr.mxu0 0.0
      %2970 = vmatpush1.msra.mxu0 0.0
      %2971 = vmatprep.subr.mxu0 0.0
      %2972 = vmatpush1.msra.mxu0 0.0
      %2973 = vmatprep.subr.mxu0 0.0
      %2974 = vmatpush1.msra.mxu0 0.0
      %2975 = vmatprep.subr.mxu0 0.0
      %2976 = vmatpush1.msra.mxu0 0.0
      %2977 = vmatprep.subr.mxu0 0.0
      %2978 = vmatpush1.msra.mxu0 0.0
      %2979 = vmatprep.subr.mxu0 0.0
      %2980 = vmatpush1.msra.mxu0 0.0
      %2981 = vmatprep.mubr.f32.mxu0 0.0
      %v2982 = vand.u32 %v2735, 4294901760
      %v2983 = vsub.f32 %v2735, %v2982
      %2984 = vmatmul.mubr.f32.gmra.mrb[0].mxu0 %v2983
      %v2985 = vpop.f32.mrb[0].mxu0
      %v2986 = vadd.f32 %v2905, %v2985
      %v2987 = vpop.f32.mrb[0].mxu0
      %v2988 = vadd.f32 %v2907, %v2987
      %2989 = vdwg.mxu0
      %v2990 = vand.u32 %v2730, 4294901760
      %2991 = vmatprep.subr.mxu0 %v2990
      %v2992 = vand.u32 %v2729, 4294901760
      %2993 = vmatpush1.msra.mxu0 %v2992
      %v2994 = vand.u32 %v2732, 4294901760
      %2995 = vmatprep.subr.mxu0 %v2994
      %v2996 = vand.u32 %v2731, 4294901760
      %2997 = vmatpush1.msra.mxu0 %v2996
      %2998 = vmatprep.subr.mxu0 0.0
      %2999 = vmatpush1.msra.mxu0 0.0
      %3000 = vmatprep.subr.mxu0 0.0
      %3001 = vmatpush1.msra.mxu0 0.0
      %3002 = vmatprep.subr.mxu0 0.0
      %3003 = vmatpush1.msra.mxu0 0.0
      %3004 = vmatprep.subr.mxu0 0.0
      %3005 = vmatpush1.msra.mxu0 0.0
      %3006 = vmatprep.subr.mxu0 0.0
      %3007 = vmatpush1.msra.mxu0 0.0
      %3008 = vmatprep.subr.mxu0 0.0
      %3009 = vmatpush1.msra.mxu0 0.0
      %3010 = vmatprep.subr.mxu0 0.0
      %3011 = vmatpush1.msra.mxu0 0.0
      %3012 = vmatprep.subr.mxu0 0.0
      %3013 = vmatpush1.msra.mxu0 0.0
      %3014 = vmatprep.subr.mxu0 0.0
      %3015 = vmatpush1.msra.mxu0 0.0
      %3016 = vmatprep.subr.mxu0 0.0
      %3017 = vmatpush1.msra.mxu0 0.0
      %3018 = vmatprep.subr.mxu0 0.0
      %3019 = vmatpush1.msra.mxu0 0.0
      %3020 = vmatprep.subr.mxu0 0.0
      %3021 = vmatpush1.msra.mxu0 0.0
      %3022 = vmatprep.subr.mxu0 0.0
      %3023 = vmatpush1.msra.mxu0 0.0
      %3024 = vmatprep.subr.mxu0 0.0
      %3025 = vmatpush1.msra.mxu0 0.0
      %3026 = vmatprep.subr.mxu0 0.0
      %3027 = vmatpush1.msra.mxu0 0.0
      %3028 = vmatprep.subr.mxu0 0.0
      %3029 = vmatpush1.msra.mxu0 0.0
      %3030 = vmatprep.subr.mxu0 0.0
      %3031 = vmatpush1.msra.mxu0 0.0
      %3032 = vmatprep.subr.mxu0 0.0
      %3033 = vmatpush1.msra.mxu0 0.0
      %3034 = vmatprep.subr.mxu0 0.0
      %3035 = vmatpush1.msra.mxu0 0.0
      %3036 = vmatprep.subr.mxu0 0.0
      %3037 = vmatpush1.msra.mxu0 0.0
      %3038 = vmatprep.subr.mxu0 0.0
      %3039 = vmatpush1.msra.mxu0 0.0
      %3040 = vmatprep.subr.mxu0 0.0
      %3041 = vmatpush1.msra.mxu0 0.0
      %3042 = vmatprep.subr.mxu0 0.0
      %3043 = vmatpush1.msra.mxu0 0.0
      %3044 = vmatprep.subr.mxu0 0.0
      %3045 = vmatpush1.msra.mxu0 0.0
      %3046 = vmatprep.subr.mxu0 0.0
      %3047 = vmatpush1.msra.mxu0 0.0
      %3048 = vmatprep.subr.mxu0 0.0
      %3049 = vmatpush1.msra.mxu0 0.0
      %3050 = vmatprep.subr.mxu0 0.0
      %3051 = vmatpush1.msra.mxu0 0.0
      %3052 = vmatprep.subr.mxu0 0.0
      %3053 = vmatpush1.msra.mxu0 0.0
      %3054 = vmatprep.subr.mxu0 0.0
      %3055 = vmatpush1.msra.mxu0 0.0
      %3056 = vmatprep.subr.mxu0 0.0
      %3057 = vmatpush1.msra.mxu0 0.0
      %3058 = vmatprep.mubr.f32.mxu0 0.0
      %v3059 = vand.u32 %v2735, 4294901760
      %v3060 = vsub.f32 %v2735, %v3059
      %v3061 = vand.u32 %v3060, 4294901760
      %3062 = vmatmul.mubr.f32.gmra.mrb[0].mxu0 %v3061
      %v3063 = vpop.f32.mrb[0].mxu0
      %v3064 = vadd.f32 %v2986, %v3063
      %v3065 = vpop.f32.mrb[0].mxu0
      %v3066 = vadd.f32 %v2988, %v3065
      %3067 = vdwg.mxu0
      %v3068 = vand.u32 %v2730, 4294901760
      %v3069 = vsub.f32 %v2730, %v3068
      %v3070 = vand.u32 %v3069, 4294901760
      %3071 = vmatprep.subr.mxu0 %v3070
      %v3072 = vand.u32 %v2729, 4294901760
      %v3073 = vsub.f32 %v2729, %v3072
      %v3074 = vand.u32 %v3073, 4294901760
      %3075 = vmatpush1.msra.mxu0 %v3074
      %v3076 = vand.u32 %v2732, 4294901760
      %v3077 = vsub.f32 %v2732, %v3076
      %v3078 = vand.u32 %v3077, 4294901760
      %3079 = vmatprep.subr.mxu0 %v3078
      %v3080 = vand.u32 %v2731, 4294901760
      %v3081 = vsub.f32 %v2731, %v3080
      %v3082 = vand.u32 %v3081, 4294901760
      %3083 = vmatpush1.msra.mxu0 %v3082
      %3084 = vmatprep.subr.mxu0 0.0
      %3085 = vmatpush1.msra.mxu0 0.0
      %3086 = vmatprep.subr.mxu0 0.0
      %3087 = vmatpush1.msra.mxu0 0.0
      %3088 = vmatprep.subr.mxu0 0.0
      %3089 = vmatpush1.msra.mxu0 0.0
      %3090 = vmatprep.subr.mxu0 0.0
      %3091 = vmatpush1.msra.mxu0 0.0
      %3092 = vmatprep.subr.mxu0 0.0
      %3093 = vmatpush1.msra.mxu0 0.0
      %3094 = vmatprep.subr.mxu0 0.0
      %3095 = vmatpush1.msra.mxu0 0.0
      %3096 = vmatprep.subr.mxu0 0.0
      %3097 = vmatpush1.msra.mxu0 0.0
      %3098 = vmatprep.subr.mxu0 0.0
      %3099 = vmatpush1.msra.mxu0 0.0
      %3100 = vmatprep.subr.mxu0 0.0
      %3101 = vmatpush1.msra.mxu0 0.0
      %3102 = vmatprep.subr.mxu0 0.0
      %3103 = vmatpush1.msra.mxu0 0.0
      %3104 = vmatprep.subr.mxu0 0.0
      %3105 = vmatpush1.msra.mxu0 0.0
      %3106 = vmatprep.subr.mxu0 0.0
      %3107 = vmatpush1.msra.mxu0 0.0
      %3108 = vmatprep.subr.mxu0 0.0
      %3109 = vmatpush1.msra.mxu0 0.0
      %3110 = vmatprep.subr.mxu0 0.0
      %3111 = vmatpush1.msra.mxu0 0.0
      %3112 = vmatprep.subr.mxu0 0.0
      %3113 = vmatpush1.msra.mxu0 0.0
      %3114 = vmatprep.subr.mxu0 0.0
      %3115 = vmatpush1.msra.mxu0 0.0
      %3116 = vmatprep.subr.mxu0 0.0
      %3117 = vmatpush1.msra.mxu0 0.0
      %3118 = vmatprep.subr.mxu0 0.0
      %3119 = vmatpush1.msra.mxu0 0.0
      %3120 = vmatprep.subr.mxu0 0.0
      %3121 = vmatpush1.msra.mxu0 0.0
      %3122 = vmatprep.subr.mxu0 0.0
      %3123 = vmatpush1.msra.mxu0 0.0
      %3124 = vmatprep.subr.mxu0 0.0
      %3125 = vmatpush1.msra.mxu0 0.0
      %3126 = vmatprep.subr.mxu0 0.0
      %3127 = vmatpush1.msra.mxu0 0.0
      %3128 = vmatprep.subr.mxu0 0.0
      %3129 = vmatpush1.msra.mxu0 0.0
      %3130 = vmatprep.subr.mxu0 0.0
      %3131 = vmatpush1.msra.mxu0 0.0
      %3132 = vmatprep.subr.mxu0 0.0
      %3133 = vmatpush1.msra.mxu0 0.0
      %3134 = vmatprep.subr.mxu0 0.0
      %3135 = vmatpush1.msra.mxu0 0.0
      %3136 = vmatprep.subr.mxu0 0.0
      %3137 = vmatpush1.msra.mxu0 0.0
      %3138 = vmatprep.subr.mxu0 0.0
      %3139 = vmatpush1.msra.mxu0 0.0
      %3140 = vmatprep.subr.mxu0 0.0
      %3141 = vmatpush1.msra.mxu0 0.0
      %3142 = vmatprep.subr.mxu0 0.0
      %3143 = vmatpush1.msra.mxu0 0.0
      %3144 = vmatprep.mubr.f32.mxu0 0.0
      %v3145 = vand.u32 %v2735, 4294901760
      %3146 = vmatmul.mubr.f32.gmra.mrb[0].mxu0 %v3145
      %v3147 = vpop.f32.mrb[0].mxu0
      %v3148 = vadd.f32 %v3064, %v3147
      %v3149 = vpop.f32.mrb[0].mxu0
      %v3150 = vadd.f32 %v3066, %v3149
      %3151 = vdwg.mxu0
      %v3152 = vand.u32 %v2730, 4294901760
      %3153 = vmatprep.subr.mxu0 %v3152
      %v3154 = vand.u32 %v2729, 4294901760
      %3155 = vmatpush1.msra.mxu0 %v3154
      %v3156 = vand.u32 %v2732, 4294901760
      %3157 = vmatprep.subr.mxu0 %v3156
      %v3158 = vand.u32 %v2731, 4294901760
      %3159 = vmatpush1.msra.mxu0 %v3158
      %3160 = vmatprep.subr.mxu0 0.0
      %3161 = vmatpush1.msra.mxu0 0.0
      %3162 = vmatprep.subr.mxu0 0.0
      %3163 = vmatpush1.msra.mxu0 0.0
      %3164 = vmatprep.subr.mxu0 0.0
      %3165 = vmatpush1.msra.mxu0 0.0
      %3166 = vmatprep.subr.mxu0 0.0
      %3167 = vmatpush1.msra.mxu0 0.0
      %3168 = vmatprep.subr.mxu0 0.0
      %3169 = vmatpush1.msra.mxu0 0.0
      %3170 = vmatprep.subr.mxu0 0.0
      %3171 = vmatpush1.msra.mxu0 0.0
      %3172 = vmatprep.subr.mxu0 0.0
      %3173 = vmatpush1.msra.mxu0 0.0
      %3174 = vmatprep.subr.mxu0 0.0
      %3175 = vmatpush1.msra.mxu0 0.0
      %3176 = vmatprep.subr.mxu0 0.0
      %3177 = vmatpush1.msra.mxu0 0.0
      %3178 = vmatprep.subr.mxu0 0.0
      %3179 = vmatpush1.msra.mxu0 0.0
      %3180 = vmatprep.subr.mxu0 0.0
      %3181 = vmatpush1.msra.mxu0 0.0
      %3182 = vmatprep.subr.mxu0 0.0
      %3183 = vmatpush1.msra.mxu0 0.0
      %3184 = vmatprep.subr.mxu0 0.0
      %3185 = vmatpush1.msra.mxu0 0.0
      %3186 = vmatprep.subr.mxu0 0.0
      %3187 = vmatpush1.msra.mxu0 0.0
      %3188 = vmatprep.subr.mxu0 0.0
      %3189 = vmatpush1.msra.mxu0 0.0
      %3190 = vmatprep.subr.mxu0 0.0
      %3191 = vmatpush1.msra.mxu0 0.0
      %3192 = vmatprep.subr.mxu0 0.0
      %3193 = vmatpush1.msra.mxu0 0.0
      %3194 = vmatprep.subr.mxu0 0.0
      %3195 = vmatpush1.msra.mxu0 0.0
      %3196 = vmatprep.subr.mxu0 0.0
      %3197 = vmatpush1.msra.mxu0 0.0
      %3198 = vmatprep.subr.mxu0 0.0
      %3199 = vmatpush1.msra.mxu0 0.0
      %3200 = vmatprep.subr.mxu0 0.0
      %3201 = vmatpush1.msra.mxu0 0.0
      %3202 = vmatprep.subr.mxu0 0.0
      %3203 = vmatpush1.msra.mxu0 0.0
      %3204 = vmatprep.subr.mxu0 0.0
      %3205 = vmatpush1.msra.mxu0 0.0
      %3206 = vmatprep.subr.mxu0 0.0
      %3207 = vmatpush1.msra.mxu0 0.0
      %3208 = vmatprep.subr.mxu0 0.0
      %3209 = vmatpush1.msra.mxu0 0.0
      %3210 = vmatprep.subr.mxu0 0.0
      %3211 = vmatpush1.msra.mxu0 0.0
      %3212 = vmatprep.subr.mxu0 0.0
      %3213 = vmatpush1.msra.mxu0 0.0
      %3214 = vmatprep.subr.mxu0 0.0
      %3215 = vmatpush1.msra.mxu0 0.0
      %3216 = vmatprep.subr.mxu0 0.0
      %3217 = vmatpush1.msra.mxu0 0.0
      %3218 = vmatprep.subr.mxu0 0.0
      %3219 = vmatpush1.msra.mxu0 0.0
      %3220 = vmatprep.mubr.f32.mxu0 0.0
      %v3221 = vand.u32 %v2735, 4294901760
      %3222 = vmatmul.mubr.f32.gmra.mrb[0].mxu0 %v3221
      %v3223 = vpop.f32.mrb[0].mxu0
      %v3224 = vadd.f32 %v3148, %v3223
      %v3225 = vpop.f32.mrb[0].mxu0
      %v3226 = vadd.f32 %v3150, %v3225
      %3227 = vdwg.mxu0
      %v3228 = vmul.f32 %v2725, %v3224
      %v3229 = vmul.f32 %v2727, %v3226
      %v3230 = vmul.f32 %v3228, %v305
      %v3231 = vmul.f32 %v3229, %v306
      %3232 = vst [vmem:[%s304] sm:$0xff] %v3230
      %3233 = vst [vmem:[%s304 + $0x8] sm:$0xff] %v3231
      %p3234 = scmp.lt.s32.totalorder %s21, 1
      %s3235 = scalar_select %p3234, %s21, 1
      %p3236 = scmp.lt.s32.totalorder %s22, 3
      %s3237 = scalar_select %p3236, %s22, 3
      %s3238 = smul.addr %s3237, 2
      %s3239 = smul.addr %s3235, 8
      %s3240 = sadd.s32 %s3238, %s3239
      %s3241 = smul.addr %s3240, 8
      %s3242 = scalar_lea.vmem %s6, %s3241
      // Predicated region
      $region45: #{_ela_impl.1} parent=43 // pred_check
        %p3243 = pneg %p187
      $region46: #{_ela_impl.1} parent=43 // pred_check_branch
        %3245 = sbr.rel (%p3243) target = $region48
      $region47: #{_ela_impl.1} parent=43 // pred_region
        _
      $region48: #{_ela_impl.1} parent=43 // pred_fallthru
        _
    $region44: #{_ela_impl.1} parent=5 // pred_fallthru
      _
    %p3246 = scmp.le.s32.totalorder 2, %s12
    // Predicated region
    $region49: #{_ela_impl.1} parent=5 // pred_check
      %p3247 = pneg %p3246
    $region50: #{_ela_impl.1} parent=5 // pred_check_branch
      %3249 = sbr.rel (%p3247) target = $region52
    $region51: #{_ela_impl.1} parent=5 // pred_region
      %s3250 = ssub.s32 %s12, 2
      // Predicated region
      $region53: #{_ela_impl.1} parent=51 // pred_check
        %p3251 = pneg %p193
      $region54: #{_ela_impl.1} parent=51 // pred_check_branch
        %3253 = sbr.rel (%p3251) target = $region56
      $region55: #{_ela_impl.1} parent=51 // pred_region
        %p3254 = scmp.lt.s32.totalorder %s23, 1
        %s3255 = scalar_select %p3254, %s23, 1
        %p3256 = scmp.lt.s32.totalorder %s24, 3
        %s3257 = scalar_select %p3256, %s24, 3
        %s3258 = smul.addr %s3257, 2
        %s3259 = smul.addr %s3255, 8
        %s3260 = sadd.s32 %s3258, %s3259
        %s3261 = smul.addr %s3260, 8
        %s3262 = scalar_lea.vmem %s6, %s3261
      $region56: #{_ela_impl.1} parent=51 // pred_fallthru
        _
    $region52: #{_ela_impl.1} parent=5 // pred_fallthru
      _
  $region6: #{_ela_impl.1} parent=0 // loop_footer
    %s16 = sadd.s32 1, %s12
  $region7: #{_ela_impl.1} parent=0 // loop_footer_branch
    %11 = sbr.rel target = $region3
  $region8: #{_ela_impl.1} parent=0 // loop_exit
    _

// kernel: _ela_impl.1
$region0: #{_ela_impl.1}
  #allocation0 [shape = 'u32[]', space=smem, size = 0x4, offset = 0x4, fixed_abs, tag = 'smem constant byte address 0x4 - core index']
  #allocation1 [shape = 'u32[144,128]{1,0:T(1,128)}', space=vmem, size = 0x12000, scoped, tag = 'internal scratch']
  %s0 = inlined_call_operand.vmem [shape: f32[2,32,256], index: 0, kind: input, shape index: {}]
  %s1 = inlined_call_operand.vmem [shape: f32[32,7], index: 1, kind: input, shape index: {}]
  %s2 = inlined_call_operand.vmem [shape: f32[256,32], index: 2, kind: input, shape index: {}]
  %s3 = inlined_call_operand.vmem [shape: f32[16,256], index: 3, kind: input, shape index: {}]
  %s4 = inlined_call_operand.vmem [shape: f32[16,256], index: 4, kind: input, shape index: {}]
  %s5 = inlined_call_operand.vmem [shape: f32[8,8], index: 5, kind: input, shape index: {}]
  %s6 = inlined_call_operand.vmem [shape: f32[2,32,256], index: 6, kind: output, shape index: {}]
  %s7 = sld [smem:[#allocation0]]
  $region57: #{_ela_impl.1} parent=0
    _
  %s9 = ssub.s32 1, %s7
  %s10 = scalar_select 0, %s9, %s7
  loop: start=0, step=1, limit=10
  $region2: #{_ela_impl.1} parent=0 // loop_pre_header
    _
  $region3: #{_ela_impl.1} parent=0 // loop_header
    %s12 = sphi 0, %s16
    %p13 = scmp.ge.s32.totalorder %s12, 10
    %s19 = sphi 0, %s31
    %s20 = sphi 0, %s27
    %s21 = sphi 0, %s19
    %s22 = sphi 0, %s20
    %s23 = sphi 0, %s21
    %s24 = sphi 0, %s22
    %s36 = sphi 0, %s38
    %s39 = sphi 0, %s36
    %s40 = sphi 0, %s39
    %s56 = sphi 0, %s40
    %s62 = sphi 0, %s64
    %s65 = sphi 0, %s62
    %s66 = sphi 0, %s65
    %s82 = sphi 0, %s66
    %s86 = sphi 0, %s86
    %s88 = sphi 0, %s86
    %s89 = sphi 0, %s88
    %s103 = sphi 0, %s89
    %s107 = sphi 0, %s107
    %s109 = sphi 0, %s107
    %s110 = sphi 0, %s109
    %s124 = sphi 0, %s110
    %s128 = sphi 0, %s128
    %s130 = sphi 0, %s128
    %s131 = sphi 0, %s130
    %s145 = sphi 0, %s131
    %s149 = sphi 0, %s149
    %s151 = sphi 0, %s149
    %s152 = sphi 0, %s151
    %s166 = sphi 0, %s152
    %s174 = sphi 0, %s176
    %s177 = sphi 0, %s174
    %s178 = sphi 0, %s177
    %s194 = sphi 0, %s178
  $region4: #{_ela_impl.1} parent=0 // loop_header_branch
    %15 = sbr.rel (%p13) target = $region8
  $region5: #{_ela_impl.1} parent=0 // loop_body
    %s17 = ssub.s32 %s12, 1
    %s18 = ssub.s32 %s12, 2
    %s25 = sadd.s32 1, %s20
    %p26 = scmp.ge.s32.totalorder %s25, 4
    %s27 = scalar_select %p26, 0, %s25
    %s28 = sadd.s32 1, %s19
    %s29 = scalar_select %p26, %s28, %s19
    %p30 = scmp.ge.s32.totalorder %s29, 2
    %s31 = scalar_select %p30, 0, %s29
    %s32 = ssub.s32 %s19, %s31
    %s33 = ssub.s32 %s20, %s27
    %s34 = sor.u32 %s32, %s33
    %p35 = scmp.eq.s32.totalorder %s34, 0
    %s37 = sadd.s32 %s36, 1
    %s38 = scalar_select %p35, %s36, %s37
    %p41 = pneg %p35
    %p42 = scmp.eq.s32.totalorder %s12, 7
    %p43 = por %p41, %p42
    %p44 = scmp.ne.s32.totalorder %s36, %s39
    %p45 = scmp.eq.s32.totalorder %s12, 0
    %p46 = por %p44, %p45
    %p47 = scmp.ne.s32.totalorder %s36, %s39
    %p48 = scmp.eq.s32.totalorder %s17, 7
    %p49 = por %p47, %p48
    %p50 = scmp.ne.s32.totalorder %s39, %s40
    %p51 = scmp.eq.s32.totalorder %s17, 0
    %p52 = por %p50, %p51
    %p53 = scmp.ne.s32.totalorder %s39, %s40
    %p54 = scmp.eq.s32.totalorder %s18, 7
    %p55 = por %p53, %p54
    %p57 = scmp.ne.s32.totalorder %s40, %s56
    %p58 = scmp.eq.s32.totalorder %s18, 0
    %p59 = por %p57, %p58
    %s60 = ssub.s32 %s20, %s27
    %p61 = scmp.eq.s32.totalorder %s60, 0
    %s63 = sadd.s32 %s62, 1
    %s64 = scalar_select %p61, %s62, %s63
    %p67 = pneg %p61
    %p68 = scmp.eq.s32.totalorder %s12, 7
    %p69 = por %p67, %p68
    %p70 = scmp.ne.s32.totalorder %s62, %s65
    %p71 = scmp.eq.s32.totalorder %s12, 0
    %p72 = por %p70, %p71
    %p73 = scmp.ne.s32.totalorder %s62, %s65
    %p74 = scmp.eq.s32.totalorder %s17, 7
    %p75 = por %p73, %p74
    %p76 = scmp.ne.s32.totalorder %s65, %s66
    %p77 = scmp.eq.s32.totalorder %s17, 0
    %p78 = por %p76, %p77
    %p79 = scmp.ne.s32.totalorder %s65, %s66
    %p80 = scmp.eq.s32.totalorder %s18, 7
    %p81 = por %p79, %p80
    %p83 = scmp.ne.s32.totalorder %s66, %s82
    %p84 = scmp.eq.s32.totalorder %s18, 0
    %p85 = por %p83, %p84
    %s87 = sadd.s32 %s86, 1
    %p90 = scmp.eq.s32.totalorder %s12, 7
    %p91 = scmp.ne.s32.totalorder %s86, %s88
    %p92 = scmp.eq.s32.totalorder %s12, 0
    %p93 = por %p91, %p92
    %p94 = scmp.ne.s32.totalorder %s86, %s88
    %p95 = scmp.eq.s32.totalorder %s17, 7
    %p96 = por %p94, %p95
    %p97 = scmp.ne.s32.totalorder %s88, %s89
    %p98 = scmp.eq.s32.totalorder %s17, 0
    %p99 = por %p97, %p98
    %p100 = scmp.ne.s32.totalorder %s88, %s89
    %p101 = scmp.eq.s32.totalorder %s18, 7
    %p102 = por %p100, %p101
    %p104 = scmp.ne.s32.totalorder %s89, %s103
    %p105 = scmp.eq.s32.totalorder %s18, 0
    %p106 = por %p104, %p105
    %s108 = sadd.s32 %s107, 1
    %p111 = scmp.eq.s32.totalorder %s12, 7
    %p112 = scmp.ne.s32.totalorder %s107, %s109
    %p113 = scmp.eq.s32.totalorder %s12, 0
    %p114 = por %p112, %p113
    %p115 = scmp.ne.s32.totalorder %s107, %s109
    %p116 = scmp.eq.s32.totalorder %s17, 7
    %p117 = por %p115, %p116
    %p118 = scmp.ne.s32.totalorder %s109, %s110
    %p119 = scmp.eq.s32.totalorder %s17, 0
    %p120 = por %p118, %p119
    %p121 = scmp.ne.s32.totalorder %s109, %s110
    %p122 = scmp.eq.s32.totalorder %s18, 7
    %p123 = por %p121, %p122
    %p125 = scmp.ne.s32.totalorder %s110, %s124
    %p126 = scmp.eq.s32.totalorder %s18, 0
    %p127 = por %p125, %p126
    %s129 = sadd.s32 %s128, 1
    %p132 = scmp.eq.s32.totalorder %s12, 7
    %p133 = scmp.ne.s32.totalorder %s128, %s130
    %p134 = scmp.eq.s32.totalorder %s12, 0
    %p135 = por %p133, %p134
    %p136 = scmp.ne.s32.totalorder %s128, %s130
    %p137 = scmp.eq.s32.totalorder %s17, 7
    %p138 = por %p136, %p137
    %p139 = scmp.ne.s32.totalorder %s130, %s131
    %p140 = scmp.eq.s32.totalorder %s17, 0
    %p141 = por %p139, %p140
    %p142 = scmp.ne.s32.totalorder %s130, %s131
    %p143 = scmp.eq.s32.totalorder %s18, 7
    %p144 = por %p142, %p143
    %p146 = scmp.ne.s32.totalorder %s131, %s145
    %p147 = scmp.eq.s32.totalorder %s18, 0
    %p148 = por %p146, %p147
    %s150 = sadd.s32 %s149, 1
    %p153 = scmp.eq.s32.totalorder %s12, 7
    %p154 = scmp.ne.s32.totalorder %s149, %s151
    %p155 = scmp.eq.s32.totalorder %s12, 0
    %p156 = por %p154, %p155
    %p157 = scmp.ne.s32.totalorder %s149, %s151
    %p158 = scmp.eq.s32.totalorder %s17, 7
    %p159 = por %p157, %p158
    %p160 = scmp.ne.s32.totalorder %s151, %s152
    %p161 = scmp.eq.s32.totalorder %s17, 0
    %p162 = por %p160, %p161
    %p163 = scmp.ne.s32.totalorder %s151, %s152
    %p164 = scmp.eq.s32.totalorder %s18, 7
    %p165 = por %p163, %p164
    %p167 = scmp.ne.s32.totalorder %s152, %s166
    %p168 = scmp.eq.s32.totalorder %s18, 0
    %p169 = por %p167, %p168
    %s170 = ssub.s32 %s19, %s31
    %s171 = ssub.s32 %s20, %s27
    %s172 = sor.u32 %s170, %s171
    %p173 = scmp.eq.s32.totalorder %s172, 0
    %s175 = sadd.s32 %s174, 1
    %s176 = scalar_select %p173, %s174, %s175
    %p179 = pneg %p173
    %p180 = scmp.eq.s32.totalorder %s12, 7
    %p181 = por %p179, %p180
    %p182 = scmp.ne.s32.totalorder %s174, %s177
    %p183 = scmp.eq.s32.totalorder %s12, 0
    %p184 = por %p182, %p183
    %p185 = scmp.ne.s32.totalorder %s174, %s177
    %p186 = scmp.eq.s32.totalorder %s17, 7
    %p187 = por %p185, %p186
    %p188 = scmp.ne.s32.totalorder %s177, %s178
    %p189 = scmp.eq.s32.totalorder %s17, 0
    %p190 = por %p188, %p189
    %p191 = scmp.ne.s32.totalorder %s177, %s178
    %p192 = scmp.eq.s32.totalorder %s18, 7
    %p193 = por %p191, %p192
    %p195 = scmp.ne.s32.totalorder %s178, %s194
    %p196 = scmp.eq.s32.totalorder %s18, 0
    %p197 = por %p195, %p196
    %p198 = scmp.le.s32.totalorder 1, %s12
    %p199 = scmp.lt.s32.totalorder %s12, 9
    %p200 = pnand %p198, %p199
    %p201 = pneg %p200
    // Predicated region
    $region9: #{_ela_impl.1} parent=5 // pred_check
      _
    $region10: #{_ela_impl.1} parent=5 // pred_check_branch
      %203 = sbr.rel (%p200) target = $region12
    $region11: #{_ela_impl.1} parent=5 // pred_region
      %s204 = ssub.s32 %s12, 1
      // Predicated region
      $region13: #{_ela_impl.1} parent=11 // pred_check
        %p205 = pneg %p99
      $region14: #{_ela_impl.1} parent=11 // pred_check_branch
        %207 = sbr.rel (%p205) target = $region16
      $region15: #{_ela_impl.1} parent=11 // pred_region
        _
      $region16: #{_ela_impl.1} parent=11 // pred_fallthru
        _
      // Predicated region
      $region17: #{_ela_impl.1} parent=11 // pred_check
        %p208 = pneg %p120
      $region18: #{_ela_impl.1} parent=11 // pred_check_branch
        %210 = sbr.rel (%p208) target = $region20
      $region19: #{_ela_impl.1} parent=11 // pred_region
        _
      $region20: #{_ela_impl.1} parent=11 // pred_fallthru
        _
      // Predicated region
      $region21: #{_ela_impl.1} parent=11 // pred_check
        %p211 = pneg %p141
      $region22: #{_ela_impl.1} parent=11 // pred_check_branch
        %213 = sbr.rel (%p211) target = $region24
      $region23: #{_ela_impl.1} parent=11 // pred_region
        _
      $region24: #{_ela_impl.1} parent=11 // pred_fallthru
        _
      // Predicated region
      $region25: #{_ela_impl.1} parent=11 // pred_check
        %p214 = pneg %p162
      $region26: #{_ela_impl.1} parent=11 // pred_check_branch
        %216 = sbr.rel (%p214) target = $region28
      $region27: #{_ela_impl.1} parent=11 // pred_region
        _
      $region28: #{_ela_impl.1} parent=11 // pred_fallthru
        _
    $region12: #{_ela_impl.1} parent=5 // pred_fallthru
      _
    %p217 = scmp.lt.s32.totalorder %s12, 8
    // Predicated region
    $region29: #{_ela_impl.1} parent=5 // pred_check
      %p218 = pneg %p217
    $region30: #{_ela_impl.1} parent=5 // pred_check_branch
      %220 = sbr.rel (%p218) target = $region32
    $region31: #{_ela_impl.1} parent=5 // pred_region
      // Predicated region
      $region33: #{_ela_impl.1} parent=31 // pred_check
        %p221 = pneg %p46
      $region34: #{_ela_impl.1} parent=31 // pred_check_branch
        %223 = sbr.rel (%p221) target = $region36
      $region35: #{_ela_impl.1} parent=31 // pred_region
        %p224 = scmp.lt.s32.totalorder %s19, 1
        %s225 = scalar_select %p224, %s19, 1
        %p226 = scmp.lt.s32.totalorder %s20, 3
        %s227 = scalar_select %p226, %s20, 3
        %s228 = smul.addr %s227, 2
        %s229 = smul.addr %s225, 8
        %s230 = sadd.s32 %s228, %s229
        %s231 = smul.addr %s230, 8
        %s232 = scalar_lea.vmem %s0, %s231
      $region36: #{_ela_impl.1} parent=31 // pred_fallthru
        _
      // Predicated region
      $region37: #{_ela_impl.1} parent=31 // pred_check
        %p233 = pneg %p72
      $region38: #{_ela_impl.1} parent=31 // pred_check_branch
        %235 = sbr.rel (%p233) target = $region40
      $region39: #{_ela_impl.1} parent=31 // pred_region
        %p236 = scmp.lt.s32.totalorder %s20, 3
        %s237 = scalar_select %p236, %s20, 3
        %s238 = smul.addr %s237, 8
        %s239 = scalar_lea.vmem %s1, %s238
      $region40: #{_ela_impl.1} parent=31 // pred_fallthru
        _
    $region32: #{_ela_impl.1} parent=5 // pred_fallthru
      _
    %p240 = scmp.le.s32.totalorder 1, %s12
    %p241 = scmp.lt.s32.totalorder %s12, 9
    %p242 = pnand %p240, %p241
    %p243 = pneg %p242
    // Predicated region
    $region41: #{_ela_impl.1} parent=5 // pred_check
      _
    $region42: #{_ela_impl.1} parent=5 // pred_check_branch
      %245 = sbr.rel (%p242) target = $region44
    $region43: #{_ela_impl.1} parent=5 // pred_region
      %s246 = ssub.s32 %s12, 1
      %p247 = scmp.lt.s32.totalorder %s21, 1
      %s248 = scalar_select %p247, %s21, 1
      %p249 = scmp.lt.s32.totalorder %s22, 3
      %s250 = scalar_select %p249, %s22, 3
      %s251 = smul.addr %s250, 2
      %s252 = smul.addr %s248, 8
      %s253 = sadd.s32 %s251, %s252
      %s254 = smul.addr %s253, 8
      %s255 = scalar_lea.vmem %s0, %s254
      %p256 = pneg %p52
      %p257 = pneg %p49
      %p258 = scmp.lt.s32.totalorder %s22, 3
      %s259 = scalar_select %p258, %s22, 3
      %s260 = smul.addr %s259, 8
      %s261 = scalar_lea.vmem %s1, %s260
      %p262 = pneg %p78
      %p263 = pneg %p75
      %p264 = pneg %p99
      %p265 = pneg %p96
      %p266 = pneg %p120
      %p267 = pneg %p117
      %p268 = pneg %p141
      %p269 = pneg %p138
      %p270 = pneg %p162
      %p271 = pneg %p159
      %p272 = pneg %p190
      %p273 = pneg %p187
      %p274 = scmp.lt.s32.totalorder %s21, 1
      %s275 = scalar_select %p274, %s21, 1
      %p276 = scmp.lt.s32.totalorder %s22, 3
      %s277 = scalar_select %p276, %s22, 3
      %s278 = smul.addr %s277, 2
      %s279 = smul.addr %s275, 8
      %s280 = sadd.s32 %s278, %s279
      %s281 = smul.addr %s280, 8
      %s282 = scalar_lea.vmem %s6, %s281
      %p283 = scmp.lt.s32.totalorder %s21, 1
      %s284 = scalar_select %p283, %s21, 1
      %p285 = scmp.lt.s32.totalorder %s22, 3
      %s286 = scalar_select %p285, %s22, 3
      %s287 = smul.addr %s286, 2
      %s288 = smul.addr %s284, 8
      %s289 = sadd.s32 %s287, %s288
      %s290 = smul.addr %s289, 8
      %s291 = scalar_lea.vmem %s0, %s290
      %p292 = scmp.lt.s32.totalorder %s22, 3
      %s293 = scalar_select %p292, %s22, 3
      %s294 = smul.addr %s293, 8
      %s295 = scalar_lea.vmem %s1, %s294
      %p296 = scmp.lt.s32.totalorder %s21, 1
      %s297 = scalar_select %p296, %s21, 1
      %p298 = scmp.lt.s32.totalorder %s22, 3
      %s299 = scalar_select %p298, %s22, 3
      %s300 = smul.addr %s299, 2
      %s301 = smul.addr %s297, 8
      %s302 = sadd.s32 %s300, %s301
      %s303 = smul.addr %s302, 8
      %s304 = scalar_lea.vmem %s6, %s303
      %v305 = vld [vmem:[%s291] sm:$0xff]
      %v306 = vld [vmem:[%s291 + $0x8] sm:$0xff]
      %v307 = vld [vmem:[%s295] sm:$0xff]
      %v308 = vld [vmem:[%s2] sm:$0xff]
      %v309 = vld [vmem:[%s2 + $0x8] sm:$0xff]
      %v310 = vld [vmem:[%s2 + $0x10] sm:$0xff]
      %v311 = vld [vmem:[%s2 + $0x18] sm:$0xff]
      %v312 = vld [vmem:[%s2 + $0x20] sm:$0xff]
      %v313 = vld [vmem:[%s2 + $0x28] sm:$0xff]
      %v314 = vld [vmem:[%s2 + $0x30] sm:$0xff]
      %v315 = vld [vmem:[%s2 + $0x38] sm:$0xff]
      %v316 = vld [vmem:[%s2 + $0x40] sm:$0xff]
      %v317 = vld [vmem:[%s2 + $0x48] sm:$0xff]
      %v318 = vld [vmem:[%s2 + $0x50] sm:$0xff]
      %v319 = vld [vmem:[%s2 + $0x58] sm:$0xff]
      %v320 = vld [vmem:[%s2 + $0x60] sm:$0xff]
      %v321 = vld [vmem:[%s2 + $0x68] sm:$0xff]
      %v322 = vld [vmem:[%s2 + $0x70] sm:$0xff]
      %v323 = vld [vmem:[%s2 + $0x78] sm:$0xff]
      %v324 = vld [vmem:[%s2 + $0x80] sm:$0xff]
      %v325 = vld [vmem:[%s2 + $0x88] sm:$0xff]
      %v326 = vld [vmem:[%s2 + $0x90] sm:$0xff]
      %v327 = vld [vmem:[%s2 + $0x98] sm:$0xff]
      %v328 = vld [vmem:[%s2 + $0xa0] sm:$0xff]
      %v329 = vld [vmem:[%s2 + $0xa8] sm:$0xff]
      %v330 = vld [vmem:[%s2 + $0xb0] sm:$0xff]
      %v331 = vld [vmem:[%s2 + $0xb8] sm:$0xff]
      %v332 = vld [vmem:[%s2 + $0xc0] sm:$0xff]
      %v333 = vld [vmem:[%s2 + $0xc8] sm:$0xff]
      %v334 = vld [vmem:[%s2 + $0xd0] sm:$0xff]
      %v335 = vld [vmem:[%s2 + $0xd8] sm:$0xff]
      %v336 = vld [vmem:[%s2 + $0xe0] sm:$0xff]
      %v337 = vld [vmem:[%s2 + $0xe8] sm:$0xff]
      %v338 = vld [vmem:[%s2 + $0xf0] sm:$0xff]
      %v339 = vld [vmem:[%s2 + $0xf8] sm:$0xff]
      %340 = vmatprep.subr.mxu0 0.0
      %v341 = vand.u32 %v308, 4294901760
      %342 = vmatpush1.msra.mxu0 %v341
      %343 = vmatprep.subr.mxu0 0.0
      %v344 = vand.u32 %v309, 4294901760
      %345 = vmatpush1.msra.mxu0 %v344
      %346 = vmatprep.subr.mxu0 0.0
      %v347 = vand.u32 %v310, 4294901760
      %348 = vmatpush1.msra.mxu0 %v347
      %349 = vmatprep.subr.mxu0 0.0
      %v350 = vand.u32 %v311, 4294901760
      %351 = vmatpush1.msra.mxu0 %v350
      %352 = vmatprep.subr.mxu0 0.0
      %v353 = vand.u32 %v312, 4294901760
      %354 = vmatpush1.msra.mxu0 %v353
      %355 = vmatprep.subr.mxu0 0.0
      %v356 = vand.u32 %v313, 4294901760
      %357 = vmatpush1.msra.mxu0 %v356
      %358 = vmatprep.subr.mxu0 0.0
      %v359 = vand.u32 %v314, 4294901760
      %360 = vmatpush1.msra.mxu0 %v359
      %361 = vmatprep.subr.mxu0 0.0
      %v362 = vand.u32 %v315, 4294901760
      %363 = vmatpush1.msra.mxu0 %v362
      %364 = vmatprep.subr.mxu0 0.0
      %v365 = vand.u32 %v316, 4294901760
      %366 = vmatpush1.msra.mxu0 %v365
      %367 = vmatprep.subr.mxu0 0.0
      %v368 = vand.u32 %v317, 4294901760
      %369 = vmatpush1.msra.mxu0 %v368
      %370 = vmatprep.subr.mxu0 0.0
      %v371 = vand.u32 %v318, 4294901760
      %372 = vmatpush1.msra.mxu0 %v371
      %373 = vmatprep.subr.mxu0 0.0
      %v374 = vand.u32 %v319, 4294901760
      %375 = vmatpush1.msra.mxu0 %v374
      %376 = vmatprep.subr.mxu0 0.0
      %v377 = vand.u32 %v320, 4294901760
      %378 = vmatpush1.msra.mxu0 %v377
      %379 = vmatprep.subr.mxu0 0.0
      %v380 = vand.u32 %v321, 4294901760
      %381 = vmatpush1.msra.mxu0 %v380
      %382 = vmatprep.subr.mxu0 0.0
      %v383 = vand.u32 %v322, 4294901760
      %384 = vmatpush1.msra.mxu0 %v383
      %385 = vmatprep.subr.mxu0 0.0
      %v386 = vand.u32 %v323, 4294901760
      %387 = vmatpush1.msra.mxu0 %v386
      %388 = vmatprep.subr.mxu0 0.0
      %v389 = vand.u32 %v324, 4294901760
      %390 = vmatpush1.msra.mxu0 %v389
      %391 = vmatprep.subr.mxu0 0.0
      %v392 = vand.u32 %v325, 4294901760
      %393 = vmatpush1.msra.mxu0 %v392
      %394 = vmatprep.subr.mxu0 0.0
      %v395 = vand.u32 %v326, 4294901760
      %396 = vmatpush1.msra.mxu0 %v395
      %397 = vmatprep.subr.mxu0 0.0
      %v398 = vand.u32 %v327, 4294901760
      %399 = vmatpush1.msra.mxu0 %v398
      %400 = vmatprep.subr.mxu0 0.0
      %v401 = vand.u32 %v328, 4294901760
      %402 = vmatpush1.msra.mxu0 %v401
      %403 = vmatprep.subr.mxu0 0.0
      %v404 = vand.u32 %v329, 4294901760
      %405 = vmatpush1.msra.mxu0 %v404
      %406 = vmatprep.subr.mxu0 0.0
      %v407 = vand.u32 %v330, 4294901760
      %408 = vmatpush1.msra.mxu0 %v407
      %409 = vmatprep.subr.mxu0 0.0
      %v410 = vand.u32 %v331, 4294901760
      %411 = vmatpush1.msra.mxu0 %v410
      %412 = vmatprep.subr.mxu0 0.0
      %v413 = vand.u32 %v332, 4294901760
      %414 = vmatpush1.msra.mxu0 %v413
      %415 = vmatprep.subr.mxu0 0.0
      %v416 = vand.u32 %v333, 4294901760
      %417 = vmatpush1.msra.mxu0 %v416
      %418 = vmatprep.subr.mxu0 0.0
      %v419 = vand.u32 %v334, 4294901760
      %420 = vmatpush1.msra.mxu0 %v419
      %421 = vmatprep.subr.mxu0 0.0
      %v422 = vand.u32 %v335, 4294901760
      %423 = vmatpush1.msra.mxu0 %v422
      %424 = vmatprep.subr.mxu0 0.0
      %v425 = vand.u32 %v336, 4294901760
      %426 = vmatpush1.msra.mxu0 %v425
      %427 = vmatprep.subr.mxu0 0.0
      %v428 = vand.u32 %v337, 4294901760
      %429 = vmatpush1.msra.mxu0 %v428
      %430 = vmatprep.subr.mxu0 0.0
      %v431 = vand.u32 %v338, 4294901760
      %432 = vmatpush1.msra.mxu0 %v431
      %433 = vmatprep.subr.mxu0 0.0
      %v434 = vand.u32 %v339, 4294901760
      %435 = vmatpush1.msra.mxu0 %v434
      %v436 = vand.u32 %v306, 4294901760
      %v437 = vsub.f32 %v306, %v436
      %v438 = vand.u32 %v437, 4294901760
      %v439 = vsub.f32 %v437, %v438
      %v440 = vand.u32 %v439, 4294901760
      %441 = vmatprep.mubr.f32.mxu0 %v440
      %v442 = vand.u32 %v305, 4294901760
      %v443 = vsub.f32 %v305, %v442
      %v444 = vand.u32 %v443, 4294901760
      %v445 = vsub.f32 %v443, %v444
      %v446 = vand.u32 %v445, 4294901760
      %447 = vmatmul.mubr.f32.gmra.mrb[0].mxu0 %v446
      %v448 = vpop.f32.mrb[0].mxu0
      %v449 = vadd.f32 0.0, %v448
      %v450 = vpop.f32.mrb[0].mxu0
      %451 = vdwg.mxu0
      %452 = vmatprep.subr.mxu0 0.0
      %v453 = vand.u32 %v308, 4294901760
      %v454 = vsub.f32 %v308, %v453
      %v455 = vand.u32 %v454, 4294901760
      %v456 = vsub.f32 %v454, %v455
      %v457 = vand.u32 %v456, 4294901760
      %458 = vmatpush1.msra.mxu0 %v457
      %459 = vmatprep.subr.mxu0 0.0
      %v460 = vand.u32 %v309, 4294901760
      %v461 = vsub.f32 %v309, %v460
      %v462 = vand.u32 %v461, 4294901760
      %v463 = vsub.f32 %v461, %v462
      %v464 = vand.u32 %v463, 4294901760
      %465 = vmatpush1.msra.mxu0 %v464
      %466 = vmatprep.subr.mxu0 0.0
      %v467 = vand.u32 %v310, 4294901760
      %v468 = vsub.f32 %v310, %v467
      %v469 = vand.u32 %v468, 4294901760
      %v470 = vsub.f32 %v468, %v469
      %v471 = vand.u32 %v470, 4294901760
      %472 = vmatpush1.msra.mxu0 %v471
      %473 = vmatprep.subr.mxu0 0.0
      %v474 = vand.u32 %v311, 4294901760
      %v475 = vsub.f32 %v311, %v474
      %v476 = vand.u32 %v475, 4294901760
      %v477 = vsub.f32 %v475, %v476
      %v478 = vand.u32 %v477, 4294901760
      %479 = vmatpush1.msra.mxu0 %v478
      %480 = vmatprep.subr.mxu0 0.0
      %v481 = vand.u32 %v312, 4294901760
      %v482 = vsub.f32 %v312, %v481
      %v483 = vand.u32 %v482, 4294901760
      %v484 = vsub.f32 %v482, %v483
      %v485 = vand.u32 %v484, 4294901760
      %486 = vmatpush1.msra.mxu0 %v485
      %487 = vmatprep.subr.mxu0 0.0
      %v488 = vand.u32 %v313, 4294901760
      %v489 = vsub.f32 %v313, %v488
      %v490 = vand.u32 %v489, 4294901760
      %v491 = vsub.f32 %v489, %v490
      %v492 = vand.u32 %v491, 4294901760
      %493 = vmatpush1.msra.mxu0 %v492
      %494 = vmatprep.subr.mxu0 0.0
      %v495 = vand.u32 %v314, 4294901760
      %v496 = vsub.f32 %v314, %v495
      %v497 = vand.u32 %v496, 4294901760
      %v498 = vsub.f32 %v496, %v497
      %v499 = vand.u32 %v498, 4294901760
      %500 = vmatpush1.msra.mxu0 %v499
      %501 = vmatprep.subr.mxu0 0.0
      %v502 = vand.u32 %v315, 4294901760
      %v503 = vsub.f32 %v315, %v502
      %v504 = vand.u32 %v503, 4294901760
      %v505 = vsub.f32 %v503, %v504
      %v506 = vand.u32 %v505, 4294901760
      %507 = vmatpush1.msra.mxu0 %v506
      %508 = vmatprep.subr.mxu0 0.0
      %v509 = vand.u32 %v316, 4294901760
      %v510 = vsub.f32 %v316, %v509
      %v511 = vand.u32 %v510, 4294901760
      %v512 = vsub.f32 %v510, %v511
      %v513 = vand.u32 %v512, 4294901760
      %514 = vmatpush1.msra.mxu0 %v513
      %515 = vmatprep.subr.mxu0 0.0
      %v516 = vand.u32 %v317, 4294901760
      %v517 = vsub.f32 %v317, %v516
      %v518 = vand.u32 %v517, 4294901760
      %v519 = vsub.f32 %v517, %v518
      %v520 = vand.u32 %v519, 4294901760
      %521 = vmatpush1.msra.mxu0 %v520
      %522 = vmatprep.subr.mxu0 0.0
      %v523 = vand.u32 %v318, 4294901760
      %v524 = vsub.f32 %v318, %v523
      %v525 = vand.u32 %v524, 4294901760
      %v526 = vsub.f32 %v524, %v525
      %v527 = vand.u32 %v526, 4294901760
      %528 = vmatpush1.msra.mxu0 %v527
      %529 = vmatprep.subr.mxu0 0.0
      %v530 = vand.u32 %v319, 4294901760
      %v531 = vsub.f32 %v319, %v530
      %v532 = vand.u32 %v531, 4294901760
      %v533 = vsub.f32 %v531, %v532
      %v534 = vand.u32 %v533, 4294901760
      %535 = vmatpush1.msra.mxu0 %v534
      %536 = vmatprep.subr.mxu0 0.0
      %v537 = vand.u32 %v320, 4294901760
      %v538 = vsub.f32 %v320, %v537
      %v539 = vand.u32 %v538, 4294901760
      %v540 = vsub.f32 %v538, %v539
      %v541 = vand.u32 %v540, 4294901760
      %542 = vmatpush1.msra.mxu0 %v541
      %543 = vmatprep.subr.mxu0 0.0
      %v544 = vand.u32 %v321, 4294901760
      %v545 = vsub.f32 %v321, %v544
      %v546 = vand.u32 %v545, 4294901760
      %v547 = vsub.f32 %v545, %v546
      %v548 = vand.u32 %v547, 4294901760
      %549 = vmatpush1.msra.mxu0 %v548
      %550 = vmatprep.subr.mxu0 0.0
      %v551 = vand.u32 %v322, 4294901760
      %v552 = vsub.f32 %v322, %v551
      %v553 = vand.u32 %v552, 4294901760
      %v554 = vsub.f32 %v552, %v553
      %v555 = vand.u32 %v554, 4294901760
      %556 = vmatpush1.msra.mxu0 %v555
      %557 = vmatprep.subr.mxu0 0.0
      %v558 = vand.u32 %v323, 4294901760
      %v559 = vsub.f32 %v323, %v558
      %v560 = vand.u32 %v559, 4294901760
      %v561 = vsub.f32 %v559, %v560
      %v562 = vand.u32 %v561, 4294901760
      %563 = vmatpush1.msra.mxu0 %v562
      %564 = vmatprep.subr.mxu0 0.0
      %v565 = vand.u32 %v324, 4294901760
      %v566 = vsub.f32 %v324, %v565
      %v567 = vand.u32 %v566, 4294901760
      %v568 = vsub.f32 %v566, %v567
      %v569 = vand.u32 %v568, 4294901760
      %570 = vmatpush1.msra.mxu0 %v569
      %571 = vmatprep.subr.mxu0 0.0
      %v572 = vand.u32 %v325, 4294901760
      %v573 = vsub.f32 %v325, %v572
      %v574 = vand.u32 %v573, 4294901760
      %v575 = vsub.f32 %v573, %v574
      %v576 = vand.u32 %v575, 4294901760
      %577 = vmatpush1.msra.mxu0 %v576
      %578 = vmatprep.subr.mxu0 0.0
      %v579 = vand.u32 %v326, 4294901760
      %v580 = vsub.f32 %v326, %v579
      %v581 = vand.u32 %v580, 4294901760
      %v582 = vsub.f32 %v580, %v581
      %v583 = vand.u32 %v582, 4294901760
      %584 = vmatpush1.msra.mxu0 %v583
      %585 = vmatprep.subr.mxu0 0.0
      %v586 = vand.u32 %v327, 4294901760
      %v587 = vsub.f32 %v327, %v586
      %v588 = vand.u32 %v587, 4294901760
      %v589 = vsub.f32 %v587, %v588
      %v590 = vand.u32 %v589, 4294901760
      %591 = vmatpush1.msra.mxu0 %v590
      %592 = vmatprep.subr.mxu0 0.0
      %v593 = vand.u32 %v328, 4294901760
      %v594 = vsub.f32 %v328, %v593
      %v595 = vand.u32 %v594, 4294901760
      %v596 = vsub.f32 %v594, %v595
      %v597 = vand.u32 %v596, 4294901760
      %598 = vmatpush1.msra.mxu0 %v597
      %599 = vmatprep.subr.mxu0 0.0
      %v600 = vand.u32 %v329, 4294901760
      %v601 = vsub.f32 %v329, %v600
      %v602 = vand.u32 %v601, 4294901760
      %v603 = vsub.f32 %v601, %v602
      %v604 = vand.u32 %v603, 4294901760
      %605 = vmatpush1.msra.mxu0 %v604
      %606 = vmatprep.subr.mxu0 0.0
      %v607 = vand.u32 %v330, 4294901760
      %v608 = vsub.f32 %v330, %v607
      %v609 = vand.u32 %v608, 4294901760
      %v610 = vsub.f32 %v608, %v609
      %v611 = vand.u32 %v610, 4294901760
      %612 = vmatpush1.msra.mxu0 %v611
      %613 = vmatprep.subr.mxu0 0.0
      %v614 = vand.u32 %v331, 4294901760
      %v615 = vsub.f32 %v331, %v614
      %v616 = vand.u32 %v615, 4294901760
      %v617 = vsub.f32 %v615, %v616
      %v618 = vand.u32 %v617, 4294901760
      %619 = vmatpush1.msra.mxu0 %v618
      %620 = vmatprep.subr.mxu0 0.0
      %v621 = vand.u32 %v332, 4294901760
      %v622 = vsub.f32 %v332, %v621
      %v623 = vand.u32 %v622, 4294901760
      %v624 = vsub.f32 %v622, %v623
      %v625 = vand.u32 %v624, 4294901760
      %626 = vmatpush1.msra.mxu0 %v625
      %627 = vmatprep.subr.mxu0 0.0
      %v628 = vand.u32 %v333, 4294901760
      %v629 = vsub.f32 %v333, %v628
      %v630 = vand.u32 %v629, 4294901760
      %v631 = vsub.f32 %v629, %v630
      %v632 = vand.u32 %v631, 4294901760
      %633 = vmatpush1.msra.mxu0 %v632
      %634 = vmatprep.subr.mxu0 0.0
      %v635 = vand.u32 %v334, 4294901760
      %v636 = vsub.f32 %v334, %v635
      %v637 = vand.u32 %v636, 4294901760
      %v638 = vsub.f32 %v636, %v637
      %v639 = vand.u32 %v638, 4294901760
      %640 = vmatpush1.msra.mxu0 %v639
      %641 = vmatprep.subr.mxu0 0.0
      %v642 = vand.u32 %v335, 4294901760
      %v643 = vsub.f32 %v335, %v642
      %v644 = vand.u32 %v643, 4294901760
      %v645 = vsub.f32 %v643, %v644
      %v646 = vand.u32 %v645, 4294901760
      %647 = vmatpush1.msra.mxu0 %v646
      %648 = vmatprep.subr.mxu0 0.0
      %v649 = vand.u32 %v336, 4294901760
      %v650 = vsub.f32 %v336, %v649
      %v651 = vand.u32 %v650, 4294901760
      %v652 = vsub.f32 %v650, %v651
      %v653 = vand.u32 %v652, 4294901760
      %654 = vmatpush1.msra.mxu0 %v653
      %655 = vmatprep.subr.mxu0 0.0
      %v656 = vand.u32 %v337, 4294901760
      %v657 = vsub.f32 %v337, %v656
      %v658 = vand.u32 %v657, 4294901760
      %v659 = vsub.f32 %v657, %v658
      %v660 = vand.u32 %v659, 4294901760
      %661 = vmatpush1.msra.mxu0 %v660
      %662 = vmatprep.subr.mxu0 0.0
      %v663 = vand.u32 %v338, 4294901760
      %v664 = vsub.f32 %v338, %v663
      %v665 = vand.u32 %v664, 4294901760
      %v666 = vsub.f32 %v664, %v665
      %v667 = vand.u32 %v666, 4294901760
      %668 = vmatpush1.msra.mxu0 %v667
      %669 = vmatprep.subr.mxu0 0.0
      %v670 = vand.u32 %v339, 4294901760
      %v671 = vsub.f32 %v339, %v670
      %v672 = vand.u32 %v671, 4294901760
      %v673 = vsub.f32 %v671, %v672
      %v674 = vand.u32 %v673, 4294901760
      %675 = vmatpush1.msra.mxu0 %v674
      %v676 = vand.u32 %v306, 4294901760
      %677 = vmatprep.mubr.f32.mxu0 %v676
      %v678 = vand.u32 %v305, 4294901760
      %679 = vmatmul.mubr.f32.gmra.mrb[0].mxu0 %v678
      %v680 = vpop.f32.mrb[0].mxu0
      %v681 = vadd.f32 %v449, %v680
      %v682 = vpop.f32.mrb[0].mxu0
      %683 = vdwg.mxu0
      %684 = vmatprep.subr.mxu0 0.0
      %v685 = vand.u32 %v308, 4294901760
      %v686 = vsub.f32 %v308, %v685
      %687 = vmatpush1.msra.mxu0 %v686
      %688 = vmatprep.subr.mxu0 0.0
      %v689 = vand.u32 %v309, 4294901760
      %v690 = vsub.f32 %v309, %v689
      %691 = vmatpush1.msra.mxu0 %v690
      %692 = vmatprep.subr.mxu0 0.0
      %v693 = vand.u32 %v310, 4294901760
      %v694 = vsub.f32 %v310, %v693
      %695 = vmatpush1.msra.mxu0 %v694
      %696 = vmatprep.subr.mxu0 0.0
      %v697 = vand.u32 %v311, 4294901760
      %v698 = vsub.f32 %v311, %v697
      %699 = vmatpush1.msra.mxu0 %v698
      %700 = vmatprep.subr.mxu0 0.0
      %v701 = vand.u32 %v312, 4294901760
      %v702 = vsub.f32 %v312, %v701
      %703 = vmatpush1.msra.mxu0 %v702
      %704 = vmatprep.subr.mxu0 0.0
      %v705 = vand.u32 %v313, 4294901760
      %v706 = vsub.f32 %v313, %v705
      %707 = vmatpush1.msra.mxu0 %v706
      %708 = vmatprep.subr.mxu0 0.0
      %v709 = vand.u32 %v314, 4294901760
      %v710 = vsub.f32 %v314, %v709
      %711 = vmatpush1.msra.mxu0 %v710
      %712 = vmatprep.subr.mxu0 0.0
      %v713 = vand.u32 %v315, 4294901760
      %v714 = vsub.f32 %v315, %v713
      %715 = vmatpush1.msra.mxu0 %v714
      %716 = vmatprep.subr.mxu0 0.0
      %v717 = vand.u32 %v316, 4294901760
      %v718 = vsub.f32 %v316, %v717
      %719 = vmatpush1.msra.mxu0 %v718
      %720 = vmatprep.subr.mxu0 0.0
      %v721 = vand.u32 %v317, 4294901760
      %v722 = vsub.f32 %v317, %v721
      %723 = vmatpush1.msra.mxu0 %v722
      %724 = vmatprep.subr.mxu0 0.0
      %v725 = vand.u32 %v318, 4294901760
      %v726 = vsub.f32 %v318, %v725
      %727 = vmatpush1.msra.mxu0 %v726
      %728 = vmatprep.subr.mxu0 0.0
      %v729 = vand.u32 %v319, 4294901760
      %v730 = vsub.f32 %v319, %v729
      %731 = vmatpush1.msra.mxu0 %v730
      %732 = vmatprep.subr.mxu0 0.0
      %v733 = vand.u32 %v320, 4294901760
      %v734 = vsub.f32 %v320, %v733
      %735 = vmatpush1.msra.mxu0 %v734
      %736 = vmatprep.subr.mxu0 0.0
      %v737 = vand.u32 %v321, 4294901760
      %v738 = vsub.f32 %v321, %v737
      %739 = vmatpush1.msra.mxu0 %v738
      %740 = vmatprep.subr.mxu0 0.0
      %v741 = vand.u32 %v322, 4294901760
      %v742 = vsub.f32 %v322, %v741
      %743 = vmatpush1.msra.mxu0 %v742
      %744 = vmatprep.subr.mxu0 0.0
      %v745 = vand.u32 %v323, 4294901760
      %v746 = vsub.f32 %v323, %v745
      %747 = vmatpush1.msra.mxu0 %v746
      %748 = vmatprep.subr.mxu0 0.0
      %v749 = vand.u32 %v324, 4294901760
      %v750 = vsub.f32 %v324, %v749
      %751 = vmatpush1.msra.mxu0 %v750
      %752 = vmatprep.subr.mxu0 0.0
      %v753 = vand.u32 %v325, 4294901760
      %v754 = vsub.f32 %v325, %v753
      %755 = vmatpush1.msra.mxu0 %v754
      %756 = vmatprep.subr.mxu0 0.0
      %v757 = vand.u32 %v326, 4294901760
      %v758 = vsub.f32 %v326, %v757
      %759 = vmatpush1.msra.mxu0 %v758
      %760 = vmatprep.subr.mxu0 0.0
      %v761 = vand.u32 %v327, 4294901760
      %v762 = vsub.f32 %v327, %v761
      %763 = vmatpush1.msra.mxu0 %v762
      %764 = vmatprep.subr.mxu0 0.0
      %v765 = vand.u32 %v328, 4294901760
      %v766 = vsub.f32 %v328, %v765
      %767 = vmatpush1.msra.mxu0 %v766
      %768 = vmatprep.subr.mxu0 0.0
      %v769 = vand.u32 %v329, 4294901760
      %v770 = vsub.f32 %v329, %v769
      %771 = vmatpush1.msra.mxu0 %v770
      %772 = vmatprep.subr.mxu0 0.0
      %v773 = vand.u32 %v330, 4294901760
      %v774 = vsub.f32 %v330, %v773
      %775 = vmatpush1.msra.mxu0 %v774
      %776 = vmatprep.subr.mxu0 0.0
      %v777 = vand.u32 %v331, 4294901760
      %v778 = vsub.f32 %v331, %v777
      %779 = vmatpush1.msra.mxu0 %v778
      %780 = vmatprep.subr.mxu0 0.0
      %v781 = vand.u32 %v332, 4294901760
      %v782 = vsub.f32 %v332, %v781
      %783 = vmatpush1.msra.mxu0 %v782
      %784 = vmatprep.subr.mxu0 0.0
      %v785 = vand.u32 %v333, 4294901760
      %v786 = vsub.f32 %v333, %v785
      %787 = vmatpush1.msra.mxu0 %v786
      %788 = vmatprep.subr.mxu0 0.0
      %v789 = vand.u32 %v334, 4294901760
      %v790 = vsub.f32 %v334, %v789
      %791 = vmatpush1.msra.mxu0 %v790
      %792 = vmatprep.subr.mxu0 0.0
      %v793 = vand.u32 %v335, 4294901760
      %v794 = vsub.f32 %v335, %v793
      %795 = vmatpush1.msra.mxu0 %v794
      %796 = vmatprep.subr.mxu0 0.0
      %v797 = vand.u32 %v336, 4294901760
      %v798 = vsub.f32 %v336, %v797
      %799 = vmatpush1.msra.mxu0 %v798
      %800 = vmatprep.subr.mxu0 0.0
      %v801 = vand.u32 %v337, 4294901760
      %v802 = vsub.f32 %v337, %v801
      %803 = vmatpush1.msra.mxu0 %v802
      %804 = vmatprep.subr.mxu0 0.0
      %v805 = vand.u32 %v338, 4294901760
      %v806 = vsub.f32 %v338, %v805
      %807 = vmatpush1.msra.mxu0 %v806
      %808 = vmatprep.subr.mxu0 0.0
      %v809 = vand.u32 %v339, 4294901760
      %v810 = vsub.f32 %v339, %v809
      %811 = vmatpush1.msra.mxu0 %v810
      %v812 = vand.u32 %v306, 4294901760
      %v813 = vsub.f32 %v306, %v812
      %814 = vmatprep.mubr.f32.mxu0 %v813
      %v815 = vand.u32 %v305, 4294901760
      %v816 = vsub.f32 %v305, %v815
      %817 = vmatmul.mubr.f32.gmra.mrb[0].mxu0 %v816
      %v818 = vpop.f32.mrb[0].mxu0
      %v819 = vadd.f32 %v681, %v818
      %v820 = vpop.f32.mrb[0].mxu0
      %821 = vdwg.mxu0
      %822 = vmatprep.subr.mxu0 0.0
      %v823 = vand.u32 %v308, 4294901760
      %824 = vmatpush1.msra.mxu0 %v823
      %825 = vmatprep.subr.mxu0 0.0
      %v826 = vand.u32 %v309, 4294901760
      %827 = vmatpush1.msra.mxu0 %v826
      %828 = vmatprep.subr.mxu0 0.0
      %v829 = vand.u32 %v310, 4294901760
      %830 = vmatpush1.msra.mxu0 %v829
      %831 = vmatprep.subr.mxu0 0.0
      %v832 = vand.u32 %v311, 4294901760
      %833 = vmatpush1.msra.mxu0 %v832
      %834 = vmatprep.subr.mxu0 0.0
      %v835 = vand.u32 %v312, 4294901760
      %836 = vmatpush1.msra.mxu0 %v835
      %837 = vmatprep.subr.mxu0 0.0
      %v838 = vand.u32 %v313, 4294901760
      %839 = vmatpush1.msra.mxu0 %v838
      %840 = vmatprep.subr.mxu0 0.0
      %v841 = vand.u32 %v314, 4294901760
      %842 = vmatpush1.msra.mxu0 %v841
      %843 = vmatprep.subr.mxu0 0.0
      %v844 = vand.u32 %v315, 4294901760
      %845 = vmatpush1.msra.mxu0 %v844
      %846 = vmatprep.subr.mxu0 0.0
      %v847 = vand.u32 %v316, 4294901760
      %848 = vmatpush1.msra.mxu0 %v847
      %849 = vmatprep.subr.mxu0 0.0
      %v850 = vand.u32 %v317, 4294901760
      %851 = vmatpush1.msra.mxu0 %v850
      %852 = vmatprep.subr.mxu0 0.0
      %v853 = vand.u32 %v318, 4294901760
      %854 = vmatpush1.msra.mxu0 %v853
      %855 = vmatprep.subr.mxu0 0.0
      %v856 = vand.u32 %v319, 4294901760
      %857 = vmatpush1.msra.mxu0 %v856
      %858 = vmatprep.subr.mxu0 0.0
      %v859 = vand.u32 %v320, 4294901760
      %860 = vmatpush1.msra.mxu0 %v859
      %861 = vmatprep.subr.mxu0 0.0
      %v862 = vand.u32 %v321, 4294901760
      %863 = vmatpush1.msra.mxu0 %v862
      %864 = vmatprep.subr.mxu0 0.0
      %v865 = vand.u32 %v322, 4294901760
      %866 = vmatpush1.msra.mxu0 %v865
      %867 = vmatprep.subr.mxu0 0.0
      %v868 = vand.u32 %v323, 4294901760
      %869 = vmatpush1.msra.mxu0 %v868
      %870 = vmatprep.subr.mxu0 0.0
      %v871 = vand.u32 %v324, 4294901760
      %872 = vmatpush1.msra.mxu0 %v871
      %873 = vmatprep.subr.mxu0 0.0
      %v874 = vand.u32 %v325, 4294901760
      %875 = vmatpush1.msra.mxu0 %v874
      %876 = vmatprep.subr.mxu0 0.0
      %v877 = vand.u32 %v326, 4294901760
      %878 = vmatpush1.msra.mxu0 %v877
      %879 = vmatprep.subr.mxu0 0.0
      %v880 = vand.u32 %v327, 4294901760
      %881 = vmatpush1.msra.mxu0 %v880
      %882 = vmatprep.subr.mxu0 0.0
      %v883 = vand.u32 %v328, 4294901760
      %884 = vmatpush1.msra.mxu0 %v883
      %885 = vmatprep.subr.mxu0 0.0
      %v886 = vand.u32 %v329, 4294901760
      %887 = vmatpush1.msra.mxu0 %v886
      %888 = vmatprep.subr.mxu0 0.0
      %v889 = vand.u32 %v330, 4294901760
      %890 = vmatpush1.msra.mxu0 %v889
      %891 = vmatprep.subr.mxu0 0.0
      %v892 = vand.u32 %v331, 4294901760
      %893 = vmatpush1.msra.mxu0 %v892
      %894 = vmatprep.subr.mxu0 0.0
      %v895 = vand.u32 %v332, 4294901760
      %896 = vmatpush1.msra.mxu0 %v895
      %897 = vmatprep.subr.mxu0 0.0
      %v898 = vand.u32 %v333, 4294901760
      %899 = vmatpush1.msra.mxu0 %v898
      %900 = vmatprep.subr.mxu0 0.0
      %v901 = vand.u32 %v334, 4294901760
      %902 = vmatpush1.msra.mxu0 %v901
      %903 = vmatprep.subr.mxu0 0.0
      %v904 = vand.u32 %v335, 4294901760
      %905 = vmatpush1.msra.mxu0 %v904
      %906 = vmatprep.subr.mxu0 0.0
      %v907 = vand.u32 %v336, 4294901760
      %908 = vmatpush1.msra.mxu0 %v907
      %909 = vmatprep.subr.mxu0 0.0
      %v910 = vand.u32 %v337, 4294901760
      %911 = vmatpush1.msra.mxu0 %v910
      %912 = vmatprep.subr.mxu0 0.0
      %v913 = vand.u32 %v338, 4294901760
      %914 = vmatpush1.msra.mxu0 %v913
      %915 = vmatprep.subr.mxu0 0.0
      %v916 = vand.u32 %v339, 4294901760
      %917 = vmatpush1.msra.mxu0 %v916
      %v918 = vand.u32 %v306, 4294901760
      %v919 = vsub.f32 %v306, %v918
      %v920 = vand.u32 %v919, 4294901760
      %921 = vmatprep.mubr.f32.mxu0 %v920
      %v922 = vand.u32 %v305, 4294901760
      %v923 = vsub.f32 %v305, %v922
      %v924 = vand.u32 %v923, 4294901760
      %925 = vmatmul.mubr.f32.gmra.mrb[0].mxu0 %v924
      %v926 = vpop.f32.mrb[0].mxu0
      %v927 = vadd.f32 %v819, %v926
      %v928 = vpop.f32.mrb[0].mxu0
      %929 = vdwg.mxu0
      %930 = vmatprep.subr.mxu0 0.0
      %v931 = vand.u32 %v308, 4294901760
      %v932 = vsub.f32 %v308, %v931
      %v933 = vand.u32 %v932, 4294901760
      %934 = vmatpush1.msra.mxu0 %v933
      %935 = vmatprep.subr.mxu0 0.0
      %v936 = vand.u32 %v309, 4294901760
      %v937 = vsub.f32 %v309, %v936
      %v938 = vand.u32 %v937, 4294901760
      %939 = vmatpush1.msra.mxu0 %v938
      %940 = vmatprep.subr.mxu0 0.0
      %v941 = vand.u32 %v310, 4294901760
      %v942 = vsub.f32 %v310, %v941
      %v943 = vand.u32 %v942, 4294901760
      %944 = vmatpush1.msra.mxu0 %v943
      %945 = vmatprep.subr.mxu0 0.0
      %v946 = vand.u32 %v311, 4294901760
      %v947 = vsub.f32 %v311, %v946
      %v948 = vand.u32 %v947, 4294901760
      %949 = vmatpush1.msra.mxu0 %v948
      %950 = vmatprep.subr.mxu0 0.0
      %v951 = vand.u32 %v312, 4294901760
      %v952 = vsub.f32 %v312, %v951
      %v953 = vand.u32 %v952, 4294901760
      %954 = vmatpush1.msra.mxu0 %v953
      %955 = vmatprep.subr.mxu0 0.0
      %v956 = vand.u32 %v313, 4294901760
      %v957 = vsub.f32 %v313, %v956
      %v958 = vand.u32 %v957, 4294901760
      %959 = vmatpush1.msra.mxu0 %v958
      %960 = vmatprep.subr.mxu0 0.0
      %v961 = vand.u32 %v314, 4294901760
      %v962 = vsub.f32 %v314, %v961
      %v963 = vand.u32 %v962, 4294901760
      %964 = vmatpush1.msra.mxu0 %v963
      %965 = vmatprep.subr.mxu0 0.0
      %v966 = vand.u32 %v315, 4294901760
      %v967 = vsub.f32 %v315, %v966
      %v968 = vand.u32 %v967, 4294901760
      %969 = vmatpush1.msra.mxu0 %v968
      %970 = vmatprep.subr.mxu0 0.0
      %v971 = vand.u32 %v316, 4294901760
      %v972 = vsub.f32 %v316, %v971
      %v973 = vand.u32 %v972, 4294901760
      %974 = vmatpush1.msra.mxu0 %v973
      %975 = vmatprep.subr.mxu0 0.0
      %v976 = vand.u32 %v317, 4294901760
      %v977 = vsub.f32 %v317, %v976
      %v978 = vand.u32 %v977, 4294901760
      %979 = vmatpush1.msra.mxu0 %v978
      %980 = vmatprep.subr.mxu0 0.0
      %v981 = vand.u32 %v318, 4294901760
      %v982 = vsub.f32 %v318, %v981
      %v983 = vand.u32 %v982, 4294901760
      %984 = vmatpush1.msra.mxu0 %v983
      %985 = vmatprep.subr.mxu0 0.0
      %v986 = vand.u32 %v319, 4294901760
      %v987 = vsub.f32 %v319, %v986
      %v988 = vand.u32 %v987, 4294901760
      %989 = vmatpush1.msra.mxu0 %v988
      %990 = vmatprep.subr.mxu0 0.0
      %v991 = vand.u32 %v320, 4294901760
      %v992 = vsub.f32 %v320, %v991
      %v993 = vand.u32 %v992, 4294901760
      %994 = vmatpush1.msra.mxu0 %v993
      %995 = vmatprep.subr.mxu0 0.0
      %v996 = vand.u32 %v321, 4294901760
      %v997 = vsub.f32 %v321, %v996
      %v998 = vand.u32 %v997, 4294901760
      %999 = vmatpush1.msra.mxu0 %v998
      %1000 = vmatprep.subr.mxu0 0.0
      %v1001 = vand.u32 %v322, 4294901760
      %v1002 = vsub.f32 %v322, %v1001
      %v1003 = vand.u32 %v1002, 4294901760
      %1004 = vmatpush1.msra.mxu0 %v1003
      %1005 = vmatprep.subr.mxu0 0.0
      %v1006 = vand.u32 %v323, 4294901760
      %v1007 = vsub.f32 %v323, %v1006
      %v1008 = vand.u32 %v1007, 4294901760
      %1009 = vmatpush1.msra.mxu0 %v1008
      %1010 = vmatprep.subr.mxu0 0.0
      %v1011 = vand.u32 %v324, 4294901760
      %v1012 = vsub.f32 %v324, %v1011
      %v1013 = vand.u32 %v1012, 4294901760
      %1014 = vmatpush1.msra.mxu0 %v1013
      %1015 = vmatprep.subr.mxu0 0.0
      %v1016 = vand.u32 %v325, 4294901760
      %v1017 = vsub.f32 %v325, %v1016
      %v1018 = vand.u32 %v1017, 4294901760
      %1019 = vmatpush1.msra.mxu0 %v1018
      %1020 = vmatprep.subr.mxu0 0.0
      %v1021 = vand.u32 %v326, 4294901760
      %v1022 = vsub.f32 %v326, %v1021
      %v1023 = vand.u32 %v1022, 4294901760
      %1024 = vmatpush1.msra.mxu0 %v1023
      %1025 = vmatprep.subr.mxu0 0.0
      %v1026 = vand.u32 %v327, 4294901760
      %v1027 = vsub.f32 %v327, %v1026
      %v1028 = vand.u32 %v1027, 4294901760
      %1029 = vmatpush1.msra.mxu0 %v1028
      %1030 = vmatprep.subr.mxu0 0.0
      %v1031 = vand.u32 %v328, 4294901760
      %v1032 = vsub.f32 %v328, %v1031
      %v1033 = vand.u32 %v1032, 4294901760
      %1034 = vmatpush1.msra.mxu0 %v1033
      %1035 = vmatprep.subr.mxu0 0.0
      %v1036 = vand.u32 %v329, 4294901760
      %v1037 = vsub.f32 %v329, %v1036
      %v1038 = vand.u32 %v1037, 4294901760
      %1039 = vmatpush1.msra.mxu0 %v1038
      %1040 = vmatprep.subr.mxu0 0.0
      %v1041 = vand.u32 %v330, 4294901760
      %v1042 = vsub.f32 %v330, %v1041
      %v1043 = vand.u32 %v1042, 4294901760
      %1044 = vmatpush1.msra.mxu0 %v1043
      %1045 = vmatprep.subr.mxu0 0.0
      %v1046 = vand.u32 %v331, 4294901760
      %v1047 = vsub.f32 %v331, %v1046
      %v1048 = vand.u32 %v1047, 4294901760
      %1049 = vmatpush1.msra.mxu0 %v1048
      %1050 = vmatprep.subr.mxu0 0.0
      %v1051 = vand.u32 %v332, 4294901760
      %v1052 = vsub.f32 %v332, %v1051
      %v1053 = vand.u32 %v1052, 4294901760
      %1054 = vmatpush1.msra.mxu0 %v1053
      %1055 = vmatprep.subr.mxu0 0.0
      %v1056 = vand.u32 %v333, 4294901760
      %v1057 = vsub.f32 %v333, %v1056
      %v1058 = vand.u32 %v1057, 4294901760
      %1059 = vmatpush1.msra.mxu0 %v1058
      %1060 = vmatprep.subr.mxu0 0.0
      %v1061 = vand.u32 %v334, 4294901760
      %v1062 = vsub.f32 %v334, %v1061
      %v1063 = vand.u32 %v1062, 4294901760
      %1064 = vmatpush1.msra.mxu0 %v1063
      %1065 = vmatprep.subr.mxu0 0.0
      %v1066 = vand.u32 %v335, 4294901760
      %v1067 = vsub.f32 %v335, %v1066
      %v1068 = vand.u32 %v1067, 4294901760
      %1069 = vmatpush1.msra.mxu0 %v1068
      %1070 = vmatprep.subr.mxu0 0.0
      %v1071 = vand.u32 %v336, 4294901760
      %v1072 = vsub.f32 %v336, %v1071
      %v1073 = vand.u32 %v1072, 4294901760
      %1074 = vmatpush1.msra.mxu0 %v1073
      %1075 = vmatprep.subr.mxu0 0.0
      %v1076 = vand.u32 %v337, 4294901760
      %v1077 = vsub.f32 %v337, %v1076
      %v1078 = vand.u32 %v1077, 4294901760
      %1079 = vmatpush1.msra.mxu0 %v1078
      %1080 = vmatprep.subr.mxu0 0.0
      %v1081 = vand.u32 %v338, 4294901760
      %v1082 = vsub.f32 %v338, %v1081
      %v1083 = vand.u32 %v1082, 4294901760
      %1084 = vmatpush1.msra.mxu0 %v1083
      %1085 = vmatprep.subr.mxu0 0.0
      %v1086 = vand.u32 %v339, 4294901760
      %v1087 = vsub.f32 %v339, %v1086
      %v1088 = vand.u32 %v1087, 4294901760
      %1089 = vmatpush1.msra.mxu0 %v1088
      %v1090 = vand.u32 %v306, 4294901760
      %1091 = vmatprep.mubr.f32.mxu0 %v1090
      %v1092 = vand.u32 %v305, 4294901760
      %1093 = vmatmul.mubr.f32.gmra.mrb[0].mxu0 %v1092
      %v1094 = vpop.f32.mrb[0].mxu0
      %v1095 = vadd.f32 %v927, %v1094
      %v1096 = vpop.f32.mrb[0].mxu0
      %1097 = vdwg.mxu0
      %1098 = vmatprep.subr.mxu0 0.0
      %v1099 = vand.u32 %v308, 4294901760
      %1100 = vmatpush1.msra.mxu0 %v1099
      %1101 = vmatprep.subr.mxu0 0.0
      %v1102 = vand.u32 %v309, 4294901760
      %1103 = vmatpush1.msra.mxu0 %v1102
      %1104 = vmatprep.subr.mxu0 0.0
      %v1105 = vand.u32 %v310, 4294901760
      %1106 = vmatpush1.msra.mxu0 %v1105
      %1107 = vmatprep.subr.mxu0 0.0
      %v1108 = vand.u32 %v311, 4294901760
      %1109 = vmatpush1.msra.mxu0 %v1108
      %1110 = vmatprep.subr.mxu0 0.0
      %v1111 = vand.u32 %v312, 4294901760
      %1112 = vmatpush1.msra.mxu0 %v1111
      %1113 = vmatprep.subr.mxu0 0.0
      %v1114 = vand.u32 %v313, 4294901760
      %1115 = vmatpush1.msra.mxu0 %v1114
      %1116 = vmatprep.subr.mxu0 0.0
      %v1117 = vand.u32 %v314, 4294901760
      %1118 = vmatpush1.msra.mxu0 %v1117
      %1119 = vmatprep.subr.mxu0 0.0
      %v1120 = vand.u32 %v315, 4294901760
      %1121 = vmatpush1.msra.mxu0 %v1120
      %1122 = vmatprep.subr.mxu0 0.0
      %v1123 = vand.u32 %v316, 4294901760
      %1124 = vmatpush1.msra.mxu0 %v1123
      %1125 = vmatprep.subr.mxu0 0.0
      %v1126 = vand.u32 %v317, 4294901760
      %1127 = vmatpush1.msra.mxu0 %v1126
      %1128 = vmatprep.subr.mxu0 0.0
      %v1129 = vand.u32 %v318, 4294901760
      %1130 = vmatpush1.msra.mxu0 %v1129
      %1131 = vmatprep.subr.mxu0 0.0
      %v1132 = vand.u32 %v319, 4294901760
      %1133 = vmatpush1.msra.mxu0 %v1132
      %1134 = vmatprep.subr.mxu0 0.0
      %v1135 = vand.u32 %v320, 4294901760
      %1136 = vmatpush1.msra.mxu0 %v1135
      %1137 = vmatprep.subr.mxu0 0.0
      %v1138 = vand.u32 %v321, 4294901760
      %1139 = vmatpush1.msra.mxu0 %v1138
      %1140 = vmatprep.subr.mxu0 0.0
      %v1141 = vand.u32 %v322, 4294901760
      %1142 = vmatpush1.msra.mxu0 %v1141
      %1143 = vmatprep.subr.mxu0 0.0
      %v1144 = vand.u32 %v323, 4294901760
      %1145 = vmatpush1.msra.mxu0 %v1144
      %1146 = vmatprep.subr.mxu0 0.0
      %v1147 = vand.u32 %v324, 4294901760
      %1148 = vmatpush1.msra.mxu0 %v1147
      %1149 = vmatprep.subr.mxu0 0.0
      %v1150 = vand.u32 %v325, 4294901760
      %1151 = vmatpush1.msra.mxu0 %v1150
      %1152 = vmatprep.subr.mxu0 0.0
      %v1153 = vand.u32 %v326, 4294901760
      %1154 = vmatpush1.msra.mxu0 %v1153
      %1155 = vmatprep.subr.mxu0 0.0
      %v1156 = vand.u32 %v327, 4294901760
      %1157 = vmatpush1.msra.mxu0 %v1156
      %1158 = vmatprep.subr.mxu0 0.0
      %v1159 = vand.u32 %v328, 4294901760
      %1160 = vmatpush1.msra.mxu0 %v1159
      %1161 = vmatprep.subr.mxu0 0.0
      %v1162 = vand.u32 %v329, 4294901760
      %1163 = vmatpush1.msra.mxu0 %v1162
      %1164 = vmatprep.subr.mxu0 0.0
      %v1165 = vand.u32 %v330, 4294901760
      %1166 = vmatpush1.msra.mxu0 %v1165
      %1167 = vmatprep.subr.mxu0 0.0
      %v1168 = vand.u32 %v331, 4294901760
      %1169 = vmatpush1.msra.mxu0 %v1168
      %1170 = vmatprep.subr.mxu0 0.0
      %v1171 = vand.u32 %v332, 4294901760
      %1172 = vmatpush1.msra.mxu0 %v1171
      %1173 = vmatprep.subr.mxu0 0.0
      %v1174 = vand.u32 %v333, 4294901760
      %1175 = vmatpush1.msra.mxu0 %v1174
      %1176 = vmatprep.subr.mxu0 0.0
      %v1177 = vand.u32 %v334, 4294901760
      %1178 = vmatpush1.msra.mxu0 %v1177
      %1179 = vmatprep.subr.mxu0 0.0
      %v1180 = vand.u32 %v335, 4294901760
      %1181 = vmatpush1.msra.mxu0 %v1180
      %1182 = vmatprep.subr.mxu0 0.0
      %v1183 = vand.u32 %v336, 4294901760
      %1184 = vmatpush1.msra.mxu0 %v1183
      %1185 = vmatprep.subr.mxu0 0.0
      %v1186 = vand.u32 %v337, 4294901760
      %1187 = vmatpush1.msra.mxu0 %v1186
      %1188 = vmatprep.subr.mxu0 0.0
      %v1189 = vand.u32 %v338, 4294901760
      %1190 = vmatpush1.msra.mxu0 %v1189
      %1191 = vmatprep.subr.mxu0 0.0
      %v1192 = vand.u32 %v339, 4294901760
      %1193 = vmatpush1.msra.mxu0 %v1192
      %v1194 = vand.u32 %v306, 4294901760
      %1195 = vmatprep.mubr.f32.mxu0 %v1194
      %v1196 = vand.u32 %v305, 4294901760
      %1197 = vmatmul.mubr.f32.gmra.mrb[0].mxu0 %v1196
      %v1198 = vpop.f32.mrb[0].mxu0
      %v1199 = vadd.f32 %v1095, %v1198
      %v1200 = vpop.f32.mrb[0].mxu0
      %1201 = vdwg.mxu0
      %v1202 = vmul.f32 %v1199, 0.0625
      %1204 = vrot.lane.b32.xlu0 %v1202, 2
      %v1205 = vpop.permute.xlu0 %1204
      %1207 = vrot.lane.b32.xlu0 %v1202, 6
      %v1208 = vpop.permute.xlu0 %1207
      %vm1210 = vcmask 15360
      %v1211 = vsel %vm1210, 0.0, %v1205
      %vm1212 = vcmask 146432
      %v1213 = vsel %vm1212, %v1211, 0.0
      %vm1214 = vcmask 179200
      %v1215 = vsel %vm1214, %v1213, %v1208
      %vm1216 = vcmask 310272
      %v1217 = vsel %vm1216, %v1215, 0.0
      %1219 = vset.pattern.permute.xlu0 0
      %1220 = vperm.xlu0 %1219, %v307
      %v1221 = vpop.permute.xlu0 %1220
      %v1223 = vmul.f32 %v1221, %v1217
      %1224 = vset.pattern.permute.xlu0 1
      %1225 = vperm.xlu0 %1224, %v307
      %v1226 = vpop.permute.xlu0 %1225
      %v1228 = vmul.f32 %v1226, %v1217
      %1230 = vrot.lane.b32.xlu0 %v1228, 127
      %v1231 = vpop.permute.xlu0 %1230
      %v1233 = vadd.f32 %v1223, %v1231
      %1234 = vset.pattern.permute.xlu0 2
      %1235 = vperm.xlu0 %1234, %v307
      %v1236 = vpop.permute.xlu0 %1235
      %v1238 = vmul.f32 %v1236, %v1217
      %1240 = vrot.lane.b32.xlu0 %v1238, 126
      %v1241 = vpop.permute.xlu0 %1240
      %v1243 = vadd.f32 %v1233, %v1241
      %1244 = vset.pattern.permute.xlu0 3
      %1245 = vperm.xlu0 %1244, %v307
      %v1246 = vpop.permute.xlu0 %1245
      %v1248 = vmul.f32 %v1246, %v1217
      %1250 = vrot.lane.b32.xlu0 %v1248, 125
      %v1251 = vpop.permute.xlu0 %1250
      %v1253 = vadd.f32 %v1243, %v1251
      %1254 = vset.pattern.permute.xlu0 4
      %1255 = vperm.xlu0 %1254, %v307
      %v1256 = vpop.permute.xlu0 %1255
      %v1258 = vmul.f32 %v1256, %v1217
      %1260 = vrot.lane.b32.xlu0 %v1258, 124
      %v1261 = vpop.permute.xlu0 %1260
      %v1263 = vadd.f32 %v1253, %v1261
      %v1264 = vld [vmem:[%s5] sm:$0xff]
      %vm1265 = vcmask 130048
      %v1266 = vsel %vm1265, %v1263, 0.0
      %1267 = vadd.xlane.f32.xlu0 %v1266
      %v1268 = vpop.xlane.xlu0 %1267
      %1270 = vrot.lane.b32.xlu0 %v1263, 108
      %v1271 = vpop.permute.xlu0 %1270
      %v1273 = vsel %vm1265, %v1271, 0.0
      %1274 = vadd.xlane.f32.xlu0 %v1273
      %v1275 = vpop.xlane.xlu0 %1274
      %vm1276 = vcmask 7168
      %v1277 = vsel %vm1276, %v1268, %v1275
      %vm1278 = vcmask 64512
      %v1280 = vsel %vm1278, %v1264, 0
      %1282 = vmatprep.subr.mxu0 0.0
      %v1283 = vand.u32 %v1277, 4294901760
      %1284 = vmatpush1.msra.mxu0 %v1283
      %1285 = vmatprep.subr.mxu0 0.0
      %1286 = vmatpush1.msra.mxu0 0.0
      %1287 = vmatprep.subr.mxu0 0.0
      %1288 = vmatpush1.msra.mxu0 0.0
      %1289 = vmatprep.subr.mxu0 0.0
      %1290 = vmatpush1.msra.mxu0 0.0
      %1291 = vmatprep.subr.mxu0 0.0
      %1292 = vmatpush1.msra.mxu0 0.0
      %1293 = vmatprep.subr.mxu0 0.0
      %1294 = vmatpush1.msra.mxu0 0.0
      %1295 = vmatprep.subr.mxu0 0.0
      %1296 = vmatpush1.msra.mxu0 0.0
      %1297 = vmatprep.subr.mxu0 0.0
      %1298 = vmatpush1.msra.mxu0 0.0
      %1299 = vmatprep.subr.mxu0 0.0
      %1300 = vmatpush1.msra.mxu0 0.0
      %1301 = vmatprep.subr.mxu0 0.0
      %1302 = vmatpush1.msra.mxu0 0.0
      %1303 = vmatprep.subr.mxu0 0.0
      %1304 = vmatpush1.msra.mxu0 0.0
      %1305 = vmatprep.subr.mxu0 0.0
      %1306 = vmatpush1.msra.mxu0 0.0
      %1307 = vmatprep.subr.mxu0 0.0
      %1308 = vmatpush1.msra.mxu0 0.0
      %1309 = vmatprep.subr.mxu0 0.0
      %1310 = vmatpush1.msra.mxu0 0.0
      %1311 = vmatprep.subr.mxu0 0.0
      %1312 = vmatpush1.msra.mxu0 0.0
      %1313 = vmatprep.subr.mxu0 0.0
      %1314 = vmatpush1.msra.mxu0 0.0
      %1315 = vmatprep.subr.mxu0 0.0
      %1316 = vmatpush1.msra.mxu0 0.0
      %1317 = vmatprep.subr.mxu0 0.0
      %1318 = vmatpush1.msra.mxu0 0.0
      %1319 = vmatprep.subr.mxu0 0.0
      %1320 = vmatpush1.msra.mxu0 0.0
      %1321 = vmatprep.subr.mxu0 0.0
      %1322 = vmatpush1.msra.mxu0 0.0
      %1323 = vmatprep.subr.mxu0 0.0
      %1324 = vmatpush1.msra.mxu0 0.0
      %1325 = vmatprep.subr.mxu0 0.0
      %1326 = vmatpush1.msra.mxu0 0.0
      %1327 = vmatprep.subr.mxu0 0.0
      %1328 = vmatpush1.msra.mxu0 0.0
      %1329 = vmatprep.subr.mxu0 0.0
      %1330 = vmatpush1.msra.mxu0 0.0
      %1331 = vmatprep.subr.mxu0 0.0
      %1332 = vmatpush1.msra.mxu0 0.0
      %1333 = vmatprep.subr.mxu0 0.0
      %1334 = vmatpush1.msra.mxu0 0.0
      %1335 = vmatprep.subr.mxu0 0.0
      %1336 = vmatpush1.msra.mxu0 0.0
      %1337 = vmatprep.subr.mxu0 0.0
      %1338 = vmatpush1.msra.mxu0 0.0
      %1339 = vmatprep.subr.mxu0 0.0
      %1340 = vmatpush1.msra.mxu0 0.0
      %1341 = vmatprep.subr.mxu0 0.0
      %1342 = vmatpush1.msra.mxu0 0.0
      %1343 = vmatprep.subr.mxu0 0.0
      %1344 = vmatpush1.msra.mxu0 0.0
      %1345 = vmatprep.subr.mxu0 0.0
      %1346 = vmatpush1.msra.mxu0 0.0
      %1347 = vmatprep.mubr.f32.mxu0 0.0
      %v1348 = vand.u32 %v1280, 4294901760
      %v1349 = vsub.f32 %v1280, %v1348
      %v1350 = vand.u32 %v1349, 4294901760
      %v1351 = vsub.f32 %v1349, %v1350
      %v1352 = vand.u32 %v1351, 4294901760
      %1353 = vmatmul.mubr.f32.gmra.mrb[0].mxu0 %v1352
      %v1354 = vpop.f32.mrb[0].mxu0
      %v1355 = vadd.f32 0.0, %v1354
      %v1356 = vpop.f32.mrb[0].mxu0
      %1357 = vdwg.mxu0
      %1358 = vmatprep.subr.mxu0 0.0
      %v1359 = vand.u32 %v1277, 4294901760
      %v1360 = vsub.f32 %v1277, %v1359
      %v1361 = vand.u32 %v1360, 4294901760
      %v1362 = vsub.f32 %v1360, %v1361
      %v1363 = vand.u32 %v1362, 4294901760
      %1364 = vmatpush1.msra.mxu0 %v1363
      %1365 = vmatprep.subr.mxu0 0.0
      %1366 = vmatpush1.msra.mxu0 0.0
      %1367 = vmatprep.subr.mxu0 0.0
      %1368 = vmatpush1.msra.mxu0 0.0
      %1369 = vmatprep.subr.mxu0 0.0
      %1370 = vmatpush1.msra.mxu0 0.0
      %1371 = vmatprep.subr.mxu0 0.0
      %1372 = vmatpush1.msra.mxu0 0.0
      %1373 = vmatprep.subr.mxu0 0.0
      %1374 = vmatpush1.msra.mxu0 0.0
      %1375 = vmatprep.subr.mxu0 0.0
      %1376 = vmatpush1.msra.mxu0 0.0
      %1377 = vmatprep.subr.mxu0 0.0
      %1378 = vmatpush1.msra.mxu0 0.0
      %1379 = vmatprep.subr.mxu0 0.0
      %1380 = vmatpush1.msra.mxu0 0.0
      %1381 = vmatprep.subr.mxu0 0.0
      %1382 = vmatpush1.msra.mxu0 0.0
      %1383 = vmatprep.subr.mxu0 0.0
      %1384 = vmatpush1.msra.mxu0 0.0
      %1385 = vmatprep.subr.mxu0 0.0
      %1386 = vmatpush1.msra.mxu0 0.0
      %1387 = vmatprep.subr.mxu0 0.0
      %1388 = vmatpush1.msra.mxu0 0.0
      %1389 = vmatprep.subr.mxu0 0.0
      %1390 = vmatpush1.msra.mxu0 0.0
      %1391 = vmatprep.subr.mxu0 0.0
      %1392 = vmatpush1.msra.mxu0 0.0
      %1393 = vmatprep.subr.mxu0 0.0
      %1394 = vmatpush1.msra.mxu0 0.0
      %1395 = vmatprep.subr.mxu0 0.0
      %1396 = vmatpush1.msra.mxu0 0.0
      %1397 = vmatprep.subr.mxu0 0.0
      %1398 = vmatpush1.msra.mxu0 0.0
      %1399 = vmatprep.subr.mxu0 0.0
      %1400 = vmatpush1.msra.mxu0 0.0
      %1401 = vmatprep.subr.mxu0 0.0
      %1402 = vmatpush1.msra.mxu0 0.0
      %1403 = vmatprep.subr.mxu0 0.0
      %1404 = vmatpush1.msra.mxu0 0.0
      %1405 = vmatprep.subr.mxu0 0.0
      %1406 = vmatpush1.msra.mxu0 0.0
      %1407 = vmatprep.subr.mxu0 0.0
      %1408 = vmatpush1.msra.mxu0 0.0
      %1409 = vmatprep.subr.mxu0 0.0
      %1410 = vmatpush1.msra.mxu0 0.0
      %1411 = vmatprep.subr.mxu0 0.0
      %1412 = vmatpush1.msra.mxu0 0.0
      %1413 = vmatprep.subr.mxu0 0.0
      %1414 = vmatpush1.msra.mxu0 0.0
      %1415 = vmatprep.subr.mxu0 0.0
      %1416 = vmatpush1.msra.mxu0 0.0
      %1417 = vmatprep.subr.mxu0 0.0
      %1418 = vmatpush1.msra.mxu0 0.0
      %1419 = vmatprep.subr.mxu0 0.0
      %1420 = vmatpush1.msra.mxu0 0.0
      %1421 = vmatprep.subr.mxu0 0.0
      %1422 = vmatpush1.msra.mxu0 0.0
      %1423 = vmatprep.subr.mxu0 0.0
      %1424 = vmatpush1.msra.mxu0 0.0
      %1425 = vmatprep.subr.mxu0 0.0
      %1426 = vmatpush1.msra.mxu0 0.0
      %1427 = vmatprep.mubr.f32.mxu0 0.0
      %v1428 = vand.u32 %v1280, 4294901760
      %1429 = vmatmul.mubr.f32.gmra.mrb[0].mxu0 %v1428
      %v1430 = vpop.f32.mrb[0].mxu0
      %v1431 = vadd.f32 %v1355, %v1430
      %v1432 = vpop.f32.mrb[0].mxu0
      %1433 = vdwg.mxu0
      %1434 = vmatprep.subr.mxu0 0.0
      %v1435 = vand.u32 %v1277, 4294901760
      %v1436 = vsub.f32 %v1277, %v1435
      %1437 = vmatpush1.msra.mxu0 %v1436
      %1438 = vmatprep.subr.mxu0 0.0
      %1439 = vmatpush1.msra.mxu0 0.0
      %1440 = vmatprep.subr.mxu0 0.0
      %1441 = vmatpush1.msra.mxu0 0.0
      %1442 = vmatprep.subr.mxu0 0.0
      %1443 = vmatpush1.msra.mxu0 0.0
      %1444 = vmatprep.subr.mxu0 0.0
      %1445 = vmatpush1.msra.mxu0 0.0
      %1446 = vmatprep.subr.mxu0 0.0
      %1447 = vmatpush1.msra.mxu0 0.0
      %1448 = vmatprep.subr.mxu0 0.0
      %1449 = vmatpush1.msra.mxu0 0.0
      %1450 = vmatprep.subr.mxu0 0.0
      %1451 = vmatpush1.msra.mxu0 0.0
      %1452 = vmatprep.subr.mxu0 0.0
      %1453 = vmatpush1.msra.mxu0 0.0
      %1454 = vmatprep.subr.mxu0 0.0
      %1455 = vmatpush1.msra.mxu0 0.0
      %1456 = vmatprep.subr.mxu0 0.0
      %1457 = vmatpush1.msra.mxu0 0.0
      %1458 = vmatprep.subr.mxu0 0.0
      %1459 = vmatpush1.msra.mxu0 0.0
      %1460 = vmatprep.subr.mxu0 0.0
      %1461 = vmatpush1.msra.mxu0 0.0
      %1462 = vmatprep.subr.mxu0 0.0
      %1463 = vmatpush1.msra.mxu0 0.0
      %1464 = vmatprep.subr.mxu0 0.0
      %1465 = vmatpush1.msra.mxu0 0.0
      %1466 = vmatprep.subr.mxu0 0.0
      %1467 = vmatpush1.msra.mxu0 0.0
      %1468 = vmatprep.subr.mxu0 0.0
      %1469 = vmatpush1.msra.mxu0 0.0
      %1470 = vmatprep.subr.mxu0 0.0
      %1471 = vmatpush1.msra.mxu0 0.0
      %1472 = vmatprep.subr.mxu0 0.0
      %1473 = vmatpush1.msra.mxu0 0.0
      %1474 = vmatprep.subr.mxu0 0.0
      %1475 = vmatpush1.msra.mxu0 0.0
      %1476 = vmatprep.subr.mxu0 0.0
      %1477 = vmatpush1.msra.mxu0 0.0
      %1478 = vmatprep.subr.mxu0 0.0
      %1479 = vmatpush1.msra.mxu0 0.0
      %1480 = vmatprep.subr.mxu0 0.0
      %1481 = vmatpush1.msra.mxu0 0.0
      %1482 = vmatprep.subr.mxu0 0.0
      %1483 = vmatpush1.msra.mxu0 0.0
      %1484 = vmatprep.subr.mxu0 0.0
      %1485 = vmatpush1.msra.mxu0 0.0
      %1486 = vmatprep.subr.mxu0 0.0
      %1487 = vmatpush1.msra.mxu0 0.0
      %1488 = vmatprep.subr.mxu0 0.0
      %1489 = vmatpush1.msra.mxu0 0.0
      %1490 = vmatprep.subr.mxu0 0.0
      %1491 = vmatpush1.msra.mxu0 0.0
      %1492 = vmatprep.subr.mxu0 0.0
      %1493 = vmatpush1.msra.mxu0 0.0
      %1494 = vmatprep.subr.mxu0 0.0
      %1495 = vmatpush1.msra.mxu0 0.0
      %1496 = vmatprep.subr.mxu0 0.0
      %1497 = vmatpush1.msra.mxu0 0.0
      %1498 = vmatprep.subr.mxu0 0.0
      %1499 = vmatpush1.msra.mxu0 0.0
      %1500 = vmatprep.mubr.f32.mxu0 0.0
      %v1501 = vand.u32 %v1280, 4294901760
      %v1502 = vsub.f32 %v1280, %v1501
      %1503 = vmatmul.mubr.f32.gmra.mrb[0].mxu0 %v1502
      %v1504 = vpop.f32.mrb[0].mxu0
      %v1505 = vadd.f32 %v1431, %v1504
      %v1506 = vpop.f32.mrb[0].mxu0
      %1507 = vdwg.mxu0
      %1508 = vmatprep.subr.mxu0 0.0
      %v1509 = vand.u32 %v1277, 4294901760
      %1510 = vmatpush1.msra.mxu0 %v1509
      %1511 = vmatprep.subr.mxu0 0.0
      %1512 = vmatpush1.msra.mxu0 0.0
      %1513 = vmatprep.subr.mxu0 0.0
      %1514 = vmatpush1.msra.mxu0 0.0
      %1515 = vmatprep.subr.mxu0 0.0
      %1516 = vmatpush1.msra.mxu0 0.0
      %1517 = vmatprep.subr.mxu0 0.0
      %1518 = vmatpush1.msra.mxu0 0.0
      %1519 = vmatprep.subr.mxu0 0.0
      %1520 = vmatpush1.msra.mxu0 0.0
      %1521 = vmatprep.subr.mxu0 0.0
      %1522 = vmatpush1.msra.mxu0 0.0
      %1523 = vmatprep.subr.mxu0 0.0
      %1524 = vmatpush1.msra.mxu0 0.0
      %1525 = vmatprep.subr.mxu0 0.0
      %1526 = vmatpush1.msra.mxu0 0.0
      %1527 = vmatprep.subr.mxu0 0.0
      %1528 = vmatpush1.msra.mxu0 0.0
      %1529 = vmatprep.subr.mxu0 0.0
      %1530 = vmatpush1.msra.mxu0 0.0
      %1531 = vmatprep.subr.mxu0 0.0
      %1532 = vmatpush1.msra.mxu0 0.0
      %1533 = vmatprep.subr.mxu0 0.0
      %1534 = vmatpush1.msra.mxu0 0.0
      %1535 = vmatprep.subr.mxu0 0.0
      %1536 = vmatpush1.msra.mxu0 0.0
      %1537 = vmatprep.subr.mxu0 0.0
      %1538 = vmatpush1.msra.mxu0 0.0
      %1539 = vmatprep.subr.mxu0 0.0
      %1540 = vmatpush1.msra.mxu0 0.0
      %1541 = vmatprep.subr.mxu0 0.0
      %1542 = vmatpush1.msra.mxu0 0.0
      %1543 = vmatprep.subr.mxu0 0.0
      %1544 = vmatpush1.msra.mxu0 0.0
      %1545 = vmatprep.subr.mxu0 0.0
      %1546 = vmatpush1.msra.mxu0 0.0
      %1547 = vmatprep.subr.mxu0 0.0
      %1548 = vmatpush1.msra.mxu0 0.0
      %1549 = vmatprep.subr.mxu0 0.0
      %1550 = vmatpush1.msra.mxu0 0.0
      %1551 = vmatprep.subr.mxu0 0.0
      %1552 = vmatpush1.msra.mxu0 0.0
      %1553 = vmatprep.subr.mxu0 0.0
      %1554 = vmatpush1.msra.mxu0 0.0
      %1555 = vmatprep.subr.mxu0 0.0
      %1556 = vmatpush1.msra.mxu0 0.0
      %1557 = vmatprep.subr.mxu0 0.0
      %1558 = vmatpush1.msra.mxu0 0.0
      %1559 = vmatprep.subr.mxu0 0.0
      %1560 = vmatpush1.msra.mxu0 0.0
      %1561 = vmatprep.subr.mxu0 0.0
      %1562 = vmatpush1.msra.mxu0 0.0
      %1563 = vmatprep.subr.mxu0 0.0
      %1564 = vmatpush1.msra.mxu0 0.0
      %1565 = vmatprep.subr.mxu0 0.0
      %1566 = vmatpush1.msra.mxu0 0.0
      %1567 = vmatprep.subr.mxu0 0.0
      %1568 = vmatpush1.msra.mxu0 0.0
      %1569 = vmatprep.subr.mxu0 0.0
      %1570 = vmatpush1.msra.mxu0 0.0
      %1571 = vmatprep.subr.mxu0 0.0
      %1572 = vmatpush1.msra.mxu0 0.0
      %1573 = vmatprep.mubr.f32.mxu0 0.0
      %v1574 = vand.u32 %v1280, 4294901760
      %v1575 = vsub.f32 %v1280, %v1574
      %v1576 = vand.u32 %v1575, 4294901760
      %1577 = vmatmul.mubr.f32.gmra.mrb[0].mxu0 %v1576
      %v1578 = vpop.f32.mrb[0].mxu0
      %v1579 = vadd.f32 %v1505, %v1578
      %v1580 = vpop.f32.mrb[0].mxu0
      %1581 = vdwg.mxu0
      %1582 = vmatprep.subr.mxu0 0.0
      %v1583 = vand.u32 %v1277, 4294901760
      %v1584 = vsub.f32 %v1277, %v1583
      %v1585 = vand.u32 %v1584, 4294901760
      %1586 = vmatpush1.msra.mxu0 %v1585
      %1587 = vmatprep.subr.mxu0 0.0
      %1588 = vmatpush1.msra.mxu0 0.0
      %1589 = vmatprep.subr.mxu0 0.0
      %1590 = vmatpush1.msra.mxu0 0.0
      %1591 = vmatprep.subr.mxu0 0.0
      %1592 = vmatpush1.msra.mxu0 0.0
      %1593 = vmatprep.subr.mxu0 0.0
      %1594 = vmatpush1.msra.mxu0 0.0
      %1595 = vmatprep.subr.mxu0 0.0
      %1596 = vmatpush1.msra.mxu0 0.0
      %1597 = vmatprep.subr.mxu0 0.0
      %1598 = vmatpush1.msra.mxu0 0.0
      %1599 = vmatprep.subr.mxu0 0.0
      %1600 = vmatpush1.msra.mxu0 0.0
      %1601 = vmatprep.subr.mxu0 0.0
      %1602 = vmatpush1.msra.mxu0 0.0
      %1603 = vmatprep.subr.mxu0 0.0
      %1604 = vmatpush1.msra.mxu0 0.0
      %1605 = vmatprep.subr.mxu0 0.0
      %1606 = vmatpush1.msra.mxu0 0.0
      %1607 = vmatprep.subr.mxu0 0.0
      %1608 = vmatpush1.msra.mxu0 0.0
      %1609 = vmatprep.subr.mxu0 0.0
      %1610 = vmatpush1.msra.mxu0 0.0
      %1611 = vmatprep.subr.mxu0 0.0
      %1612 = vmatpush1.msra.mxu0 0.0
      %1613 = vmatprep.subr.mxu0 0.0
      %1614 = vmatpush1.msra.mxu0 0.0
      %1615 = vmatprep.subr.mxu0 0.0
      %1616 = vmatpush1.msra.mxu0 0.0
      %1617 = vmatprep.subr.mxu0 0.0
      %1618 = vmatpush1.msra.mxu0 0.0
      %1619 = vmatprep.subr.mxu0 0.0
      %1620 = vmatpush1.msra.mxu0 0.0
      %1621 = vmatprep.subr.mxu0 0.0
      %1622 = vmatpush1.msra.mxu0 0.0
      %1623 = vmatprep.subr.mxu0 0.0
      %1624 = vmatpush1.msra.mxu0 0.0
      %1625 = vmatprep.subr.mxu0 0.0
      %1626 = vmatpush1.msra.mxu0 0.0
      %1627 = vmatprep.subr.mxu0 0.0
      %1628 = vmatpush1.msra.mxu0 0.0
      %1629 = vmatprep.subr.mxu0 0.0
      %1630 = vmatpush1.msra.mxu0 0.0
      %1631 = vmatprep.subr.mxu0 0.0
      %1632 = vmatpush1.msra.mxu0 0.0
      %1633 = vmatprep.subr.mxu0 0.0
      %1634 = vmatpush1.msra.mxu0 0.0
      %1635 = vmatprep.subr.mxu0 0.0
      %1636 = vmatpush1.msra.mxu0 0.0
      %1637 = vmatprep.subr.mxu0 0.0
      %1638 = vmatpush1.msra.mxu0 0.0
      %1639 = vmatprep.subr.mxu0 0.0
      %1640 = vmatpush1.msra.mxu0 0.0
      %1641 = vmatprep.subr.mxu0 0.0
      %1642 = vmatpush1.msra.mxu0 0.0
      %1643 = vmatprep.subr.mxu0 0.0
      %1644 = vmatpush1.msra.mxu0 0.0
      %1645 = vmatprep.subr.mxu0 0.0
      %1646 = vmatpush1.msra.mxu0 0.0
      %1647 = vmatprep.subr.mxu0 0.0
      %1648 = vmatpush1.msra.mxu0 0.0
      %1649 = vmatprep.mubr.f32.mxu0 0.0
      %v1650 = vand.u32 %v1280, 4294901760
      %1651 = vmatmul.mubr.f32.gmra.mrb[0].mxu0 %v1650
      %v1652 = vpop.f32.mrb[0].mxu0
      %v1653 = vadd.f32 %v1579, %v1652
      %v1654 = vpop.f32.mrb[0].mxu0
      %1655 = vdwg.mxu0
      %1656 = vmatprep.subr.mxu0 0.0
      %v1657 = vand.u32 %v1277, 4294901760
      %1658 = vmatpush1.msra.mxu0 %v1657
      %1659 = vmatprep.subr.mxu0 0.0
      %1660 = vmatpush1.msra.mxu0 0.0
      %1661 = vmatprep.subr.mxu0 0.0
      %1662 = vmatpush1.msra.mxu0 0.0
      %1663 = vmatprep.subr.mxu0 0.0
      %1664 = vmatpush1.msra.mxu0 0.0
      %1665 = vmatprep.subr.mxu0 0.0
      %1666 = vmatpush1.msra.mxu0 0.0
      %1667 = vmatprep.subr.mxu0 0.0
      %1668 = vmatpush1.msra.mxu0 0.0
      %1669 = vmatprep.subr.mxu0 0.0
      %1670 = vmatpush1.msra.mxu0 0.0
      %1671 = vmatprep.subr.mxu0 0.0
      %1672 = vmatpush1.msra.mxu0 0.0
      %1673 = vmatprep.subr.mxu0 0.0
      %1674 = vmatpush1.msra.mxu0 0.0
      %1675 = vmatprep.subr.mxu0 0.0
      %1676 = vmatpush1.msra.mxu0 0.0
      %1677 = vmatprep.subr.mxu0 0.0
      %1678 = vmatpush1.msra.mxu0 0.0
      %1679 = vmatprep.subr.mxu0 0.0
      %1680 = vmatpush1.msra.mxu0 0.0
      %1681 = vmatprep.subr.mxu0 0.0
      %1682 = vmatpush1.msra.mxu0 0.0
      %1683 = vmatprep.subr.mxu0 0.0
      %1684 = vmatpush1.msra.mxu0 0.0
      %1685 = vmatprep.subr.mxu0 0.0
      %1686 = vmatpush1.msra.mxu0 0.0
      %1687 = vmatprep.subr.mxu0 0.0
      %1688 = vmatpush1.msra.mxu0 0.0
      %1689 = vmatprep.subr.mxu0 0.0
      %1690 = vmatpush1.msra.mxu0 0.0
      %1691 = vmatprep.subr.mxu0 0.0
      %1692 = vmatpush1.msra.mxu0 0.0
      %1693 = vmatprep.subr.mxu0 0.0
      %1694 = vmatpush1.msra.mxu0 0.0
      %1695 = vmatprep.subr.mxu0 0.0
      %1696 = vmatpush1.msra.mxu0 0.0
      %1697 = vmatprep.subr.mxu0 0.0
      %1698 = vmatpush1.msra.mxu0 0.0
      %1699 = vmatprep.subr.mxu0 0.0
      %1700 = vmatpush1.msra.mxu0 0.0
      %1701 = vmatprep.subr.mxu0 0.0
      %1702 = vmatpush1.msra.mxu0 0.0
      %1703 = vmatprep.subr.mxu0 0.0
      %1704 = vmatpush1.msra.mxu0 0.0
      %1705 = vmatprep.subr.mxu0 0.0
      %1706 = vmatpush1.msra.mxu0 0.0
      %1707 = vmatprep.subr.mxu0 0.0
      %1708 = vmatpush1.msra.mxu0 0.0
      %1709 = vmatprep.subr.mxu0 0.0
      %1710 = vmatpush1.msra.mxu0 0.0
      %1711 = vmatprep.subr.mxu0 0.0
      %1712 = vmatpush1.msra.mxu0 0.0
      %1713 = vmatprep.subr.mxu0 0.0
      %1714 = vmatpush1.msra.mxu0 0.0
      %1715 = vmatprep.subr.mxu0 0.0
      %1716 = vmatpush1.msra.mxu0 0.0
      %1717 = vmatprep.subr.mxu0 0.0
      %1718 = vmatpush1.msra.mxu0 0.0
      %1719 = vmatprep.subr.mxu0 0.0
      %1720 = vmatpush1.msra.mxu0 0.0
      %1721 = vmatprep.mubr.f32.mxu0 0.0
      %v1722 = vand.u32 %v1280, 4294901760
      %1723 = vmatmul.mubr.f32.gmra.mrb[0].mxu0 %v1722
      %v1724 = vpop.f32.mrb[0].mxu0
      %v1725 = vadd.f32 %v1653, %v1724
      %v1726 = vpop.f32.mrb[0].mxu0
      %1727 = vdwg.mxu0
      %v1728 = vmul.f32 %v1725, 0.0625
      %v1729 = vlaneseq
      %v1730 = vand.u32 %v1729, 127
      %vm1731 = vcmp.lt.s32.totalorder %v1730, 16
      %1733 = vset.pattern.permute.xlu0 0
      %1734 = vperm.xlu0 %1733, %v1728
      %v1735 = vpop.permute.xlu0 %1734
      %1737 = vset.pattern.permute.xlu0 1
      %1738 = vperm.xlu0 %1737, %v1728
      %v1739 = vpop.permute.xlu0 %1738
      %v1741 = vsel %vm1731, %v1735, %v1739
      %v1742 = vsub.f32 %v1263, %v1741
      %v1743 = vmul.f32 %v1742, %v1742
      %v1744 = vsel %vm1265, %v1743, 0.0
      %1745 = vadd.xlane.f32.xlu0 %v1744
      %v1746 = vpop.xlane.xlu0 %1745
      %1748 = vrot.lane.b32.xlu0 %v1743, 108
      %v1749 = vpop.permute.xlu0 %1748
      %v1751 = vsel %vm1265, %v1749, 0.0
      %1752 = vadd.xlane.f32.xlu0 %v1751
      %v1753 = vpop.xlane.xlu0 %1752
      %v1754 = vsel %vm1276, %v1746, %v1753
      %1755 = vmatprep.subr.mxu0 0.0
      %v1756 = vand.u32 %v1754, 4294901760
      %1757 = vmatpush1.msra.mxu0 %v1756
      %1758 = vmatprep.subr.mxu0 0.0
      %1759 = vmatpush1.msra.mxu0 0.0
      %1760 = vmatprep.subr.mxu0 0.0
      %1761 = vmatpush1.msra.mxu0 0.0
      %1762 = vmatprep.subr.mxu0 0.0
      %1763 = vmatpush1.msra.mxu0 0.0
      %1764 = vmatprep.subr.mxu0 0.0
      %1765 = vmatpush1.msra.mxu0 0.0
      %1766 = vmatprep.subr.mxu0 0.0
      %1767 = vmatpush1.msra.mxu0 0.0
      %1768 = vmatprep.subr.mxu0 0.0
      %1769 = vmatpush1.msra.mxu0 0.0
      %1770 = vmatprep.subr.mxu0 0.0
      %1771 = vmatpush1.msra.mxu0 0.0
      %1772 = vmatprep.subr.mxu0 0.0
      %1773 = vmatpush1.msra.mxu0 0.0
      %1774 = vmatprep.subr.mxu0 0.0
      %1775 = vmatpush1.msra.mxu0 0.0
      %1776 = vmatprep.subr.mxu0 0.0
      %1777 = vmatpush1.msra.mxu0 0.0
      %1778 = vmatprep.subr.mxu0 0.0
      %1779 = vmatpush1.msra.mxu0 0.0
      %1780 = vmatprep.subr.mxu0 0.0
      %1781 = vmatpush1.msra.mxu0 0.0
      %1782 = vmatprep.subr.mxu0 0.0
      %1783 = vmatpush1.msra.mxu0 0.0
      %1784 = vmatprep.subr.mxu0 0.0
      %1785 = vmatpush1.msra.mxu0 0.0
      %1786 = vmatprep.subr.mxu0 0.0
      %1787 = vmatpush1.msra.mxu0 0.0
      %1788 = vmatprep.subr.mxu0 0.0
      %1789 = vmatpush1.msra.mxu0 0.0
      %1790 = vmatprep.subr.mxu0 0.0
      %1791 = vmatpush1.msra.mxu0 0.0
      %1792 = vmatprep.subr.mxu0 0.0
      %1793 = vmatpush1.msra.mxu0 0.0
      %1794 = vmatprep.subr.mxu0 0.0
      %1795 = vmatpush1.msra.mxu0 0.0
      %1796 = vmatprep.subr.mxu0 0.0
      %1797 = vmatpush1.msra.mxu0 0.0
      %1798 = vmatprep.subr.mxu0 0.0
      %1799 = vmatpush1.msra.mxu0 0.0
      %1800 = vmatprep.subr.mxu0 0.0
      %1801 = vmatpush1.msra.mxu0 0.0
      %1802 = vmatprep.subr.mxu0 0.0
      %1803 = vmatpush1.msra.mxu0 0.0
      %1804 = vmatprep.subr.mxu0 0.0
      %1805 = vmatpush1.msra.mxu0 0.0
      %1806 = vmatprep.subr.mxu0 0.0
      %1807 = vmatpush1.msra.mxu0 0.0
      %1808 = vmatprep.subr.mxu0 0.0
      %1809 = vmatpush1.msra.mxu0 0.0
      %1810 = vmatprep.subr.mxu0 0.0
      %1811 = vmatpush1.msra.mxu0 0.0
      %1812 = vmatprep.subr.mxu0 0.0
      %1813 = vmatpush1.msra.mxu0 0.0
      %1814 = vmatprep.subr.mxu0 0.0
      %1815 = vmatpush1.msra.mxu0 0.0
      %1816 = vmatprep.subr.mxu0 0.0
      %1817 = vmatpush1.msra.mxu0 0.0
      %1818 = vmatprep.subr.mxu0 0.0
      %1819 = vmatpush1.msra.mxu0 0.0
      %1820 = vmatprep.mubr.f32.mxu0 0.0
      %v1821 = vand.u32 %v1280, 4294901760
      %v1822 = vsub.f32 %v1280, %v1821
      %v1823 = vand.u32 %v1822, 4294901760
      %v1824 = vsub.f32 %v1822, %v1823
      %v1825 = vand.u32 %v1824, 4294901760
      %1826 = vmatmul.mubr.f32.gmra.mrb[0].mxu0 %v1825
      %v1827 = vpop.f32.mrb[0].mxu0
      %v1828 = vadd.f32 0.0, %v1827
      %v1829 = vpop.f32.mrb[0].mxu0
      %1830 = vdwg.mxu0
      %1831 = vmatprep.subr.mxu0 0.0
      %v1832 = vand.u32 %v1754, 4294901760
      %v1833 = vsub.f32 %v1754, %v1832
      %v1834 = vand.u32 %v1833, 4294901760
      %v1835 = vsub.f32 %v1833, %v1834
      %v1836 = vand.u32 %v1835, 4294901760
      %1837 = vmatpush1.msra.mxu0 %v1836
      %1838 = vmatprep.subr.mxu0 0.0
      %1839 = vmatpush1.msra.mxu0 0.0
      %1840 = vmatprep.subr.mxu0 0.0
      %1841 = vmatpush1.msra.mxu0 0.0
      %1842 = vmatprep.subr.mxu0 0.0
      %1843 = vmatpush1.msra.mxu0 0.0
      %1844 = vmatprep.subr.mxu0 0.0
      %1845 = vmatpush1.msra.mxu0 0.0
      %1846 = vmatprep.subr.mxu0 0.0
      %1847 = vmatpush1.msra.mxu0 0.0
      %1848 = vmatprep.subr.mxu0 0.0
      %1849 = vmatpush1.msra.mxu0 0.0
      %1850 = vmatprep.subr.mxu0 0.0
      %1851 = vmatpush1.msra.mxu0 0.0
      %1852 = vmatprep.subr.mxu0 0.0
      %1853 = vmatpush1.msra.mxu0 0.0
      %1854 = vmatprep.subr.mxu0 0.0
      %1855 = vmatpush1.msra.mxu0 0.0
      %1856 = vmatprep.subr.mxu0 0.0
      %1857 = vmatpush1.msra.mxu0 0.0
      %1858 = vmatprep.subr.mxu0 0.0
      %1859 = vmatpush1.msra.mxu0 0.0
      %1860 = vmatprep.subr.mxu0 0.0
      %1861 = vmatpush1.msra.mxu0 0.0
      %1862 = vmatprep.subr.mxu0 0.0
      %1863 = vmatpush1.msra.mxu0 0.0
      %1864 = vmatprep.subr.mxu0 0.0
      %1865 = vmatpush1.msra.mxu0 0.0
      %1866 = vmatprep.subr.mxu0 0.0
      %1867 = vmatpush1.msra.mxu0 0.0
      %1868 = vmatprep.subr.mxu0 0.0
      %1869 = vmatpush1.msra.mxu0 0.0
      %1870 = vmatprep.subr.mxu0 0.0
      %1871 = vmatpush1.msra.mxu0 0.0
      %1872 = vmatprep.subr.mxu0 0.0
      %1873 = vmatpush1.msra.mxu0 0.0
      %1874 = vmatprep.subr.mxu0 0.0
      %1875 = vmatpush1.msra.mxu0 0.0
      %1876 = vmatprep.subr.mxu0 0.0
      %1877 = vmatpush1.msra.mxu0 0.0
      %1878 = vmatprep.subr.mxu0 0.0
      %1879 = vmatpush1.msra.mxu0 0.0
      %1880 = vmatprep.subr.mxu0 0.0
      %1881 = vmatpush1.msra.mxu0 0.0
      %1882 = vmatprep.subr.mxu0 0.0
      %1883 = vmatpush1.msra.mxu0 0.0
      %1884 = vmatprep.subr.mxu0 0.0
      %1885 = vmatpush1.msra.mxu0 0.0
      %1886 = vmatprep.subr.mxu0 0.0
      %1887 = vmatpush1.msra.mxu0 0.0
      %1888 = vmatprep.subr.mxu0 0.0
      %1889 = vmatpush1.msra.mxu0 0.0
      %1890 = vmatprep.subr.mxu0 0.0
      %1891 = vmatpush1.msra.mxu0 0.0
      %1892 = vmatprep.subr.mxu0 0.0
      %1893 = vmatpush1.msra.mxu0 0.0
      %1894 = vmatprep.subr.mxu0 0.0
      %1895 = vmatpush1.msra.mxu0 0.0
      %1896 = vmatprep.subr.mxu0 0.0
      %1897 = vmatpush1.msra.mxu0 0.0
      %1898 = vmatprep.subr.mxu0 0.0
      %1899 = vmatpush1.msra.mxu0 0.0
      %1900 = vmatprep.mubr.f32.mxu0 0.0
      %v1901 = vand.u32 %v1280, 4294901760
      %1902 = vmatmul.mubr.f32.gmra.mrb[0].mxu0 %v1901
      %v1903 = vpop.f32.mrb[0].mxu0
      %v1904 = vadd.f32 %v1828, %v1903
      %v1905 = vpop.f32.mrb[0].mxu0
      %1906 = vdwg.mxu0
      %1907 = vmatprep.subr.mxu0 0.0
      %v1908 = vand.u32 %v1754, 4294901760
      %v1909 = vsub.f32 %v1754, %v1908
      %1910 = vmatpush1.msra.mxu0 %v1909
      %1911 = vmatprep.subr.mxu0 0.0
      %1912 = vmatpush1.msra.mxu0 0.0
      %1913 = vmatprep.subr.mxu0 0.0
      %1914 = vmatpush1.msra.mxu0 0.0
      %1915 = vmatprep.subr.mxu0 0.0
      %1916 = vmatpush1.msra.mxu0 0.0
      %1917 = vmatprep.subr.mxu0 0.0
      %1918 = vmatpush1.msra.mxu0 0.0
      %1919 = vmatprep.subr.mxu0 0.0
      %1920 = vmatpush1.msra.mxu0 0.0
      %1921 = vmatprep.subr.mxu0 0.0
      %1922 = vmatpush1.msra.mxu0 0.0
      %1923 = vmatprep.subr.mxu0 0.0
      %1924 = vmatpush1.msra.mxu0 0.0
      %1925 = vmatprep.subr.mxu0 0.0
      %1926 = vmatpush1.msra.mxu0 0.0
      %1927 = vmatprep.subr.mxu0 0.0
      %1928 = vmatpush1.msra.mxu0 0.0
      %1929 = vmatprep.subr.mxu0 0.0
      %1930 = vmatpush1.msra.mxu0 0.0
      %1931 = vmatprep.subr.mxu0 0.0
      %1932 = vmatpush1.msra.mxu0 0.0
      %1933 = vmatprep.subr.mxu0 0.0
      %1934 = vmatpush1.msra.mxu0 0.0
      %1935 = vmatprep.subr.mxu0 0.0
      %1936 = vmatpush1.msra.mxu0 0.0
      %1937 = vmatprep.subr.mxu0 0.0
      %1938 = vmatpush1.msra.mxu0 0.0
      %1939 = vmatprep.subr.mxu0 0.0
      %1940 = vmatpush1.msra.mxu0 0.0
      %1941 = vmatprep.subr.mxu0 0.0
      %1942 = vmatpush1.msra.mxu0 0.0
      %1943 = vmatprep.subr.mxu0 0.0
      %1944 = vmatpush1.msra.mxu0 0.0
      %1945 = vmatprep.subr.mxu0 0.0
      %1946 = vmatpush1.msra.mxu0 0.0
      %1947 = vmatprep.subr.mxu0 0.0
      %1948 = vmatpush1.msra.mxu0 0.0
      %1949 = vmatprep.subr.mxu0 0.0
      %1950 = vmatpush1.msra.mxu0 0.0
      %1951 = vmatprep.subr.mxu0 0.0
      %1952 = vmatpush1.msra.mxu0 0.0
      %1953 = vmatprep.subr.mxu0 0.0
      %1954 = vmatpush1.msra.mxu0 0.0
      %1955 = vmatprep.subr.mxu0 0.0
      %1956 = vmatpush1.msra.mxu0 0.0
      %1957 = vmatprep.subr.mxu0 0.0
      %1958 = vmatpush1.msra.mxu0 0.0
      %1959 = vmatprep.subr.mxu0 0.0
      %1960 = vmatpush1.msra.mxu0 0.0
      %1961 = vmatprep.subr.mxu0 0.0
      %1962 = vmatpush1.msra.mxu0 0.0
      %1963 = vmatprep.subr.mxu0 0.0
      %1964 = vmatpush1.msra.mxu0 0.0
      %1965 = vmatprep.subr.mxu0 0.0
      %1966 = vmatpush1.msra.mxu0 0.0
      %1967 = vmatprep.subr.mxu0 0.0
      %1968 = vmatpush1.msra.mxu0 0.0
      %1969 = vmatprep.subr.mxu0 0.0
      %1970 = vmatpush1.msra.mxu0 0.0
      %1971 = vmatprep.subr.mxu0 0.0
      %1972 = vmatpush1.msra.mxu0 0.0
      %1973 = vmatprep.mubr.f32.mxu0 0.0
      %v1974 = vand.u32 %v1280, 4294901760
      %v1975 = vsub.f32 %v1280, %v1974
      %1976 = vmatmul.mubr.f32.gmra.mrb[0].mxu0 %v1975
      %v1977 = vpop.f32.mrb[0].mxu0
      %v1978 = vadd.f32 %v1904, %v1977
      %v1979 = vpop.f32.mrb[0].mxu0
      %1980 = vdwg.mxu0
      %1981 = vmatprep.subr.mxu0 0.0
      %v1982 = vand.u32 %v1754, 4294901760
      %1983 = vmatpush1.msra.mxu0 %v1982
      %1984 = vmatprep.subr.mxu0 0.0
      %1985 = vmatpush1.msra.mxu0 0.0
      %1986 = vmatprep.subr.mxu0 0.0
      %1987 = vmatpush1.msra.mxu0 0.0
      %1988 = vmatprep.subr.mxu0 0.0
      %1989 = vmatpush1.msra.mxu0 0.0
      %1990 = vmatprep.subr.mxu0 0.0
      %1991 = vmatpush1.msra.mxu0 0.0
      %1992 = vmatprep.subr.mxu0 0.0
      %1993 = vmatpush1.msra.mxu0 0.0
      %1994 = vmatprep.subr.mxu0 0.0
      %1995 = vmatpush1.msra.mxu0 0.0
      %1996 = vmatprep.subr.mxu0 0.0
      %1997 = vmatpush1.msra.mxu0 0.0
      %1998 = vmatprep.subr.mxu0 0.0
      %1999 = vmatpush1.msra.mxu0 0.0
      %2000 = vmatprep.subr.mxu0 0.0
      %2001 = vmatpush1.msra.mxu0 0.0
      %2002 = vmatprep.subr.mxu0 0.0
      %2003 = vmatpush1.msra.mxu0 0.0
      %2004 = vmatprep.subr.mxu0 0.0
      %2005 = vmatpush1.msra.mxu0 0.0
      %2006 = vmatprep.subr.mxu0 0.0
      %2007 = vmatpush1.msra.mxu0 0.0
      %2008 = vmatprep.subr.mxu0 0.0
      %2009 = vmatpush1.msra.mxu0 0.0
      %2010 = vmatprep.subr.mxu0 0.0
      %2011 = vmatpush1.msra.mxu0 0.0
      %2012 = vmatprep.subr.mxu0 0.0
      %2013 = vmatpush1.msra.mxu0 0.0
      %2014 = vmatprep.subr.mxu0 0.0
      %2015 = vmatpush1.msra.mxu0 0.0
      %2016 = vmatprep.subr.mxu0 0.0
      %2017 = vmatpush1.msra.mxu0 0.0
      %2018 = vmatprep.subr.mxu0 0.0
      %2019 = vmatpush1.msra.mxu0 0.0
      %2020 = vmatprep.subr.mxu0 0.0
      %2021 = vmatpush1.msra.mxu0 0.0
      %2022 = vmatprep.subr.mxu0 0.0
      %2023 = vmatpush1.msra.mxu0 0.0
      %2024 = vmatprep.subr.mxu0 0.0
      %2025 = vmatpush1.msra.mxu0 0.0
      %2026 = vmatprep.subr.mxu0 0.0
      %2027 = vmatpush1.msra.mxu0 0.0
      %2028 = vmatprep.subr.mxu0 0.0
      %2029 = vmatpush1.msra.mxu0 0.0
      %2030 = vmatprep.subr.mxu0 0.0
      %2031 = vmatpush1.msra.mxu0 0.0
      %2032 = vmatprep.subr.mxu0 0.0
      %2033 = vmatpush1.msra.mxu0 0.0
      %2034 = vmatprep.subr.mxu0 0.0
      %2035 = vmatpush1.msra.mxu0 0.0
      %2036 = vmatprep.subr.mxu0 0.0
      %2037 = vmatpush1.msra.mxu0 0.0
      %2038 = vmatprep.subr.mxu0 0.0
      %2039 = vmatpush1.msra.mxu0 0.0
      %2040 = vmatprep.subr.mxu0 0.0
      %2041 = vmatpush1.msra.mxu0 0.0
      %2042 = vmatprep.subr.mxu0 0.0
      %2043 = vmatpush1.msra.mxu0 0.0
      %2044 = vmatprep.subr.mxu0 0.0
      %2045 = vmatpush1.msra.mxu0 0.0
      %2046 = vmatprep.mubr.f32.mxu0 0.0
      %v2047 = vand.u32 %v1280, 4294901760
      %v2048 = vsub.f32 %v1280, %v2047
      %v2049 = vand.u32 %v2048, 4294901760
      %2050 = vmatmul.mubr.f32.gmra.mrb[0].mxu0 %v2049
      %v2051 = vpop.f32.mrb[0].mxu0
      %v2052 = vadd.f32 %v1978, %v2051
      %v2053 = vpop.f32.mrb[0].mxu0
      %2054 = vdwg.mxu0
      %2055 = vmatprep.subr.mxu0 0.0
      %v2056 = vand.u32 %v1754, 4294901760
      %v2057 = vsub.f32 %v1754, %v2056
      %v2058 = vand.u32 %v2057, 4294901760
      %2059 = vmatpush1.msra.mxu0 %v2058
      %2060 = vmatprep.subr.mxu0 0.0
      %2061 = vmatpush1.msra.mxu0 0.0
      %2062 = vmatprep.subr.mxu0 0.0
      %2063 = vmatpush1.msra.mxu0 0.0
      %2064 = vmatprep.subr.mxu0 0.0
      %2065 = vmatpush1.msra.mxu0 0.0
      %2066 = vmatprep.subr.mxu0 0.0
      %2067 = vmatpush1.msra.mxu0 0.0
      %2068 = vmatprep.subr.mxu0 0.0
      %2069 = vmatpush1.msra.mxu0 0.0
      %2070 = vmatprep.subr.mxu0 0.0
      %2071 = vmatpush1.msra.mxu0 0.0
      %2072 = vmatprep.subr.mxu0 0.0
      %2073 = vmatpush1.msra.mxu0 0.0
      %2074 = vmatprep.subr.mxu0 0.0
      %2075 = vmatpush1.msra.mxu0 0.0
      %2076 = vmatprep.subr.mxu0 0.0
      %2077 = vmatpush1.msra.mxu0 0.0
      %2078 = vmatprep.subr.mxu0 0.0
      %2079 = vmatpush1.msra.mxu0 0.0
      %2080 = vmatprep.subr.mxu0 0.0
      %2081 = vmatpush1.msra.mxu0 0.0
      %2082 = vmatprep.subr.mxu0 0.0
      %2083 = vmatpush1.msra.mxu0 0.0
      %2084 = vmatprep.subr.mxu0 0.0
      %2085 = vmatpush1.msra.mxu0 0.0
      %2086 = vmatprep.subr.mxu0 0.0
      %2087 = vmatpush1.msra.mxu0 0.0
      %2088 = vmatprep.subr.mxu0 0.0
      %2089 = vmatpush1.msra.mxu0 0.0
      %2090 = vmatprep.subr.mxu0 0.0
      %2091 = vmatpush1.msra.mxu0 0.0
      %2092 = vmatprep.subr.mxu0 0.0
      %2093 = vmatpush1.msra.mxu0 0.0
      %2094 = vmatprep.subr.mxu0 0.0
      %2095 = vmatpush1.msra.mxu0 0.0
      %2096 = vmatprep.subr.mxu0 0.0
      %2097 = vmatpush1.msra.mxu0 0.0
      %2098 = vmatprep.subr.mxu0 0.0
      %2099 = vmatpush1.msra.mxu0 0.0
      %2100 = vmatprep.subr.mxu0 0.0
      %2101 = vmatpush1.msra.mxu0 0.0
      %2102 = vmatprep.subr.mxu0 0.0
      %2103 = vmatpush1.msra.mxu0 0.0
      %2104 = vmatprep.subr.mxu0 0.0
      %2105 = vmatpush1.msra.mxu0 0.0
      %2106 = vmatprep.subr.mxu0 0.0
      %2107 = vmatpush1.msra.mxu0 0.0
      %2108 = vmatprep.subr.mxu0 0.0
      %2109 = vmatpush1.msra.mxu0 0.0
      %2110 = vmatprep.subr.mxu0 0.0
      %2111 = vmatpush1.msra.mxu0 0.0
      %2112 = vmatprep.subr.mxu0 0.0
      %2113 = vmatpush1.msra.mxu0 0.0
      %2114 = vmatprep.subr.mxu0 0.0
      %2115 = vmatpush1.msra.mxu0 0.0
      %2116 = vmatprep.subr.mxu0 0.0
      %2117 = vmatpush1.msra.mxu0 0.0
      %2118 = vmatprep.subr.mxu0 0.0
      %2119 = vmatpush1.msra.mxu0 0.0
      %2120 = vmatprep.subr.mxu0 0.0
      %2121 = vmatpush1.msra.mxu0 0.0
      %2122 = vmatprep.mubr.f32.mxu0 0.0
      %v2123 = vand.u32 %v1280, 4294901760
      %2124 = vmatmul.mubr.f32.gmra.mrb[0].mxu0 %v2123
      %v2125 = vpop.f32.mrb[0].mxu0
      %v2126 = vadd.f32 %v2052, %v2125
      %v2127 = vpop.f32.mrb[0].mxu0
      %2128 = vdwg.mxu0
      %2129 = vmatprep.subr.mxu0 0.0
      %v2130 = vand.u32 %v1754, 4294901760
      %2131 = vmatpush1.msra.mxu0 %v2130
      %2132 = vmatprep.subr.mxu0 0.0
      %2133 = vmatpush1.msra.mxu0 0.0
      %2134 = vmatprep.subr.mxu0 0.0
      %2135 = vmatpush1.msra.mxu0 0.0
      %2136 = vmatprep.subr.mxu0 0.0
      %2137 = vmatpush1.msra.mxu0 0.0
      %2138 = vmatprep.subr.mxu0 0.0
      %2139 = vmatpush1.msra.mxu0 0.0
      %2140 = vmatprep.subr.mxu0 0.0
      %2141 = vmatpush1.msra.mxu0 0.0
      %2142 = vmatprep.subr.mxu0 0.0
      %2143 = vmatpush1.msra.mxu0 0.0
      %2144 = vmatprep.subr.mxu0 0.0
      %2145 = vmatpush1.msra.mxu0 0.0
      %2146 = vmatprep.subr.mxu0 0.0
      %2147 = vmatpush1.msra.mxu0 0.0
      %2148 = vmatprep.subr.mxu0 0.0
      %2149 = vmatpush1.msra.mxu0 0.0
      %2150 = vmatprep.subr.mxu0 0.0
      %2151 = vmatpush1.msra.mxu0 0.0
      %2152 = vmatprep.subr.mxu0 0.0
      %2153 = vmatpush1.msra.mxu0 0.0
      %2154 = vmatprep.subr.mxu0 0.0
      %2155 = vmatpush1.msra.mxu0 0.0
      %2156 = vmatprep.subr.mxu0 0.0
      %2157 = vmatpush1.msra.mxu0 0.0
      %2158 = vmatprep.subr.mxu0 0.0
      %2159 = vmatpush1.msra.mxu0 0.0
      %2160 = vmatprep.subr.mxu0 0.0
      %2161 = vmatpush1.msra.mxu0 0.0
      %2162 = vmatprep.subr.mxu0 0.0
      %2163 = vmatpush1.msra.mxu0 0.0
      %2164 = vmatprep.subr.mxu0 0.0
      %2165 = vmatpush1.msra.mxu0 0.0
      %2166 = vmatprep.subr.mxu0 0.0
      %2167 = vmatpush1.msra.mxu0 0.0
      %2168 = vmatprep.subr.mxu0 0.0
      %2169 = vmatpush1.msra.mxu0 0.0
      %2170 = vmatprep.subr.mxu0 0.0
      %2171 = vmatpush1.msra.mxu0 0.0
      %2172 = vmatprep.subr.mxu0 0.0
      %2173 = vmatpush1.msra.mxu0 0.0
      %2174 = vmatprep.subr.mxu0 0.0
      %2175 = vmatpush1.msra.mxu0 0.0
      %2176 = vmatprep.subr.mxu0 0.0
      %2177 = vmatpush1.msra.mxu0 0.0
      %2178 = vmatprep.subr.mxu0 0.0
      %2179 = vmatpush1.msra.mxu0 0.0
      %2180 = vmatprep.subr.mxu0 0.0
      %2181 = vmatpush1.msra.mxu0 0.0
      %2182 = vmatprep.subr.mxu0 0.0
      %2183 = vmatpush1.msra.mxu0 0.0
      %2184 = vmatprep.subr.mxu0 0.0
      %2185 = vmatpush1.msra.mxu0 0.0
      %2186 = vmatprep.subr.mxu0 0.0
      %2187 = vmatpush1.msra.mxu0 0.0
      %2188 = vmatprep.subr.mxu0 0.0
      %2189 = vmatpush1.msra.mxu0 0.0
      %2190 = vmatprep.subr.mxu0 0.0
      %2191 = vmatpush1.msra.mxu0 0.0
      %2192 = vmatprep.subr.mxu0 0.0
      %2193 = vmatpush1.msra.mxu0 0.0
      %2194 = vmatprep.mubr.f32.mxu0 0.0
      %v2195 = vand.u32 %v1280, 4294901760
      %2196 = vmatmul.mubr.f32.gmra.mrb[0].mxu0 %v2195
      %v2197 = vpop.f32.mrb[0].mxu0
      %v2198 = vadd.f32 %v2126, %v2197
      %v2199 = vpop.f32.mrb[0].mxu0
      %2200 = vdwg.mxu0
      %v2201 = vmul.f32 %v2198, 0.0625
      %v2202 = vadd.f32 %v2201, 1e-05
      %v2203 = vrsqrt.pop %v2202
      %2205 = vset.pattern.permute.xlu0 0
      %2206 = vperm.xlu0 %2205, %v2203
      %v2207 = vpop.permute.xlu0 %2206
      %2209 = vset.pattern.permute.xlu0 1
      %2210 = vperm.xlu0 %2209, %v2203
      %v2211 = vpop.permute.xlu0 %2210
      %v2213 = vsel %vm1731, %v2207, %v2211
      %v2214 = vmul.f32 %v1742, %v2213
      %2215 = vset.pattern.permute.xlu0 5
      %2216 = vperm.xlu0 %2215, %v307
      %v2217 = vpop.permute.xlu0 %2216
      %v2219 = vmul.f32 %v2217, %v2214
      %2220 = vset.pattern.permute.xlu0 6
      %2221 = vperm.xlu0 %2220, %v307
      %v2222 = vpop.permute.xlu0 %2221
      %v2224 = vadd.f32 %v2219, %v2222
      %v2225 = vxor.u32 %v2224, 2147483648
      %v2226 = vmul.f32 %v2225, 1.442695
      %v2227 = vpow.pop %v2226
      %v2228 = vadd.f32 %v2227, 1.0
      %v2229 = vrcp.pop %v2228
      %v2230 = vmul.f32 1.0, %v2229
      %v2231 = vld [vmem:[%s3] sm:$0xff]
      %v2232 = vld [vmem:[%s3 + $0x8] sm:$0xff]
      %v2233 = vld [vmem:[%s3 + $0x10] sm:$0xff]
      %v2234 = vld [vmem:[%s3 + $0x18] sm:$0xff]
      %v2236 = vsel %vm1265, %v2230, 0
      %v2238 = vand.u32 %v2232, 4294901760
      %2239 = vmatprep.subr.mxu0 %v2238
      %v2240 = vand.u32 %v2231, 4294901760
      %2241 = vmatpush1.msra.mxu0 %v2240
      %v2242 = vand.u32 %v2234, 4294901760
      %2243 = vmatprep.subr.mxu0 %v2242
      %v2244 = vand.u32 %v2233, 4294901760
      %2245 = vmatpush1.msra.mxu0 %v2244
      %2246 = vmatprep.subr.mxu0 0.0
      %2247 = vmatpush1.msra.mxu0 0.0
      %2248 = vmatprep.subr.mxu0 0.0
      %2249 = vmatpush1.msra.mxu0 0.0
      %2250 = vmatprep.subr.mxu0 0.0
      %2251 = vmatpush1.msra.mxu0 0.0
      %2252 = vmatprep.subr.mxu0 0.0
      %2253 = vmatpush1.msra.mxu0 0.0
      %2254 = vmatprep.subr.mxu0 0.0
      %2255 = vmatpush1.msra.mxu0 0.0
      %2256 = vmatprep.subr.mxu0 0.0
      %2257 = vmatpush1.msra.mxu0 0.0
      %2258 = vmatprep.subr.mxu0 0.0
      %2259 = vmatpush1.msra.mxu0 0.0
      %2260 = vmatprep.subr.mxu0 0.0
      %2261 = vmatpush1.msra.mxu0 0.0
      %2262 = vmatprep.subr.mxu0 0.0
      %2263 = vmatpush1.msra.mxu0 0.0
      %2264 = vmatprep.subr.mxu0 0.0
      %2265 = vmatpush1.msra.mxu0 0.0
      %2266 = vmatprep.subr.mxu0 0.0
      %2267 = vmatpush1.msra.mxu0 0.0
      %2268 = vmatprep.subr.mxu0 0.0
      %2269 = vmatpush1.msra.mxu0 0.0
      %2270 = vmatprep.subr.mxu0 0.0
      %2271 = vmatpush1.msra.mxu0 0.0
      %2272 = vmatprep.subr.mxu0 0.0
      %2273 = vmatpush1.msra.mxu0 0.0
      %2274 = vmatprep.subr.mxu0 0.0
      %2275 = vmatpush1.msra.mxu0 0.0
      %2276 = vmatprep.subr.mxu0 0.0
      %2277 = vmatpush1.msra.mxu0 0.0
      %2278 = vmatprep.subr.mxu0 0.0
      %2279 = vmatpush1.msra.mxu0 0.0
      %2280 = vmatprep.subr.mxu0 0.0
      %2281 = vmatpush1.msra.mxu0 0.0
      %2282 = vmatprep.subr.mxu0 0.0
      %2283 = vmatpush1.msra.mxu0 0.0
      %2284 = vmatprep.subr.mxu0 0.0
      %2285 = vmatpush1.msra.mxu0 0.0
      %2286 = vmatprep.subr.mxu0 0.0
      %2287 = vmatpush1.msra.mxu0 0.0
      %2288 = vmatprep.subr.mxu0 0.0
      %2289 = vmatpush1.msra.mxu0 0.0
      %2290 = vmatprep.subr.mxu0 0.0
      %2291 = vmatpush1.msra.mxu0 0.0
      %2292 = vmatprep.subr.mxu0 0.0
      %2293 = vmatpush1.msra.mxu0 0.0
      %2294 = vmatprep.subr.mxu0 0.0
      %2295 = vmatpush1.msra.mxu0 0.0
      %2296 = vmatprep.subr.mxu0 0.0
      %2297 = vmatpush1.msra.mxu0 0.0
      %2298 = vmatprep.subr.mxu0 0.0
      %2299 = vmatpush1.msra.mxu0 0.0
      %2300 = vmatprep.subr.mxu0 0.0
      %2301 = vmatpush1.msra.mxu0 0.0
      %2302 = vmatprep.subr.mxu0 0.0
      %2303 = vmatpush1.msra.mxu0 0.0
      %2304 = vmatprep.subr.mxu0 0.0
      %2305 = vmatpush1.msra.mxu0 0.0
      %2306 = vmatprep.mubr.f32.mxu0 0.0
      %v2307 = vand.u32 %v2236, 4294901760
      %v2308 = vsub.f32 %v2236, %v2307
      %v2309 = vand.u32 %v2308, 4294901760
      %v2310 = vsub.f32 %v2308, %v2309
      %v2311 = vand.u32 %v2310, 4294901760
      %2312 = vmatmul.mubr.f32.gmra.mrb[0].mxu0 %v2311
      %v2313 = vpop.f32.mrb[0].mxu0
      %v2314 = vadd.f32 0.0, %v2313
      %v2315 = vpop.f32.mrb[0].mxu0
      %v2316 = vadd.f32 0.0, %v2315
      %2317 = vdwg.mxu0
      %v2318 = vand.u32 %v2232, 4294901760
      %v2319 = vsub.f32 %v2232, %v2318
      %v2320 = vand.u32 %v2319, 4294901760
      %v2321 = vsub.f32 %v2319, %v2320
      %v2322 = vand.u32 %v2321, 4294901760
      %2323 = vmatprep.subr.mxu0 %v2322
      %v2324 = vand.u32 %v2231, 4294901760
      %v2325 = vsub.f32 %v2231, %v2324
      %v2326 = vand.u32 %v2325, 4294901760
      %v2327 = vsub.f32 %v2325, %v2326
      %v2328 = vand.u32 %v2327, 4294901760
      %2329 = vmatpush1.msra.mxu0 %v2328
      %v2330 = vand.u32 %v2234, 4294901760
      %v2331 = vsub.f32 %v2234, %v2330
      %v2332 = vand.u32 %v2331, 4294901760
      %v2333 = vsub.f32 %v2331, %v2332
      %v2334 = vand.u32 %v2333, 4294901760
      %2335 = vmatprep.subr.mxu0 %v2334
      %v2336 = vand.u32 %v2233, 4294901760
      %v2337 = vsub.f32 %v2233, %v2336
      %v2338 = vand.u32 %v2337, 4294901760
      %v2339 = vsub.f32 %v2337, %v2338
      %v2340 = vand.u32 %v2339, 4294901760
      %2341 = vmatpush1.msra.mxu0 %v2340
      %2342 = vmatprep.subr.mxu0 0.0
      %2343 = vmatpush1.msra.mxu0 0.0
      %2344 = vmatprep.subr.mxu0 0.0
      %2345 = vmatpush1.msra.mxu0 0.0
      %2346 = vmatprep.subr.mxu0 0.0
      %2347 = vmatpush1.msra.mxu0 0.0
      %2348 = vmatprep.subr.mxu0 0.0
      %2349 = vmatpush1.msra.mxu0 0.0
      %2350 = vmatprep.subr.mxu0 0.0
      %2351 = vmatpush1.msra.mxu0 0.0
      %2352 = vmatprep.subr.mxu0 0.0
      %2353 = vmatpush1.msra.mxu0 0.0
      %2354 = vmatprep.subr.mxu0 0.0
      %2355 = vmatpush1.msra.mxu0 0.0
      %2356 = vmatprep.subr.mxu0 0.0
      %2357 = vmatpush1.msra.mxu0 0.0
      %2358 = vmatprep.subr.mxu0 0.0
      %2359 = vmatpush1.msra.mxu0 0.0
      %2360 = vmatprep.subr.mxu0 0.0
      %2361 = vmatpush1.msra.mxu0 0.0
      %2362 = vmatprep.subr.mxu0 0.0
      %2363 = vmatpush1.msra.mxu0 0.0
      %2364 = vmatprep.subr.mxu0 0.0
      %2365 = vmatpush1.msra.mxu0 0.0
      %2366 = vmatprep.subr.mxu0 0.0
      %2367 = vmatpush1.msra.mxu0 0.0
      %2368 = vmatprep.subr.mxu0 0.0
      %2369 = vmatpush1.msra.mxu0 0.0
      %2370 = vmatprep.subr.mxu0 0.0
      %2371 = vmatpush1.msra.mxu0 0.0
      %2372 = vmatprep.subr.mxu0 0.0
      %2373 = vmatpush1.msra.mxu0 0.0
      %2374 = vmatprep.subr.mxu0 0.0
      %2375 = vmatpush1.msra.mxu0 0.0
      %2376 = vmatprep.subr.mxu0 0.0
      %2377 = vmatpush1.msra.mxu0 0.0
      %2378 = vmatprep.subr.mxu0 0.0
      %2379 = vmatpush1.msra.mxu0 0.0
      %2380 = vmatprep.subr.mxu0 0.0
      %2381 = vmatpush1.msra.mxu0 0.0
      %2382 = vmatprep.subr.mxu0 0.0
      %2383 = vmatpush1.msra.mxu0 0.0
      %2384 = vmatprep.subr.mxu0 0.0
      %2385 = vmatpush1.msra.mxu0 0.0
      %2386 = vmatprep.subr.mxu0 0.0
      %2387 = vmatpush1.msra.mxu0 0.0
      %2388 = vmatprep.subr.mxu0 0.0
      %2389 = vmatpush1.msra.mxu0 0.0
      %2390 = vmatprep.subr.mxu0 0.0
      %2391 = vmatpush1.msra.mxu0 0.0
      %2392 = vmatprep.subr.mxu0 0.0
      %2393 = vmatpush1.msra.mxu0 0.0
      %2394 = vmatprep.subr.mxu0 0.0
      %2395 = vmatpush1.msra.mxu0 0.0
      %2396 = vmatprep.subr.mxu0 0.0
      %2397 = vmatpush1.msra.mxu0 0.0
      %2398 = vmatprep.subr.mxu0 0.0
      %2399 = vmatpush1.msra.mxu0 0.0
      %2400 = vmatprep.subr.mxu0 0.0
      %2401 = vmatpush1.msra.mxu0 0.0
      %2402 = vmatprep.mubr.f32.mxu0 0.0
      %v2403 = vand.u32 %v2236, 4294901760
      %2404 = vmatmul.mubr.f32.gmra.mrb[0].mxu0 %v2403
      %v2405 = vpop.f32.mrb[0].mxu0
      %v2406 = vadd.f32 %v2314, %v2405
      %v2407 = vpop.f32.mrb[0].mxu0
      %v2408 = vadd.f32 %v2316, %v2407
      %2409 = vdwg.mxu0
      %v2410 = vand.u32 %v2232, 4294901760
      %v2411 = vsub.f32 %v2232, %v2410
      %2412 = vmatprep.subr.mxu0 %v2411
      %v2413 = vand.u32 %v2231, 4294901760
      %v2414 = vsub.f32 %v2231, %v2413
      %2415 = vmatpush1.msra.mxu0 %v2414
      %v2416 = vand.u32 %v2234, 4294901760
      %v2417 = vsub.f32 %v2234, %v2416
      %2418 = vmatprep.subr.mxu0 %v2417
      %v2419 = vand.u32 %v2233, 4294901760
      %v2420 = vsub.f32 %v2233, %v2419
      %2421 = vmatpush1.msra.mxu0 %v2420
      %2422 = vmatprep.subr.mxu0 0.0
      %2423 = vmatpush1.msra.mxu0 0.0
      %2424 = vmatprep.subr.mxu0 0.0
      %2425 = vmatpush1.msra.mxu0 0.0
      %2426 = vmatprep.subr.mxu0 0.0
      %2427 = vmatpush1.msra.mxu0 0.0
      %2428 = vmatprep.subr.mxu0 0.0
      %2429 = vmatpush1.msra.mxu0 0.0
      %2430 = vmatprep.subr.mxu0 0.0
      %2431 = vmatpush1.msra.mxu0 0.0
      %2432 = vmatprep.subr.mxu0 0.0
      %2433 = vmatpush1.msra.mxu0 0.0
      %2434 = vmatprep.subr.mxu0 0.0
      %2435 = vmatpush1.msra.mxu0 0.0
      %2436 = vmatprep.subr.mxu0 0.0
      %2437 = vmatpush1.msra.mxu0 0.0
      %2438 = vmatprep.subr.mxu0 0.0
      %2439 = vmatpush1.msra.mxu0 0.0
      %2440 = vmatprep.subr.mxu0 0.0
      %2441 = vmatpush1.msra.mxu0 0.0
      %2442 = vmatprep.subr.mxu0 0.0
      %2443 = vmatpush1.msra.mxu0 0.0
      %2444 = vmatprep.subr.mxu0 0.0
      %2445 = vmatpush1.msra.mxu0 0.0
      %2446 = vmatprep.subr.mxu0 0.0
      %2447 = vmatpush1.msra.mxu0 0.0
      %2448 = vmatprep.subr.mxu0 0.0
      %2449 = vmatpush1.msra.mxu0 0.0
      %2450 = vmatprep.subr.mxu0 0.0
      %2451 = vmatpush1.msra.mxu0 0.0
      %2452 = vmatprep.subr.mxu0 0.0
      %2453 = vmatpush1.msra.mxu0 0.0
      %2454 = vmatprep.subr.mxu0 0.0
      %2455 = vmatpush1.msra.mxu0 0.0
      %2456 = vmatprep.subr.mxu0 0.0
      %2457 = vmatpush1.msra.mxu0 0.0
      %2458 = vmatprep.subr.mxu0 0.0
      %2459 = vmatpush1.msra.mxu0 0.0
      %2460 = vmatprep.subr.mxu0 0.0
      %2461 = vmatpush1.msra.mxu0 0.0
      %2462 = vmatprep.subr.mxu0 0.0
      %2463 = vmatpush1.msra.mxu0 0.0
      %2464 = vmatprep.subr.mxu0 0.0
      %2465 = vmatpush1.msra.mxu0 0.0
      %2466 = vmatprep.subr.mxu0 0.0
      %2467 = vmatpush1.msra.mxu0 0.0
      %2468 = vmatprep.subr.mxu0 0.0
      %2469 = vmatpush1.msra.mxu0 0.0
      %2470 = vmatprep.subr.mxu0 0.0
      %2471 = vmatpush1.msra.mxu0 0.0
      %2472 = vmatprep.subr.mxu0 0.0
      %2473 = vmatpush1.msra.mxu0 0.0
      %2474 = vmatprep.subr.mxu0 0.0
      %2475 = vmatpush1.msra.mxu0 0.0
      %2476 = vmatprep.subr.mxu0 0.0
      %2477 = vmatpush1.msra.mxu0 0.0
      %2478 = vmatprep.subr.mxu0 0.0
      %2479 = vmatpush1.msra.mxu0 0.0
      %2480 = vmatprep.subr.mxu0 0.0
      %2481 = vmatpush1.msra.mxu0 0.0
      %2482 = vmatprep.mubr.f32.mxu0 0.0
      %v2483 = vand.u32 %v2236, 4294901760
      %v2484 = vsub.f32 %v2236, %v2483
      %2485 = vmatmul.mubr.f32.gmra.mrb[0].mxu0 %v2484
      %v2486 = vpop.f32.mrb[0].mxu0
      %v2487 = vadd.f32 %v2406, %v2486
      %v2488 = vpop.f32.mrb[0].mxu0
      %v2489 = vadd.f32 %v2408, %v2488
      %2490 = vdwg.mxu0
      %v2491 = vand.u32 %v2232, 4294901760
      %2492 = vmatprep.subr.mxu0 %v2491
      %v2493 = vand.u32 %v2231, 4294901760
      %2494 = vmatpush1.msra.mxu0 %v2493
      %v2495 = vand.u32 %v2234, 4294901760
      %2496 = vmatprep.subr.mxu0 %v2495
      %v2497 = vand.u32 %v2233, 4294901760
      %2498 = vmatpush1.msra.mxu0 %v2497
      %2499 = vmatprep.subr.mxu0 0.0
      %2500 = vmatpush1.msra.mxu0 0.0
      %2501 = vmatprep.subr.mxu0 0.0
      %2502 = vmatpush1.msra.mxu0 0.0
      %2503 = vmatprep.subr.mxu0 0.0
      %2504 = vmatpush1.msra.mxu0 0.0
      %2505 = vmatprep.subr.mxu0 0.0
      %2506 = vmatpush1.msra.mxu0 0.0
      %2507 = vmatprep.subr.mxu0 0.0
      %2508 = vmatpush1.msra.mxu0 0.0
      %2509 = vmatprep.subr.mxu0 0.0
      %2510 = vmatpush1.msra.mxu0 0.0
      %2511 = vmatprep.subr.mxu0 0.0
      %2512 = vmatpush1.msra.mxu0 0.0
      %2513 = vmatprep.subr.mxu0 0.0
      %2514 = vmatpush1.msra.mxu0 0.0
      %2515 = vmatprep.subr.mxu0 0.0
      %2516 = vmatpush1.msra.mxu0 0.0
      %2517 = vmatprep.subr.mxu0 0.0
      %2518 = vmatpush1.msra.mxu0 0.0
      %2519 = vmatprep.subr.mxu0 0.0
      %2520 = vmatpush1.msra.mxu0 0.0
      %2521 = vmatprep.subr.mxu0 0.0
      %2522 = vmatpush1.msra.mxu0 0.0
      %2523 = vmatprep.subr.mxu0 0.0
      %2524 = vmatpush1.msra.mxu0 0.0
      %2525 = vmatprep.subr.mxu0 0.0
      %2526 = vmatpush1.msra.mxu0 0.0
      %2527 = vmatprep.subr.mxu0 0.0
      %2528 = vmatpush1.msra.mxu0 0.0
      %2529 = vmatprep.subr.mxu0 0.0
      %2530 = vmatpush1.msra.mxu0 0.0
      %2531 = vmatprep.subr.mxu0 0.0
      %2532 = vmatpush1.msra.mxu0 0.0
      %2533 = vmatprep.subr.mxu0 0.0
      %2534 = vmatpush1.msra.mxu0 0.0
      %2535 = vmatprep.subr.mxu0 0.0
      %2536 = vmatpush1.msra.mxu0 0.0
      %2537 = vmatprep.subr.mxu0 0.0
      %2538 = vmatpush1.msra.mxu0 0.0
      %2539 = vmatprep.subr.mxu0 0.0
      %2540 = vmatpush1.msra.mxu0 0.0
      %2541 = vmatprep.subr.mxu0 0.0
      %2542 = vmatpush1.msra.mxu0 0.0
      %2543 = vmatprep.subr.mxu0 0.0
      %2544 = vmatpush1.msra.mxu0 0.0
      %2545 = vmatprep.subr.mxu0 0.0
      %2546 = vmatpush1.msra.mxu0 0.0
      %2547 = vmatprep.subr.mxu0 0.0
      %2548 = vmatpush1.msra.mxu0 0.0
      %2549 = vmatprep.subr.mxu0 0.0
      %2550 = vmatpush1.msra.mxu0 0.0
      %2551 = vmatprep.subr.mxu0 0.0
      %2552 = vmatpush1.msra.mxu0 0.0
      %2553 = vmatprep.subr.mxu0 0.0
      %2554 = vmatpush1.msra.mxu0 0.0
      %2555 = vmatprep.subr.mxu0 0.0
      %2556 = vmatpush1.msra.mxu0 0.0
      %2557 = vmatprep.subr.mxu0 0.0
      %2558 = vmatpush1.msra.mxu0 0.0
      %2559 = vmatprep.mubr.f32.mxu0 0.0
      %v2560 = vand.u32 %v2236, 4294901760
      %v2561 = vsub.f32 %v2236, %v2560
      %v2562 = vand.u32 %v2561, 4294901760
      %2563 = vmatmul.mubr.f32.gmra.mrb[0].mxu0 %v2562
      %v2564 = vpop.f32.mrb[0].mxu0
      %v2565 = vadd.f32 %v2487, %v2564
      %v2566 = vpop.f32.mrb[0].mxu0
      %v2567 = vadd.f32 %v2489, %v2566
      %2568 = vdwg.mxu0
      %v2569 = vand.u32 %v2232, 4294901760
      %v2570 = vsub.f32 %v2232, %v2569
      %v2571 = vand.u32 %v2570, 4294901760
      %2572 = vmatprep.subr.mxu0 %v2571
      %v2573 = vand.u32 %v2231, 4294901760
      %v2574 = vsub.f32 %v2231, %v2573
      %v2575 = vand.u32 %v2574, 4294901760
      %2576 = vmatpush1.msra.mxu0 %v2575
      %v2577 = vand.u32 %v2234, 4294901760
      %v2578 = vsub.f32 %v2234, %v2577
      %v2579 = vand.u32 %v2578, 4294901760
      %2580 = vmatprep.subr.mxu0 %v2579
      %v2581 = vand.u32 %v2233, 4294901760
      %v2582 = vsub.f32 %v2233, %v2581
      %v2583 = vand.u32 %v2582, 4294901760
      %2584 = vmatpush1.msra.mxu0 %v2583
      %2585 = vmatprep.subr.mxu0 0.0
      %2586 = vmatpush1.msra.mxu0 0.0
      %2587 = vmatprep.subr.mxu0 0.0
      %2588 = vmatpush1.msra.mxu0 0.0
      %2589 = vmatprep.subr.mxu0 0.0
      %2590 = vmatpush1.msra.mxu0 0.0
      %2591 = vmatprep.subr.mxu0 0.0
      %2592 = vmatpush1.msra.mxu0 0.0
      %2593 = vmatprep.subr.mxu0 0.0
      %2594 = vmatpush1.msra.mxu0 0.0
      %2595 = vmatprep.subr.mxu0 0.0
      %2596 = vmatpush1.msra.mxu0 0.0
      %2597 = vmatprep.subr.mxu0 0.0
      %2598 = vmatpush1.msra.mxu0 0.0
      %2599 = vmatprep.subr.mxu0 0.0
      %2600 = vmatpush1.msra.mxu0 0.0
      %2601 = vmatprep.subr.mxu0 0.0
      %2602 = vmatpush1.msra.mxu0 0.0
      %2603 = vmatprep.subr.mxu0 0.0
      %2604 = vmatpush1.msra.mxu0 0.0
      %2605 = vmatprep.subr.mxu0 0.0
      %2606 = vmatpush1.msra.mxu0 0.0
      %2607 = vmatprep.subr.mxu0 0.0
      %2608 = vmatpush1.msra.mxu0 0.0
      %2609 = vmatprep.subr.mxu0 0.0
      %2610 = vmatpush1.msra.mxu0 0.0
      %2611 = vmatprep.subr.mxu0 0.0
      %2612 = vmatpush1.msra.mxu0 0.0
      %2613 = vmatprep.subr.mxu0 0.0
      %2614 = vmatpush1.msra.mxu0 0.0
      %2615 = vmatprep.subr.mxu0 0.0
      %2616 = vmatpush1.msra.mxu0 0.0
      %2617 = vmatprep.subr.mxu0 0.0
      %2618 = vmatpush1.msra.mxu0 0.0
      %2619 = vmatprep.subr.mxu0 0.0
      %2620 = vmatpush1.msra.mxu0 0.0
      %2621 = vmatprep.subr.mxu0 0.0
      %2622 = vmatpush1.msra.mxu0 0.0
      %2623 = vmatprep.subr.mxu0 0.0
      %2624 = vmatpush1.msra.mxu0 0.0
      %2625 = vmatprep.subr.mxu0 0.0
      %2626 = vmatpush1.msra.mxu0 0.0
      %2627 = vmatprep.subr.mxu0 0.0
      %2628 = vmatpush1.msra.mxu0 0.0
      %2629 = vmatprep.subr.mxu0 0.0
      %2630 = vmatpush1.msra.mxu0 0.0
      %2631 = vmatprep.subr.mxu0 0.0
      %2632 = vmatpush1.msra.mxu0 0.0
      %2633 = vmatprep.subr.mxu0 0.0
      %2634 = vmatpush1.msra.mxu0 0.0
      %2635 = vmatprep.subr.mxu0 0.0
      %2636 = vmatpush1.msra.mxu0 0.0
      %2637 = vmatprep.subr.mxu0 0.0
      %2638 = vmatpush1.msra.mxu0 0.0
      %2639 = vmatprep.subr.mxu0 0.0
      %2640 = vmatpush1.msra.mxu0 0.0
      %2641 = vmatprep.subr.mxu0 0.0
      %2642 = vmatpush1.msra.mxu0 0.0
      %2643 = vmatprep.subr.mxu0 0.0
      %2644 = vmatpush1.msra.mxu0 0.0
      %2645 = vmatprep.mubr.f32.mxu0 0.0
      %v2646 = vand.u32 %v2236, 4294901760
      %2647 = vmatmul.mubr.f32.gmra.mrb[0].mxu0 %v2646
      %v2648 = vpop.f32.mrb[0].mxu0
      %v2649 = vadd.f32 %v2565, %v2648
      %v2650 = vpop.f32.mrb[0].mxu0
      %v2651 = vadd.f32 %v2567, %v2650
      %2652 = vdwg.mxu0
      %v2653 = vand.u32 %v2232, 4294901760
      %2654 = vmatprep.subr.mxu0 %v2653
      %v2655 = vand.u32 %v2231, 4294901760
      %2656 = vmatpush1.msra.mxu0 %v2655
      %v2657 = vand.u32 %v2234, 4294901760
      %2658 = vmatprep.subr.mxu0 %v2657
      %v2659 = vand.u32 %v2233, 4294901760
      %2660 = vmatpush1.msra.mxu0 %v2659
      %2661 = vmatprep.subr.mxu0 0.0
      %2662 = vmatpush1.msra.mxu0 0.0
      %2663 = vmatprep.subr.mxu0 0.0
      %2664 = vmatpush1.msra.mxu0 0.0
      %2665 = vmatprep.subr.mxu0 0.0
      %2666 = vmatpush1.msra.mxu0 0.0
      %2667 = vmatprep.subr.mxu0 0.0
      %2668 = vmatpush1.msra.mxu0 0.0
      %2669 = vmatprep.subr.mxu0 0.0
      %2670 = vmatpush1.msra.mxu0 0.0
      %2671 = vmatprep.subr.mxu0 0.0
      %2672 = vmatpush1.msra.mxu0 0.0
      %2673 = vmatprep.subr.mxu0 0.0
      %2674 = vmatpush1.msra.mxu0 0.0
      %2675 = vmatprep.subr.mxu0 0.0
      %2676 = vmatpush1.msra.mxu0 0.0
      %2677 = vmatprep.subr.mxu0 0.0
      %2678 = vmatpush1.msra.mxu0 0.0
      %2679 = vmatprep.subr.mxu0 0.0
      %2680 = vmatpush1.msra.mxu0 0.0
      %2681 = vmatprep.subr.mxu0 0.0
      %2682 = vmatpush1.msra.mxu0 0.0
      %2683 = vmatprep.subr.mxu0 0.0
      %2684 = vmatpush1.msra.mxu0 0.0
      %2685 = vmatprep.subr.mxu0 0.0
      %2686 = vmatpush1.msra.mxu0 0.0
      %2687 = vmatprep.subr.mxu0 0.0
      %2688 = vmatpush1.msra.mxu0 0.0
      %2689 = vmatprep.subr.mxu0 0.0
      %2690 = vmatpush1.msra.mxu0 0.0
      %2691 = vmatprep.subr.mxu0 0.0
      %2692 = vmatpush1.msra.mxu0 0.0
      %2693 = vmatprep.subr.mxu0 0.0
      %2694 = vmatpush1.msra.mxu0 0.0
      %2695 = vmatprep.subr.mxu0 0.0
      %2696 = vmatpush1.msra.mxu0 0.0
      %2697 = vmatprep.subr.mxu0 0.0
      %2698 = vmatpush1.msra.mxu0 0.0
      %2699 = vmatprep.subr.mxu0 0.0
      %2700 = vmatpush1.msra.mxu0 0.0
      %2701 = vmatprep.subr.mxu0 0.0
      %2702 = vmatpush1.msra.mxu0 0.0
      %2703 = vmatprep.subr.mxu0 0.0
      %2704 = vmatpush1.msra.mxu0 0.0
      %2705 = vmatprep.subr.mxu0 0.0
      %2706 = vmatpush1.msra.mxu0 0.0
      %2707 = vmatprep.subr.mxu0 0.0
      %2708 = vmatpush1.msra.mxu0 0.0
      %2709 = vmatprep.subr.mxu0 0.0
      %2710 = vmatpush1.msra.mxu0 0.0
      %2711 = vmatprep.subr.mxu0 0.0
      %2712 = vmatpush1.msra.mxu0 0.0
      %2713 = vmatprep.subr.mxu0 0.0
      %2714 = vmatpush1.msra.mxu0 0.0
      %2715 = vmatprep.subr.mxu0 0.0
      %2716 = vmatpush1.msra.mxu0 0.0
      %2717 = vmatprep.subr.mxu0 0.0
      %2718 = vmatpush1.msra.mxu0 0.0
      %2719 = vmatprep.subr.mxu0 0.0
      %2720 = vmatpush1.msra.mxu0 0.0
      %2721 = vmatprep.mubr.f32.mxu0 0.0
      %v2722 = vand.u32 %v2236, 4294901760
      %2723 = vmatmul.mubr.f32.gmra.mrb[0].mxu0 %v2722
      %v2724 = vpop.f32.mrb[0].mxu0
      %v2725 = vadd.f32 %v2649, %v2724
      %v2726 = vpop.f32.mrb[0].mxu0
      %v2727 = vadd.f32 %v2651, %v2726
      %2728 = vdwg.mxu0
      %v2729 = vld [vmem:[%s4] sm:$0xff]
      %v2730 = vld [vmem:[%s4 + $0x8] sm:$0xff]
      %v2731 = vld [vmem:[%s4 + $0x10] sm:$0xff]
      %v2732 = vld [vmem:[%s4 + $0x18] sm:$0xff]
      %2733 = vrot.lane.b32.xlu0 %v2230, 108
      %v2734 = vpop.permute.xlu0 %2733
      %v2735 = vsel %vm1265, %v2734, 0
      %v2737 = vand.u32 %v2730, 4294901760
      %2738 = vmatprep.subr.mxu0 %v2737
      %v2739 = vand.u32 %v2729, 4294901760
      %2740 = vmatpush1.msra.mxu0 %v2739
      %v2741 = vand.u32 %v2732, 4294901760
      %2742 = vmatprep.subr.mxu0 %v2741
      %v2743 = vand.u32 %v2731, 4294901760
      %2744 = vmatpush1.msra.mxu0 %v2743
      %2745 = vmatprep.subr.mxu0 0.0
      %2746 = vmatpush1.msra.mxu0 0.0
      %2747 = vmatprep.subr.mxu0 0.0
      %2748 = vmatpush1.msra.mxu0 0.0
      %2749 = vmatprep.subr.mxu0 0.0
      %2750 = vmatpush1.msra.mxu0 0.0
      %2751 = vmatprep.subr.mxu0 0.0
      %2752 = vmatpush1.msra.mxu0 0.0
      %2753 = vmatprep.subr.mxu0 0.0
      %2754 = vmatpush1.msra.mxu0 0.0
      %2755 = vmatprep.subr.mxu0 0.0
      %2756 = vmatpush1.msra.mxu0 0.0
      %2757 = vmatprep.subr.mxu0 0.0
      %2758 = vmatpush1.msra.mxu0 0.0
      %2759 = vmatprep.subr.mxu0 0.0
      %2760 = vmatpush1.msra.mxu0 0.0
      %2761 = vmatprep.subr.mxu0 0.0
      %2762 = vmatpush1.msra.mxu0 0.0
      %2763 = vmatprep.subr.mxu0 0.0
      %2764 = vmatpush1.msra.mxu0 0.0
      %2765 = vmatprep.subr.mxu0 0.0
      %2766 = vmatpush1.msra.mxu0 0.0
      %2767 = vmatprep.subr.mxu0 0.0
      %2768 = vmatpush1.msra.mxu0 0.0
      %2769 = vmatprep.subr.mxu0 0.0
      %2770 = vmatpush1.msra.mxu0 0.0
      %2771 = vmatprep.subr.mxu0 0.0
      %2772 = vmatpush1.msra.mxu0 0.0
      %2773 = vmatprep.subr.mxu0 0.0
      %2774 = vmatpush1.msra.mxu0 0.0
      %2775 = vmatprep.subr.mxu0 0.0
      %2776 = vmatpush1.msra.mxu0 0.0
      %2777 = vmatprep.subr.mxu0 0.0
      %2778 = vmatpush1.msra.mxu0 0.0
      %2779 = vmatprep.subr.mxu0 0.0
      %2780 = vmatpush1.msra.mxu0 0.0
      %2781 = vmatprep.subr.mxu0 0.0
      %2782 = vmatpush1.msra.mxu0 0.0
      %2783 = vmatprep.subr.mxu0 0.0
      %2784 = vmatpush1.msra.mxu0 0.0
      %2785 = vmatprep.subr.mxu0 0.0
      %2786 = vmatpush1.msra.mxu0 0.0
      %2787 = vmatprep.subr.mxu0 0.0
      %2788 = vmatpush1.msra.mxu0 0.0
      %2789 = vmatprep.subr.mxu0 0.0
      %2790 = vmatpush1.msra.mxu0 0.0
      %2791 = vmatprep.subr.mxu0 0.0
      %2792 = vmatpush1.msra.mxu0 0.0
      %2793 = vmatprep.subr.mxu0 0.0
      %2794 = vmatpush1.msra.mxu0 0.0
      %2795 = vmatprep.subr.mxu0 0.0
      %2796 = vmatpush1.msra.mxu0 0.0
      %2797 = vmatprep.subr.mxu0 0.0
      %2798 = vmatpush1.msra.mxu0 0.0
      %2799 = vmatprep.subr.mxu0 0.0
      %2800 = vmatpush1.msra.mxu0 0.0
      %2801 = vmatprep.subr.mxu0 0.0
      %2802 = vmatpush1.msra.mxu0 0.0
      %2803 = vmatprep.subr.mxu0 0.0
      %2804 = vmatpush1.msra.mxu0 0.0
      %2805 = vmatprep.mubr.f32.mxu0 0.0
      %v2806 = vand.u32 %v2735, 4294901760
      %v2807 = vsub.f32 %v2735, %v2806
      %v2808 = vand.u32 %v2807, 4294901760
      %v2809 = vsub.f32 %v2807, %v2808
      %v2810 = vand.u32 %v2809, 4294901760
      %2811 = vmatmul.mubr.f32.gmra.mrb[0].mxu0 %v2810
      %v2812 = vpop.f32.mrb[0].mxu0
      %v2813 = vadd.f32 0.0, %v2812
      %v2814 = vpop.f32.mrb[0].mxu0
      %v2815 = vadd.f32 0.0, %v2814
      %2816 = vdwg.mxu0
      %v2817 = vand.u32 %v2730, 4294901760
      %v2818 = vsub.f32 %v2730, %v2817
      %v2819 = vand.u32 %v2818, 4294901760
      %v2820 = vsub.f32 %v2818, %v2819
      %v2821 = vand.u32 %v2820, 4294901760
      %2822 = vmatprep.subr.mxu0 %v2821
      %v2823 = vand.u32 %v2729, 4294901760
      %v2824 = vsub.f32 %v2729, %v2823
      %v2825 = vand.u32 %v2824, 4294901760
      %v2826 = vsub.f32 %v2824, %v2825
      %v2827 = vand.u32 %v2826, 4294901760
      %2828 = vmatpush1.msra.mxu0 %v2827
      %v2829 = vand.u32 %v2732, 4294901760
      %v2830 = vsub.f32 %v2732, %v2829
      %v2831 = vand.u32 %v2830, 4294901760
      %v2832 = vsub.f32 %v2830, %v2831
      %v2833 = vand.u32 %v2832, 4294901760
      %2834 = vmatprep.subr.mxu0 %v2833
      %v2835 = vand.u32 %v2731, 4294901760
      %v2836 = vsub.f32 %v2731, %v2835
      %v2837 = vand.u32 %v2836, 4294901760
      %v2838 = vsub.f32 %v2836, %v2837
      %v2839 = vand.u32 %v2838, 4294901760
      %2840 = vmatpush1.msra.mxu0 %v2839
      %2841 = vmatprep.subr.mxu0 0.0
      %2842 = vmatpush1.msra.mxu0 0.0
      %2843 = vmatprep.subr.mxu0 0.0
      %2844 = vmatpush1.msra.mxu0 0.0
      %2845 = vmatprep.subr.mxu0 0.0
      %2846 = vmatpush1.msra.mxu0 0.0
      %2847 = vmatprep.subr.mxu0 0.0
      %2848 = vmatpush1.msra.mxu0 0.0
      %2849 = vmatprep.subr.mxu0 0.0
      %2850 = vmatpush1.msra.mxu0 0.0
      %2851 = vmatprep.subr.mxu0 0.0
      %2852 = vmatpush1.msra.mxu0 0.0
      %2853 = vmatprep.subr.mxu0 0.0
      %2854 = vmatpush1.msra.mxu0 0.0
      %2855 = vmatprep.subr.mxu0 0.0
      %2856 = vmatpush1.msra.mxu0 0.0
      %2857 = vmatprep.subr.mxu0 0.0
      %2858 = vmatpush1.msra.mxu0 0.0
      %2859 = vmatprep.subr.mxu0 0.0
      %2860 = vmatpush1.msra.mxu0 0.0
      %2861 = vmatprep.subr.mxu0 0.0
      %2862 = vmatpush1.msra.mxu0 0.0
      %2863 = vmatprep.subr.mxu0 0.0
      %2864 = vmatpush1.msra.mxu0 0.0
      %2865 = vmatprep.subr.mxu0 0.0
      %2866 = vmatpush1.msra.mxu0 0.0
      %2867 = vmatprep.subr.mxu0 0.0
      %2868 = vmatpush1.msra.mxu0 0.0
      %2869 = vmatprep.subr.mxu0 0.0
      %2870 = vmatpush1.msra.mxu0 0.0
      %2871 = vmatprep.subr.mxu0 0.0
      %2872 = vmatpush1.msra.mxu0 0.0
      %2873 = vmatprep.subr.mxu0 0.0
      %2874 = vmatpush1.msra.mxu0 0.0
      %2875 = vmatprep.subr.mxu0 0.0
      %2876 = vmatpush1.msra.mxu0 0.0
      %2877 = vmatprep.subr.mxu0 0.0
      %2878 = vmatpush1.msra.mxu0 0.0
      %2879 = vmatprep.subr.mxu0 0.0
      %2880 = vmatpush1.msra.mxu0 0.0
      %2881 = vmatprep.subr.mxu0 0.0
      %2882 = vmatpush1.msra.mxu0 0.0
      %2883 = vmatprep.subr.mxu0 0.0
      %2884 = vmatpush1.msra.mxu0 0.0
      %2885 = vmatprep.subr.mxu0 0.0
      %2886 = vmatpush1.msra.mxu0 0.0
      %2887 = vmatprep.subr.mxu0 0.0
      %2888 = vmatpush1.msra.mxu0 0.0
      %2889 = vmatprep.subr.mxu0 0.0
      %2890 = vmatpush1.msra.mxu0 0.0
      %2891 = vmatprep.subr.mxu0 0.0
      %2892 = vmatpush1.msra.mxu0 0.0
      %2893 = vmatprep.subr.mxu0 0.0
      %2894 = vmatpush1.msra.mxu0 0.0
      %2895 = vmatprep.subr.mxu0 0.0
      %2896 = vmatpush1.msra.mxu0 0.0
      %2897 = vmatprep.subr.mxu0 0.0
      %2898 = vmatpush1.msra.mxu0 0.0
      %2899 = vmatprep.subr.mxu0 0.0
      %2900 = vmatpush1.msra.mxu0 0.0
      %2901 = vmatprep.mubr.f32.mxu0 0.0
      %v2902 = vand.u32 %v2735, 4294901760
      %2903 = vmatmul.mubr.f32.gmra.mrb[0].mxu0 %v2902
      %v2904 = vpop.f32.mrb[0].mxu0
      %v2905 = vadd.f32 %v2813, %v2904
      %v2906 = vpop.f32.mrb[0].mxu0
      %v2907 = vadd.f32 %v2815, %v2906
      %2908 = vdwg.mxu0
      %v2909 = vand.u32 %v2730, 4294901760
      %v2910 = vsub.f32 %v2730, %v2909
      %2911 = vmatprep.subr.mxu0 %v2910
      %v2912 = vand.u32 %v2729, 4294901760
      %v2913 = vsub.f32 %v2729, %v2912
      %2914 = vmatpush1.msra.mxu0 %v2913
      %v2915 = vand.u32 %v2732, 4294901760
      %v2916 = vsub.f32 %v2732, %v2915
      %2917 = vmatprep.subr.mxu0 %v2916
      %v2918 = vand.u32 %v2731, 4294901760
      %v2919 = vsub.f32 %v2731, %v2918
      %2920 = vmatpush1.msra.mxu0 %v2919
      %2921 = vmatprep.subr.mxu0 0.0
      %2922 = vmatpush1.msra.mxu0 0.0
      %2923 = vmatprep.subr.mxu0 0.0
      %2924 = vmatpush1.msra.mxu0 0.0
      %2925 = vmatprep.subr.mxu0 0.0
      %2926 = vmatpush1.msra.mxu0 0.0
      %2927 = vmatprep.subr.mxu0 0.0
      %2928 = vmatpush1.msra.mxu0 0.0
      %2929 = vmatprep.subr.mxu0 0.0
      %2930 = vmatpush1.msra.mxu0 0.0
      %2931 = vmatprep.subr.mxu0 0.0
      %2932 = vmatpush1.msra.mxu0 0.0
      %2933 = vmatprep.subr.mxu0 0.0
      %2934 = vmatpush1.msra.mxu0 0.0
      %2935 = vmatprep.subr.mxu0 0.0
      %2936 = vmatpush1.msra.mxu0 0.0
      %2937 = vmatprep.subr.mxu0 0.0
      %2938 = vmatpush1.msra.mxu0 0.0
      %2939 = vmatprep.subr.mxu0 0.0
      %2940 = vmatpush1.msra.mxu0 0.0
      %2941 = vmatprep.subr.mxu0 0.0
      %2942 = vmatpush1.msra.mxu0 0.0
      %2943 = vmatprep.subr.mxu0 0.0
      %2944 = vmatpush1.msra.mxu0 0.0
      %2945 = vmatprep.subr.mxu0 0.0
      %2946 = vmatpush1.msra.mxu0 0.0
      %2947 = vmatprep.subr.mxu0 0.0
      %2948 = vmatpush1.msra.mxu0 0.0
      %2949 = vmatprep.subr.mxu0 0.0
      %2950 = vmatpush1.msra.mxu0 0.0
      %2951 = vmatprep.subr.mxu0 0.0
      %2952 = vmatpush1.msra.mxu0 0.0
      %2953 = vmatprep.subr.mxu0 0.0
      %2954 = vmatpush1.msra.mxu0 0.0
      %2955 = vmatprep.subr.mxu0 0.0
      %2956 = vmatpush1.msra.mxu0 0.0
      %2957 = vmatprep.subr.mxu0 0.0
      %2958 = vmatpush1.msra.mxu0 0.0
      %2959 = vmatprep.subr.mxu0 0.0
      %2960 = vmatpush1.msra.mxu0 0.0
      %2961 = vmatprep.subr.mxu0 0.0
      %2962 = vmatpush1.msra.mxu0 0.0
      %2963 = vmatprep.subr.mxu0 0.0
      %2964 = vmatpush1.msra.mxu0 0.0
      %2965 = vmatprep.subr.mxu0 0.0
      %2966 = vmatpush1.msra.mxu0 0.0
      %2967 = vmatprep.subr.mxu0 0.0
      %2968 = vmatpush1.msra.mxu0 0.0
      %2969 = vmatprep.subr.mxu0 0.0
      %2970 = vmatpush1.msra.mxu0 0.0
      %2971 = vmatprep.subr.mxu0 0.0
      %2972 = vmatpush1.msra.mxu0 0.0
      %2973 = vmatprep.subr.mxu0 0.0
      %2974 = vmatpush1.msra.mxu0 0.0
      %2975 = vmatprep.subr.mxu0 0.0
      %2976 = vmatpush1.msra.mxu0 0.0
      %2977 = vmatprep.subr.mxu0 0.0
      %2978 = vmatpush1.msra.mxu0 0.0
      %2979 = vmatprep.subr.mxu0 0.0
      %2980 = vmatpush1.msra.mxu0 0.0
      %2981 = vmatprep.mubr.f32.mxu0 0.0
      %v2982 = vand.u32 %v2735, 4294901760
      %v2983 = vsub.f32 %v2735, %v2982
      %2984 = vmatmul.mubr.f32.gmra.mrb[0].mxu0 %v2983
      %v2985 = vpop.f32.mrb[0].mxu0
      %v2986 = vadd.f32 %v2905, %v2985
      %v2987 = vpop.f32.mrb[0].mxu0
      %v2988 = vadd.f32 %v2907, %v2987
      %2989 = vdwg.mxu0
      %v2990 = vand.u32 %v2730, 4294901760
      %2991 = vmatprep.subr.mxu0 %v2990
      %v2992 = vand.u32 %v2729, 4294901760
      %2993 = vmatpush1.msra.mxu0 %v2992
      %v2994 = vand.u32 %v2732, 4294901760
      %2995 = vmatprep.subr.mxu0 %v2994
      %v2996 = vand.u32 %v2731, 4294901760
      %2997 = vmatpush1.msra.mxu0 %v2996
      %2998 = vmatprep.subr.mxu0 0.0
      %2999 = vmatpush1.msra.mxu0 0.0
      %3000 = vmatprep.subr.mxu0 0.0
      %3001 = vmatpush1.msra.mxu0 0.0
      %3002 = vmatprep.subr.mxu0 0.0
      %3003 = vmatpush1.msra.mxu0 0.0
      %3004 = vmatprep.subr.mxu0 0.0
      %3005 = vmatpush1.msra.mxu0 0.0
      %3006 = vmatprep.subr.mxu0 0.0
      %3007 = vmatpush1.msra.mxu0 0.0
      %3008 = vmatprep.subr.mxu0 0.0
      %3009 = vmatpush1.msra.mxu0 0.0
      %3010 = vmatprep.subr.mxu0 0.0
      %3011 = vmatpush1.msra.mxu0 0.0
      %3012 = vmatprep.subr.mxu0 0.0
      %3013 = vmatpush1.msra.mxu0 0.0
      %3014 = vmatprep.subr.mxu0 0.0
      %3015 = vmatpush1.msra.mxu0 0.0
      %3016 = vmatprep.subr.mxu0 0.0
      %3017 = vmatpush1.msra.mxu0 0.0
      %3018 = vmatprep.subr.mxu0 0.0
      %3019 = vmatpush1.msra.mxu0 0.0
      %3020 = vmatprep.subr.mxu0 0.0
      %3021 = vmatpush1.msra.mxu0 0.0
      %3022 = vmatprep.subr.mxu0 0.0
      %3023 = vmatpush1.msra.mxu0 0.0
      %3024 = vmatprep.subr.mxu0 0.0
      %3025 = vmatpush1.msra.mxu0 0.0
      %3026 = vmatprep.subr.mxu0 0.0
      %3027 = vmatpush1.msra.mxu0 0.0
      %3028 = vmatprep.subr.mxu0 0.0
      %3029 = vmatpush1.msra.mxu0 0.0
      %3030 = vmatprep.subr.mxu0 0.0
      %3031 = vmatpush1.msra.mxu0 0.0
      %3032 = vmatprep.subr.mxu0 0.0
      %3033 = vmatpush1.msra.mxu0 0.0
      %3034 = vmatprep.subr.mxu0 0.0
      %3035 = vmatpush1.msra.mxu0 0.0
      %3036 = vmatprep.subr.mxu0 0.0
      %3037 = vmatpush1.msra.mxu0 0.0
      %3038 = vmatprep.subr.mxu0 0.0
      %3039 = vmatpush1.msra.mxu0 0.0
      %3040 = vmatprep.subr.mxu0 0.0
      %3041 = vmatpush1.msra.mxu0 0.0
      %3042 = vmatprep.subr.mxu0 0.0
      %3043 = vmatpush1.msra.mxu0 0.0
      %3044 = vmatprep.subr.mxu0 0.0
      %3045 = vmatpush1.msra.mxu0 0.0
      %3046 = vmatprep.subr.mxu0 0.0
      %3047 = vmatpush1.msra.mxu0 0.0
      %3048 = vmatprep.subr.mxu0 0.0
      %3049 = vmatpush1.msra.mxu0 0.0
      %3050 = vmatprep.subr.mxu0 0.0
      %3051 = vmatpush1.msra.mxu0 0.0
      %3052 = vmatprep.subr.mxu0 0.0
      %3053 = vmatpush1.msra.mxu0 0.0
      %3054 = vmatprep.subr.mxu0 0.0
      %3055 = vmatpush1.msra.mxu0 0.0
      %3056 = vmatprep.subr.mxu0 0.0
      %3057 = vmatpush1.msra.mxu0 0.0
      %3058 = vmatprep.mubr.f32.mxu0 0.0
      %v3059 = vand.u32 %v2735, 4294901760
      %v3060 = vsub.f32 %v2735, %v3059
      %v3061 = vand.u32 %v3060, 4294901760
      %3062 = vmatmul.mubr.f32.gmra.mrb[0].mxu0 %v3061
      %v3063 = vpop.f32.mrb[0].mxu0
      %v3064 = vadd.f32 %v2986, %v3063
      %v3065 = vpop.f32.mrb[0].mxu0
      %v3066 = vadd.f32 %v2988, %v3065
      %3067 = vdwg.mxu0
      %v3068 = vand.u32 %v2730, 4294901760
      %v3069 = vsub.f32 %v2730, %v3068
      %v3070 = vand.u32 %v3069, 4294901760
      %3071 = vmatprep.subr.mxu0 %v3070
      %v3072 = vand.u32 %v2729, 4294901760
      %v3073 = vsub.f32 %v2729, %v3072
      %v3074 = vand.u32 %v3073, 4294901760
      %3075 = vmatpush1.msra.mxu0 %v3074
      %v3076 = vand.u32 %v2732, 4294901760
      %v3077 = vsub.f32 %v2732, %v3076
      %v3078 = vand.u32 %v3077, 4294901760
      %3079 = vmatprep.subr.mxu0 %v3078
      %v3080 = vand.u32 %v2731, 4294901760
      %v3081 = vsub.f32 %v2731, %v3080
      %v3082 = vand.u32 %v3081, 4294901760
      %3083 = vmatpush1.msra.mxu0 %v3082
      %3084 = vmatprep.subr.mxu0 0.0
      %3085 = vmatpush1.msra.mxu0 0.0
      %3086 = vmatprep.subr.mxu0 0.0
      %3087 = vmatpush1.msra.mxu0 0.0
      %3088 = vmatprep.subr.mxu0 0.0
      %3089 = vmatpush1.msra.mxu0 0.0
      %3090 = vmatprep.subr.mxu0 0.0
      %3091 = vmatpush1.msra.mxu0 0.0
      %3092 = vmatprep.subr.mxu0 0.0
      %3093 = vmatpush1.msra.mxu0 0.0
      %3094 = vmatprep.subr.mxu0 0.0
      %3095 = vmatpush1.msra.mxu0 0.0
      %3096 = vmatprep.subr.mxu0 0.0
      %3097 = vmatpush1.msra.mxu0 0.0
      %3098 = vmatprep.subr.mxu0 0.0
      %3099 = vmatpush1.msra.mxu0 0.0
      %3100 = vmatprep.subr.mxu0 0.0
      %3101 = vmatpush1.msra.mxu0 0.0
      %3102 = vmatprep.subr.mxu0 0.0
      %3103 = vmatpush1.msra.mxu0 0.0
      %3104 = vmatprep.subr.mxu0 0.0
      %3105 = vmatpush1.msra.mxu0 0.0
      %3106 = vmatprep.subr.mxu0 0.0
      %3107 = vmatpush1.msra.mxu0 0.0
      %3108 = vmatprep.subr.mxu0 0.0
      %3109 = vmatpush1.msra.mxu0 0.0
      %3110 = vmatprep.subr.mxu0 0.0
      %3111 = vmatpush1.msra.mxu0 0.0
      %3112 = vmatprep.subr.mxu0 0.0
      %3113 = vmatpush1.msra.mxu0 0.0
      %3114 = vmatprep.subr.mxu0 0.0
      %3115 = vmatpush1.msra.mxu0 0.0
      %3116 = vmatprep.subr.mxu0 0.0
      %3117 = vmatpush1.msra.mxu0 0.0
      %3118 = vmatprep.subr.mxu0 0.0
      %3119 = vmatpush1.msra.mxu0 0.0
      %3120 = vmatprep.subr.mxu0 0.0
      %3121 = vmatpush1.msra.mxu0 0.0
      %3122 = vmatprep.subr.mxu0 0.0
      %3123 = vmatpush1.msra.mxu0 0.0
      %3124 = vmatprep.subr.mxu0 0.0
      %3125 = vmatpush1.msra.mxu0 0.0
      %3126 = vmatprep.subr.mxu0 0.0
      %3127 = vmatpush1.msra.mxu0 0.0
      %3128 = vmatprep.subr.mxu0 0.0
      %3129 = vmatpush1.msra.mxu0 0.0
      %3130 = vmatprep.subr.mxu0 0.0
      %3131 = vmatpush1.msra.mxu0 0.0
      %3132 = vmatprep.subr.mxu0 0.0
      %3133 = vmatpush1.msra.mxu0 0.0
      %3134 = vmatprep.subr.mxu0 0.0
      %3135 = vmatpush1.msra.mxu0 0.0
      %3136 = vmatprep.subr.mxu0 0.0
      %3137 = vmatpush1.msra.mxu0 0.0
      %3138 = vmatprep.subr.mxu0 0.0
      %3139 = vmatpush1.msra.mxu0 0.0
      %3140 = vmatprep.subr.mxu0 0.0
      %3141 = vmatpush1.msra.mxu0 0.0
      %3142 = vmatprep.subr.mxu0 0.0
      %3143 = vmatpush1.msra.mxu0 0.0
      %3144 = vmatprep.mubr.f32.mxu0 0.0
      %v3145 = vand.u32 %v2735, 4294901760
      %3146 = vmatmul.mubr.f32.gmra.mrb[0].mxu0 %v3145
      %v3147 = vpop.f32.mrb[0].mxu0
      %v3148 = vadd.f32 %v3064, %v3147
      %v3149 = vpop.f32.mrb[0].mxu0
      %v3150 = vadd.f32 %v3066, %v3149
      %3151 = vdwg.mxu0
      %v3152 = vand.u32 %v2730, 4294901760
      %3153 = vmatprep.subr.mxu0 %v3152
      %v3154 = vand.u32 %v2729, 4294901760
      %3155 = vmatpush1.msra.mxu0 %v3154
      %v3156 = vand.u32 %v2732, 4294901760
      %3157 = vmatprep.subr.mxu0 %v3156
      %v3158 = vand.u32 %v2731, 4294901760
      %3159 = vmatpush1.msra.mxu0 %v3158
      %3160 = vmatprep.subr.mxu0 0.0
      %3161 = vmatpush1.msra.mxu0 0.0
      %3162 = vmatprep.subr.mxu0 0.0
      %3163 = vmatpush1.msra.mxu0 0.0
      %3164 = vmatprep.subr.mxu0 0.0
      %3165 = vmatpush1.msra.mxu0 0.0
      %3166 = vmatprep.subr.mxu0 0.0
      %3167 = vmatpush1.msra.mxu0 0.0
      %3168 = vmatprep.subr.mxu0 0.0
      %3169 = vmatpush1.msra.mxu0 0.0
      %3170 = vmatprep.subr.mxu0 0.0
      %3171 = vmatpush1.msra.mxu0 0.0
      %3172 = vmatprep.subr.mxu0 0.0
      %3173 = vmatpush1.msra.mxu0 0.0
      %3174 = vmatprep.subr.mxu0 0.0
      %3175 = vmatpush1.msra.mxu0 0.0
      %3176 = vmatprep.subr.mxu0 0.0
      %3177 = vmatpush1.msra.mxu0 0.0
      %3178 = vmatprep.subr.mxu0 0.0
      %3179 = vmatpush1.msra.mxu0 0.0
      %3180 = vmatprep.subr.mxu0 0.0
      %3181 = vmatpush1.msra.mxu0 0.0
      %3182 = vmatprep.subr.mxu0 0.0
      %3183 = vmatpush1.msra.mxu0 0.0
      %3184 = vmatprep.subr.mxu0 0.0
      %3185 = vmatpush1.msra.mxu0 0.0
      %3186 = vmatprep.subr.mxu0 0.0
      %3187 = vmatpush1.msra.mxu0 0.0
      %3188 = vmatprep.subr.mxu0 0.0
      %3189 = vmatpush1.msra.mxu0 0.0
      %3190 = vmatprep.subr.mxu0 0.0
      %3191 = vmatpush1.msra.mxu0 0.0
      %3192 = vmatprep.subr.mxu0 0.0
      %3193 = vmatpush1.msra.mxu0 0.0
      %3194 = vmatprep.subr.mxu0 0.0
      %3195 = vmatpush1.msra.mxu0 0.0
      %3196 = vmatprep.subr.mxu0 0.0
      %3197 = vmatpush1.msra.mxu0 0.0
      %3198 = vmatprep.subr.mxu0 0.0
      %3199 = vmatpush1.msra.mxu0 0.0
      %3200 = vmatprep.subr.mxu0 0.0
      %3201 = vmatpush1.msra.mxu0 0.0
      %3202 = vmatprep.subr.mxu0 0.0
      %3203 = vmatpush1.msra.mxu0 0.0
      %3204 = vmatprep.subr.mxu0 0.0
      %3205 = vmatpush1.msra.mxu0 0.0
      %3206 = vmatprep.subr.mxu0 0.0
      %3207 = vmatpush1.msra.mxu0 0.0
      %3208 = vmatprep.subr.mxu0 0.0
      %3209 = vmatpush1.msra.mxu0 0.0
      %3210 = vmatprep.subr.mxu0 0.0
      %3211 = vmatpush1.msra.mxu0 0.0
      %3212 = vmatprep.subr.mxu0 0.0
      %3213 = vmatpush1.msra.mxu0 0.0
      %3214 = vmatprep.subr.mxu0 0.0
      %3215 = vmatpush1.msra.mxu0 0.0
      %3216 = vmatprep.subr.mxu0 0.0
      %3217 = vmatpush1.msra.mxu0 0.0
      %3218 = vmatprep.subr.mxu0 0.0
      %3219 = vmatpush1.msra.mxu0 0.0
      %3220 = vmatprep.mubr.f32.mxu0 0.0
      %v3221 = vand.u32 %v2735, 4294901760
      %3222 = vmatmul.mubr.f32.gmra.mrb[0].mxu0 %v3221
      %v3223 = vpop.f32.mrb[0].mxu0
      %v3224 = vadd.f32 %v3148, %v3223
      %v3225 = vpop.f32.mrb[0].mxu0
      %v3226 = vadd.f32 %v3150, %v3225
      %3227 = vdwg.mxu0
      %v3228 = vmul.f32 %v2725, %v3224
      %v3229 = vmul.f32 %v2727, %v3226
      %v3230 = vmul.f32 %v3228, %v305
      %v3231 = vmul.f32 %v3229, %v306
      %3232 = vst [vmem:[%s304] sm:$0xff] %v3230
      %3233 = vst [vmem:[%s304 + $0x8] sm:$0xff] %v3231
      %p3234 = scmp.lt.s32.totalorder %s21, 1
      %s3235 = scalar_select %p3234, %s21, 1
      %p3236 = scmp.lt.s32.totalorder %s22, 3
      %s3237 = scalar_select %p3236, %s22, 3
      %s3238 = smul.addr %s3237, 2
      %s3239 = smul.addr %s3235, 8
      %s3240 = sadd.s32 %s3238, %s3239
      %s3241 = smul.addr %s3240, 8
      %s3242 = scalar_lea.vmem %s6, %s3241
      // Predicated region
      $region45: #{_ela_impl.1} parent=43 // pred_check
        %p3243 = pneg %p187
      $region46: #{_ela_impl.1} parent=43 // pred_check_branch
        %3245 = sbr.rel (%p3243) target = $region48
      $region47: #{_ela_impl.1} parent=43 // pred_region
        _
      $region48: #{_ela_impl.1} parent=43 // pred_fallthru
        _
    $region44: #{_ela_impl.1} parent=5 // pred_fallthru
      _
    %p3246 = scmp.le.s32.totalorder 2, %s12
    // Predicated region
    $region49: #{_ela_impl.1} parent=5 // pred_check
      %p3247 = pneg %p3246
    $region50: #{_ela_impl.1} parent=5 // pred_check_branch
      %3249 = sbr.rel (%p3247) target = $region52
    $region51: #{_ela_impl.1} parent=5 // pred_region
      %s3250 = ssub.s32 %s12, 2
      // Predicated region
      $region53: #{_ela_impl.1} parent=51 // pred_check
        %p3251 = pneg %p193
      $region54: #{_ela_impl.1} parent=51 // pred_check_branch
        %3253 = sbr.rel (%p3251) target = $region56
      $region55: #{_ela_impl.1} parent=51 // pred_region
        %p3254 = scmp.lt.s32.totalorder %s23, 1
        %s3255 = scalar_select %p3254, %s23, 1
        %p3256 = scmp.lt.s32.totalorder %s24, 3
        %s3257 = scalar_select %p3256, %s24, 3
        %s3258 = smul.addr %s3257, 2
        %s3259 = smul.addr %s3255, 8
        %s3260 = sadd.s32 %s3258, %s3259
        %s3261 = smul.addr %s3260, 8
        %s3262 = scalar_lea.vmem %s6, %s3261
      $region56: #{_ela_impl.1} parent=51 // pred_fallthru
        _
    $region52: #{_ela_impl.1} parent=5 // pred_fallthru
      _
  $region6: #{_ela_impl.1} parent=0 // loop_footer
    %s16 = sadd.s32 1, %s12
  $region7: #{_ela_impl.1} parent=0 // loop_footer_branch
    %11 = sbr.rel target = $region3
  $region8: #{_ela_impl.1} parent=0 // loop_exit
    _

</llo_original>
